<compile_context>
chip_gen: v5e
topology: v5e:2x2
jax: 0.10.0
libtpu: 0.0.40
codegen_flags: <defaults>
</compile_context>

<pallas_src>
import functools

import jax
import jax.numpy as jnp
from jax.experimental import pallas as pl
from jax.experimental.pallas import tpu as pltpu


def _block_diag3(w):
    """(cout, cin) -> (3*cout, 3*cin) block diagonal diag(W, W, W)."""
    cout, cin = w.shape
    z = jnp.zeros((cout, cin), w.dtype)
    return jnp.concatenate(
        [jnp.concatenate([w, z, z], axis=1),
         jnp.concatenate([z, w, z], axis=1),
         jnp.concatenate([z, z, w], axis=1)], axis=0)


# ----------------------------------------------------------------------------
# Main kernel: grid = (batch, point-split, point-tile).  Channel-first layout.
#   x_ref  : (9, TN) bf16      [points | colors | normals] channel groups
#   w1 (192,9) b1 (192,1)      block-diag of conv1 (3->64), shared weights
#   w2 (384,192) b2 (384,1)    block-diag of conv2 (64->128)
#   w3 (512,384) b3 (512,1)
#   w4 (1024,512) b4 (1024,1)
#   pf_ref   : (576, TN) f32   rows 0:192 = pointfeat1, 192:576 = pointfeat2
#   gmax_ref : (1024, 1) f32   per-split running global max (resident over j)
# ----------------------------------------------------------------------------
def posenet_feat_kernel(n_points, first_pad_tile, has_pad,
                        x_ref, w1_ref, b1_ref, w2_ref, b2_ref,
                        w3_ref, b3_ref, w4_ref, b4_ref,
                        pf_ref, gmax_ref):
    j = pl.program_id(2)                                        # tile within split
    g = pl.program_id(1) * pl.num_programs(2) + j               # global tile index

    def mm(w, h):
        return jnp.dot(w, h, preferred_element_type=jnp.float32)

    x = x_ref[...]                                              # (9, TN) bf16

    # conv1 over the three channel groups, fused as one block-diag matmul.
    pf1 = jnp.maximum(mm(w1_ref[...], x) + b1_ref[...], 0.0)    # (192, TN) f32
    pf_ref[0:192, :] = pf1

    # conv2 (block-diag) -> pointfeat2
    pf2 = jnp.maximum(
        mm(w2_ref[...], pf1.astype(jnp.bfloat16)) + b2_ref[...], 0.0)  # (384, TN)
    pf_ref[192:576, :] = pf2

    # conv3 / conv4.  conv4's ReLU is folded into the (1024,1) reduction below
    # (relu(max(x)) == max(relu(x))), so h4 stays a pre-activation.
    h3 = jnp.maximum(
        mm(w3_ref[...], pf2.astype(jnp.bfloat16)) + b3_ref[...], 0.0)  # (512, TN)
    h4 = mm(w4_ref[...], h3.astype(jnp.bfloat16)) + b4_ref[...]        # (1024, TN)

    tn = h4.shape[1]
    if has_pad:
        # Only tiles that contain zero-padded columns pay for the mask.
        def masked_max():
            col = g * tn + jax.lax.broadcasted_iota(jnp.int32, h4.shape, 1)
            return jnp.max(jnp.where(col < n_points, h4, -jnp.inf),
                           axis=1, keepdims=True)

        def plain_max():
            return jnp.max(h4, axis=1, keepdims=True)

        tile_max = jax.lax.cond(g >= first_pad_tile, masked_max, plain_max)
    else:
        tile_max = jnp.max(h4, axis=1, keepdims=True)            # (1024, 1)

    tile_max = jnp.maximum(tile_max, 0.0)   # conv4 ReLU, applied post-reduction

    @pl.when(j == 0)
    def _():
        gmax_ref[...] = tile_max

    @pl.when(j > 0)
    def _():
        gmax_ref[...] = jnp.maximum(gmax_ref[...], tile_max)


# ----------------------------------------------------------------------------
# Assembly kernel: builds the exact PyTorch (1600, TN) tile directly so the
# broadcast global feature is never materialized by XLA.
# ----------------------------------------------------------------------------
def assemble_out_kernel(pf_ref, gmax_ref, out_ref):
    tn = pf_ref.shape[-1]
    out_ref[0:576, :] = pf_ref[...]
    out_ref[576:1600, :] = jnp.broadcast_to(gmax_ref[...], (1024, tn))


# ----------------------------------------------------------------------------
# Wrappers
# ----------------------------------------------------------------------------
def _posenet_feat_core(x, params, *, tn=None, point_splits=None):
    """Runs the main kernel.  Returns (pf_padded (B,576,n_pad) f32,
    gmax (B,1024,1) f32, tn, n_pad)."""
    w1, b1, w2, b2, w3, b3, w4, b4 = params
    B, C, N = x.shape
    assert C == 9

    # ---- point-axis tile ---------------------------------------------------
    if tn is None:
        if N >= 896:
            tn = 1024          # amortizes per-grid-step overhead on v6e/v7x
        elif N >= 448:
            tn = 512
        elif N >= 256:
            tn = 256
        elif N >= 128:
            tn = 128
        else:
            tn = N
    if tn % 128 != 0:          # lane rule: multiple of 128, or == full dim
        tn = N
    nt = -(-N // tn)

    # ---- optional point-axis split (second parallel grid axis) -------------
    # With only B marked parallel, B == 1 leaves one v7x TensorCore idle.
    if point_splits is None:
        point_splits = 2 if (B == 1 and nt >= 2) else 1
    S = max(1, min(point_splits, nt))
    nt = -(-nt // S) * S
    nj = nt // S
    n_pad = nt * tn

    if n_pad != N:
        x = jnp.pad(x, ((0, 0), (0, 0), (0, n_pad - N)))

    # ---- bf16 operands (f32 accumulation happens on the MXU) ---------------
    xb = x.astype(jnp.bfloat16)
    w1b = _block_diag3(w1).astype(jnp.bfloat16)      # (192, 9)
    b1b = jnp.tile(b1, (3, 1))                       # (192, 1) f32
    w2b = _block_diag3(w2).astype(jnp.bfloat16)      # (384, 192)
    b2b = jnp.tile(b2, (3, 1))                       # (384, 1) f32
    w3b = w3.astype(jnp.bfloat16)                    # (512, 384)
    w4b = w4.astype(jnp.bfloat16)                    # (1024, 512)

    def wspec(arr):
        nd = arr.ndim
        return pl.BlockSpec(arr.shape, lambda b, s, j, _nd=nd: (0,) * _nd)

    x_spec = pl.BlockSpec((pl.Squeezed(), 9, tn),
                          lambda b, s, j: (b, 0, s * nj + j))
    pf_spec = pl.BlockSpec((pl.Squeezed(), 576, tn),
                           lambda b, s, j: (b, 0, s * nj + j))
    gmax_spec = pl.BlockSpec((pl.Squeezed(), pl.Squeezed(), 1024, 1),
                             lambda b, s, j: (b, s, 0, 0))

    has_pad = n_pad != N
    first_pad_tile = N // tn        # tiles >= this contain padded columns
    kernel = functools.partial(posenet_feat_kernel, N, first_pad_tile, has_pad)

    pf, gmax = pl.pallas_call(
        kernel,
        out_shape=(jax.ShapeDtypeStruct((B, 576, n_pad), jnp.float32),
                   jax.ShapeDtypeStruct((B, S, 1024, 1), jnp.float32)),
        grid_spec=pltpu.PrefetchScalarGridSpec(
            num_scalar_prefetch=0,
            grid=(B, S, nj),
            in_specs=[x_spec,
                      wspec(w1b), wspec(b1b), wspec(w2b), wspec(b2b),
                      wspec(w3b), wspec(b3), wspec(w4b), wspec(b4)],
            out_specs=(pf_spec, gmax_spec),
        ),
        compiler_params=pltpu.CompilerParams(
            dimension_semantics=("parallel", "parallel", "arbitrary"),
            vmem_limit_bytes=48 * 1024 * 1024),
    )(xb, w1b, b1b, w2b, b2b, w3b, b3, w4b, b4)

    # Combine the per-split partial maxes (tiny (B, S, 1024, 1) reduce).
    gmax = jnp.max(gmax, axis=1)                     # (B, 1024, 1)
    return pf, gmax, tn, n_pad


def posenet_feat_split(x, params, *, tn=None, point_splits=None):
    """x: (B, 9, N) f32.  Returns (pointfeat (B,576,N) f32, global_max
    (B,1024,1) f32).  Preferred API: never materializes the N-broadcast."""
    B, _, N = x.shape
    pf, gmax, _, n_pad = _posenet_feat_core(x, params, tn=tn,
                                            point_splits=point_splits)
    if n_pad != N:
        pf = pf[:, :, :N]
    return pf, gmax


def posenet_feat(x, params, *, tn=None, point_splits=None):
    """Exact PyTorch-interface output (B, 1600, N): [pointfeat1, pointfeat2,
    broadcast global max].  Assembly is a dedicated lightweight kernel."""
    B, _, N = x.shape
    pf, gmax, tn_u, n_pad = _posenet_feat_core(x, params, tn=tn,
                                               point_splits=point_splits)
    nt = n_pad // tn_u
    out = pl.pallas_call(
        assemble_out_kernel,
        out_shape=jax.ShapeDtypeStruct((B, 1600, n_pad), jnp.float32),
        grid_spec=pltpu.PrefetchScalarGridSpec(
            num_scalar_prefetch=0,
            grid=(B, nt),
            in_specs=[pl.BlockSpec((pl.Squeezed(), 576, tn_u),
                                   lambda b, j: (b, 0, j)),
                      pl.BlockSpec((pl.Squeezed(), 1024, 1),
                                   lambda b, j: (b, 0, 0))],
            out_specs=pl.BlockSpec((pl.Squeezed(), 1600, tn_u),
                                   lambda b, j: (b, 0, j)),
        ),
        compiler_params=pltpu.CompilerParams(
            dimension_semantics=("parallel", "parallel"),
            vmem_limit_bytes=48 * 1024 * 1024),
    )(pf, gmax)
    if n_pad != N:
        out = out[:, :, :N]
    return out


# ----------------------------------------------------------------------------
# Pure-JAX reference (mirrors the bf16-compute / f32-accumulate recipe)
# ----------------------------------------------------------------------------
def posenet_feat_ref(x, params):
    w1, b1, w2, b2, w3, b3, w4, b4 = params
    bf16, f32 = jnp.bfloat16, jnp.float32

    def conv_relu(h_bf16, w, b):
        y = jnp.einsum('co,bon->bcn', w.astype(bf16), h_bf16,
                       preferred_element_type=f32) + b[None]
        return jnp.maximum(y, 0.0)

    xb = x.astype(bf16)
    groups = [xb[:, 3 * g:3 * g + 3, :] for g in range(3)]
    f1 = [conv_relu(g, w1, b1) for g in groups]                 # (B,64,N) f32
    pf1 = jnp.concatenate(f1, axis=1)                           # (B,192,N)
    f2 = [conv_relu(h.astype(bf16), w2, b2) for h in f1]
    pf2 = jnp.concatenate(f2, axis=1)                           # (B,384,N)
    h3 = conv_relu(pf2.astype(bf16), w3, b3)                    # (B,512,N)
    h4 = conv_relu(h3.astype(bf16), w4, b4)                     # (B,1024,N)
    gmax = jnp.max(h4, axis=2, keepdims=True)
    gmax_b = jnp.broadcast_to(gmax, h4.shape)
    return jnp.concatenate([pf1, pf2, gmax_b], axis=1)          # (B,1600,N)


def init_params(key):
    """Synthetic weights matching Conv1d(cin, cout, 1):
    w stored as (cout, cin) == torch weight[:, :, 0]; b as (cout, 1)."""
    shapes = [(3, 64), (64, 128), (384, 512), (512, 1024)]
    params = []
    for cin, cout in shapes:
        kw, kb, key = jax.random.split(key, 3)
        scale = 1.0 / jnp.sqrt(jnp.float32(cin))
        w = jax.random.uniform(kw, (cout, cin), jnp.float32, -scale, scale)
        b = jax.random.uniform(kb, (cout, 1), jnp.float32, -scale, scale)
        params += [w, b]
    return tuple(params)


if __name__ == "__main__":
    key = jax.random.PRNGKey(0)
    k1, k2, k3, kp = jax.random.split(key, 4)
    params = init_params(kp)

    # Case 1: aligned N, two point tiles -> running-max accumulator across tiles.
    B, N = 2, 512
    x = jax.random.normal(k1, (B, 9, N), jnp.float32)
    out = jax.block_until_ready(posenet_feat(x, params, tn=256))
    ref = posenet_feat_ref(x, params)
    assert out.shape == (B, 1600, N), out.shape
    assert jnp.allclose(out, ref, atol=1e-2, rtol=1e-2), "mismatch (case 1)"

    # Case 2: ragged N -> tail masking gated to the padded tile only.
    N2 = 300
    x2 = jax.random.normal(k2, (B, 9, N2), jnp.float32)
    out2 = jax.block_until_ready(posenet_feat(x2, params, tn=256))
    ref2 = posenet_feat_ref(x2, params)
    assert out2.shape == (B, 1600, N2), out2.shape
    assert jnp.allclose(out2, ref2, atol=1e-2, rtol=1e-2), "mismatch (case 2)"

    # Case 3: B=1 -> point axis split across two parallel grid programs
    # (dual-TensorCore path on v7x), ragged N with a fully-padded tail tile.
    N3 = 300
    x3 = jax.random.normal(k3, (1, 9, N3), jnp.float32)
    pf3, gmax3 = posenet_feat_split(x3, params, tn=128)
    out3 = jax.block_until_ready(posenet_feat(x3, params, tn=128))
    ref3 = posenet_feat_ref(x3, params)
    assert pf3.shape == (1, 576, N3) and gmax3.shape == (1, 1024, 1)
    assert out3.shape == (1, 1600, N3), out3.shape
    assert jnp.allclose(out3, ref3, atol=1e-2, rtol=1e-2), "mismatch (case 3)"
    assert jnp.allclose(gmax3, ref3[:, 576:, :1], atol=1e-2, rtol=1e-2), \
        "global max mismatch (case 3)"

    print("KERNEL_OK")
</pallas_src>

<mosaic_0001>
module attributes {stable_mosaic.version = 11 : i64} {
  func.func @posenet_feat_kernel(%arg0: i32, %arg1: i32, %arg2: i32, %arg3: memref<1x9x256xbf16, #tpu.memory_space<vmem>>, %arg4: memref<192x9xbf16, #tpu.memory_space<vmem>>, %arg5: memref<192x1xf32, #tpu.memory_space<vmem>>, %arg6: memref<384x192xbf16, #tpu.memory_space<vmem>>, %arg7: memref<384x1xf32, #tpu.memory_space<vmem>>, %arg8: memref<512x384xbf16, #tpu.memory_space<vmem>>, %arg9: memref<512x1xf32, #tpu.memory_space<vmem>>, %arg10: memref<1024x512xbf16, #tpu.memory_space<vmem>>, %arg11: memref<1024x1xf32, #tpu.memory_space<vmem>>, %arg12: memref<1x576x256xf32, #tpu.memory_space<vmem>>, %arg13: memref<1x1x1024x1xf32, #tpu.memory_space<vmem>>) attributes {dimension_semantics = [#tpu.dimension_semantics<parallel>, #tpu.dimension_semantics<parallel>, #tpu.dimension_semantics<arbitrary>], iteration_bounds = array<i64: 2, 1, 2>, scalar_prefetch = 0 : i64, scratch_operands = 0 : i64, tpu.core_type = #tpu.core_type<tc>, window_params = [{transform_indices = @transform_0, window_bounds = array<i64: 1, 9, 256>}, {pipeline_mode = #tpu.pipeline_mode<synchronous>, transform_indices = @transform_1, window_bounds = array<i64: 192, 9>}, {pipeline_mode = #tpu.pipeline_mode<synchronous>, transform_indices = @transform_2, window_bounds = array<i64: 192, 1>}, {pipeline_mode = #tpu.pipeline_mode<synchronous>, transform_indices = @transform_3, window_bounds = array<i64: 384, 192>}, {pipeline_mode = #tpu.pipeline_mode<synchronous>, transform_indices = @transform_4, window_bounds = array<i64: 384, 1>}, {pipeline_mode = #tpu.pipeline_mode<synchronous>, transform_indices = @transform_5, window_bounds = array<i64: 512, 384>}, {pipeline_mode = #tpu.pipeline_mode<synchronous>, transform_indices = @transform_6, window_bounds = array<i64: 512, 1>}, {pipeline_mode = #tpu.pipeline_mode<synchronous>, transform_indices = @transform_7, window_bounds = array<i64: 1024, 512>}, {pipeline_mode = #tpu.pipeline_mode<synchronous>, transform_indices = @transform_8, window_bounds = array<i64: 1024, 1>}, {transform_indices = @transform_9, window_bounds = array<i64: 1, 576, 256>}, {transform_indices = @transform_10, window_bounds = array<i64: 1, 1, 1024, 1>}]} {
    %c0 = arith.constant 0 : index
    %c0_0 = arith.constant 0 : index
    %c0_1 = arith.constant 0 : index
    %0 = vector.load %arg3[%c0, %c0_0, %c0_1] : memref<1x9x256xbf16, #tpu.memory_space<vmem>>, vector<1x9x256xbf16>
    %1 = vector.shape_cast %0 : vector<1x9x256xbf16> to vector<9x256xbf16>
    %c0_2 = arith.constant 0 : index
    %c0_3 = arith.constant 0 : index
    %2 = vector.load %arg4[%c0_2, %c0_3] : memref<192x9xbf16, #tpu.memory_space<vmem>>, vector<192x9xbf16>
    %cst = arith.constant dense<0.000000e+00> : vector<192x256xf32>
    %3 = tpu.matmul %2, %1, %cst {dimension_numbers = #tpu.dot_dimension_numbers<[1], [0], [0], [1], [0, 0, 1, 1], [], []>} : vector<192x9xbf16>, vector<9x256xbf16>, vector<192x256xf32> -> vector<192x256xf32>
    %c0_4 = arith.constant 0 : index
    %c0_5 = arith.constant 0 : index
    %4 = vector.load %arg5[%c0_4, %c0_5] : memref<192x1xf32, #tpu.memory_space<vmem>>, vector<192x1xf32>
    %5 = vector.broadcast %4 : vector<192x1xf32> to vector<192x256xf32>
    %6 = arith.addf %3, %5 : vector<192x256xf32>
    %cst_6 = arith.constant 0.000000e+00 : f32
    %7 = vector.broadcast %cst_6 : f32 to vector<192x256xf32>
    %8 = arith.maximumf %6, %7 : vector<192x256xf32>
    %c0_7 = arith.constant 0 : index
    %c0_8 = arith.constant 0 : index
    %c0_9 = arith.constant 0 : index
    %9 = vector.load %arg12[%c0_7, %c0_8, %c0_9] : memref<1x576x256xf32, #tpu.memory_space<vmem>>, vector<1x192x256xf32>
    %10 = vector.shape_cast %9 : vector<1x192x256xf32> to vector<192x256xf32>
    %11 = vector.shape_cast %8 : vector<192x256xf32> to vector<1x192x256xf32>
    tpu.vector_store %arg12[%c0_7, %c0_8, %c0_9], %11 {strides = array<i32>} : memref<1x576x256xf32, #tpu.memory_space<vmem>>, vector<1x192x256xf32>,
    %c0_10 = arith.constant 0 : index
    %c0_11 = arith.constant 0 : index
    %12 = vector.load %arg6[%c0_10, %c0_11] : memref<384x192xbf16, #tpu.memory_space<vmem>>, vector<384x192xbf16>
    %13 = arith.truncf %8 : vector<192x256xf32> to vector<192x256xbf16>
    %cst_12 = arith.constant dense<0.000000e+00> : vector<384x256xf32>
    %14 = tpu.matmul %12, %13, %cst_12 {dimension_numbers = #tpu.dot_dimension_numbers<[1], [0], [0], [1], [0, 0, 1, 1], [], []>} : vector<384x192xbf16>, vector<192x256xbf16>, vector<384x256xf32> -> vector<384x256xf32>
    %c0_13 = arith.constant 0 : index
    %c0_14 = arith.constant 0 : index
    %15 = vector.load %arg7[%c0_13, %c0_14] : memref<384x1xf32, #tpu.memory_space<vmem>>, vector<384x1xf32>
    %16 = vector.broadcast %15 : vector<384x1xf32> to vector<384x256xf32>
    %17 = arith.addf %14, %16 : vector<384x256xf32>
    %cst_15 = arith.constant 0.000000e+00 : f32
    %18 = vector.broadcast %cst_15 : f32 to vector<384x256xf32>
    %19 = arith.maximumf %17, %18 : vector<384x256xf32>
    %c0_16 = arith.constant 0 : index
    %c192 = arith.constant 192 : index
    %c0_17 = arith.constant 0 : index
    %20 = vector.load %arg12[%c0_16, %c192, %c0_17] : memref<1x576x256xf32, #tpu.memory_space<vmem>>, vector<1x384x256xf32>
    %21 = vector.shape_cast %20 : vector<1x384x256xf32> to vector<384x256xf32>
    %22 = vector.shape_cast %19 : vector<384x256xf32> to vector<1x384x256xf32>
    tpu.vector_store %arg12[%c0_16, %c192, %c0_17], %22 {strides = array<i32>} : memref<1x576x256xf32, #tpu.memory_space<vmem>>, vector<1x384x256xf32>,
    %c0_18 = arith.constant 0 : index
    %c0_19 = arith.constant 0 : index
    %23 = vector.load %arg8[%c0_18, %c0_19] : memref<512x384xbf16, #tpu.memory_space<vmem>>, vector<512x384xbf16>
    %24 = arith.truncf %19 : vector<384x256xf32> to vector<384x256xbf16>
    %cst_20 = arith.constant dense<0.000000e+00> : vector<512x256xf32>
    %25 = tpu.matmul %23, %24, %cst_20 {dimension_numbers = #tpu.dot_dimension_numbers<[1], [0], [0], [1], [0, 0, 1, 1], [], []>} : vector<512x384xbf16>, vector<384x256xbf16>, vector<512x256xf32> -> vector<512x256xf32>
    %c0_21 = arith.constant 0 : index
    %c0_22 = arith.constant 0 : index
    %26 = vector.load %arg9[%c0_21, %c0_22] : memref<512x1xf32, #tpu.memory_space<vmem>>, vector<512x1xf32>
    %27 = vector.broadcast %26 : vector<512x1xf32> to vector<512x256xf32>
    %28 = arith.addf %25, %27 : vector<512x256xf32>
    %cst_23 = arith.constant 0.000000e+00 : f32
    %29 = vector.broadcast %cst_23 : f32 to vector<512x256xf32>
    %30 = arith.maximumf %28, %29 : vector<512x256xf32>
    %c0_24 = arith.constant 0 : index
    %c0_25 = arith.constant 0 : index
    %31 = vector.load %arg10[%c0_24, %c0_25] : memref<1024x512xbf16, #tpu.memory_space<vmem>>, vector<1024x512xbf16>
    %32 = arith.truncf %30 : vector<512x256xf32> to vector<512x256xbf16>
    %cst_26 = arith.constant dense<0.000000e+00> : vector<1024x256xf32>
    %33 = tpu.matmul %31, %32, %cst_26 {dimension_numbers = #tpu.dot_dimension_numbers<[1], [0], [0], [1], [0, 0, 1, 1], [], []>} : vector<1024x512xbf16>, vector<512x256xbf16>, vector<1024x256xf32> -> vector<1024x256xf32>
    %c0_27 = arith.constant 0 : index
    %c0_28 = arith.constant 0 : index
    %34 = vector.load %arg11[%c0_27, %c0_28] : memref<1024x1xf32, #tpu.memory_space<vmem>>, vector<1024x1xf32>
    %35 = vector.broadcast %34 : vector<1024x1xf32> to vector<1024x256xf32>
    %36 = arith.addf %33, %35 : vector<1024x256xf32>
    %cst_29 = arith.constant dense<0xFF800000> : vector<1024xf32>
    %37 = vector.multi_reduction <maximumf>, %36, %cst_29 [1] : vector<1024x256xf32> to vector<1024xf32>
    %38 = vector.shape_cast %37 : vector<1024xf32> to vector<1024x1xf32>
    %cst_30 = arith.constant 0.000000e+00 : f32
    %39 = vector.broadcast %cst_30 : f32 to vector<1024x1xf32>
    %40 = arith.maximumf %38, %39 : vector<1024x1xf32>
    %c0_i32 = arith.constant 0 : i32
    %41 = arith.cmpi eq, %arg2, %c0_i32 : i32
    %42 = arith.extui %41 : i1 to i32
    %c0_i32_31 = arith.constant 0 : i32
    %43 = arith.cmpi ne, %42, %c0_i32_31 : i32
    scf.if %43 {
      %c0_34 = arith.constant 0 : index
      %c0_35 = arith.constant 0 : index
      %c0_36 = arith.constant 0 : index
      %c0_37 = arith.constant 0 : index
      %47 = vector.load %arg13[%c0_34, %c0_35, %c0_36, %c0_37] : memref<1x1x1024x1xf32, #tpu.memory_space<vmem>>, vector<1x1x1024x1xf32>
      %48 = vector.shape_cast %47 : vector<1x1x1024x1xf32> to vector<1024x1xf32>
      %49 = vector.shape_cast %40 : vector<1024x1xf32> to vector<1x1x1024x1xf32>
      tpu.vector_store %arg13[%c0_34, %c0_35, %c0_36, %c0_37], %49 {strides = array<i32>} : memref<1x1x1024x1xf32, #tpu.memory_space<vmem>>, vector<1x1x1024x1xf32>,
    } else {
    }
    %c0_i32_32 = arith.constant 0 : i32
    %44 = arith.cmpi sgt, %arg2, %c0_i32_32 : i32
    %45 = arith.extui %44 : i1 to i32
    %c0_i32_33 = arith.constant 0 : i32
    %46 = arith.cmpi ne, %45, %c0_i32_33 : i32
    scf.if %46 {
      %c0_34 = arith.constant 0 : index
      %c0_35 = arith.constant 0 : index
      %c0_36 = arith.constant 0 : index
      %c0_37 = arith.constant 0 : index
      %47 = vector.load %arg13[%c0_34, %c0_35, %c0_36, %c0_37] : memref<1x1x1024x1xf32, #tpu.memory_space<vmem>>, vector<1x1x1024x1xf32>
      %48 = vector.shape_cast %47 : vector<1x1x1024x1xf32> to vector<1024x1xf32>
      %49 = arith.maximumf %48, %40 : vector<1024x1xf32>
      %c0_38 = arith.constant 0 : index
      %c0_39 = arith.constant 0 : index
      %c0_40 = arith.constant 0 : index
      %c0_41 = arith.constant 0 : index
      %50 = vector.load %arg13[%c0_38, %c0_39, %c0_40, %c0_41] : memref<1x1x1024x1xf32, #tpu.memory_space<vmem>>, vector<1x1x1024x1xf32>
      %51 = vector.shape_cast %50 : vector<1x1x1024x1xf32> to vector<1024x1xf32>
      %52 = vector.shape_cast %49 : vector<1024x1xf32> to vector<1x1x1024x1xf32>
      tpu.vector_store %arg13[%c0_38, %c0_39, %c0_40, %c0_41], %52 {strides = array<i32>} : memref<1x1x1024x1xf32, #tpu.memory_space<vmem>>, vector<1x1x1024x1xf32>,
    } else {
    }
    return
  }
  func.func @transform_0(%arg0: i32, %arg1: i32, %arg2: i32) -> (i32, i32, i32) {
    %c2_i32 = arith.constant 2 : i32
    %0 = arith.muli %arg1, %c2_i32 : i32
    %1 = arith.addi %0, %arg2 : i32
    %c0_i32 = arith.constant 0 : i32
    %c0_i32_0 = arith.constant 0 : i32
    return %arg0, %c0_i32, %1 : i32, i32, i32
  }
  func.func @transform_1(%arg0: i32, %arg1: i32, %arg2: i32) -> (i32, i32) {
    %c0_i32 = arith.constant 0 : i32
    %c0_i32_0 = arith.constant 0 : i32
    %c0_i32_1 = arith.constant 0 : i32
    return %c0_i32, %c0_i32_0 : i32, i32
  }
  func.func @transform_2(%arg0: i32, %arg1: i32, %arg2: i32) -> (i32, i32) {
    %c0_i32 = arith.constant 0 : i32
    %c0_i32_0 = arith.constant 0 : i32
    %c0_i32_1 = arith.constant 0 : i32
    return %c0_i32, %c0_i32_0 : i32, i32
  }
  func.func @transform_3(%arg0: i32, %arg1: i32, %arg2: i32) -> (i32, i32) {
    %c0_i32 = arith.constant 0 : i32
    %c0_i32_0 = arith.constant 0 : i32
    %c0_i32_1 = arith.constant 0 : i32
    return %c0_i32, %c0_i32_0 : i32, i32
  }
  func.func @transform_4(%arg0: i32, %arg1: i32, %arg2: i32) -> (i32, i32) {
    %c0_i32 = arith.constant 0 : i32
    %c0_i32_0 = arith.constant 0 : i32
    %c0_i32_1 = arith.constant 0 : i32
    return %c0_i32, %c0_i32_0 : i32, i32
  }
  func.func @transform_5(%arg0: i32, %arg1: i32, %arg2: i32) -> (i32, i32) {
    %c0_i32 = arith.constant 0 : i32
    %c0_i32_0 = arith.constant 0 : i32
    %c0_i32_1 = arith.constant 0 : i32
    return %c0_i32, %c0_i32_0 : i32, i32
  }
  func.func @transform_6(%arg0: i32, %arg1: i32, %arg2: i32) -> (i32, i32) {
    %c0_i32 = arith.constant 0 : i32
    %c0_i32_0 = arith.constant 0 : i32
    %c0_i32_1 = arith.constant 0 : i32
    return %c0_i32, %c0_i32_0 : i32, i32
  }
  func.func @transform_7(%arg0: i32, %arg1: i32, %arg2: i32) -> (i32, i32) {
    %c0_i32 = arith.constant 0 : i32
    %c0_i32_0 = arith.constant 0 : i32
    %c0_i32_1 = arith.constant 0 : i32
    return %c0_i32, %c0_i32_0 : i32, i32
  }
  func.func @transform_8(%arg0: i32, %arg1: i32, %arg2: i32) -> (i32, i32) {
    %c0_i32 = arith.constant 0 : i32
    %c0_i32_0 = arith.constant 0 : i32
    %c0_i32_1 = arith.constant 0 : i32
    return %c0_i32, %c0_i32_0 : i32, i32
  }
  func.func @transform_9(%arg0: i32, %arg1: i32, %arg2: i32) -> (i32, i32, i32) {
    %c2_i32 = arith.constant 2 : i32
    %0 = arith.muli %arg1, %c2_i32 : i32
    %1 = arith.addi %0, %arg2 : i32
    %c0_i32 = arith.constant 0 : i32
    %c0_i32_0 = arith.constant 0 : i32
    return %arg0, %c0_i32, %1 : i32, i32, i32
  }
  func.func @transform_10(%arg0: i32, %arg1: i32, %arg2: i32) -> (i32, i32, i32, i32) {
    %c0_i32 = arith.constant 0 : i32
    %c0_i32_0 = arith.constant 0 : i32
    %c0_i32_1 = arith.constant 0 : i32
    return %arg0, %arg1, %c0_i32, %c0_i32_0 : i32, i32, i32, i32
  }
}

</mosaic_0001>

<llo_original>
// kernel: tpu_custom_call.1
$region0: #{tpu_custom_call.1}
  #allocation0 [shape = 'u32[]', space=smem, size = 0x4, offset = 0x4, fixed_abs, tag = 'smem constant byte address 0x4 - core index']
  #allocation1 [shape = 'u32[72,128]{1,0:T(1,128)}', space=vmem, size = 0x9000, scoped, tag = 'internal scratch']
  %s0 = inlined_call_operand.vmem [shape: bf16[2,9,512], index: 0, kind: input, shape index: {}]
  %s1 = inlined_call_operand.vmem [shape: bf16[192,9], index: 1, kind: input, shape index: {}]
  %s2 = inlined_call_operand.vmem [shape: f32[192,1], index: 2, kind: input, shape index: {}]
  %s3 = inlined_call_operand.vmem [shape: bf16[384,192], index: 3, kind: input, shape index: {}]
  %s4 = inlined_call_operand.vmem [shape: f32[384,1], index: 4, kind: input, shape index: {}]
  %s5 = inlined_call_operand.hbm [shape: bf16[512,384], index: 5, kind: input, shape index: {}]
  %s6 = inlined_call_operand.vmem [shape: f32[512,1], index: 6, kind: input, shape index: {}]
  %s7 = inlined_call_operand.hbm [shape: bf16[1024,512], index: 7, kind: input, shape index: {}]
  %s8 = inlined_call_operand.vmem [shape: f32[1024,1], index: 8, kind: input, shape index: {}]
  %s9 = inlined_call_operand.hbm [shape: f32[2,576,512], index: 9, kind: output, shape index: {0}]
  %s10 = inlined_call_operand.vmem [shape: f32[2,1,1024,1], index: 10, kind: output, shape index: {1}]
  %11 = xla_tuple %s9, %s10
  %s12 = sld [smem:[#allocation0]]
  $region131: #{tpu_custom_call.1} parent=0
    _
  %s14 = ssub.s32 1, %s12
  %s15 = scalar_select 0, %s14, %s12
  $region1: #{tpu_custom_call.1} parent=0
    #allocation2 [shape = 'u8[16384]{0}', space=vmem, size = 0x4000, scoped, tag = 'input window, operand 0']
    #allocation3 [shape = 'u8[393216]{0}', space=vmem, size = 0x60000, scoped, tag = 'input window, operand 5, single buffered']
    #allocation4 [shape = 's32[2]{0}', space=sflag, size = 0x8, scoped, tag = 'scoped memory for tpu_custom_call.1']
    #allocation5 [shape = 's32[2]{0}', space=sflag, size = 0x8, scoped, tag = 'scoped memory for tpu_custom_call.1']
    #allocation6 [shape = 'u8[1048576]{0}', space=vmem, size = 0x100000, scoped, tag = 'input window, operand 7, single buffered']
    #allocation7 [shape = 's32[1]{0}', space=sflag, size = 0x4, scoped, tag = 'scoped memory for tpu_custom_call.1']
    #allocation8 [shape = 'u8[1179648]{0}', space=vmem, size = 0x120000, scoped, tag = 'output window, operand 0']
    %16 = vsyncpa [#allocation4], 0
    %17 = vsyncpa [#allocation7], 0
    %18 = vsyncpa [#allocation5], 0
    %s19 = scalar_lea.sflag [#allocation5], 1
    %20 = vsyncpa %s19, 0
    loop: start=0, step=1, limit=6
    $region2: #{tpu_custom_call.1} parent=1 // loop_pre_header
      _
    $region3: #{tpu_custom_call.1} parent=1 // loop_header
      %s22 = sphi 0, %s26
      %p23 = scmp.ge.s32.totalorder %s22, 6
      %s29 = sphi 0, %s48
      %s30 = sphi 0, %s44
      %s31 = sphi 0, %s40
      %s32 = sphi 0, %s29
      %s33 = sphi 0, %s30
      %s34 = sphi 0, %s31
      %s35 = sphi 0, %s32
      %s36 = sphi 0, %s33
      %s37 = sphi 0, %s34
      %s57 = sphi 0, %s59
      %s60 = sphi 0, %s57
      %s61 = sphi 0, %s60
      %s77 = sphi 0, %s61
      %s81 = sphi 0, %s81
      %s83 = sphi 0, %s81
      %s84 = sphi 0, %s83
      %s98 = sphi 0, %s84
      %s102 = sphi 0, %s102
      %s104 = sphi 0, %s102
      %s105 = sphi 0, %s104
      %s119 = sphi 0, %s105
      %s123 = sphi 0, %s123
      %s125 = sphi 0, %s123
      %s126 = sphi 0, %s125
      %s140 = sphi 0, %s126
      %s144 = sphi 0, %s144
      %s146 = sphi 0, %s144
      %s147 = sphi 0, %s146
      %s161 = sphi 0, %s147
      %s165 = sphi 0, %s165
      %s167 = sphi 0, %s165
      %s168 = sphi 0, %s167
      %s182 = sphi 0, %s168
      %s186 = sphi 0, %s186
      %s188 = sphi 0, %s186
      %s189 = sphi 0, %s188
      %s203 = sphi 0, %s189
      %s207 = sphi 0, %s207
      %s209 = sphi 0, %s207
      %s210 = sphi 0, %s209
      %s224 = sphi 0, %s210
      %s228 = sphi 0, %s228
      %s230 = sphi 0, %s228
      %s231 = sphi 0, %s230
      %s245 = sphi 0, %s231
      %s257 = sphi 0, %s259
      %s260 = sphi 0, %s257
      %s261 = sphi 0, %s260
      %s277 = sphi 0, %s261
      %s285 = sphi 0, %s287
      %s288 = sphi 0, %s285
      %s289 = sphi 0, %s288
      %s305 = sphi 0, %s289
    $region4: #{tpu_custom_call.1} parent=1 // loop_header_branch
      %25 = sbr.rel (%p23) target = $region8
    $region5: #{tpu_custom_call.1} parent=1 // loop_body
      %s27 = ssub.s32 %s22, 1
      %s28 = ssub.s32 %s22, 2
      %s38 = sadd.s32 1, %s31
      %p39 = scmp.ge.s32.totalorder %s38, 2
      %s40 = scalar_select %p39, 0, %s38
      %s41 = sadd.s32 1, %s30
      %s42 = scalar_select %p39, %s41, %s30
      %p43 = scmp.ge.s32.totalorder %s42, 1
      %s44 = scalar_select %p43, 0, %s42
      %s45 = sadd.s32 1, %s29
      %s46 = scalar_select %p43, %s45, %s29
      %p47 = scmp.ge.s32.totalorder %s46, 2
      %s48 = scalar_select %p47, 0, %s46
      %s49 = smul.u32 %s30, 2
      %s50 = sadd.s32 %s49, %s31
      %s51 = smul.u32 %s44, 2
      %s52 = sadd.s32 %s51, %s40
      %s53 = ssub.s32 %s29, %s48
      %s54 = ssub.s32 %s50, %s52
      %s55 = sor.u32 %s53, %s54
      %p56 = scmp.eq.s32.totalorder %s55, 0
      %s58 = sadd.s32 %s57, 1
      %s59 = scalar_select %p56, %s57, %s58
      %p62 = pneg %p56
      %p63 = scmp.eq.s32.totalorder %s22, 3
      %p64 = por %p62, %p63
      %p65 = scmp.ne.s32.totalorder %s57, %s60
      %p66 = scmp.eq.s32.totalorder %s22, 0
      %p67 = por %p65, %p66
      %p68 = scmp.ne.s32.totalorder %s57, %s60
      %p69 = scmp.eq.s32.totalorder %s27, 3
      %p70 = por %p68, %p69
      %p71 = scmp.ne.s32.totalorder %s60, %s61
      %p72 = scmp.eq.s32.totalorder %s27, 0
      %p73 = por %p71, %p72
      %p74 = scmp.ne.s32.totalorder %s60, %s61
      %p75 = scmp.eq.s32.totalorder %s28, 3
      %p76 = por %p74, %p75
      %p78 = scmp.ne.s32.totalorder %s61, %s77
      %p79 = scmp.eq.s32.totalorder %s28, 0
      %p80 = por %p78, %p79
      %s82 = sadd.s32 %s81, 1
      %p85 = scmp.eq.s32.totalorder %s22, 3
      %p86 = scmp.ne.s32.totalorder %s81, %s83
      %p87 = scmp.eq.s32.totalorder %s22, 0
      %p88 = por %p86, %p87
      %p89 = scmp.ne.s32.totalorder %s81, %s83
      %p90 = scmp.eq.s32.totalorder %s27, 3
      %p91 = por %p89, %p90
      %p92 = scmp.ne.s32.totalorder %s83, %s84
      %p93 = scmp.eq.s32.totalorder %s27, 0
      %p94 = por %p92, %p93
      %p95 = scmp.ne.s32.totalorder %s83, %s84
      %p96 = scmp.eq.s32.totalorder %s28, 3
      %p97 = por %p95, %p96
      %p99 = scmp.ne.s32.totalorder %s84, %s98
      %p100 = scmp.eq.s32.totalorder %s28, 0
      %p101 = por %p99, %p100
      %s103 = sadd.s32 %s102, 1
      %p106 = scmp.eq.s32.totalorder %s22, 3
      %p107 = scmp.ne.s32.totalorder %s102, %s104
      %p108 = scmp.eq.s32.totalorder %s22, 0
      %p109 = por %p107, %p108
      %p110 = scmp.ne.s32.totalorder %s102, %s104
      %p111 = scmp.eq.s32.totalorder %s27, 3
      %p112 = por %p110, %p111
      %p113 = scmp.ne.s32.totalorder %s104, %s105
      %p114 = scmp.eq.s32.totalorder %s27, 0
      %p115 = por %p113, %p114
      %p116 = scmp.ne.s32.totalorder %s104, %s105
      %p117 = scmp.eq.s32.totalorder %s28, 3
      %p118 = por %p116, %p117
      %p120 = scmp.ne.s32.totalorder %s105, %s119
      %p121 = scmp.eq.s32.totalorder %s28, 0
      %p122 = por %p120, %p121
      %s124 = sadd.s32 %s123, 1
      %p127 = scmp.eq.s32.totalorder %s22, 3
      %p128 = scmp.ne.s32.totalorder %s123, %s125
      %p129 = scmp.eq.s32.totalorder %s22, 0
      %p130 = por %p128, %p129
      %p131 = scmp.ne.s32.totalorder %s123, %s125
      %p132 = scmp.eq.s32.totalorder %s27, 3
      %p133 = por %p131, %p132
      %p134 = scmp.ne.s32.totalorder %s125, %s126
      %p135 = scmp.eq.s32.totalorder %s27, 0
      %p136 = por %p134, %p135
      %p137 = scmp.ne.s32.totalorder %s125, %s126
      %p138 = scmp.eq.s32.totalorder %s28, 3
      %p139 = por %p137, %p138
      %p141 = scmp.ne.s32.totalorder %s126, %s140
      %p142 = scmp.eq.s32.totalorder %s28, 0
      %p143 = por %p141, %p142
      %s145 = sadd.s32 %s144, 1
      %p148 = scmp.eq.s32.totalorder %s22, 3
      %p149 = scmp.ne.s32.totalorder %s144, %s146
      %p150 = scmp.eq.s32.totalorder %s22, 0
      %p151 = por %p149, %p150
      %p152 = scmp.ne.s32.totalorder %s144, %s146
      %p153 = scmp.eq.s32.totalorder %s27, 3
      %p154 = por %p152, %p153
      %p155 = scmp.ne.s32.totalorder %s146, %s147
      %p156 = scmp.eq.s32.totalorder %s27, 0
      %p157 = por %p155, %p156
      %p158 = scmp.ne.s32.totalorder %s146, %s147
      %p159 = scmp.eq.s32.totalorder %s28, 3
      %p160 = por %p158, %p159
      %p162 = scmp.ne.s32.totalorder %s147, %s161
      %p163 = scmp.eq.s32.totalorder %s28, 0
      %p164 = por %p162, %p163
      %s166 = sadd.s32 %s165, 1
      %p169 = scmp.eq.s32.totalorder %s22, 3
      %p170 = scmp.ne.s32.totalorder %s165, %s167
      %p171 = scmp.eq.s32.totalorder %s22, 0
      %p172 = por %p170, %p171
      %p173 = scmp.ne.s32.totalorder %s165, %s167
      %p174 = scmp.eq.s32.totalorder %s27, 3
      %p175 = por %p173, %p174
      %p176 = scmp.ne.s32.totalorder %s167, %s168
      %p177 = scmp.eq.s32.totalorder %s27, 0
      %p178 = por %p176, %p177
      %p179 = scmp.ne.s32.totalorder %s167, %s168
      %p180 = scmp.eq.s32.totalorder %s28, 3
      %p181 = por %p179, %p180
      %p183 = scmp.ne.s32.totalorder %s168, %s182
      %p184 = scmp.eq.s32.totalorder %s28, 0
      %p185 = por %p183, %p184
      %s187 = sadd.s32 %s186, 1
      %p190 = scmp.eq.s32.totalorder %s22, 3
      %p191 = scmp.ne.s32.totalorder %s186, %s188
      %p192 = scmp.eq.s32.totalorder %s22, 0
      %p193 = por %p191, %p192
      %p194 = scmp.ne.s32.totalorder %s186, %s188
      %p195 = scmp.eq.s32.totalorder %s27, 3
      %p196 = por %p194, %p195
      %p197 = scmp.ne.s32.totalorder %s188, %s189
      %p198 = scmp.eq.s32.totalorder %s27, 0
      %p199 = por %p197, %p198
      %p200 = scmp.ne.s32.totalorder %s188, %s189
      %p201 = scmp.eq.s32.totalorder %s28, 3
      %p202 = por %p200, %p201
      %p204 = scmp.ne.s32.totalorder %s189, %s203
      %p205 = scmp.eq.s32.totalorder %s28, 0
      %p206 = por %p204, %p205
      %s208 = sadd.s32 %s207, 1
      %p211 = scmp.eq.s32.totalorder %s22, 3
      %p212 = scmp.ne.s32.totalorder %s207, %s209
      %p213 = scmp.eq.s32.totalorder %s22, 0
      %p214 = por %p212, %p213
      %p215 = scmp.ne.s32.totalorder %s207, %s209
      %p216 = scmp.eq.s32.totalorder %s27, 3
      %p217 = por %p215, %p216
      %p218 = scmp.ne.s32.totalorder %s209, %s210
      %p219 = scmp.eq.s32.totalorder %s27, 0
      %p220 = por %p218, %p219
      %p221 = scmp.ne.s32.totalorder %s209, %s210
      %p222 = scmp.eq.s32.totalorder %s28, 3
      %p223 = por %p221, %p222
      %p225 = scmp.ne.s32.totalorder %s210, %s224
      %p226 = scmp.eq.s32.totalorder %s28, 0
      %p227 = por %p225, %p226
      %s229 = sadd.s32 %s228, 1
      %p232 = scmp.eq.s32.totalorder %s22, 3
      %p233 = scmp.ne.s32.totalorder %s228, %s230
      %p234 = scmp.eq.s32.totalorder %s22, 0
      %p235 = por %p233, %p234
      %p236 = scmp.ne.s32.totalorder %s228, %s230
      %p237 = scmp.eq.s32.totalorder %s27, 3
      %p238 = por %p236, %p237
      %p239 = scmp.ne.s32.totalorder %s230, %s231
      %p240 = scmp.eq.s32.totalorder %s27, 0
      %p241 = por %p239, %p240
      %p242 = scmp.ne.s32.totalorder %s230, %s231
      %p243 = scmp.eq.s32.totalorder %s28, 3
      %p244 = por %p242, %p243
      %p246 = scmp.ne.s32.totalorder %s231, %s245
      %p247 = scmp.eq.s32.totalorder %s28, 0
      %p248 = por %p246, %p247
      %s249 = smul.u32 %s30, 2
      %s250 = sadd.s32 %s249, %s31
      %s251 = smul.u32 %s44, 2
      %s252 = sadd.s32 %s251, %s40
      %s253 = ssub.s32 %s29, %s48
      %s254 = ssub.s32 %s250, %s252
      %s255 = sor.u32 %s253, %s254
      %p256 = scmp.eq.s32.totalorder %s255, 0
      %s258 = sadd.s32 %s257, 1
      %s259 = scalar_select %p256, %s257, %s258
      %p262 = pneg %p256
      %p263 = scmp.eq.s32.totalorder %s22, 3
      %p264 = por %p262, %p263
      %p265 = scmp.ne.s32.totalorder %s257, %s260
      %p266 = scmp.eq.s32.totalorder %s22, 0
      %p267 = por %p265, %p266
      %p268 = scmp.ne.s32.totalorder %s257, %s260
      %p269 = scmp.eq.s32.totalorder %s27, 3
      %p270 = por %p268, %p269
      %p271 = scmp.ne.s32.totalorder %s260, %s261
      %p272 = scmp.eq.s32.totalorder %s27, 0
      %p273 = por %p271, %p272
      %p274 = scmp.ne.s32.totalorder %s260, %s261
      %p275 = scmp.eq.s32.totalorder %s28, 3
      %p276 = por %p274, %p275
      %p278 = scmp.ne.s32.totalorder %s261, %s277
      %p279 = scmp.eq.s32.totalorder %s28, 0
      %p280 = por %p278, %p279
      %s281 = ssub.s32 %s29, %s48
      %s282 = ssub.s32 %s30, %s44
      %s283 = sor.u32 %s281, %s282
      %p284 = scmp.eq.s32.totalorder %s283, 0
      %s286 = sadd.s32 %s285, 1
      %s287 = scalar_select %p284, %s285, %s286
      %p290 = pneg %p284
      %p291 = scmp.eq.s32.totalorder %s22, 3
      %p292 = por %p290, %p291
      %p293 = scmp.ne.s32.totalorder %s285, %s288
      %p294 = scmp.eq.s32.totalorder %s22, 0
      %p295 = por %p293, %p294
      %p296 = scmp.ne.s32.totalorder %s285, %s288
      %p297 = scmp.eq.s32.totalorder %s27, 3
      %p298 = por %p296, %p297
      %p299 = scmp.ne.s32.totalorder %s288, %s289
      %p300 = scmp.eq.s32.totalorder %s27, 0
      %p301 = por %p299, %p300
      %p302 = scmp.ne.s32.totalorder %s288, %s289
      %p303 = scmp.eq.s32.totalorder %s28, 3
      %p304 = por %p302, %p303
      %p306 = scmp.ne.s32.totalorder %s289, %s305
      %p307 = scmp.eq.s32.totalorder %s28, 0
      %p308 = por %p306, %p307
      %p309 = scmp.le.s32.totalorder 1, %s22
      %p310 = scmp.lt.s32.totalorder %s22, 5
      %p311 = pnand %p309, %p310
      %p312 = pneg %p311
      // Predicated region
      $region9: #{tpu_custom_call.1} parent=5 // pred_check
        _
      $region10: #{tpu_custom_call.1} parent=5 // pred_check_branch
        %314 = sbr.rel (%p311) target = $region12
      $region11: #{tpu_custom_call.1} parent=5 // pred_region
        %s315 = ssub.s32 %s22, 1
        // Predicated region
        $region13: #{tpu_custom_call.1} parent=11 // pred_check
          %p316 = pneg %p94
        $region14: #{tpu_custom_call.1} parent=11 // pred_check_branch
          %318 = sbr.rel (%p316) target = $region16
        $region15: #{tpu_custom_call.1} parent=11 // pred_region
          _
        $region16: #{tpu_custom_call.1} parent=11 // pred_fallthru
          _
        // Predicated region
        $region17: #{tpu_custom_call.1} parent=11 // pred_check
          %p319 = pneg %p115
        $region18: #{tpu_custom_call.1} parent=11 // pred_check_branch
          %321 = sbr.rel (%p319) target = $region20
        $region19: #{tpu_custom_call.1} parent=11 // pred_region
          _
        $region20: #{tpu_custom_call.1} parent=11 // pred_fallthru
          _
        // Predicated region
        $region21: #{tpu_custom_call.1} parent=11 // pred_check
          %p322 = pneg %p136
        $region22: #{tpu_custom_call.1} parent=11 // pred_check_branch
          %324 = sbr.rel (%p322) target = $region24
        $region23: #{tpu_custom_call.1} parent=11 // pred_region
          _
        $region24: #{tpu_custom_call.1} parent=11 // pred_fallthru
          _
        // Predicated region
        $region25: #{tpu_custom_call.1} parent=11 // pred_check
          %p325 = pneg %p157
        $region26: #{tpu_custom_call.1} parent=11 // pred_check_branch
          %327 = sbr.rel (%p325) target = $region28
        $region27: #{tpu_custom_call.1} parent=11 // pred_region
          _
        $region28: #{tpu_custom_call.1} parent=11 // pred_fallthru
          _
        // Predicated region
        $region29: #{tpu_custom_call.1} parent=11 // pred_check
          %p328 = pneg %p178
        $region30: #{tpu_custom_call.1} parent=11 // pred_check_branch
          %330 = sbr.rel (%p328) target = $region32
        $region31: #{tpu_custom_call.1} parent=11 // pred_region
          %332 = vsyncadd [#allocation4], 0
          %s333 = sshll.u32 %s5, 4
          %s334 = int_to_ptr.hbm [resolvable:$true] %s333
          %s335 = sshll.u32 [#allocation3], 4
          %s336 = int_to_ptr.vmem [resolvable:$true] %s335
          %341 = dma.hbm_to_vmem [thread:$0]  %s334, 12288, %s336, [#allocation4], 192, 192, 12
        $region32: #{tpu_custom_call.1} parent=11 // pred_fallthru
          _
        // Predicated region
        $region33: #{tpu_custom_call.1} parent=11 // pred_check
          %p342 = pneg %p199
        $region34: #{tpu_custom_call.1} parent=11 // pred_check_branch
          %344 = sbr.rel (%p342) target = $region36
        $region35: #{tpu_custom_call.1} parent=11 // pred_region
          _
        $region36: #{tpu_custom_call.1} parent=11 // pred_fallthru
          _
        // Predicated region
        $region37: #{tpu_custom_call.1} parent=11 // pred_check
          %p345 = pneg %p220
        $region38: #{tpu_custom_call.1} parent=11 // pred_check_branch
          %347 = sbr.rel (%p345) target = $region40
        $region39: #{tpu_custom_call.1} parent=11 // pred_region
          %349 = vsyncadd [#allocation7], 0
          %s350 = sshll.u32 %s7, 4
          %s351 = int_to_ptr.hbm [resolvable:$true] %s350
          %s352 = sshll.u32 [#allocation6], 4
          %s353 = int_to_ptr.vmem [resolvable:$true] %s352
          %358 = dma.hbm_to_vmem [thread:$0]  %s351, 32768, %s353, [#allocation7], 256, 256, 16
        $region40: #{tpu_custom_call.1} parent=11 // pred_fallthru
          _
        // Predicated region
        $region41: #{tpu_custom_call.1} parent=11 // pred_check
          %p359 = pneg %p241
        $region42: #{tpu_custom_call.1} parent=11 // pred_check_branch
          %361 = sbr.rel (%p359) target = $region44
        $region43: #{tpu_custom_call.1} parent=11 // pred_region
          _
        $region44: #{tpu_custom_call.1} parent=11 // pred_fallthru
          _
      $region12: #{tpu_custom_call.1} parent=5 // pred_fallthru
        _
      %p362 = scmp.lt.s32.totalorder %s22, 4
      // Predicated region
      $region45: #{tpu_custom_call.1} parent=5 // pred_check
        %p363 = pneg %p362
      $region46: #{tpu_custom_call.1} parent=5 // pred_check_branch
        %365 = sbr.rel (%p363) target = $region48
      $region47: #{tpu_custom_call.1} parent=5 // pred_region
        // Predicated region
        $region49: #{tpu_custom_call.1} parent=47 // pred_check
          %p366 = pneg %p67
        $region50: #{tpu_custom_call.1} parent=47 // pred_check_branch
          %368 = sbr.rel (%p366) target = $region52
        $region51: #{tpu_custom_call.1} parent=47 // pred_region
          %s369 = sand.u32 %s57, 1
          %s370 = sand.u32 %s57, 1
          %s371 = smul.addr %s370, 16
          %s372 = scalar_lea.vmem [#allocation2], %s371
          %s373 = smul.u32 %s30, 2
          %s374 = sadd.s32 %s373, %s31
          %s375 = smul.u32 2, %s374
          %s376 = smul.addr %s29, 8
          %s377 = sadd.s32 %s375, %s376
          %s378 = smul.addr %s377, 4
          %s379 = scalar_lea.vmem %s0, %s378
          // Predicated region
          $region53: #{tpu_custom_call.1} parent=51 // pred_check
            _
          $region54: #{tpu_custom_call.1} parent=51 // pred_check_branch
            %381 = sbr.rel (0) target = $region56
          $region55: #{tpu_custom_call.1} parent=51 // pred_region
            // Predicated region
            $region57: #{tpu_custom_call.1} parent=55 // pred_check
              _
            $region58: #{tpu_custom_call.1} parent=55 // pred_check_branch
              %383 = sbr.rel (0) target = $region60
            $region59: #{tpu_custom_call.1} parent=55 // pred_region
              // Predicated region
              $region72: #{tpu_custom_call.1} parent=59 // pred_check
                _
              $region73: #{tpu_custom_call.1} parent=59 // pred_check_branch
                %401 = sbr.rel (0) target = $region75
              $region74: #{tpu_custom_call.1} parent=59 // pred_region
                loop: start=0, step=1, limit=1
                $region76: #{tpu_custom_call.1} parent=74 // loop_pre_header
                  _
                $region77: #{tpu_custom_call.1} parent=74 // loop_header
                  %s403 = sphi 0, %s407
                  %p404 = scmp.ge.s32.totalorder %s403, 1
                  %s408 = sphi %s379, %s379
                  %s409 = sphi %s372, %s372
                $region78: #{tpu_custom_call.1} parent=74 // loop_header_branch
                  %406 = sbr.rel (%p404) target = $region82
                $region79: #{tpu_custom_call.1} parent=74 // loop_body
                  %v410 = vld [vmem:[%s408] sm:$0xff]
                  %411 = vst [vmem:[%s409] sm:$0xff] %v410
                  %v412 = vld [vmem:[%s408 + $0x10] sm:$0xff]
                  %413 = vst [vmem:[%s409 + $0x8] sm:$0xff] %v412
                $region80: #{tpu_custom_call.1} parent=74 // loop_footer
                  %s407 = sadd.s32 1, %s403
                $region81: #{tpu_custom_call.1} parent=74 // loop_footer_branch
                  %402 = sbr.rel target = $region77
                $region82: #{tpu_custom_call.1} parent=74 // loop_exit
                  _
              $region75: #{tpu_custom_call.1} parent=59 // pred_fallthru
                _
              // Predicated region
              $region83: #{tpu_custom_call.1} parent=59 // pred_check
                _
              $region84: #{tpu_custom_call.1} parent=59 // pred_check_branch
                %415 = sbr.rel target = $region86
              $region85: #{tpu_custom_call.1} parent=59 // pred_region
                _
              $region86: #{tpu_custom_call.1} parent=59 // pred_fallthru
                _
            $region60: #{tpu_custom_call.1} parent=55 // pred_fallthru
              _
            // Predicated region
            $region61: #{tpu_custom_call.1} parent=55 // pred_check
              _
            $region62: #{tpu_custom_call.1} parent=55 // pred_check_branch
              %385 = sbr.rel target = $region64
            $region63: #{tpu_custom_call.1} parent=55 // pred_region
              %s387 = ssub.s32 256, 1
              loop: start=0, step=1, limit=1
              $region65: #{tpu_custom_call.1} parent=63 // loop_pre_header
                _
              $region66: #{tpu_custom_call.1} parent=63 // loop_header
                %s389 = sphi 0, %s393
                %p390 = scmp.ge.s32.totalorder %s389, 1
                %s394 = sphi %s379, %s379
                %s395 = sphi %s372, %s372
              $region67: #{tpu_custom_call.1} parent=63 // loop_header_branch
                %392 = sbr.rel (%p390) target = $region71
              $region68: #{tpu_custom_call.1} parent=63 // loop_body
                %v396 = vld [vmem:[%s394] sm:%s387]
                %397 = vst [vmem:[%s395] sm:%s387] %v396
                %v398 = vld [vmem:[%s394 + $0x10] sm:%s387]
                %399 = vst [vmem:[%s395 + $0x8] sm:%s387] %v398
              $region69: #{tpu_custom_call.1} parent=63 // loop_footer
                %s393 = sadd.s32 1, %s389
              $region70: #{tpu_custom_call.1} parent=63 // loop_footer_branch
                %388 = sbr.rel target = $region66
              $region71: #{tpu_custom_call.1} parent=63 // loop_exit
                _
            $region64: #{tpu_custom_call.1} parent=55 // pred_fallthru
              _
          $region56: #{tpu_custom_call.1} parent=51 // pred_fallthru
            _
          %416 = vnop
        $region52: #{tpu_custom_call.1} parent=47 // pred_fallthru
          _
      $region48: #{tpu_custom_call.1} parent=5 // pred_fallthru
        _
      %p417 = scmp.le.s32.totalorder 1, %s22
      %p418 = scmp.lt.s32.totalorder %s22, 5
      %p419 = pnand %p417, %p418
      %p420 = pneg %p419
      // Predicated region
      $region87: #{tpu_custom_call.1} parent=5 // pred_check
        _
      $region88: #{tpu_custom_call.1} parent=5 // pred_check_branch
        %422 = sbr.rel (%p419) target = $region90
      $region89: #{tpu_custom_call.1} parent=5 // pred_region
        %s423 = ssub.s32 %s22, 1
        %s424 = sand.u32 %s60, 1
        %s425 = sand.u32 %s60, 1
        %s426 = smul.addr %s425, 16
        %s427 = scalar_lea.vmem [#allocation2], %s426
        // Predicated region
        $region91: #{tpu_custom_call.1} parent=89 // pred_check
          %p428 = pneg %p73
        $region92: #{tpu_custom_call.1} parent=89 // pred_check_branch
          %430 = sbr.rel (%p428) target = $region94
        $region93: #{tpu_custom_call.1} parent=89 // pred_region
          _
        $region94: #{tpu_custom_call.1} parent=89 // pred_fallthru
          _
        // Predicated region
        $region95: #{tpu_custom_call.1} parent=89 // pred_check
          %p431 = pneg %p178
        $region96: #{tpu_custom_call.1} parent=89 // pred_check_branch
          %433 = sbr.rel (%p431) target = $region98
        $region97: #{tpu_custom_call.1} parent=89 // pred_region
          %435 = dma.done [#allocation4], 12288
        $region98: #{tpu_custom_call.1} parent=89 // pred_fallthru
          _
        // Predicated region
        $region99: #{tpu_custom_call.1} parent=89 // pred_check
          %p436 = pneg %p220
        $region100: #{tpu_custom_call.1} parent=89 // pred_check_branch
          %438 = sbr.rel (%p436) target = $region102
        $region101: #{tpu_custom_call.1} parent=89 // pred_region
          %440 = dma.done [#allocation7], 32768
        $region102: #{tpu_custom_call.1} parent=89 // pred_fallthru
          _
        %s441 = sand.u32 %s60, 1
        %s442 = sand.u32 %s60, 1
        %s443 = smul.addr %s442, 16
        %s444 = scalar_lea.vmem [#allocation2], %s443
        %p445 = pneg %p73
        %p446 = pneg %p70
        %p447 = pneg %p94
        %p448 = pneg %p91
        %p449 = pneg %p115
        %p450 = pneg %p112
        %p451 = pneg %p136
        %p452 = pneg %p133
        %p453 = pneg %p157
        %p454 = pneg %p154
        %p455 = pneg %p178
        %p456 = pneg %p175
        %p457 = pneg %p199
        %p458 = pneg %p196
        %p459 = pneg %p220
        %p460 = pneg %p217
        %p461 = pneg %p241
        %p462 = pneg %p238
        %p463 = pneg %p273
        %p464 = pneg %p270
        %s465 = sand.u32 %s260, 1
        %s466 = scalar_lea.sflag [#allocation5], %s465
        %s467 = sand.u32 %s260, 1
        %s468 = smul.addr %s467, 1152
        %s469 = scalar_lea.vmem [#allocation8], %s468
        %p470 = pneg %p301
        %p471 = pneg %p298
        %p472 = scmp.lt.s32.totalorder %s32, 1
        %s473 = scalar_select %p472, %s32, 1
        %p474 = scmp.lt.s32.totalorder %s33, 0
        %s475 = scalar_select %p474, %s33, 0
        %s476 = smul.addr %s475, 128
        %s477 = smul.addr %s473, 128
        %s478 = sadd.s32 %s476, %s477
        %s479 = smul.addr %s478, 8
        %s480 = scalar_lea.vmem %s10, %s479
        %s481 = smul.u32 %s33, 2
        %s482 = sadd.s32 %s481, %s34
        %s483 = smul.u32 2, %s482
        %s484 = smul.u32 %s33, 2
        %s485 = sadd.s32 %s484, %s34
        %s486 = smul.u32 2, %s485
        %p487 = scmp.lt.s32.totalorder %s32, 1
        %s488 = scalar_select %p487, %s32, 1
        %p489 = scmp.lt.s32.totalorder %s33, 0
        %s490 = scalar_select %p489, %s33, 0
        %s491 = smul.addr %s490, 128
        %s492 = smul.addr %s488, 128
        %s493 = sadd.s32 %s491, %s492
        %s494 = smul.addr %s493, 8
        %s495 = scalar_lea.vmem %s10, %s494
        %v497 = vld [vmem:[%s427] sm:$0xff]
        %v498 = vld [vmem:[%s427 + $0x8] sm:$0x11]
        %v499 = vld [vmem:[%s1] sm:$0xf]
        %v500 = vld [vmem:[%s1 + $0x4] sm:$0xf]
        %v501 = vld [vmem:[%s1 + $0x8] sm:$0xf]
        %v502 = vld [vmem:[%s1 + $0xc] sm:$0xf]
        %v503 = vld [vmem:[%s1 + $0x10] sm:$0xf]
        %v504 = vld [vmem:[%s1 + $0x14] sm:$0xf]
        %v505 = vld [vmem:[%s1 + $0x18] sm:$0xf]
        %v506 = vld [vmem:[%s1 + $0x1c] sm:$0xf]
        %v507 = vld [vmem:[%s1 + $0x20] sm:$0xf]
        %v508 = vld [vmem:[%s1 + $0x24] sm:$0xf]
        %v509 = vld [vmem:[%s1 + $0x28] sm:$0xf]
        %v510 = vld [vmem:[%s1 + $0x2c] sm:$0xf]
        %v511 = vld [vmem:[%s1 + $0x30] sm:$0xf]
        %v512 = vld [vmem:[%s1 + $0x34] sm:$0xf]
        %v513 = vld [vmem:[%s1 + $0x38] sm:$0xf]
        %v514 = vld [vmem:[%s1 + $0x3c] sm:$0xf]
        %v515 = vld [vmem:[%s1 + $0x40] sm:$0xf]
        %v516 = vld [vmem:[%s1 + $0x44] sm:$0xf]
        %v517 = vld [vmem:[%s1 + $0x48] sm:$0xf]
        %v518 = vld [vmem:[%s1 + $0x4c] sm:$0xf]
        %v519 = vld [vmem:[%s1 + $0x50] sm:$0xf]
        %v520 = vld [vmem:[%s1 + $0x54] sm:$0xf]
        %v521 = vld [vmem:[%s1 + $0x58] sm:$0xf]
        %v522 = vld [vmem:[%s1 + $0x5c] sm:$0xf]
        %v523 = vld [vmem:[%s2] sm:$0xff]
        %v524 = vld [vmem:[%s2 + $0x8] sm:$0xff]
        %v525 = vld [vmem:[%s2 + $0x10] sm:$0xff]
        %v526 = vld [vmem:[%s2 + $0x18] sm:$0xff]
        %v527 = vld [vmem:[%s2 + $0x20] sm:$0xff]
        %v528 = vld [vmem:[%s2 + $0x28] sm:$0xff]
        %v529 = vld [vmem:[%s2 + $0x30] sm:$0xff]
        %v530 = vld [vmem:[%s2 + $0x38] sm:$0xff]
        %v531 = vld [vmem:[%s2 + $0x40] sm:$0xff]
        %v532 = vld [vmem:[%s2 + $0x48] sm:$0xff]
        %v533 = vld [vmem:[%s2 + $0x50] sm:$0xff]
        %v534 = vld [vmem:[%s2 + $0x58] sm:$0xff]
        %v535 = vld [vmem:[%s2 + $0x60] sm:$0xff]
        %v536 = vld [vmem:[%s2 + $0x68] sm:$0xff]
        %v537 = vld [vmem:[%s2 + $0x70] sm:$0xff]
        %v538 = vld [vmem:[%s2 + $0x78] sm:$0xff]
        %v539 = vld [vmem:[%s2 + $0x80] sm:$0xff]
        %v540 = vld [vmem:[%s2 + $0x88] sm:$0xff]
        %v541 = vld [vmem:[%s2 + $0x90] sm:$0xff]
        %v542 = vld [vmem:[%s2 + $0x98] sm:$0xff]
        %v543 = vld [vmem:[%s2 + $0xa0] sm:$0xff]
        %v544 = vld [vmem:[%s2 + $0xa8] sm:$0xff]
        %v545 = vld [vmem:[%s2 + $0xb0] sm:$0xff]
        %v546 = vld [vmem:[%s2 + $0xb8] sm:$0xff]
        %548 = vset.pattern.permute.xlu0 0
        %549 = vperm.xlu0 %548, %v523
        %v550 = vpop.permute.xlu0 %549
        %553 = vset.pattern.permute.xlu0 0
        %554 = vperm.xlu0 %553, %v524
        %v555 = vpop.permute.xlu0 %554
        %558 = vset.pattern.permute.xlu0 0
        %559 = vperm.xlu0 %558, %v525
        %v560 = vpop.permute.xlu0 %559
        %563 = vset.pattern.permute.xlu0 0
        %564 = vperm.xlu0 %563, %v526
        %v565 = vpop.permute.xlu0 %564
        %568 = vset.pattern.permute.xlu0 0
        %569 = vperm.xlu0 %568, %v527
        %v570 = vpop.permute.xlu0 %569
        %573 = vset.pattern.permute.xlu0 0
        %574 = vperm.xlu0 %573, %v528
        %v575 = vpop.permute.xlu0 %574
        %578 = vset.pattern.permute.xlu0 0
        %579 = vperm.xlu0 %578, %v529
        %v580 = vpop.permute.xlu0 %579
        %583 = vset.pattern.permute.xlu0 0
        %584 = vperm.xlu0 %583, %v530
        %v585 = vpop.permute.xlu0 %584
        %588 = vset.pattern.permute.xlu0 0
        %589 = vperm.xlu0 %588, %v531
        %v590 = vpop.permute.xlu0 %589
        %593 = vset.pattern.permute.xlu0 0
        %594 = vperm.xlu0 %593, %v532
        %v595 = vpop.permute.xlu0 %594
        %598 = vset.pattern.permute.xlu0 0
        %599 = vperm.xlu0 %598, %v533
        %v600 = vpop.permute.xlu0 %599
        %603 = vset.pattern.permute.xlu0 0
        %604 = vperm.xlu0 %603, %v534
        %v605 = vpop.permute.xlu0 %604
        %608 = vset.pattern.permute.xlu0 0
        %609 = vperm.xlu0 %608, %v535
        %v610 = vpop.permute.xlu0 %609
        %613 = vset.pattern.permute.xlu0 0
        %614 = vperm.xlu0 %613, %v536
        %v615 = vpop.permute.xlu0 %614
        %618 = vset.pattern.permute.xlu0 0
        %619 = vperm.xlu0 %618, %v537
        %v620 = vpop.permute.xlu0 %619
        %623 = vset.pattern.permute.xlu0 0
        %624 = vperm.xlu0 %623, %v538
        %v625 = vpop.permute.xlu0 %624
        %628 = vset.pattern.permute.xlu0 0
        %629 = vperm.xlu0 %628, %v539
        %v630 = vpop.permute.xlu0 %629
        %633 = vset.pattern.permute.xlu0 0
        %634 = vperm.xlu0 %633, %v540
        %v635 = vpop.permute.xlu0 %634
        %638 = vset.pattern.permute.xlu0 0
        %639 = vperm.xlu0 %638, %v541
        %v640 = vpop.permute.xlu0 %639
        %643 = vset.pattern.permute.xlu0 0
        %644 = vperm.xlu0 %643, %v542
        %v645 = vpop.permute.xlu0 %644
        %648 = vset.pattern.permute.xlu0 0
        %649 = vperm.xlu0 %648, %v543
        %v650 = vpop.permute.xlu0 %649
        %653 = vset.pattern.permute.xlu0 0
        %654 = vperm.xlu0 %653, %v544
        %v655 = vpop.permute.xlu0 %654
        %658 = vset.pattern.permute.xlu0 0
        %659 = vperm.xlu0 %658, %v545
        %v660 = vpop.permute.xlu0 %659
        %663 = vset.pattern.permute.xlu0 0
        %664 = vperm.xlu0 %663, %v546
        %v665 = vpop.permute.xlu0 %664
        %v691 = vunpack.c.l.b16 %v499
        %v692 = vunpack.c.l.b16 %v500
        %v693 = vunpack.c.l.b16 %v501
        %v694 = vunpack.c.l.b16 %v502
        %v695 = vunpack.c.l.b16 %v503
        %v696 = vunpack.c.l.b16 %v504
        %v697 = vunpack.c.l.b16 %v505
        %v698 = vunpack.c.l.b16 %v506
        %v699 = vunpack.c.l.b16 %v507
        %v700 = vunpack.c.l.b16 %v508
        %v701 = vunpack.c.l.b16 %v509
        %v702 = vunpack.c.l.b16 %v510
        %v703 = vunpack.c.l.b16 %v511
        %v704 = vunpack.c.l.b16 %v512
        %v705 = vunpack.c.l.b16 %v513
        %v706 = vunpack.c.l.b16 %v514
        %v707 = vunpack.c.l.b16 %v515
        %v708 = vunpack.c.l.b16 %v516
        %v709 = vunpack.c.l.b16 %v517
        %v710 = vunpack.c.l.b16 %v518
        %v711 = vunpack.c.l.b16 %v519
        %v712 = vunpack.c.l.b16 %v520
        %v713 = vunpack.c.l.b16 %v521
        %v714 = vunpack.c.l.b16 %v522
        %v715 = vpack.c.b16 %v692, %v691
        %v716 = vpack.c.b16 %v694, %v693
        %v717 = vpack.c.b16 %v696, %v695
        %v718 = vpack.c.b16 %v698, %v697
        %v719 = vpack.c.b16 %v700, %v699
        %v720 = vpack.c.b16 %v702, %v701
        %v721 = vpack.c.b16 %v704, %v703
        %v722 = vpack.c.b16 %v706, %v705
        %v723 = vpack.c.b16 %v708, %v707
        %v724 = vpack.c.b16 %v710, %v709
        %v725 = vpack.c.b16 %v712, %v711
        %v726 = vpack.c.b16 %v714, %v713
        %v729 = vunpack.c.l.b16 %v497
        %v730 = vunpack.c.h.b16 %v497
        %v731 = vunpack.c.l.b16 %v498
        %v732 = vunpack.c.h.b16 %v498
        %v733 = vpack.c.b16 %v731, %v729
        %v734 = vpack.c.b16 %v732, %v730
        %vm735 = vcmask 72704
        %v737 = vsel %vm735, %v715, 0
        %v740 = vsel %vm735, %v716, 0
        %v743 = vsel %vm735, %v717, 0
        %v746 = vsel %vm735, %v718, 0
        %v749 = vsel %vm735, %v719, 0
        %v752 = vsel %vm735, %v720, 0
        %v755 = vsel %vm735, %v721, 0
        %v758 = vsel %vm735, %v722, 0
        %v761 = vsel %vm735, %v723, 0
        %v764 = vsel %vm735, %v724, 0
        %v767 = vsel %vm735, %v725, 0
        %v770 = vsel %vm735, %v726, 0
        %vm772 = vcmask 1043456
        %vm773 = vcmask 1044480
        %v774 = vsel %vm772, 4294967295, 65535
        %v775 = vsel %vm773, %v774, 0
        %v777 = vand.u32 %v733, %v775
        %v780 = vand.u32 %v734, %v775
        %782 = vmatpush.bf16.msra.mxu0 0
        %783 = vmatpush.bf16.msra.mxu0 0
        %784 = vmatpush.bf16.msra.mxu0 0
        %785 = vmatpush.bf16.msra.mxu0 0
        %786 = vmatpush.bf16.msra.mxu0 0
        %787 = vmatpush.bf16.msra.mxu0 0
        %788 = vmatpush.bf16.msra.mxu0 0
        %789 = vmatpush.bf16.msra.mxu0 %v777
        %790 = vmatmul.bf16.gmra.mxu0 %v737
        %v791 = vpop.f32.mrf.mxu0
        %v792 = vadd.f32 %v550, %v791
        %v793 = vpop.f32.mrf.mxu0
        %v794 = vadd.f32 %v555, %v793
        %795 = vmatmul.bf16.gmra.mxu0 %v740
        %v796 = vpop.f32.mrf.mxu0
        %v797 = vadd.f32 %v560, %v796
        %v798 = vpop.f32.mrf.mxu0
        %v799 = vadd.f32 %v565, %v798
        %800 = vmatmul.bf16.gmra.mxu0 %v743
        %v801 = vpop.f32.mrf.mxu0
        %v802 = vadd.f32 %v570, %v801
        %v803 = vpop.f32.mrf.mxu0
        %v804 = vadd.f32 %v575, %v803
        %805 = vmatmul.bf16.gmra.mxu0 %v746
        %v806 = vpop.f32.mrf.mxu0
        %v807 = vadd.f32 %v580, %v806
        %v808 = vpop.f32.mrf.mxu0
        %v809 = vadd.f32 %v585, %v808
        %810 = vmatmul.bf16.gmra.mxu0 %v749
        %v811 = vpop.f32.mrf.mxu0
        %v812 = vadd.f32 %v590, %v811
        %v813 = vpop.f32.mrf.mxu0
        %v814 = vadd.f32 %v595, %v813
        %815 = vmatmul.bf16.gmra.mxu0 %v752
        %v816 = vpop.f32.mrf.mxu0
        %v817 = vadd.f32 %v600, %v816
        %v818 = vpop.f32.mrf.mxu0
        %v819 = vadd.f32 %v605, %v818
        %820 = vmatmul.bf16.gmra.mxu0 %v755
        %v821 = vpop.f32.mrf.mxu0
        %v822 = vadd.f32 %v610, %v821
        %v823 = vpop.f32.mrf.mxu0
        %v824 = vadd.f32 %v615, %v823
        %825 = vmatmul.bf16.gmra.mxu0 %v758
        %v826 = vpop.f32.mrf.mxu0
        %v827 = vadd.f32 %v620, %v826
        %v828 = vpop.f32.mrf.mxu0
        %v829 = vadd.f32 %v625, %v828
        %830 = vmatmul.bf16.gmra.mxu0 %v761
        %v831 = vpop.f32.mrf.mxu0
        %v832 = vadd.f32 %v630, %v831
        %v833 = vpop.f32.mrf.mxu0
        %v834 = vadd.f32 %v635, %v833
        %835 = vmatmul.bf16.gmra.mxu0 %v764
        %v836 = vpop.f32.mrf.mxu0
        %v837 = vadd.f32 %v640, %v836
        %v838 = vpop.f32.mrf.mxu0
        %v839 = vadd.f32 %v645, %v838
        %840 = vmatmul.bf16.gmra.mxu0 %v767
        %v841 = vpop.f32.mrf.mxu0
        %v842 = vadd.f32 %v650, %v841
        %v843 = vpop.f32.mrf.mxu0
        %v844 = vadd.f32 %v655, %v843
        %845 = vmatmul.bf16.gmra.mxu0 %v770
        %v846 = vpop.f32.mrf.mxu0
        %v847 = vadd.f32 %v660, %v846
        %v848 = vpop.f32.mrf.mxu0
        %v849 = vadd.f32 %v665, %v848
        %850 = vdwg.mxu0
        %851 = vmatpush.bf16.msra.mxu0 0
        %852 = vmatpush.bf16.msra.mxu0 0
        %853 = vmatpush.bf16.msra.mxu0 0
        %854 = vmatpush.bf16.msra.mxu0 0
        %855 = vmatpush.bf16.msra.mxu0 0
        %856 = vmatpush.bf16.msra.mxu0 0
        %857 = vmatpush.bf16.msra.mxu0 0
        %858 = vmatpush.bf16.msra.mxu0 %v780
        %859 = vmatmul.bf16.gmra.mxu0 %v737
        %v860 = vpop.f32.mrf.mxu0
        %v861 = vadd.f32 %v550, %v860
        %v862 = vpop.f32.mrf.mxu0
        %v863 = vadd.f32 %v555, %v862
        %864 = vmatmul.bf16.gmra.mxu0 %v740
        %v865 = vpop.f32.mrf.mxu0
        %v866 = vadd.f32 %v560, %v865
        %v867 = vpop.f32.mrf.mxu0
        %v868 = vadd.f32 %v565, %v867
        %869 = vmatmul.bf16.gmra.mxu0 %v743
        %v870 = vpop.f32.mrf.mxu0
        %v871 = vadd.f32 %v570, %v870
        %v872 = vpop.f32.mrf.mxu0
        %v873 = vadd.f32 %v575, %v872
        %874 = vmatmul.bf16.gmra.mxu0 %v746
        %v875 = vpop.f32.mrf.mxu0
        %v876 = vadd.f32 %v580, %v875
        %v877 = vpop.f32.mrf.mxu0
        %v878 = vadd.f32 %v585, %v877
        %879 = vmatmul.bf16.gmra.mxu0 %v749
        %v880 = vpop.f32.mrf.mxu0
        %v881 = vadd.f32 %v590, %v880
        %v882 = vpop.f32.mrf.mxu0
        %v883 = vadd.f32 %v595, %v882
        %884 = vmatmul.bf16.gmra.mxu0 %v752
        %v885 = vpop.f32.mrf.mxu0
        %v886 = vadd.f32 %v600, %v885
        %v887 = vpop.f32.mrf.mxu0
        %v888 = vadd.f32 %v605, %v887
        %889 = vmatmul.bf16.gmra.mxu0 %v755
        %v890 = vpop.f32.mrf.mxu0
        %v891 = vadd.f32 %v610, %v890
        %v892 = vpop.f32.mrf.mxu0
        %v893 = vadd.f32 %v615, %v892
        %894 = vmatmul.bf16.gmra.mxu0 %v758
        %v895 = vpop.f32.mrf.mxu0
        %v896 = vadd.f32 %v620, %v895
        %v897 = vpop.f32.mrf.mxu0
        %v898 = vadd.f32 %v625, %v897
        %899 = vmatmul.bf16.gmra.mxu0 %v761
        %v900 = vpop.f32.mrf.mxu0
        %v901 = vadd.f32 %v630, %v900
        %v902 = vpop.f32.mrf.mxu0
        %v903 = vadd.f32 %v635, %v902
        %904 = vmatmul.bf16.gmra.mxu0 %v764
        %v905 = vpop.f32.mrf.mxu0
        %v906 = vadd.f32 %v640, %v905
        %v907 = vpop.f32.mrf.mxu0
        %v908 = vadd.f32 %v645, %v907
        %909 = vmatmul.bf16.gmra.mxu0 %v767
        %v910 = vpop.f32.mrf.mxu0
        %v911 = vadd.f32 %v650, %v910
        %v912 = vpop.f32.mrf.mxu0
        %v913 = vadd.f32 %v655, %v912
        %914 = vmatmul.bf16.gmra.mxu0 %v770
        %v915 = vpop.f32.mrf.mxu0
        %v916 = vadd.f32 %v660, %v915
        %v917 = vpop.f32.mrf.mxu0
        %v918 = vadd.f32 %v665, %v917
        %919 = vdwg.mxu0
        %v920 = vmax.f32 %v792, 0.0
        %v921 = vmax.f32 %v861, 0.0
        %v922 = vmax.f32 %v794, 0.0
        %v923 = vmax.f32 %v863, 0.0
        %v924 = vmax.f32 %v797, 0.0
        %v925 = vmax.f32 %v866, 0.0
        %v926 = vmax.f32 %v799, 0.0
        %v927 = vmax.f32 %v868, 0.0
        %v928 = vmax.f32 %v802, 0.0
        %v929 = vmax.f32 %v871, 0.0
        %v930 = vmax.f32 %v804, 0.0
        %v931 = vmax.f32 %v873, 0.0
        %v932 = vmax.f32 %v807, 0.0
        %v933 = vmax.f32 %v876, 0.0
        %v934 = vmax.f32 %v809, 0.0
        %v935 = vmax.f32 %v878, 0.0
        %v936 = vmax.f32 %v812, 0.0
        %v937 = vmax.f32 %v881, 0.0
        %v938 = vmax.f32 %v814, 0.0
        %v939 = vmax.f32 %v883, 0.0
        %v940 = vmax.f32 %v817, 0.0
        %v941 = vmax.f32 %v886, 0.0
        %v942 = vmax.f32 %v819, 0.0
        %v943 = vmax.f32 %v888, 0.0
        %v944 = vmax.f32 %v822, 0.0
        %v945 = vmax.f32 %v891, 0.0
        %v946 = vmax.f32 %v824, 0.0
        %v947 = vmax.f32 %v893, 0.0
        %v948 = vmax.f32 %v827, 0.0
        %v949 = vmax.f32 %v896, 0.0
        %v950 = vmax.f32 %v829, 0.0
        %v951 = vmax.f32 %v898, 0.0
        %v952 = vmax.f32 %v832, 0.0
        %v953 = vmax.f32 %v901, 0.0
        %v954 = vmax.f32 %v834, 0.0
        %v955 = vmax.f32 %v903, 0.0
        %v956 = vmax.f32 %v837, 0.0
        %v957 = vmax.f32 %v906, 0.0
        %v958 = vmax.f32 %v839, 0.0
        %v959 = vmax.f32 %v908, 0.0
        %v960 = vmax.f32 %v842, 0.0
        %v961 = vmax.f32 %v911, 0.0
        %v962 = vmax.f32 %v844, 0.0
        %v963 = vmax.f32 %v913, 0.0
        %v964 = vmax.f32 %v847, 0.0
        %v965 = vmax.f32 %v916, 0.0
        %v966 = vmax.f32 %v849, 0.0
        %v967 = vmax.f32 %v918, 0.0
        %968 = vst [vmem:[%s469] sm:$0xff] %v920
        %969 = vst [vmem:[%s469 + $0x8] sm:$0xff] %v921
        %970 = vst [vmem:[%s469 + $0x10] sm:$0xff] %v922
        %971 = vst [vmem:[%s469 + $0x18] sm:$0xff] %v923
        %972 = vst [vmem:[%s469 + $0x20] sm:$0xff] %v924
        %973 = vst [vmem:[%s469 + $0x28] sm:$0xff] %v925
        %974 = vst [vmem:[%s469 + $0x30] sm:$0xff] %v926
        %975 = vst [vmem:[%s469 + $0x38] sm:$0xff] %v927
        %976 = vst [vmem:[%s469 + $0x40] sm:$0xff] %v928
        %977 = vst [vmem:[%s469 + $0x48] sm:$0xff] %v929
        %978 = vst [vmem:[%s469 + $0x50] sm:$0xff] %v930
        %979 = vst [vmem:[%s469 + $0x58] sm:$0xff] %v931
        %980 = vst [vmem:[%s469 + $0x60] sm:$0xff] %v932
        %981 = vst [vmem:[%s469 + $0x68] sm:$0xff] %v933
        %982 = vst [vmem:[%s469 + $0x70] sm:$0xff] %v934
        %983 = vst [vmem:[%s469 + $0x78] sm:$0xff] %v935
        %984 = vst [vmem:[%s469 + $0x80] sm:$0xff] %v936
        %985 = vst [vmem:[%s469 + $0x88] sm:$0xff] %v937
        %986 = vst [vmem:[%s469 + $0x90] sm:$0xff] %v938
        %987 = vst [vmem:[%s469 + $0x98] sm:$0xff] %v939
        %988 = vst [vmem:[%s469 + $0xa0] sm:$0xff] %v940
        %989 = vst [vmem:[%s469 + $0xa8] sm:$0xff] %v941
        %990 = vst [vmem:[%s469 + $0xb0] sm:$0xff] %v942
        %991 = vst [vmem:[%s469 + $0xb8] sm:$0xff] %v943
        %992 = vst [vmem:[%s469 + $0xc0] sm:$0xff] %v944
        %993 = vst [vmem:[%s469 + $0xc8] sm:$0xff] %v945
        %994 = vst [vmem:[%s469 + $0xd0] sm:$0xff] %v946
        %995 = vst [vmem:[%s469 + $0xd8] sm:$0xff] %v947
        %996 = vst [vmem:[%s469 + $0xe0] sm:$0xff] %v948
        %997 = vst [vmem:[%s469 + $0xe8] sm:$0xff] %v949
        %998 = vst [vmem:[%s469 + $0xf0] sm:$0xff] %v950
        %999 = vst [vmem:[%s469 + $0xf8] sm:$0xff] %v951
        %1000 = vst [vmem:[%s469 + $0x100] sm:$0xff] %v952
        %1001 = vst [vmem:[%s469 + $0x108] sm:$0xff] %v953
        %1002 = vst [vmem:[%s469 + $0x110] sm:$0xff] %v954
        %1003 = vst [vmem:[%s469 + $0x118] sm:$0xff] %v955
        %1004 = vst [vmem:[%s469 + $0x120] sm:$0xff] %v956
        %1005 = vst [vmem:[%s469 + $0x128] sm:$0xff] %v957
        %1006 = vst [vmem:[%s469 + $0x130] sm:$0xff] %v958
        %1007 = vst [vmem:[%s469 + $0x138] sm:$0xff] %v959
        %1008 = vst [vmem:[%s469 + $0x140] sm:$0xff] %v960
        %1009 = vst [vmem:[%s469 + $0x148] sm:$0xff] %v961
        %1010 = vst [vmem:[%s469 + $0x150] sm:$0xff] %v962
        %1011 = vst [vmem:[%s469 + $0x158] sm:$0xff] %v963
        %1012 = vst [vmem:[%s469 + $0x160] sm:$0xff] %v964
        %1013 = vst [vmem:[%s469 + $0x168] sm:$0xff] %v965
        %1014 = vst [vmem:[%s469 + $0x170] sm:$0xff] %v966
        %1015 = vst [vmem:[%s469 + $0x178] sm:$0xff] %v967
        %v1016 = vld [vmem:[%s3] sm:$0xff]
        %v1017 = vld [vmem:[%s3 + $0x8] sm:$0xff]
        %v1018 = vld [vmem:[%s3 + $0x10] sm:$0xff]
        %v1019 = vld [vmem:[%s3 + $0x18] sm:$0xff]
        %v1020 = vld [vmem:[%s3 + $0x20] sm:$0xff]
        %v1021 = vld [vmem:[%s3 + $0x28] sm:$0xff]
        %v1022 = vld [vmem:[%s3 + $0x30] sm:$0xff]
        %v1023 = vld [vmem:[%s3 + $0x38] sm:$0xff]
        %v1024 = vld [vmem:[%s3 + $0x40] sm:$0xff]
        %v1025 = vld [vmem:[%s3 + $0x48] sm:$0xff]
        %v1026 = vld [vmem:[%s3 + $0x50] sm:$0xff]
        %v1027 = vld [vmem:[%s3 + $0x58] sm:$0xff]
        %v1028 = vld [vmem:[%s3 + $0x60] sm:$0xff]
        %v1029 = vld [vmem:[%s3 + $0x68] sm:$0xff]
        %v1030 = vld [vmem:[%s3 + $0x70] sm:$0xff]
        %v1031 = vld [vmem:[%s3 + $0x78] sm:$0xff]
        %v1032 = vld [vmem:[%s3 + $0x80] sm:$0xff]
        %v1033 = vld [vmem:[%s3 + $0x88] sm:$0xff]
        %v1034 = vld [vmem:[%s3 + $0x90] sm:$0xff]
        %v1035 = vld [vmem:[%s3 + $0x98] sm:$0xff]
        %v1036 = vld [vmem:[%s3 + $0xa0] sm:$0xff]
        %v1037 = vld [vmem:[%s3 + $0xa8] sm:$0xff]
        %v1038 = vld [vmem:[%s3 + $0xb0] sm:$0xff]
        %v1039 = vld [vmem:[%s3 + $0xb8] sm:$0xff]
        %v1040 = vld [vmem:[%s3 + $0xc0] sm:$0xff]
        %v1041 = vld [vmem:[%s3 + $0xc8] sm:$0xff]
        %v1042 = vld [vmem:[%s3 + $0xd0] sm:$0xff]
        %v1043 = vld [vmem:[%s3 + $0xd8] sm:$0xff]
        %v1044 = vld [vmem:[%s3 + $0xe0] sm:$0xff]
        %v1045 = vld [vmem:[%s3 + $0xe8] sm:$0xff]
        %v1046 = vld [vmem:[%s3 + $0xf0] sm:$0xff]
        %v1047 = vld [vmem:[%s3 + $0xf8] sm:$0xff]
        %v1048 = vld [vmem:[%s3 + $0x100] sm:$0xff]
        %v1049 = vld [vmem:[%s3 + $0x108] sm:$0xff]
        %v1050 = vld [vmem:[%s3 + $0x110] sm:$0xff]
        %v1051 = vld [vmem:[%s3 + $0x118] sm:$0xff]
        %v1052 = vld [vmem:[%s3 + $0x120] sm:$0xff]
        %v1053 = vld [vmem:[%s3 + $0x128] sm:$0xff]
        %v1054 = vld [vmem:[%s3 + $0x130] sm:$0xff]
        %v1055 = vld [vmem:[%s3 + $0x138] sm:$0xff]
        %v1056 = vld [vmem:[%s3 + $0x140] sm:$0xff]
        %v1057 = vld [vmem:[%s3 + $0x148] sm:$0xff]
        %v1058 = vld [vmem:[%s3 + $0x150] sm:$0xff]
        %v1059 = vld [vmem:[%s3 + $0x158] sm:$0xff]
        %v1060 = vld [vmem:[%s3 + $0x160] sm:$0xff]
        %v1061 = vld [vmem:[%s3 + $0x168] sm:$0xff]
        %v1062 = vld [vmem:[%s3 + $0x170] sm:$0xff]
        %v1063 = vld [vmem:[%s3 + $0x178] sm:$0xff]
        %v1064 = vpack.c.bf16 %v922, %v920
        %v1065 = vpack.c.bf16 %v923, %v921
        %v1066 = vpack.c.bf16 %v926, %v924
        %v1067 = vpack.c.bf16 %v927, %v925
        %v1068 = vpack.c.bf16 %v930, %v928
        %v1069 = vpack.c.bf16 %v931, %v929
        %v1070 = vpack.c.bf16 %v934, %v932
        %v1071 = vpack.c.bf16 %v935, %v933
        %v1072 = vpack.c.bf16 %v938, %v936
        %v1073 = vpack.c.bf16 %v939, %v937
        %v1074 = vpack.c.bf16 %v942, %v940
        %v1075 = vpack.c.bf16 %v943, %v941
        %v1076 = vpack.c.bf16 %v946, %v944
        %v1077 = vpack.c.bf16 %v947, %v945
        %v1078 = vpack.c.bf16 %v950, %v948
        %v1079 = vpack.c.bf16 %v951, %v949
        %v1080 = vpack.c.bf16 %v954, %v952
        %v1081 = vpack.c.bf16 %v955, %v953
        %v1082 = vpack.c.bf16 %v958, %v956
        %v1083 = vpack.c.bf16 %v959, %v957
        %v1084 = vpack.c.bf16 %v962, %v960
        %v1085 = vpack.c.bf16 %v963, %v961
        %v1086 = vpack.c.bf16 %v966, %v964
        %v1087 = vpack.c.bf16 %v967, %v965
        %v1088 = vld [vmem:[%s4] sm:$0xff]
        %v1089 = vld [vmem:[%s4 + $0x8] sm:$0xff]
        %v1090 = vld [vmem:[%s4 + $0x10] sm:$0xff]
        %v1091 = vld [vmem:[%s4 + $0x18] sm:$0xff]
        %v1092 = vld [vmem:[%s4 + $0x20] sm:$0xff]
        %v1093 = vld [vmem:[%s4 + $0x28] sm:$0xff]
        %v1094 = vld [vmem:[%s4 + $0x30] sm:$0xff]
        %v1095 = vld [vmem:[%s4 + $0x38] sm:$0xff]
        %v1096 = vld [vmem:[%s4 + $0x40] sm:$0xff]
        %v1097 = vld [vmem:[%s4 + $0x48] sm:$0xff]
        %v1098 = vld [vmem:[%s4 + $0x50] sm:$0xff]
        %v1099 = vld [vmem:[%s4 + $0x58] sm:$0xff]
        %v1100 = vld [vmem:[%s4 + $0x60] sm:$0xff]
        %v1101 = vld [vmem:[%s4 + $0x68] sm:$0xff]
        %v1102 = vld [vmem:[%s4 + $0x70] sm:$0xff]
        %v1103 = vld [vmem:[%s4 + $0x78] sm:$0xff]
        %v1104 = vld [vmem:[%s4 + $0x80] sm:$0xff]
        %v1105 = vld [vmem:[%s4 + $0x88] sm:$0xff]
        %v1106 = vld [vmem:[%s4 + $0x90] sm:$0xff]
        %v1107 = vld [vmem:[%s4 + $0x98] sm:$0xff]
        %v1108 = vld [vmem:[%s4 + $0xa0] sm:$0xff]
        %v1109 = vld [vmem:[%s4 + $0xa8] sm:$0xff]
        %v1110 = vld [vmem:[%s4 + $0xb0] sm:$0xff]
        %v1111 = vld [vmem:[%s4 + $0xb8] sm:$0xff]
        %v1112 = vld [vmem:[%s4 + $0xc0] sm:$0xff]
        %v1113 = vld [vmem:[%s4 + $0xc8] sm:$0xff]
        %v1114 = vld [vmem:[%s4 + $0xd0] sm:$0xff]
        %v1115 = vld [vmem:[%s4 + $0xd8] sm:$0xff]
        %v1116 = vld [vmem:[%s4 + $0xe0] sm:$0xff]
        %v1117 = vld [vmem:[%s4 + $0xe8] sm:$0xff]
        %v1118 = vld [vmem:[%s4 + $0xf0] sm:$0xff]
        %v1119 = vld [vmem:[%s4 + $0xf8] sm:$0xff]
        %v1120 = vld [vmem:[%s4 + $0x100] sm:$0xff]
        %v1121 = vld [vmem:[%s4 + $0x108] sm:$0xff]
        %v1122 = vld [vmem:[%s4 + $0x110] sm:$0xff]
        %v1123 = vld [vmem:[%s4 + $0x118] sm:$0xff]
        %v1124 = vld [vmem:[%s4 + $0x120] sm:$0xff]
        %v1125 = vld [vmem:[%s4 + $0x128] sm:$0xff]
        %v1126 = vld [vmem:[%s4 + $0x130] sm:$0xff]
        %v1127 = vld [vmem:[%s4 + $0x138] sm:$0xff]
        %v1128 = vld [vmem:[%s4 + $0x140] sm:$0xff]
        %v1129 = vld [vmem:[%s4 + $0x148] sm:$0xff]
        %v1130 = vld [vmem:[%s4 + $0x150] sm:$0xff]
        %v1131 = vld [vmem:[%s4 + $0x158] sm:$0xff]
        %v1132 = vld [vmem:[%s4 + $0x160] sm:$0xff]
        %v1133 = vld [vmem:[%s4 + $0x168] sm:$0xff]
        %v1134 = vld [vmem:[%s4 + $0x170] sm:$0xff]
        %v1135 = vld [vmem:[%s4 + $0x178] sm:$0xff]
        %1137 = vset.pattern.permute.xlu0 0
        %1138 = vperm.xlu0 %1137, %v1088
        %v1139 = vpop.permute.xlu0 %1138
        %1142 = vset.pattern.permute.xlu0 0
        %1143 = vperm.xlu0 %1142, %v1089
        %v1144 = vpop.permute.xlu0 %1143
        %1147 = vset.pattern.permute.xlu0 0
        %1148 = vperm.xlu0 %1147, %v1090
        %v1149 = vpop.permute.xlu0 %1148
        %1152 = vset.pattern.permute.xlu0 0
        %1153 = vperm.xlu0 %1152, %v1091
        %v1154 = vpop.permute.xlu0 %1153
        %1157 = vset.pattern.permute.xlu0 0
        %1158 = vperm.xlu0 %1157, %v1092
        %v1159 = vpop.permute.xlu0 %1158
        %1162 = vset.pattern.permute.xlu0 0
        %1163 = vperm.xlu0 %1162, %v1093
        %v1164 = vpop.permute.xlu0 %1163
        %1167 = vset.pattern.permute.xlu0 0
        %1168 = vperm.xlu0 %1167, %v1094
        %v1169 = vpop.permute.xlu0 %1168
        %1172 = vset.pattern.permute.xlu0 0
        %1173 = vperm.xlu0 %1172, %v1095
        %v1174 = vpop.permute.xlu0 %1173
        %1177 = vset.pattern.permute.xlu0 0
        %1178 = vperm.xlu0 %1177, %v1096
        %v1179 = vpop.permute.xlu0 %1178
        %1182 = vset.pattern.permute.xlu0 0
        %1183 = vperm.xlu0 %1182, %v1097
        %v1184 = vpop.permute.xlu0 %1183
        %1187 = vset.pattern.permute.xlu0 0
        %1188 = vperm.xlu0 %1187, %v1098
        %v1189 = vpop.permute.xlu0 %1188
        %1192 = vset.pattern.permute.xlu0 0
        %1193 = vperm.xlu0 %1192, %v1099
        %v1194 = vpop.permute.xlu0 %1193
        %1197 = vset.pattern.permute.xlu0 0
        %1198 = vperm.xlu0 %1197, %v1100
        %v1199 = vpop.permute.xlu0 %1198
        %1202 = vset.pattern.permute.xlu0 0
        %1203 = vperm.xlu0 %1202, %v1101
        %v1204 = vpop.permute.xlu0 %1203
        %1207 = vset.pattern.permute.xlu0 0
        %1208 = vperm.xlu0 %1207, %v1102
        %v1209 = vpop.permute.xlu0 %1208
        %1212 = vset.pattern.permute.xlu0 0
        %1213 = vperm.xlu0 %1212, %v1103
        %v1214 = vpop.permute.xlu0 %1213
        %1217 = vset.pattern.permute.xlu0 0
        %1218 = vperm.xlu0 %1217, %v1104
        %v1219 = vpop.permute.xlu0 %1218
        %1222 = vset.pattern.permute.xlu0 0
        %1223 = vperm.xlu0 %1222, %v1105
        %v1224 = vpop.permute.xlu0 %1223
        %1227 = vset.pattern.permute.xlu0 0
        %1228 = vperm.xlu0 %1227, %v1106
        %v1229 = vpop.permute.xlu0 %1228
        %1232 = vset.pattern.permute.xlu0 0
        %1233 = vperm.xlu0 %1232, %v1107
        %v1234 = vpop.permute.xlu0 %1233
        %1237 = vset.pattern.permute.xlu0 0
        %1238 = vperm.xlu0 %1237, %v1108
        %v1239 = vpop.permute.xlu0 %1238
        %1242 = vset.pattern.permute.xlu0 0
        %1243 = vperm.xlu0 %1242, %v1109
        %v1244 = vpop.permute.xlu0 %1243
        %1247 = vset.pattern.permute.xlu0 0
        %1248 = vperm.xlu0 %1247, %v1110
        %v1249 = vpop.permute.xlu0 %1248
        %1252 = vset.pattern.permute.xlu0 0
        %1253 = vperm.xlu0 %1252, %v1111
        %v1254 = vpop.permute.xlu0 %1253
        %1257 = vset.pattern.permute.xlu0 0
        %1258 = vperm.xlu0 %1257, %v1112
        %v1259 = vpop.permute.xlu0 %1258
        %1262 = vset.pattern.permute.xlu0 0
        %1263 = vperm.xlu0 %1262, %v1113
        %v1264 = vpop.permute.xlu0 %1263
        %1267 = vset.pattern.permute.xlu0 0
        %1268 = vperm.xlu0 %1267, %v1114
        %v1269 = vpop.permute.xlu0 %1268
        %1272 = vset.pattern.permute.xlu0 0
        %1273 = vperm.xlu0 %1272, %v1115
        %v1274 = vpop.permute.xlu0 %1273
        %1277 = vset.pattern.permute.xlu0 0
        %1278 = vperm.xlu0 %1277, %v1116
        %v1279 = vpop.permute.xlu0 %1278
        %1282 = vset.pattern.permute.xlu0 0
        %1283 = vperm.xlu0 %1282, %v1117
        %v1284 = vpop.permute.xlu0 %1283
        %1287 = vset.pattern.permute.xlu0 0
        %1288 = vperm.xlu0 %1287, %v1118
        %v1289 = vpop.permute.xlu0 %1288
        %1292 = vset.pattern.permute.xlu0 0
        %1293 = vperm.xlu0 %1292, %v1119
        %v1294 = vpop.permute.xlu0 %1293
        %1297 = vset.pattern.permute.xlu0 0
        %1298 = vperm.xlu0 %1297, %v1120
        %v1299 = vpop.permute.xlu0 %1298
        %1302 = vset.pattern.permute.xlu0 0
        %1303 = vperm.xlu0 %1302, %v1121
        %v1304 = vpop.permute.xlu0 %1303
        %1307 = vset.pattern.permute.xlu0 0
        %1308 = vperm.xlu0 %1307, %v1122
        %v1309 = vpop.permute.xlu0 %1308
        %1312 = vset.pattern.permute.xlu0 0
        %1313 = vperm.xlu0 %1312, %v1123
        %v1314 = vpop.permute.xlu0 %1313
        %1317 = vset.pattern.permute.xlu0 0
        %1318 = vperm.xlu0 %1317, %v1124
        %v1319 = vpop.permute.xlu0 %1318
        %1322 = vset.pattern.permute.xlu0 0
        %1323 = vperm.xlu0 %1322, %v1125
        %v1324 = vpop.permute.xlu0 %1323
        %1327 = vset.pattern.permute.xlu0 0
        %1328 = vperm.xlu0 %1327, %v1126
        %v1329 = vpop.permute.xlu0 %1328
        %1332 = vset.pattern.permute.xlu0 0
        %1333 = vperm.xlu0 %1332, %v1127
        %v1334 = vpop.permute.xlu0 %1333
        %1337 = vset.pattern.permute.xlu0 0
        %1338 = vperm.xlu0 %1337, %v1128
        %v1339 = vpop.permute.xlu0 %1338
        %1342 = vset.pattern.permute.xlu0 0
        %1343 = vperm.xlu0 %1342, %v1129
        %v1344 = vpop.permute.xlu0 %1343
        %1347 = vset.pattern.permute.xlu0 0
        %1348 = vperm.xlu0 %1347, %v1130
        %v1349 = vpop.permute.xlu0 %1348
        %1352 = vset.pattern.permute.xlu0 0
        %1353 = vperm.xlu0 %1352, %v1131
        %v1354 = vpop.permute.xlu0 %1353
        %1357 = vset.pattern.permute.xlu0 0
        %1358 = vperm.xlu0 %1357, %v1132
        %v1359 = vpop.permute.xlu0 %1358
        %1362 = vset.pattern.permute.xlu0 0
        %1363 = vperm.xlu0 %1362, %v1133
        %v1364 = vpop.permute.xlu0 %1363
        %1367 = vset.pattern.permute.xlu0 0
        %1368 = vperm.xlu0 %1367, %v1134
        %v1369 = vpop.permute.xlu0 %1368
        %1372 = vset.pattern.permute.xlu0 0
        %1373 = vperm.xlu0 %1372, %v1135
        %v1374 = vpop.permute.xlu0 %1373
        %v1424 = vunpack.c.l.b16 %v1016
        %v1425 = vunpack.c.h.b16 %v1016
        %v1426 = vunpack.c.l.b16 %v1017
        %v1427 = vunpack.c.h.b16 %v1017
        %v1428 = vunpack.c.l.b16 %v1018
        %v1429 = vunpack.c.h.b16 %v1018
        %v1430 = vunpack.c.l.b16 %v1019
        %v1431 = vunpack.c.h.b16 %v1019
        %v1432 = vunpack.c.l.b16 %v1020
        %v1433 = vunpack.c.h.b16 %v1020
        %v1434 = vunpack.c.l.b16 %v1021
        %v1435 = vunpack.c.h.b16 %v1021
        %v1436 = vunpack.c.l.b16 %v1022
        %v1437 = vunpack.c.h.b16 %v1022
        %v1438 = vunpack.c.l.b16 %v1023
        %v1439 = vunpack.c.h.b16 %v1023
        %v1440 = vunpack.c.l.b16 %v1024
        %v1441 = vunpack.c.h.b16 %v1024
        %v1442 = vunpack.c.l.b16 %v1025
        %v1443 = vunpack.c.h.b16 %v1025
        %v1444 = vunpack.c.l.b16 %v1026
        %v1445 = vunpack.c.h.b16 %v1026
        %v1446 = vunpack.c.l.b16 %v1027
        %v1447 = vunpack.c.h.b16 %v1027
        %v1448 = vunpack.c.l.b16 %v1028
        %v1449 = vunpack.c.h.b16 %v1028
        %v1450 = vunpack.c.l.b16 %v1029
        %v1451 = vunpack.c.h.b16 %v1029
        %v1452 = vunpack.c.l.b16 %v1030
        %v1453 = vunpack.c.h.b16 %v1030
        %v1454 = vunpack.c.l.b16 %v1031
        %v1455 = vunpack.c.h.b16 %v1031
        %v1456 = vunpack.c.l.b16 %v1032
        %v1457 = vunpack.c.h.b16 %v1032
        %v1458 = vunpack.c.l.b16 %v1033
        %v1459 = vunpack.c.h.b16 %v1033
        %v1460 = vunpack.c.l.b16 %v1034
        %v1461 = vunpack.c.h.b16 %v1034
        %v1462 = vunpack.c.l.b16 %v1035
        %v1463 = vunpack.c.h.b16 %v1035
        %v1464 = vunpack.c.l.b16 %v1036
        %v1465 = vunpack.c.h.b16 %v1036
        %v1466 = vunpack.c.l.b16 %v1037
        %v1467 = vunpack.c.h.b16 %v1037
        %v1468 = vunpack.c.l.b16 %v1038
        %v1469 = vunpack.c.h.b16 %v1038
        %v1470 = vunpack.c.l.b16 %v1039
        %v1471 = vunpack.c.h.b16 %v1039
        %v1472 = vunpack.c.l.b16 %v1040
        %v1473 = vunpack.c.h.b16 %v1040
        %v1474 = vunpack.c.l.b16 %v1041
        %v1475 = vunpack.c.h.b16 %v1041
        %v1476 = vunpack.c.l.b16 %v1042
        %v1477 = vunpack.c.h.b16 %v1042
        %v1478 = vunpack.c.l.b16 %v1043
        %v1479 = vunpack.c.h.b16 %v1043
        %v1480 = vunpack.c.l.b16 %v1044
        %v1481 = vunpack.c.h.b16 %v1044
        %v1482 = vunpack.c.l.b16 %v1045
        %v1483 = vunpack.c.h.b16 %v1045
        %v1484 = vunpack.c.l.b16 %v1046
        %v1485 = vunpack.c.h.b16 %v1046
        %v1486 = vunpack.c.l.b16 %v1047
        %v1487 = vunpack.c.h.b16 %v1047
        %v1488 = vunpack.c.l.b16 %v1048
        %v1489 = vunpack.c.h.b16 %v1048
        %v1490 = vunpack.c.l.b16 %v1049
        %v1491 = vunpack.c.h.b16 %v1049
        %v1492 = vunpack.c.l.b16 %v1050
        %v1493 = vunpack.c.h.b16 %v1050
        %v1494 = vunpack.c.l.b16 %v1051
        %v1495 = vunpack.c.h.b16 %v1051
        %v1496 = vunpack.c.l.b16 %v1052
        %v1497 = vunpack.c.h.b16 %v1052
        %v1498 = vunpack.c.l.b16 %v1053
        %v1499 = vunpack.c.h.b16 %v1053
        %v1500 = vunpack.c.l.b16 %v1054
        %v1501 = vunpack.c.h.b16 %v1054
        %v1502 = vunpack.c.l.b16 %v1055
        %v1503 = vunpack.c.h.b16 %v1055
        %v1504 = vunpack.c.l.b16 %v1056
        %v1505 = vunpack.c.h.b16 %v1056
        %v1506 = vunpack.c.l.b16 %v1057
        %v1507 = vunpack.c.h.b16 %v1057
        %v1508 = vunpack.c.l.b16 %v1058
        %v1509 = vunpack.c.h.b16 %v1058
        %v1510 = vunpack.c.l.b16 %v1059
        %v1511 = vunpack.c.h.b16 %v1059
        %v1512 = vunpack.c.l.b16 %v1060
        %v1513 = vunpack.c.h.b16 %v1060
        %v1514 = vunpack.c.l.b16 %v1061
        %v1515 = vunpack.c.h.b16 %v1061
        %v1516 = vunpack.c.l.b16 %v1062
        %v1517 = vunpack.c.h.b16 %v1062
        %v1518 = vunpack.c.l.b16 %v1063
        %v1519 = vunpack.c.h.b16 %v1063
        %v1520 = vpack.c.b16 %v1426, %v1424
        %v1521 = vpack.c.b16 %v1427, %v1425
        %v1522 = vpack.c.b16 %v1430, %v1428
        %v1523 = vpack.c.b16 %v1431, %v1429
        %v1524 = vpack.c.b16 %v1434, %v1432
        %v1525 = vpack.c.b16 %v1435, %v1433
        %v1526 = vpack.c.b16 %v1438, %v1436
        %v1527 = vpack.c.b16 %v1439, %v1437
        %v1528 = vpack.c.b16 %v1442, %v1440
        %v1529 = vpack.c.b16 %v1443, %v1441
        %v1530 = vpack.c.b16 %v1446, %v1444
        %v1531 = vpack.c.b16 %v1447, %v1445
        %v1532 = vpack.c.b16 %v1450, %v1448
        %v1533 = vpack.c.b16 %v1451, %v1449
        %v1534 = vpack.c.b16 %v1454, %v1452
        %v1535 = vpack.c.b16 %v1455, %v1453
        %v1536 = vpack.c.b16 %v1458, %v1456
        %v1537 = vpack.c.b16 %v1459, %v1457
        %v1538 = vpack.c.b16 %v1462, %v1460
        %v1539 = vpack.c.b16 %v1463, %v1461
        %v1540 = vpack.c.b16 %v1466, %v1464
        %v1541 = vpack.c.b16 %v1467, %v1465
        %v1542 = vpack.c.b16 %v1470, %v1468
        %v1543 = vpack.c.b16 %v1471, %v1469
        %v1544 = vpack.c.b16 %v1474, %v1472
        %v1545 = vpack.c.b16 %v1475, %v1473
        %v1546 = vpack.c.b16 %v1478, %v1476
        %v1547 = vpack.c.b16 %v1479, %v1477
        %v1548 = vpack.c.b16 %v1482, %v1480
        %v1549 = vpack.c.b16 %v1483, %v1481
        %v1550 = vpack.c.b16 %v1486, %v1484
        %v1551 = vpack.c.b16 %v1487, %v1485
        %v1552 = vpack.c.b16 %v1490, %v1488
        %v1553 = vpack.c.b16 %v1491, %v1489
        %v1554 = vpack.c.b16 %v1494, %v1492
        %v1555 = vpack.c.b16 %v1495, %v1493
        %v1556 = vpack.c.b16 %v1498, %v1496
        %v1557 = vpack.c.b16 %v1499, %v1497
        %v1558 = vpack.c.b16 %v1502, %v1500
        %v1559 = vpack.c.b16 %v1503, %v1501
        %v1560 = vpack.c.b16 %v1506, %v1504
        %v1561 = vpack.c.b16 %v1507, %v1505
        %v1562 = vpack.c.b16 %v1510, %v1508
        %v1563 = vpack.c.b16 %v1511, %v1509
        %v1564 = vpack.c.b16 %v1514, %v1512
        %v1565 = vpack.c.b16 %v1515, %v1513
        %v1566 = vpack.c.b16 %v1518, %v1516
        %v1567 = vpack.c.b16 %v1519, %v1517
        %vm1592 = vcmask 523264
        %v1594 = vsel %vm1592, %v1521, 0
        %v1597 = vsel %vm1592, %v1523, 0
        %v1600 = vsel %vm1592, %v1525, 0
        %v1603 = vsel %vm1592, %v1527, 0
        %v1606 = vsel %vm1592, %v1529, 0
        %v1609 = vsel %vm1592, %v1531, 0
        %v1612 = vsel %vm1592, %v1533, 0
        %v1615 = vsel %vm1592, %v1535, 0
        %v1618 = vsel %vm1592, %v1537, 0
        %v1621 = vsel %vm1592, %v1539, 0
        %v1624 = vsel %vm1592, %v1541, 0
        %v1627 = vsel %vm1592, %v1543, 0
        %v1630 = vsel %vm1592, %v1545, 0
        %v1633 = vsel %vm1592, %v1547, 0
        %v1636 = vsel %vm1592, %v1549, 0
        %v1639 = vsel %vm1592, %v1551, 0
        %v1642 = vsel %vm1592, %v1553, 0
        %v1645 = vsel %vm1592, %v1555, 0
        %v1648 = vsel %vm1592, %v1557, 0
        %v1651 = vsel %vm1592, %v1559, 0
        %v1654 = vsel %vm1592, %v1561, 0
        %v1657 = vsel %vm1592, %v1563, 0
        %v1660 = vsel %vm1592, %v1565, 0
        %v1663 = vsel %vm1592, %v1567, 0
        %1665 = vmatpush.bf16.msra.mxu0 %v1078
        %1666 = vmatpush.bf16.msra.mxu0 %v1076
        %1667 = vmatpush.bf16.msra.mxu0 %v1074
        %1668 = vmatpush.bf16.msra.mxu0 %v1072
        %1669 = vmatpush.bf16.msra.mxu0 %v1070
        %1670 = vmatpush.bf16.msra.mxu0 %v1068
        %1671 = vmatpush.bf16.msra.mxu0 %v1066
        %1672 = vmatpush.bf16.msra.mxu0 %v1064
        %1673 = vmatmul.bf16.gmra.mxu0 %v1520
        %v1674 = vpop.f32.mrf.mxu0
        %v1675 = vadd.f32 %v1139, %v1674
        %v1676 = vpop.f32.mrf.mxu0
        %v1677 = vadd.f32 %v1144, %v1676
        %1678 = vmatmul.bf16.gmra.mxu0 %v1522
        %v1679 = vpop.f32.mrf.mxu0
        %v1680 = vadd.f32 %v1149, %v1679
        %v1681 = vpop.f32.mrf.mxu0
        %v1682 = vadd.f32 %v1154, %v1681
        %1683 = vmatmul.bf16.gmra.mxu0 %v1524
        %v1684 = vpop.f32.mrf.mxu0
        %v1685 = vadd.f32 %v1159, %v1684
        %v1686 = vpop.f32.mrf.mxu0
        %v1687 = vadd.f32 %v1164, %v1686
        %1688 = vmatmul.bf16.gmra.mxu0 %v1526
        %v1689 = vpop.f32.mrf.mxu0
        %v1690 = vadd.f32 %v1169, %v1689
        %v1691 = vpop.f32.mrf.mxu0
        %v1692 = vadd.f32 %v1174, %v1691
        %1693 = vmatmul.bf16.gmra.mxu0 %v1528
        %v1694 = vpop.f32.mrf.mxu0
        %v1695 = vadd.f32 %v1179, %v1694
        %v1696 = vpop.f32.mrf.mxu0
        %v1697 = vadd.f32 %v1184, %v1696
        %1698 = vmatmul.bf16.gmra.mxu0 %v1530
        %v1699 = vpop.f32.mrf.mxu0
        %v1700 = vadd.f32 %v1189, %v1699
        %v1701 = vpop.f32.mrf.mxu0
        %v1702 = vadd.f32 %v1194, %v1701
        %1703 = vmatmul.bf16.gmra.mxu0 %v1532
        %v1704 = vpop.f32.mrf.mxu0
        %v1705 = vadd.f32 %v1199, %v1704
        %v1706 = vpop.f32.mrf.mxu0
        %v1707 = vadd.f32 %v1204, %v1706
        %1708 = vmatmul.bf16.gmra.mxu0 %v1534
        %v1709 = vpop.f32.mrf.mxu0
        %v1710 = vadd.f32 %v1209, %v1709
        %v1711 = vpop.f32.mrf.mxu0
        %v1712 = vadd.f32 %v1214, %v1711
        %1713 = vmatmul.bf16.gmra.mxu0 %v1536
        %v1714 = vpop.f32.mrf.mxu0
        %v1715 = vadd.f32 %v1219, %v1714
        %v1716 = vpop.f32.mrf.mxu0
        %v1717 = vadd.f32 %v1224, %v1716
        %1718 = vmatmul.bf16.gmra.mxu0 %v1538
        %v1719 = vpop.f32.mrf.mxu0
        %v1720 = vadd.f32 %v1229, %v1719
        %v1721 = vpop.f32.mrf.mxu0
        %v1722 = vadd.f32 %v1234, %v1721
        %1723 = vmatmul.bf16.gmra.mxu0 %v1540
        %v1724 = vpop.f32.mrf.mxu0
        %v1725 = vadd.f32 %v1239, %v1724
        %v1726 = vpop.f32.mrf.mxu0
        %v1727 = vadd.f32 %v1244, %v1726
        %1728 = vmatmul.bf16.gmra.mxu0 %v1542
        %v1729 = vpop.f32.mrf.mxu0
        %v1730 = vadd.f32 %v1249, %v1729
        %v1731 = vpop.f32.mrf.mxu0
        %v1732 = vadd.f32 %v1254, %v1731
        %1733 = vmatmul.bf16.gmra.mxu0 %v1544
        %v1734 = vpop.f32.mrf.mxu0
        %v1735 = vadd.f32 %v1259, %v1734
        %v1736 = vpop.f32.mrf.mxu0
        %v1737 = vadd.f32 %v1264, %v1736
        %1738 = vmatmul.bf16.gmra.mxu0 %v1546
        %v1739 = vpop.f32.mrf.mxu0
        %v1740 = vadd.f32 %v1269, %v1739
        %v1741 = vpop.f32.mrf.mxu0
        %v1742 = vadd.f32 %v1274, %v1741
        %1743 = vmatmul.bf16.gmra.mxu0 %v1548
        %v1744 = vpop.f32.mrf.mxu0
        %v1745 = vadd.f32 %v1279, %v1744
        %v1746 = vpop.f32.mrf.mxu0
        %v1747 = vadd.f32 %v1284, %v1746
        %1748 = vmatmul.bf16.gmra.mxu0 %v1550
        %v1749 = vpop.f32.mrf.mxu0
        %v1750 = vadd.f32 %v1289, %v1749
        %v1751 = vpop.f32.mrf.mxu0
        %v1752 = vadd.f32 %v1294, %v1751
        %1753 = vmatmul.bf16.gmra.mxu0 %v1552
        %v1754 = vpop.f32.mrf.mxu0
        %v1755 = vadd.f32 %v1299, %v1754
        %v1756 = vpop.f32.mrf.mxu0
        %v1757 = vadd.f32 %v1304, %v1756
        %1758 = vmatmul.bf16.gmra.mxu0 %v1554
        %v1759 = vpop.f32.mrf.mxu0
        %v1760 = vadd.f32 %v1309, %v1759
        %v1761 = vpop.f32.mrf.mxu0
        %v1762 = vadd.f32 %v1314, %v1761
        %1763 = vmatmul.bf16.gmra.mxu0 %v1556
        %v1764 = vpop.f32.mrf.mxu0
        %v1765 = vadd.f32 %v1319, %v1764
        %v1766 = vpop.f32.mrf.mxu0
        %v1767 = vadd.f32 %v1324, %v1766
        %1768 = vmatmul.bf16.gmra.mxu0 %v1558
        %v1769 = vpop.f32.mrf.mxu0
        %v1770 = vadd.f32 %v1329, %v1769
        %v1771 = vpop.f32.mrf.mxu0
        %v1772 = vadd.f32 %v1334, %v1771
        %1773 = vmatmul.bf16.gmra.mxu0 %v1560
        %v1774 = vpop.f32.mrf.mxu0
        %v1775 = vadd.f32 %v1339, %v1774
        %v1776 = vpop.f32.mrf.mxu0
        %v1777 = vadd.f32 %v1344, %v1776
        %1778 = vmatmul.bf16.gmra.mxu0 %v1562
        %v1779 = vpop.f32.mrf.mxu0
        %v1780 = vadd.f32 %v1349, %v1779
        %v1781 = vpop.f32.mrf.mxu0
        %v1782 = vadd.f32 %v1354, %v1781
        %1783 = vmatmul.bf16.gmra.mxu0 %v1564
        %v1784 = vpop.f32.mrf.mxu0
        %v1785 = vadd.f32 %v1359, %v1784
        %v1786 = vpop.f32.mrf.mxu0
        %v1787 = vadd.f32 %v1364, %v1786
        %1788 = vmatmul.bf16.gmra.mxu0 %v1566
        %v1789 = vpop.f32.mrf.mxu0
        %v1790 = vadd.f32 %v1369, %v1789
        %v1791 = vpop.f32.mrf.mxu0
        %v1792 = vadd.f32 %v1374, %v1791
        %1793 = vdwg.mxu0
        %1794 = vmatpush.bf16.msra.mxu0 0
        %1795 = vmatpush.bf16.msra.mxu0 0
        %1796 = vmatpush.bf16.msra.mxu0 0
        %1797 = vmatpush.bf16.msra.mxu0 0
        %1798 = vmatpush.bf16.msra.mxu0 %v1086
        %1799 = vmatpush.bf16.msra.mxu0 %v1084
        %1800 = vmatpush.bf16.msra.mxu0 %v1082
        %1801 = vmatpush.bf16.msra.mxu0 %v1080
        %1802 = vmatmul.bf16.gmra.mxu0 %v1594
        %v1803 = vpop.f32.mrf.mxu0
        %v1804 = vadd.f32 %v1675, %v1803
        %v1805 = vpop.f32.mrf.mxu0
        %v1806 = vadd.f32 %v1677, %v1805
        %1807 = vmatmul.bf16.gmra.mxu0 %v1597
        %v1808 = vpop.f32.mrf.mxu0
        %v1809 = vadd.f32 %v1680, %v1808
        %v1810 = vpop.f32.mrf.mxu0
        %v1811 = vadd.f32 %v1682, %v1810
        %1812 = vmatmul.bf16.gmra.mxu0 %v1600
        %v1813 = vpop.f32.mrf.mxu0
        %v1814 = vadd.f32 %v1685, %v1813
        %v1815 = vpop.f32.mrf.mxu0
        %v1816 = vadd.f32 %v1687, %v1815
        %1817 = vmatmul.bf16.gmra.mxu0 %v1603
        %v1818 = vpop.f32.mrf.mxu0
        %v1819 = vadd.f32 %v1690, %v1818
        %v1820 = vpop.f32.mrf.mxu0
        %v1821 = vadd.f32 %v1692, %v1820
        %1822 = vmatmul.bf16.gmra.mxu0 %v1606
        %v1823 = vpop.f32.mrf.mxu0
        %v1824 = vadd.f32 %v1695, %v1823
        %v1825 = vpop.f32.mrf.mxu0
        %v1826 = vadd.f32 %v1697, %v1825
        %1827 = vmatmul.bf16.gmra.mxu0 %v1609
        %v1828 = vpop.f32.mrf.mxu0
        %v1829 = vadd.f32 %v1700, %v1828
        %v1830 = vpop.f32.mrf.mxu0
        %v1831 = vadd.f32 %v1702, %v1830
        %1832 = vmatmul.bf16.gmra.mxu0 %v1612
        %v1833 = vpop.f32.mrf.mxu0
        %v1834 = vadd.f32 %v1705, %v1833
        %v1835 = vpop.f32.mrf.mxu0
        %v1836 = vadd.f32 %v1707, %v1835
        %1837 = vmatmul.bf16.gmra.mxu0 %v1615
        %v1838 = vpop.f32.mrf.mxu0
        %v1839 = vadd.f32 %v1710, %v1838
        %v1840 = vpop.f32.mrf.mxu0
        %v1841 = vadd.f32 %v1712, %v1840
        %1842 = vmatmul.bf16.gmra.mxu0 %v1618
        %v1843 = vpop.f32.mrf.mxu0
        %v1844 = vadd.f32 %v1715, %v1843
        %v1845 = vpop.f32.mrf.mxu0
        %v1846 = vadd.f32 %v1717, %v1845
        %1847 = vmatmul.bf16.gmra.mxu0 %v1621
        %v1848 = vpop.f32.mrf.mxu0
        %v1849 = vadd.f32 %v1720, %v1848
        %v1850 = vpop.f32.mrf.mxu0
        %v1851 = vadd.f32 %v1722, %v1850
        %1852 = vmatmul.bf16.gmra.mxu0 %v1624
        %v1853 = vpop.f32.mrf.mxu0
        %v1854 = vadd.f32 %v1725, %v1853
        %v1855 = vpop.f32.mrf.mxu0
        %v1856 = vadd.f32 %v1727, %v1855
        %1857 = vmatmul.bf16.gmra.mxu0 %v1627
        %v1858 = vpop.f32.mrf.mxu0
        %v1859 = vadd.f32 %v1730, %v1858
        %v1860 = vpop.f32.mrf.mxu0
        %v1861 = vadd.f32 %v1732, %v1860
        %1862 = vmatmul.bf16.gmra.mxu0 %v1630
        %v1863 = vpop.f32.mrf.mxu0
        %v1864 = vadd.f32 %v1735, %v1863
        %v1865 = vpop.f32.mrf.mxu0
        %v1866 = vadd.f32 %v1737, %v1865
        %1867 = vmatmul.bf16.gmra.mxu0 %v1633
        %v1868 = vpop.f32.mrf.mxu0
        %v1869 = vadd.f32 %v1740, %v1868
        %v1870 = vpop.f32.mrf.mxu0
        %v1871 = vadd.f32 %v1742, %v1870
        %1872 = vmatmul.bf16.gmra.mxu0 %v1636
        %v1873 = vpop.f32.mrf.mxu0
        %v1874 = vadd.f32 %v1745, %v1873
        %v1875 = vpop.f32.mrf.mxu0
        %v1876 = vadd.f32 %v1747, %v1875
        %1877 = vmatmul.bf16.gmra.mxu0 %v1639
        %v1878 = vpop.f32.mrf.mxu0
        %v1879 = vadd.f32 %v1750, %v1878
        %v1880 = vpop.f32.mrf.mxu0
        %v1881 = vadd.f32 %v1752, %v1880
        %1882 = vmatmul.bf16.gmra.mxu0 %v1642
        %v1883 = vpop.f32.mrf.mxu0
        %v1884 = vadd.f32 %v1755, %v1883
        %v1885 = vpop.f32.mrf.mxu0
        %v1886 = vadd.f32 %v1757, %v1885
        %1887 = vmatmul.bf16.gmra.mxu0 %v1645
        %v1888 = vpop.f32.mrf.mxu0
        %v1889 = vadd.f32 %v1760, %v1888
        %v1890 = vpop.f32.mrf.mxu0
        %v1891 = vadd.f32 %v1762, %v1890
        %1892 = vmatmul.bf16.gmra.mxu0 %v1648
        %v1893 = vpop.f32.mrf.mxu0
        %v1894 = vadd.f32 %v1765, %v1893
        %v1895 = vpop.f32.mrf.mxu0
        %v1896 = vadd.f32 %v1767, %v1895
        %1897 = vmatmul.bf16.gmra.mxu0 %v1651
        %v1898 = vpop.f32.mrf.mxu0
        %v1899 = vadd.f32 %v1770, %v1898
        %v1900 = vpop.f32.mrf.mxu0
        %v1901 = vadd.f32 %v1772, %v1900
        %1902 = vmatmul.bf16.gmra.mxu0 %v1654
        %v1903 = vpop.f32.mrf.mxu0
        %v1904 = vadd.f32 %v1775, %v1903
        %v1905 = vpop.f32.mrf.mxu0
        %v1906 = vadd.f32 %v1777, %v1905
        %1907 = vmatmul.bf16.gmra.mxu0 %v1657
        %v1908 = vpop.f32.mrf.mxu0
        %v1909 = vadd.f32 %v1780, %v1908
        %v1910 = vpop.f32.mrf.mxu0
        %v1911 = vadd.f32 %v1782, %v1910
        %1912 = vmatmul.bf16.gmra.mxu0 %v1660
        %v1913 = vpop.f32.mrf.mxu0
        %v1914 = vadd.f32 %v1785, %v1913
        %v1915 = vpop.f32.mrf.mxu0
        %v1916 = vadd.f32 %v1787, %v1915
        %1917 = vmatmul.bf16.gmra.mxu0 %v1663
        %v1918 = vpop.f32.mrf.mxu0
        %v1919 = vadd.f32 %v1790, %v1918
        %v1920 = vpop.f32.mrf.mxu0
        %v1921 = vadd.f32 %v1792, %v1920
        %1922 = vdwg.mxu0
        %1923 = vmatpush.bf16.msra.mxu0 %v1079
        %1924 = vmatpush.bf16.msra.mxu0 %v1077
        %1925 = vmatpush.bf16.msra.mxu0 %v1075
        %1926 = vmatpush.bf16.msra.mxu0 %v1073
        %1927 = vmatpush.bf16.msra.mxu0 %v1071
        %1928 = vmatpush.bf16.msra.mxu0 %v1069
        %1929 = vmatpush.bf16.msra.mxu0 %v1067
        %1930 = vmatpush.bf16.msra.mxu0 %v1065
        %1931 = vmatmul.bf16.gmra.mxu0 %v1520
        %v1932 = vpop.f32.mrf.mxu0
        %v1933 = vadd.f32 %v1139, %v1932
        %v1934 = vpop.f32.mrf.mxu0
        %v1935 = vadd.f32 %v1144, %v1934
        %1936 = vmatmul.bf16.gmra.mxu0 %v1522
        %v1937 = vpop.f32.mrf.mxu0
        %v1938 = vadd.f32 %v1149, %v1937
        %v1939 = vpop.f32.mrf.mxu0
        %v1940 = vadd.f32 %v1154, %v1939
        %1941 = vmatmul.bf16.gmra.mxu0 %v1524
        %v1942 = vpop.f32.mrf.mxu0
        %v1943 = vadd.f32 %v1159, %v1942
        %v1944 = vpop.f32.mrf.mxu0
        %v1945 = vadd.f32 %v1164, %v1944
        %1946 = vmatmul.bf16.gmra.mxu0 %v1526
        %v1947 = vpop.f32.mrf.mxu0
        %v1948 = vadd.f32 %v1169, %v1947
        %v1949 = vpop.f32.mrf.mxu0
        %v1950 = vadd.f32 %v1174, %v1949
        %1951 = vmatmul.bf16.gmra.mxu0 %v1528
        %v1952 = vpop.f32.mrf.mxu0
        %v1953 = vadd.f32 %v1179, %v1952
        %v1954 = vpop.f32.mrf.mxu0
        %v1955 = vadd.f32 %v1184, %v1954
        %1956 = vmatmul.bf16.gmra.mxu0 %v1530
        %v1957 = vpop.f32.mrf.mxu0
        %v1958 = vadd.f32 %v1189, %v1957
        %v1959 = vpop.f32.mrf.mxu0
        %v1960 = vadd.f32 %v1194, %v1959
        %1961 = vmatmul.bf16.gmra.mxu0 %v1532
        %v1962 = vpop.f32.mrf.mxu0
        %v1963 = vadd.f32 %v1199, %v1962
        %v1964 = vpop.f32.mrf.mxu0
        %v1965 = vadd.f32 %v1204, %v1964
        %1966 = vmatmul.bf16.gmra.mxu0 %v1534
        %v1967 = vpop.f32.mrf.mxu0
        %v1968 = vadd.f32 %v1209, %v1967
        %v1969 = vpop.f32.mrf.mxu0
        %v1970 = vadd.f32 %v1214, %v1969
        %1971 = vmatmul.bf16.gmra.mxu0 %v1536
        %v1972 = vpop.f32.mrf.mxu0
        %v1973 = vadd.f32 %v1219, %v1972
        %v1974 = vpop.f32.mrf.mxu0
        %v1975 = vadd.f32 %v1224, %v1974
        %1976 = vmatmul.bf16.gmra.mxu0 %v1538
        %v1977 = vpop.f32.mrf.mxu0
        %v1978 = vadd.f32 %v1229, %v1977
        %v1979 = vpop.f32.mrf.mxu0
        %v1980 = vadd.f32 %v1234, %v1979
        %1981 = vmatmul.bf16.gmra.mxu0 %v1540
        %v1982 = vpop.f32.mrf.mxu0
        %v1983 = vadd.f32 %v1239, %v1982
        %v1984 = vpop.f32.mrf.mxu0
        %v1985 = vadd.f32 %v1244, %v1984
        %1986 = vmatmul.bf16.gmra.mxu0 %v1542
        %v1987 = vpop.f32.mrf.mxu0
        %v1988 = vadd.f32 %v1249, %v1987
        %v1989 = vpop.f32.mrf.mxu0
        %v1990 = vadd.f32 %v1254, %v1989
        %1991 = vmatmul.bf16.gmra.mxu0 %v1544
        %v1992 = vpop.f32.mrf.mxu0
        %v1993 = vadd.f32 %v1259, %v1992
        %v1994 = vpop.f32.mrf.mxu0
        %v1995 = vadd.f32 %v1264, %v1994
        %1996 = vmatmul.bf16.gmra.mxu0 %v1546
        %v1997 = vpop.f32.mrf.mxu0
        %v1998 = vadd.f32 %v1269, %v1997
        %v1999 = vpop.f32.mrf.mxu0
        %v2000 = vadd.f32 %v1274, %v1999
        %2001 = vmatmul.bf16.gmra.mxu0 %v1548
        %v2002 = vpop.f32.mrf.mxu0
        %v2003 = vadd.f32 %v1279, %v2002
        %v2004 = vpop.f32.mrf.mxu0
        %v2005 = vadd.f32 %v1284, %v2004
        %2006 = vmatmul.bf16.gmra.mxu0 %v1550
        %v2007 = vpop.f32.mrf.mxu0
        %v2008 = vadd.f32 %v1289, %v2007
        %v2009 = vpop.f32.mrf.mxu0
        %v2010 = vadd.f32 %v1294, %v2009
        %2011 = vmatmul.bf16.gmra.mxu0 %v1552
        %v2012 = vpop.f32.mrf.mxu0
        %v2013 = vadd.f32 %v1299, %v2012
        %v2014 = vpop.f32.mrf.mxu0
        %v2015 = vadd.f32 %v1304, %v2014
        %2016 = vmatmul.bf16.gmra.mxu0 %v1554
        %v2017 = vpop.f32.mrf.mxu0
        %v2018 = vadd.f32 %v1309, %v2017
        %v2019 = vpop.f32.mrf.mxu0
        %v2020 = vadd.f32 %v1314, %v2019
        %2021 = vmatmul.bf16.gmra.mxu0 %v1556
        %v2022 = vpop.f32.mrf.mxu0
        %v2023 = vadd.f32 %v1319, %v2022
        %v2024 = vpop.f32.mrf.mxu0
        %v2025 = vadd.f32 %v1324, %v2024
        %2026 = vmatmul.bf16.gmra.mxu0 %v1558
        %v2027 = vpop.f32.mrf.mxu0
        %v2028 = vadd.f32 %v1329, %v2027
        %v2029 = vpop.f32.mrf.mxu0
        %v2030 = vadd.f32 %v1334, %v2029
        %2031 = vmatmul.bf16.gmra.mxu0 %v1560
        %v2032 = vpop.f32.mrf.mxu0
        %v2033 = vadd.f32 %v1339, %v2032
        %v2034 = vpop.f32.mrf.mxu0
        %v2035 = vadd.f32 %v1344, %v2034
        %2036 = vmatmul.bf16.gmra.mxu0 %v1562
        %v2037 = vpop.f32.mrf.mxu0
        %v2038 = vadd.f32 %v1349, %v2037
        %v2039 = vpop.f32.mrf.mxu0
        %v2040 = vadd.f32 %v1354, %v2039
        %2041 = vmatmul.bf16.gmra.mxu0 %v1564
        %v2042 = vpop.f32.mrf.mxu0
        %v2043 = vadd.f32 %v1359, %v2042
        %v2044 = vpop.f32.mrf.mxu0
        %v2045 = vadd.f32 %v1364, %v2044
        %2046 = vmatmul.bf16.gmra.mxu0 %v1566
        %v2047 = vpop.f32.mrf.mxu0
        %v2048 = vadd.f32 %v1369, %v2047
        %v2049 = vpop.f32.mrf.mxu0
        %v2050 = vadd.f32 %v1374, %v2049
        %2051 = vdwg.mxu0
        %2052 = vmatpush.bf16.msra.mxu0 0
        %2053 = vmatpush.bf16.msra.mxu0 0
        %2054 = vmatpush.bf16.msra.mxu0 0
        %2055 = vmatpush.bf16.msra.mxu0 0
        %2056 = vmatpush.bf16.msra.mxu0 %v1087
        %2057 = vmatpush.bf16.msra.mxu0 %v1085
        %2058 = vmatpush.bf16.msra.mxu0 %v1083
        %2059 = vmatpush.bf16.msra.mxu0 %v1081
        %2060 = vmatmul.bf16.gmra.mxu0 %v1594
        %v2061 = vpop.f32.mrf.mxu0
        %v2062 = vadd.f32 %v1933, %v2061
        %v2063 = vpop.f32.mrf.mxu0
        %v2064 = vadd.f32 %v1935, %v2063
        %2065 = vmatmul.bf16.gmra.mxu0 %v1597
        %v2066 = vpop.f32.mrf.mxu0
        %v2067 = vadd.f32 %v1938, %v2066
        %v2068 = vpop.f32.mrf.mxu0
        %v2069 = vadd.f32 %v1940, %v2068
        %2070 = vmatmul.bf16.gmra.mxu0 %v1600
        %v2071 = vpop.f32.mrf.mxu0
        %v2072 = vadd.f32 %v1943, %v2071
        %v2073 = vpop.f32.mrf.mxu0
        %v2074 = vadd.f32 %v1945, %v2073
        %2075 = vmatmul.bf16.gmra.mxu0 %v1603
        %v2076 = vpop.f32.mrf.mxu0
        %v2077 = vadd.f32 %v1948, %v2076
        %v2078 = vpop.f32.mrf.mxu0
        %v2079 = vadd.f32 %v1950, %v2078
        %2080 = vmatmul.bf16.gmra.mxu0 %v1606
        %v2081 = vpop.f32.mrf.mxu0
        %v2082 = vadd.f32 %v1953, %v2081
        %v2083 = vpop.f32.mrf.mxu0
        %v2084 = vadd.f32 %v1955, %v2083
        %2085 = vmatmul.bf16.gmra.mxu0 %v1609
        %v2086 = vpop.f32.mrf.mxu0
        %v2087 = vadd.f32 %v1958, %v2086
        %v2088 = vpop.f32.mrf.mxu0
        %v2089 = vadd.f32 %v1960, %v2088
        %2090 = vmatmul.bf16.gmra.mxu0 %v1612
        %v2091 = vpop.f32.mrf.mxu0
        %v2092 = vadd.f32 %v1963, %v2091
        %v2093 = vpop.f32.mrf.mxu0
        %v2094 = vadd.f32 %v1965, %v2093
        %2095 = vmatmul.bf16.gmra.mxu0 %v1615
        %v2096 = vpop.f32.mrf.mxu0
        %v2097 = vadd.f32 %v1968, %v2096
        %v2098 = vpop.f32.mrf.mxu0
        %v2099 = vadd.f32 %v1970, %v2098
        %2100 = vmatmul.bf16.gmra.mxu0 %v1618
        %v2101 = vpop.f32.mrf.mxu0
        %v2102 = vadd.f32 %v1973, %v2101
        %v2103 = vpop.f32.mrf.mxu0
        %v2104 = vadd.f32 %v1975, %v2103
        %2105 = vmatmul.bf16.gmra.mxu0 %v1621
        %v2106 = vpop.f32.mrf.mxu0
        %v2107 = vadd.f32 %v1978, %v2106
        %v2108 = vpop.f32.mrf.mxu0
        %v2109 = vadd.f32 %v1980, %v2108
        %2110 = vmatmul.bf16.gmra.mxu0 %v1624
        %v2111 = vpop.f32.mrf.mxu0
        %v2112 = vadd.f32 %v1983, %v2111
        %v2113 = vpop.f32.mrf.mxu0
        %v2114 = vadd.f32 %v1985, %v2113
        %2115 = vmatmul.bf16.gmra.mxu0 %v1627
        %v2116 = vpop.f32.mrf.mxu0
        %v2117 = vadd.f32 %v1988, %v2116
        %v2118 = vpop.f32.mrf.mxu0
        %v2119 = vadd.f32 %v1990, %v2118
        %2120 = vmatmul.bf16.gmra.mxu0 %v1630
        %v2121 = vpop.f32.mrf.mxu0
        %v2122 = vadd.f32 %v1993, %v2121
        %v2123 = vpop.f32.mrf.mxu0
        %v2124 = vadd.f32 %v1995, %v2123
        %2125 = vmatmul.bf16.gmra.mxu0 %v1633
        %v2126 = vpop.f32.mrf.mxu0
        %v2127 = vadd.f32 %v1998, %v2126
        %v2128 = vpop.f32.mrf.mxu0
        %v2129 = vadd.f32 %v2000, %v2128
        %2130 = vmatmul.bf16.gmra.mxu0 %v1636
        %v2131 = vpop.f32.mrf.mxu0
        %v2132 = vadd.f32 %v2003, %v2131
        %v2133 = vpop.f32.mrf.mxu0
        %v2134 = vadd.f32 %v2005, %v2133
        %2135 = vmatmul.bf16.gmra.mxu0 %v1639
        %v2136 = vpop.f32.mrf.mxu0
        %v2137 = vadd.f32 %v2008, %v2136
        %v2138 = vpop.f32.mrf.mxu0
        %v2139 = vadd.f32 %v2010, %v2138
        %2140 = vmatmul.bf16.gmra.mxu0 %v1642
        %v2141 = vpop.f32.mrf.mxu0
        %v2142 = vadd.f32 %v2013, %v2141
        %v2143 = vpop.f32.mrf.mxu0
        %v2144 = vadd.f32 %v2015, %v2143
        %2145 = vmatmul.bf16.gmra.mxu0 %v1645
        %v2146 = vpop.f32.mrf.mxu0
        %v2147 = vadd.f32 %v2018, %v2146
        %v2148 = vpop.f32.mrf.mxu0
        %v2149 = vadd.f32 %v2020, %v2148
        %2150 = vmatmul.bf16.gmra.mxu0 %v1648
        %v2151 = vpop.f32.mrf.mxu0
        %v2152 = vadd.f32 %v2023, %v2151
        %v2153 = vpop.f32.mrf.mxu0
        %v2154 = vadd.f32 %v2025, %v2153
        %2155 = vmatmul.bf16.gmra.mxu0 %v1651
        %v2156 = vpop.f32.mrf.mxu0
        %v2157 = vadd.f32 %v2028, %v2156
        %v2158 = vpop.f32.mrf.mxu0
        %v2159 = vadd.f32 %v2030, %v2158
        %2160 = vmatmul.bf16.gmra.mxu0 %v1654
        %v2161 = vpop.f32.mrf.mxu0
        %v2162 = vadd.f32 %v2033, %v2161
        %v2163 = vpop.f32.mrf.mxu0
        %v2164 = vadd.f32 %v2035, %v2163
        %2165 = vmatmul.bf16.gmra.mxu0 %v1657
        %v2166 = vpop.f32.mrf.mxu0
        %v2167 = vadd.f32 %v2038, %v2166
        %v2168 = vpop.f32.mrf.mxu0
        %v2169 = vadd.f32 %v2040, %v2168
        %2170 = vmatmul.bf16.gmra.mxu0 %v1660
        %v2171 = vpop.f32.mrf.mxu0
        %v2172 = vadd.f32 %v2043, %v2171
        %v2173 = vpop.f32.mrf.mxu0
        %v2174 = vadd.f32 %v2045, %v2173
        %2175 = vmatmul.bf16.gmra.mxu0 %v1663
        %v2176 = vpop.f32.mrf.mxu0
        %v2177 = vadd.f32 %v2048, %v2176
        %v2178 = vpop.f32.mrf.mxu0
        %v2179 = vadd.f32 %v2050, %v2178
        %2180 = vdwg.mxu0
        %v2181 = vmax.f32 %v1804, 0.0
        %v2182 = vmax.f32 %v2062, 0.0
        %v2183 = vmax.f32 %v1806, 0.0
        %v2184 = vmax.f32 %v2064, 0.0
        %v2185 = vmax.f32 %v1809, 0.0
        %v2186 = vmax.f32 %v2067, 0.0
        %v2187 = vmax.f32 %v1811, 0.0
        %v2188 = vmax.f32 %v2069, 0.0
        %v2189 = vmax.f32 %v1814, 0.0
        %v2190 = vmax.f32 %v2072, 0.0
        %v2191 = vmax.f32 %v1816, 0.0
        %v2192 = vmax.f32 %v2074, 0.0
        %v2193 = vmax.f32 %v1819, 0.0
        %v2194 = vmax.f32 %v2077, 0.0
        %v2195 = vmax.f32 %v1821, 0.0
        %v2196 = vmax.f32 %v2079, 0.0
        %v2197 = vmax.f32 %v1824, 0.0
        %v2198 = vmax.f32 %v2082, 0.0
        %v2199 = vmax.f32 %v1826, 0.0
        %v2200 = vmax.f32 %v2084, 0.0
        %v2201 = vmax.f32 %v1829, 0.0
        %v2202 = vmax.f32 %v2087, 0.0
        %v2203 = vmax.f32 %v1831, 0.0
        %v2204 = vmax.f32 %v2089, 0.0
        %v2205 = vmax.f32 %v1834, 0.0
        %v2206 = vmax.f32 %v2092, 0.0
        %v2207 = vmax.f32 %v1836, 0.0
        %v2208 = vmax.f32 %v2094, 0.0
        %v2209 = vmax.f32 %v1839, 0.0
        %v2210 = vmax.f32 %v2097, 0.0
        %v2211 = vmax.f32 %v1841, 0.0
        %v2212 = vmax.f32 %v2099, 0.0
        %v2213 = vmax.f32 %v1844, 0.0
        %v2214 = vmax.f32 %v2102, 0.0
        %v2215 = vmax.f32 %v1846, 0.0
        %v2216 = vmax.f32 %v2104, 0.0
        %v2217 = vmax.f32 %v1849, 0.0
        %v2218 = vmax.f32 %v2107, 0.0
        %v2219 = vmax.f32 %v1851, 0.0
        %v2220 = vmax.f32 %v2109, 0.0
        %v2221 = vmax.f32 %v1854, 0.0
        %v2222 = vmax.f32 %v2112, 0.0
        %v2223 = vmax.f32 %v1856, 0.0
        %v2224 = vmax.f32 %v2114, 0.0
        %v2225 = vmax.f32 %v1859, 0.0
        %v2226 = vmax.f32 %v2117, 0.0
        %v2227 = vmax.f32 %v1861, 0.0
        %v2228 = vmax.f32 %v2119, 0.0
        %v2229 = vmax.f32 %v1864, 0.0
        %v2230 = vmax.f32 %v2122, 0.0
        %v2231 = vmax.f32 %v1866, 0.0
        %v2232 = vmax.f32 %v2124, 0.0
        %v2233 = vmax.f32 %v1869, 0.0
        %v2234 = vmax.f32 %v2127, 0.0
        %v2235 = vmax.f32 %v1871, 0.0
        %v2236 = vmax.f32 %v2129, 0.0
        %v2237 = vmax.f32 %v1874, 0.0
        %v2238 = vmax.f32 %v2132, 0.0
        %v2239 = vmax.f32 %v1876, 0.0
        %v2240 = vmax.f32 %v2134, 0.0
        %v2241 = vmax.f32 %v1879, 0.0
        %v2242 = vmax.f32 %v2137, 0.0
        %v2243 = vmax.f32 %v1881, 0.0
        %v2244 = vmax.f32 %v2139, 0.0
        %v2245 = vmax.f32 %v1884, 0.0
        %v2246 = vmax.f32 %v2142, 0.0
        %v2247 = vmax.f32 %v1886, 0.0
        %v2248 = vmax.f32 %v2144, 0.0
        %v2249 = vmax.f32 %v1889, 0.0
        %v2250 = vmax.f32 %v2147, 0.0
        %v2251 = vmax.f32 %v1891, 0.0
        %v2252 = vmax.f32 %v2149, 0.0
        %v2253 = vmax.f32 %v1894, 0.0
        %v2254 = vmax.f32 %v2152, 0.0
        %v2255 = vmax.f32 %v1896, 0.0
        %v2256 = vmax.f32 %v2154, 0.0
        %v2257 = vmax.f32 %v1899, 0.0
        %v2258 = vmax.f32 %v2157, 0.0
        %v2259 = vmax.f32 %v1901, 0.0
        %v2260 = vmax.f32 %v2159, 0.0
        %v2261 = vmax.f32 %v1904, 0.0
        %v2262 = vmax.f32 %v2162, 0.0
        %v2263 = vmax.f32 %v1906, 0.0
        %v2264 = vmax.f32 %v2164, 0.0
        %v2265 = vmax.f32 %v1909, 0.0
        %v2266 = vmax.f32 %v2167, 0.0
        %v2267 = vmax.f32 %v1911, 0.0
        %v2268 = vmax.f32 %v2169, 0.0
        %v2269 = vmax.f32 %v1914, 0.0
        %v2270 = vmax.f32 %v2172, 0.0
        %v2271 = vmax.f32 %v1916, 0.0
        %v2272 = vmax.f32 %v2174, 0.0
        %v2273 = vmax.f32 %v1919, 0.0
        %v2274 = vmax.f32 %v2177, 0.0
        %v2275 = vmax.f32 %v1921, 0.0
        %v2276 = vmax.f32 %v2179, 0.0
        %2277 = vst [vmem:[%s469 + $0x180] sm:$0xff] %v2181
        %2278 = vst [vmem:[%s469 + $0x188] sm:$0xff] %v2182
        %2279 = vst [vmem:[%s469 + $0x190] sm:$0xff] %v2183
        %2280 = vst [vmem:[%s469 + $0x198] sm:$0xff] %v2184
        %2281 = vst [vmem:[%s469 + $0x1a0] sm:$0xff] %v2185
        %2282 = vst [vmem:[%s469 + $0x1a8] sm:$0xff] %v2186
        %2283 = vst [vmem:[%s469 + $0x1b0] sm:$0xff] %v2187
        %2284 = vst [vmem:[%s469 + $0x1b8] sm:$0xff] %v2188
        %2285 = vst [vmem:[%s469 + $0x1c0] sm:$0xff] %v2189
        %2286 = vst [vmem:[%s469 + $0x1c8] sm:$0xff] %v2190
        %2287 = vst [vmem:[%s469 + $0x1d0] sm:$0xff] %v2191
        %2288 = vst [vmem:[%s469 + $0x1d8] sm:$0xff] %v2192
        %2289 = vst [vmem:[%s469 + $0x1e0] sm:$0xff] %v2193
        %2290 = vst [vmem:[%s469 + $0x1e8] sm:$0xff] %v2194
        %2291 = vst [vmem:[%s469 + $0x1f0] sm:$0xff] %v2195
        %2292 = vst [vmem:[%s469 + $0x1f8] sm:$0xff] %v2196
        %2293 = vst [vmem:[%s469 + $0x200] sm:$0xff] %v2197
        %2294 = vst [vmem:[%s469 + $0x208] sm:$0xff] %v2198
        %2295 = vst [vmem:[%s469 + $0x210] sm:$0xff] %v2199
        %2296 = vst [vmem:[%s469 + $0x218] sm:$0xff] %v2200
        %2297 = vst [vmem:[%s469 + $0x220] sm:$0xff] %v2201
        %2298 = vst [vmem:[%s469 + $0x228] sm:$0xff] %v2202
        %2299 = vst [vmem:[%s469 + $0x230] sm:$0xff] %v2203
        %2300 = vst [vmem:[%s469 + $0x238] sm:$0xff] %v2204
        %2301 = vst [vmem:[%s469 + $0x240] sm:$0xff] %v2205
        %2302 = vst [vmem:[%s469 + $0x248] sm:$0xff] %v2206
        %2303 = vst [vmem:[%s469 + $0x250] sm:$0xff] %v2207
        %2304 = vst [vmem:[%s469 + $0x258] sm:$0xff] %v2208
        %2305 = vst [vmem:[%s469 + $0x260] sm:$0xff] %v2209
        %2306 = vst [vmem:[%s469 + $0x268] sm:$0xff] %v2210
        %2307 = vst [vmem:[%s469 + $0x270] sm:$0xff] %v2211
        %2308 = vst [vmem:[%s469 + $0x278] sm:$0xff] %v2212
        %2309 = vst [vmem:[%s469 + $0x280] sm:$0xff] %v2213
        %2310 = vst [vmem:[%s469 + $0x288] sm:$0xff] %v2214
        %2311 = vst [vmem:[%s469 + $0x290] sm:$0xff] %v2215
        %2312 = vst [vmem:[%s469 + $0x298] sm:$0xff] %v2216
        %2313 = vst [vmem:[%s469 + $0x2a0] sm:$0xff] %v2217
        %2314 = vst [vmem:[%s469 + $0x2a8] sm:$0xff] %v2218
        %2315 = vst [vmem:[%s469 + $0x2b0] sm:$0xff] %v2219
        %2316 = vst [vmem:[%s469 + $0x2b8] sm:$0xff] %v2220
        %2317 = vst [vmem:[%s469 + $0x2c0] sm:$0xff] %v2221
        %2318 = vst [vmem:[%s469 + $0x2c8] sm:$0xff] %v2222
        %2319 = vst [vmem:[%s469 + $0x2d0] sm:$0xff] %v2223
        %2320 = vst [vmem:[%s469 + $0x2d8] sm:$0xff] %v2224
        %2321 = vst [vmem:[%s469 + $0x2e0] sm:$0xff] %v2225
        %2322 = vst [vmem:[%s469 + $0x2e8] sm:$0xff] %v2226
        %2323 = vst [vmem:[%s469 + $0x2f0] sm:$0xff] %v2227
        %2324 = vst [vmem:[%s469 + $0x2f8] sm:$0xff] %v2228
        %2325 = vst [vmem:[%s469 + $0x300] sm:$0xff] %v2229
        %2326 = vst [vmem:[%s469 + $0x308] sm:$0xff] %v2230
        %2327 = vst [vmem:[%s469 + $0x310] sm:$0xff] %v2231
        %2328 = vst [vmem:[%s469 + $0x318] sm:$0xff] %v2232
        %2329 = vst [vmem:[%s469 + $0x320] sm:$0xff] %v2233
        %2330 = vst [vmem:[%s469 + $0x328] sm:$0xff] %v2234
        %2331 = vst [vmem:[%s469 + $0x330] sm:$0xff] %v2235
        %2332 = vst [vmem:[%s469 + $0x338] sm:$0xff] %v2236
        %2333 = vst [vmem:[%s469 + $0x340] sm:$0xff] %v2237
        %2334 = vst [vmem:[%s469 + $0x348] sm:$0xff] %v2238
        %2335 = vst [vmem:[%s469 + $0x350] sm:$0xff] %v2239
        %2336 = vst [vmem:[%s469 + $0x358] sm:$0xff] %v2240
        %2337 = vst [vmem:[%s469 + $0x360] sm:$0xff] %v2241
        %2338 = vst [vmem:[%s469 + $0x368] sm:$0xff] %v2242
        %2339 = vst [vmem:[%s469 + $0x370] sm:$0xff] %v2243
        %2340 = vst [vmem:[%s469 + $0x378] sm:$0xff] %v2244
        %2341 = vst [vmem:[%s469 + $0x380] sm:$0xff] %v2245
        %2342 = vst [vmem:[%s469 + $0x388] sm:$0xff] %v2246
        %2343 = vst [vmem:[%s469 + $0x390] sm:$0xff] %v2247
        %2344 = vst [vmem:[%s469 + $0x398] sm:$0xff] %v2248
        %2345 = vst [vmem:[%s469 + $0x3a0] sm:$0xff] %v2249
        %2346 = vst [vmem:[%s469 + $0x3a8] sm:$0xff] %v2250
        %2347 = vst [vmem:[%s469 + $0x3b0] sm:$0xff] %v2251
        %2348 = vst [vmem:[%s469 + $0x3b8] sm:$0xff] %v2252
        %2349 = vst [vmem:[%s469 + $0x3c0] sm:$0xff] %v2253
        %2350 = vst [vmem:[%s469 + $0x3c8] sm:$0xff] %v2254
        %2351 = vst [vmem:[%s469 + $0x3d0] sm:$0xff] %v2255
        %2352 = vst [vmem:[%s469 + $0x3d8] sm:$0xff] %v2256
        %2353 = vst [vmem:[%s469 + $0x3e0] sm:$0xff] %v2257
        %2354 = vst [vmem:[%s469 + $0x3e8] sm:$0xff] %v2258
        %2355 = vst [vmem:[%s469 + $0x3f0] sm:$0xff] %v2259
        %2356 = vst [vmem:[%s469 + $0x3f8] sm:$0xff] %v2260
        %2357 = vst [vmem:[%s469 + $0x400] sm:$0xff] %v2261
        %2358 = vst [vmem:[%s469 + $0x408] sm:$0xff] %v2262
        %2359 = vst [vmem:[%s469 + $0x410] sm:$0xff] %v2263
        %2360 = vst [vmem:[%s469 + $0x418] sm:$0xff] %v2264
        %2361 = vst [vmem:[%s469 + $0x420] sm:$0xff] %v2265
        %2362 = vst [vmem:[%s469 + $0x428] sm:$0xff] %v2266
        %2363 = vst [vmem:[%s469 + $0x430] sm:$0xff] %v2267
        %2364 = vst [vmem:[%s469 + $0x438] sm:$0xff] %v2268
        %2365 = vst [vmem:[%s469 + $0x440] sm:$0xff] %v2269
        %2366 = vst [vmem:[%s469 + $0x448] sm:$0xff] %v2270
        %2367 = vst [vmem:[%s469 + $0x450] sm:$0xff] %v2271
        %2368 = vst [vmem:[%s469 + $0x458] sm:$0xff] %v2272
        %2369 = vst [vmem:[%s469 + $0x460] sm:$0xff] %v2273
        %2370 = vst [vmem:[%s469 + $0x468] sm:$0xff] %v2274
        %2371 = vst [vmem:[%s469 + $0x470] sm:$0xff] %v2275
        %2372 = vst [vmem:[%s469 + $0x478] sm:$0xff] %v2276
        %v2373 = vld [vmem:[#allocation3] sm:$0xff]
        %v2374 = vld [vmem:[#allocation3 + $0x8] sm:$0xf]
        %v2375 = vld [vmem:[#allocation3 + $0xc] sm:$0xff]
        %v2376 = vld [vmem:[#allocation3 + $0x14] sm:$0xf]
        %v2377 = vld [vmem:[#allocation3 + $0x18] sm:$0xff]
        %v2378 = vld [vmem:[#allocation3 + $0x20] sm:$0xf]
        %v2379 = vld [vmem:[#allocation3 + $0x24] sm:$0xff]
        %v2380 = vld [vmem:[#allocation3 + $0x2c] sm:$0xf]
        %v2381 = vld [vmem:[#allocation3 + $0x30] sm:$0xff]
        %v2382 = vld [vmem:[#allocation3 + $0x38] sm:$0xf]
        %v2383 = vld [vmem:[#allocation3 + $0x3c] sm:$0xff]
        %v2384 = vld [vmem:[#allocation3 + $0x44] sm:$0xf]
        %v2385 = vld [vmem:[#allocation3 + $0x48] sm:$0xff]
        %v2386 = vld [vmem:[#allocation3 + $0x50] sm:$0xf]
        %v2387 = vld [vmem:[#allocation3 + $0x54] sm:$0xff]
        %v2388 = vld [vmem:[#allocation3 + $0x5c] sm:$0xf]
        %v2389 = vld [vmem:[#allocation3 + $0x60] sm:$0xff]
        %v2390 = vld [vmem:[#allocation3 + $0x68] sm:$0xf]
        %v2391 = vld [vmem:[#allocation3 + $0x6c] sm:$0xff]
        %v2392 = vld [vmem:[#allocation3 + $0x74] sm:$0xf]
        %v2393 = vld [vmem:[#allocation3 + $0x78] sm:$0xff]
        %v2394 = vld [vmem:[#allocation3 + $0x80] sm:$0xf]
        %v2395 = vld [vmem:[#allocation3 + $0x84] sm:$0xff]
        %v2396 = vld [vmem:[#allocation3 + $0x8c] sm:$0xf]
        %v2397 = vld [vmem:[#allocation3 + $0x90] sm:$0xff]
        %v2398 = vld [vmem:[#allocation3 + $0x98] sm:$0xf]
        %v2399 = vld [vmem:[#allocation3 + $0x9c] sm:$0xff]
        %v2400 = vld [vmem:[#allocation3 + $0xa4] sm:$0xf]
        %v2401 = vld [vmem:[#allocation3 + $0xa8] sm:$0xff]
        %v2402 = vld [vmem:[#allocation3 + $0xb0] sm:$0xf]
        %v2403 = vld [vmem:[#allocation3 + $0xb4] sm:$0xff]
        %v2404 = vld [vmem:[#allocation3 + $0xbc] sm:$0xf]
        %v2405 = vld [vmem:[#allocation3 + $0xc0] sm:$0xff]
        %v2406 = vld [vmem:[#allocation3 + $0xc8] sm:$0xf]
        %v2407 = vld [vmem:[#allocation3 + $0xcc] sm:$0xff]
        %v2408 = vld [vmem:[#allocation3 + $0xd4] sm:$0xf]
        %v2409 = vld [vmem:[#allocation3 + $0xd8] sm:$0xff]
        %v2410 = vld [vmem:[#allocation3 + $0xe0] sm:$0xf]
        %v2411 = vld [vmem:[#allocation3 + $0xe4] sm:$0xff]
        %v2412 = vld [vmem:[#allocation3 + $0xec] sm:$0xf]
        %v2413 = vld [vmem:[#allocation3 + $0xf0] sm:$0xff]
        %v2414 = vld [vmem:[#allocation3 + $0xf8] sm:$0xf]
        %v2415 = vld [vmem:[#allocation3 + $0xfc] sm:$0xff]
        %v2416 = vld [vmem:[#allocation3 + $0x104] sm:$0xf]
        %v2417 = vld [vmem:[#allocation3 + $0x108] sm:$0xff]
        %v2418 = vld [vmem:[#allocation3 + $0x110] sm:$0xf]
        %v2419 = vld [vmem:[#allocation3 + $0x114] sm:$0xff]
        %v2420 = vld [vmem:[#allocation3 + $0x11c] sm:$0xf]
        %v2421 = vld [vmem:[#allocation3 + $0x120] sm:$0xff]
        %v2422 = vld [vmem:[#allocation3 + $0x128] sm:$0xf]
        %v2423 = vld [vmem:[#allocation3 + $0x12c] sm:$0xff]
        %v2424 = vld [vmem:[#allocation3 + $0x134] sm:$0xf]
        %v2425 = vld [vmem:[#allocation3 + $0x138] sm:$0xff]
        %v2426 = vld [vmem:[#allocation3 + $0x140] sm:$0xf]
        %v2427 = vld [vmem:[#allocation3 + $0x144] sm:$0xff]
        %v2428 = vld [vmem:[#allocation3 + $0x14c] sm:$0xf]
        %v2429 = vld [vmem:[#allocation3 + $0x150] sm:$0xff]
        %v2430 = vld [vmem:[#allocation3 + $0x158] sm:$0xf]
        %v2431 = vld [vmem:[#allocation3 + $0x15c] sm:$0xff]
        %v2432 = vld [vmem:[#allocation3 + $0x164] sm:$0xf]
        %v2433 = vld [vmem:[#allocation3 + $0x168] sm:$0xff]
        %v2434 = vld [vmem:[#allocation3 + $0x170] sm:$0xf]
        %v2435 = vld [vmem:[#allocation3 + $0x174] sm:$0xff]
        %v2436 = vld [vmem:[#allocation3 + $0x17c] sm:$0xf]
        %v2437 = vld [vmem:[#allocation3 + $0x180] sm:$0xff]
        %v2438 = vld [vmem:[#allocation3 + $0x188] sm:$0xf]
        %v2439 = vld [vmem:[#allocation3 + $0x18c] sm:$0xff]
        %v2440 = vld [vmem:[#allocation3 + $0x194] sm:$0xf]
        %v2441 = vld [vmem:[#allocation3 + $0x198] sm:$0xff]
        %v2442 = vld [vmem:[#allocation3 + $0x1a0] sm:$0xf]
        %v2443 = vld [vmem:[#allocation3 + $0x1a4] sm:$0xff]
        %v2444 = vld [vmem:[#allocation3 + $0x1ac] sm:$0xf]
        %v2445 = vld [vmem:[#allocation3 + $0x1b0] sm:$0xff]
        %v2446 = vld [vmem:[#allocation3 + $0x1b8] sm:$0xf]
        %v2447 = vld [vmem:[#allocation3 + $0x1bc] sm:$0xff]
        %v2448 = vld [vmem:[#allocation3 + $0x1c4] sm:$0xf]
        %v2449 = vld [vmem:[#allocation3 + $0x1c8] sm:$0xff]
        %v2450 = vld [vmem:[#allocation3 + $0x1d0] sm:$0xf]
        %v2451 = vld [vmem:[#allocation3 + $0x1d4] sm:$0xff]
        %v2452 = vld [vmem:[#allocation3 + $0x1dc] sm:$0xf]
        %v2453 = vld [vmem:[#allocation3 + $0x1e0] sm:$0xff]
        %v2454 = vld [vmem:[#allocation3 + $0x1e8] sm:$0xf]
        %v2455 = vld [vmem:[#allocation3 + $0x1ec] sm:$0xff]
        %v2456 = vld [vmem:[#allocation3 + $0x1f4] sm:$0xf]
        %v2457 = vld [vmem:[#allocation3 + $0x1f8] sm:$0xff]
        %v2458 = vld [vmem:[#allocation3 + $0x200] sm:$0xf]
        %v2459 = vld [vmem:[#allocation3 + $0x204] sm:$0xff]
        %v2460 = vld [vmem:[#allocation3 + $0x20c] sm:$0xf]
        %v2461 = vld [vmem:[#allocation3 + $0x210] sm:$0xff]
        %v2462 = vld [vmem:[#allocation3 + $0x218] sm:$0xf]
        %v2463 = vld [vmem:[#allocation3 + $0x21c] sm:$0xff]
        %v2464 = vld [vmem:[#allocation3 + $0x224] sm:$0xf]
        %v2465 = vld [vmem:[#allocation3 + $0x228] sm:$0xff]
        %v2466 = vld [vmem:[#allocation3 + $0x230] sm:$0xf]
        %v2467 = vld [vmem:[#allocation3 + $0x234] sm:$0xff]
        %v2468 = vld [vmem:[#allocation3 + $0x23c] sm:$0xf]
        %v2469 = vld [vmem:[#allocation3 + $0x240] sm:$0xff]
        %v2470 = vld [vmem:[#allocation3 + $0x248] sm:$0xf]
        %v2471 = vld [vmem:[#allocation3 + $0x24c] sm:$0xff]
        %v2472 = vld [vmem:[#allocation3 + $0x254] sm:$0xf]
        %v2473 = vld [vmem:[#allocation3 + $0x258] sm:$0xff]
        %v2474 = vld [vmem:[#allocation3 + $0x260] sm:$0xf]
        %v2475 = vld [vmem:[#allocation3 + $0x264] sm:$0xff]
        %v2476 = vld [vmem:[#allocation3 + $0x26c] sm:$0xf]
        %v2477 = vld [vmem:[#allocation3 + $0x270] sm:$0xff]
        %v2478 = vld [vmem:[#allocation3 + $0x278] sm:$0xf]
        %v2479 = vld [vmem:[#allocation3 + $0x27c] sm:$0xff]
        %v2480 = vld [vmem:[#allocation3 + $0x284] sm:$0xf]
        %v2481 = vld [vmem:[#allocation3 + $0x288] sm:$0xff]
        %v2482 = vld [vmem:[#allocation3 + $0x290] sm:$0xf]
        %v2483 = vld [vmem:[#allocation3 + $0x294] sm:$0xff]
        %v2484 = vld [vmem:[#allocation3 + $0x29c] sm:$0xf]
        %v2485 = vld [vmem:[#allocation3 + $0x2a0] sm:$0xff]
        %v2486 = vld [vmem:[#allocation3 + $0x2a8] sm:$0xf]
        %v2487 = vld [vmem:[#allocation3 + $0x2ac] sm:$0xff]
        %v2488 = vld [vmem:[#allocation3 + $0x2b4] sm:$0xf]
        %v2489 = vld [vmem:[#allocation3 + $0x2b8] sm:$0xff]
        %v2490 = vld [vmem:[#allocation3 + $0x2c0] sm:$0xf]
        %v2491 = vld [vmem:[#allocation3 + $0x2c4] sm:$0xff]
        %v2492 = vld [vmem:[#allocation3 + $0x2cc] sm:$0xf]
        %v2493 = vld [vmem:[#allocation3 + $0x2d0] sm:$0xff]
        %v2494 = vld [vmem:[#allocation3 + $0x2d8] sm:$0xf]
        %v2495 = vld [vmem:[#allocation3 + $0x2dc] sm:$0xff]
        %v2496 = vld [vmem:[#allocation3 + $0x2e4] sm:$0xf]
        %v2497 = vld [vmem:[#allocation3 + $0x2e8] sm:$0xff]
        %v2498 = vld [vmem:[#allocation3 + $0x2f0] sm:$0xf]
        %v2499 = vld [vmem:[#allocation3 + $0x2f4] sm:$0xff]
        %v2500 = vld [vmem:[#allocation3 + $0x2fc] sm:$0xf]
        %v2501 = vpack.c.bf16 %v2183, %v2181
        %v2502 = vpack.c.bf16 %v2184, %v2182
        %v2503 = vpack.c.bf16 %v2187, %v2185
        %v2504 = vpack.c.bf16 %v2188, %v2186
        %v2505 = vpack.c.bf16 %v2191, %v2189
        %v2506 = vpack.c.bf16 %v2192, %v2190
        %v2507 = vpack.c.bf16 %v2195, %v2193
        %v2508 = vpack.c.bf16 %v2196, %v2194
        %v2509 = vpack.c.bf16 %v2199, %v2197
        %v2510 = vpack.c.bf16 %v2200, %v2198
        %v2511 = vpack.c.bf16 %v2203, %v2201
        %v2512 = vpack.c.bf16 %v2204, %v2202
        %v2513 = vpack.c.bf16 %v2207, %v2205
        %v2514 = vpack.c.bf16 %v2208, %v2206
        %v2515 = vpack.c.bf16 %v2211, %v2209
        %v2516 = vpack.c.bf16 %v2212, %v2210
        %v2517 = vpack.c.bf16 %v2215, %v2213
        %v2518 = vpack.c.bf16 %v2216, %v2214
        %v2519 = vpack.c.bf16 %v2219, %v2217
        %v2520 = vpack.c.bf16 %v2220, %v2218
        %v2521 = vpack.c.bf16 %v2223, %v2221
        %v2522 = vpack.c.bf16 %v2224, %v2222
        %v2523 = vpack.c.bf16 %v2227, %v2225
        %v2524 = vpack.c.bf16 %v2228, %v2226
        %v2525 = vpack.c.bf16 %v2231, %v2229
        %v2526 = vpack.c.bf16 %v2232, %v2230
        %v2527 = vpack.c.bf16 %v2235, %v2233
        %v2528 = vpack.c.bf16 %v2236, %v2234
        %v2529 = vpack.c.bf16 %v2239, %v2237
        %v2530 = vpack.c.bf16 %v2240, %v2238
        %v2531 = vpack.c.bf16 %v2243, %v2241
        %v2532 = vpack.c.bf16 %v2244, %v2242
        %v2533 = vpack.c.bf16 %v2247, %v2245
        %v2534 = vpack.c.bf16 %v2248, %v2246
        %v2535 = vpack.c.bf16 %v2251, %v2249
        %v2536 = vpack.c.bf16 %v2252, %v2250
        %v2537 = vpack.c.bf16 %v2255, %v2253
        %v2538 = vpack.c.bf16 %v2256, %v2254
        %v2539 = vpack.c.bf16 %v2259, %v2257
        %v2540 = vpack.c.bf16 %v2260, %v2258
        %v2541 = vpack.c.bf16 %v2263, %v2261
        %v2542 = vpack.c.bf16 %v2264, %v2262
        %v2543 = vpack.c.bf16 %v2267, %v2265
        %v2544 = vpack.c.bf16 %v2268, %v2266
        %v2545 = vpack.c.bf16 %v2271, %v2269
        %v2546 = vpack.c.bf16 %v2272, %v2270
        %v2547 = vpack.c.bf16 %v2275, %v2273
        %v2548 = vpack.c.bf16 %v2276, %v2274
        %v2549 = vld [vmem:[%s6] sm:$0xff]
        %v2550 = vld [vmem:[%s6 + $0x8] sm:$0xff]
        %v2551 = vld [vmem:[%s6 + $0x10] sm:$0xff]
        %v2552 = vld [vmem:[%s6 + $0x18] sm:$0xff]
        %v2553 = vld [vmem:[%s6 + $0x20] sm:$0xff]
        %v2554 = vld [vmem:[%s6 + $0x28] sm:$0xff]
        %v2555 = vld [vmem:[%s6 + $0x30] sm:$0xff]
        %v2556 = vld [vmem:[%s6 + $0x38] sm:$0xff]
        %v2557 = vld [vmem:[%s6 + $0x40] sm:$0xff]
        %v2558 = vld [vmem:[%s6 + $0x48] sm:$0xff]
        %v2559 = vld [vmem:[%s6 + $0x50] sm:$0xff]
        %v2560 = vld [vmem:[%s6 + $0x58] sm:$0xff]
        %v2561 = vld [vmem:[%s6 + $0x60] sm:$0xff]
        %v2562 = vld [vmem:[%s6 + $0x68] sm:$0xff]
        %v2563 = vld [vmem:[%s6 + $0x70] sm:$0xff]
        %v2564 = vld [vmem:[%s6 + $0x78] sm:$0xff]
        %v2565 = vld [vmem:[%s6 + $0x80] sm:$0xff]
        %v2566 = vld [vmem:[%s6 + $0x88] sm:$0xff]
        %v2567 = vld [vmem:[%s6 + $0x90] sm:$0xff]
        %v2568 = vld [vmem:[%s6 + $0x98] sm:$0xff]
        %v2569 = vld [vmem:[%s6 + $0xa0] sm:$0xff]
        %v2570 = vld [vmem:[%s6 + $0xa8] sm:$0xff]
        %v2571 = vld [vmem:[%s6 + $0xb0] sm:$0xff]
        %v2572 = vld [vmem:[%s6 + $0xb8] sm:$0xff]
        %v2573 = vld [vmem:[%s6 + $0xc0] sm:$0xff]
        %v2574 = vld [vmem:[%s6 + $0xc8] sm:$0xff]
        %v2575 = vld [vmem:[%s6 + $0xd0] sm:$0xff]
        %v2576 = vld [vmem:[%s6 + $0xd8] sm:$0xff]
        %v2577 = vld [vmem:[%s6 + $0xe0] sm:$0xff]
        %v2578 = vld [vmem:[%s6 + $0xe8] sm:$0xff]
        %v2579 = vld [vmem:[%s6 + $0xf0] sm:$0xff]
        %v2580 = vld [vmem:[%s6 + $0xf8] sm:$0xff]
        %v2581 = vld [vmem:[%s6 + $0x100] sm:$0xff]
        %v2582 = vld [vmem:[%s6 + $0x108] sm:$0xff]
        %v2583 = vld [vmem:[%s6 + $0x110] sm:$0xff]
        %v2584 = vld [vmem:[%s6 + $0x118] sm:$0xff]
        %v2585 = vld [vmem:[%s6 + $0x120] sm:$0xff]
        %v2586 = vld [vmem:[%s6 + $0x128] sm:$0xff]
        %v2587 = vld [vmem:[%s6 + $0x130] sm:$0xff]
        %v2588 = vld [vmem:[%s6 + $0x138] sm:$0xff]
        %v2589 = vld [vmem:[%s6 + $0x140] sm:$0xff]
        %v2590 = vld [vmem:[%s6 + $0x148] sm:$0xff]
        %v2591 = vld [vmem:[%s6 + $0x150] sm:$0xff]
        %v2592 = vld [vmem:[%s6 + $0x158] sm:$0xff]
        %v2593 = vld [vmem:[%s6 + $0x160] sm:$0xff]
        %v2594 = vld [vmem:[%s6 + $0x168] sm:$0xff]
        %v2595 = vld [vmem:[%s6 + $0x170] sm:$0xff]
        %v2596 = vld [vmem:[%s6 + $0x178] sm:$0xff]
        %v2597 = vld [vmem:[%s6 + $0x180] sm:$0xff]
        %v2598 = vld [vmem:[%s6 + $0x188] sm:$0xff]
        %v2599 = vld [vmem:[%s6 + $0x190] sm:$0xff]
        %v2600 = vld [vmem:[%s6 + $0x198] sm:$0xff]
        %v2601 = vld [vmem:[%s6 + $0x1a0] sm:$0xff]
        %v2602 = vld [vmem:[%s6 + $0x1a8] sm:$0xff]
        %v2603 = vld [vmem:[%s6 + $0x1b0] sm:$0xff]
        %v2604 = vld [vmem:[%s6 + $0x1b8] sm:$0xff]
        %v2605 = vld [vmem:[%s6 + $0x1c0] sm:$0xff]
        %v2606 = vld [vmem:[%s6 + $0x1c8] sm:$0xff]
        %v2607 = vld [vmem:[%s6 + $0x1d0] sm:$0xff]
        %v2608 = vld [vmem:[%s6 + $0x1d8] sm:$0xff]
        %v2609 = vld [vmem:[%s6 + $0x1e0] sm:$0xff]
        %v2610 = vld [vmem:[%s6 + $0x1e8] sm:$0xff]
        %v2611 = vld [vmem:[%s6 + $0x1f0] sm:$0xff]
        %v2612 = vld [vmem:[%s6 + $0x1f8] sm:$0xff]
        %2614 = vset.pattern.permute.xlu0 0
        %2615 = vperm.xlu0 %2614, %v2549
        %v2616 = vpop.permute.xlu0 %2615
        %2619 = vset.pattern.permute.xlu0 0
        %2620 = vperm.xlu0 %2619, %v2550
        %v2621 = vpop.permute.xlu0 %2620
        %2624 = vset.pattern.permute.xlu0 0
        %2625 = vperm.xlu0 %2624, %v2551
        %v2626 = vpop.permute.xlu0 %2625
        %2629 = vset.pattern.permute.xlu0 0
        %2630 = vperm.xlu0 %2629, %v2552
        %v2631 = vpop.permute.xlu0 %2630
        %2634 = vset.pattern.permute.xlu0 0
        %2635 = vperm.xlu0 %2634, %v2553
        %v2636 = vpop.permute.xlu0 %2635
        %2639 = vset.pattern.permute.xlu0 0
        %2640 = vperm.xlu0 %2639, %v2554
        %v2641 = vpop.permute.xlu0 %2640
        %2644 = vset.pattern.permute.xlu0 0
        %2645 = vperm.xlu0 %2644, %v2555
        %v2646 = vpop.permute.xlu0 %2645
        %2649 = vset.pattern.permute.xlu0 0
        %2650 = vperm.xlu0 %2649, %v2556
        %v2651 = vpop.permute.xlu0 %2650
        %2654 = vset.pattern.permute.xlu0 0
        %2655 = vperm.xlu0 %2654, %v2557
        %v2656 = vpop.permute.xlu0 %2655
        %2659 = vset.pattern.permute.xlu0 0
        %2660 = vperm.xlu0 %2659, %v2558
        %v2661 = vpop.permute.xlu0 %2660
        %2664 = vset.pattern.permute.xlu0 0
        %2665 = vperm.xlu0 %2664, %v2559
        %v2666 = vpop.permute.xlu0 %2665
        %2669 = vset.pattern.permute.xlu0 0
        %2670 = vperm.xlu0 %2669, %v2560
        %v2671 = vpop.permute.xlu0 %2670
        %2674 = vset.pattern.permute.xlu0 0
        %2675 = vperm.xlu0 %2674, %v2561
        %v2676 = vpop.permute.xlu0 %2675
        %2679 = vset.pattern.permute.xlu0 0
        %2680 = vperm.xlu0 %2679, %v2562
        %v2681 = vpop.permute.xlu0 %2680
        %2684 = vset.pattern.permute.xlu0 0
        %2685 = vperm.xlu0 %2684, %v2563
        %v2686 = vpop.permute.xlu0 %2685
        %2689 = vset.pattern.permute.xlu0 0
        %2690 = vperm.xlu0 %2689, %v2564
        %v2691 = vpop.permute.xlu0 %2690
        %2694 = vset.pattern.permute.xlu0 0
        %2695 = vperm.xlu0 %2694, %v2565
        %v2696 = vpop.permute.xlu0 %2695
        %2699 = vset.pattern.permute.xlu0 0
        %2700 = vperm.xlu0 %2699, %v2566
        %v2701 = vpop.permute.xlu0 %2700
        %2704 = vset.pattern.permute.xlu0 0
        %2705 = vperm.xlu0 %2704, %v2567
        %v2706 = vpop.permute.xlu0 %2705
        %2709 = vset.pattern.permute.xlu0 0
        %2710 = vperm.xlu0 %2709, %v2568
        %v2711 = vpop.permute.xlu0 %2710
        %2714 = vset.pattern.permute.xlu0 0
        %2715 = vperm.xlu0 %2714, %v2569
        %v2716 = vpop.permute.xlu0 %2715
        %2719 = vset.pattern.permute.xlu0 0
        %2720 = vperm.xlu0 %2719, %v2570
        %v2721 = vpop.permute.xlu0 %2720
        %2724 = vset.pattern.permute.xlu0 0
        %2725 = vperm.xlu0 %2724, %v2571
        %v2726 = vpop.permute.xlu0 %2725
        %2729 = vset.pattern.permute.xlu0 0
        %2730 = vperm.xlu0 %2729, %v2572
        %v2731 = vpop.permute.xlu0 %2730
        %2734 = vset.pattern.permute.xlu0 0
        %2735 = vperm.xlu0 %2734, %v2573
        %v2736 = vpop.permute.xlu0 %2735
        %2739 = vset.pattern.permute.xlu0 0
        %2740 = vperm.xlu0 %2739, %v2574
        %v2741 = vpop.permute.xlu0 %2740
        %2744 = vset.pattern.permute.xlu0 0
        %2745 = vperm.xlu0 %2744, %v2575
        %v2746 = vpop.permute.xlu0 %2745
        %2749 = vset.pattern.permute.xlu0 0
        %2750 = vperm.xlu0 %2749, %v2576
        %v2751 = vpop.permute.xlu0 %2750
        %2754 = vset.pattern.permute.xlu0 0
        %2755 = vperm.xlu0 %2754, %v2577
        %v2756 = vpop.permute.xlu0 %2755
        %2759 = vset.pattern.permute.xlu0 0
        %2760 = vperm.xlu0 %2759, %v2578
        %v2761 = vpop.permute.xlu0 %2760
        %2764 = vset.pattern.permute.xlu0 0
        %2765 = vperm.xlu0 %2764, %v2579
        %v2766 = vpop.permute.xlu0 %2765
        %2769 = vset.pattern.permute.xlu0 0
        %2770 = vperm.xlu0 %2769, %v2580
        %v2771 = vpop.permute.xlu0 %2770
        %2774 = vset.pattern.permute.xlu0 0
        %2775 = vperm.xlu0 %2774, %v2581
        %v2776 = vpop.permute.xlu0 %2775
        %2779 = vset.pattern.permute.xlu0 0
        %2780 = vperm.xlu0 %2779, %v2582
        %v2781 = vpop.permute.xlu0 %2780
        %2784 = vset.pattern.permute.xlu0 0
        %2785 = vperm.xlu0 %2784, %v2583
        %v2786 = vpop.permute.xlu0 %2785
        %2789 = vset.pattern.permute.xlu0 0
        %2790 = vperm.xlu0 %2789, %v2584
        %v2791 = vpop.permute.xlu0 %2790
        %2794 = vset.pattern.permute.xlu0 0
        %2795 = vperm.xlu0 %2794, %v2585
        %v2796 = vpop.permute.xlu0 %2795
        %2799 = vset.pattern.permute.xlu0 0
        %2800 = vperm.xlu0 %2799, %v2586
        %v2801 = vpop.permute.xlu0 %2800
        %2804 = vset.pattern.permute.xlu0 0
        %2805 = vperm.xlu0 %2804, %v2587
        %v2806 = vpop.permute.xlu0 %2805
        %2809 = vset.pattern.permute.xlu0 0
        %2810 = vperm.xlu0 %2809, %v2588
        %v2811 = vpop.permute.xlu0 %2810
        %2814 = vset.pattern.permute.xlu0 0
        %2815 = vperm.xlu0 %2814, %v2589
        %v2816 = vpop.permute.xlu0 %2815
        %2819 = vset.pattern.permute.xlu0 0
        %2820 = vperm.xlu0 %2819, %v2590
        %v2821 = vpop.permute.xlu0 %2820
        %2824 = vset.pattern.permute.xlu0 0
        %2825 = vperm.xlu0 %2824, %v2591
        %v2826 = vpop.permute.xlu0 %2825
        %2829 = vset.pattern.permute.xlu0 0
        %2830 = vperm.xlu0 %2829, %v2592
        %v2831 = vpop.permute.xlu0 %2830
        %2834 = vset.pattern.permute.xlu0 0
        %2835 = vperm.xlu0 %2834, %v2593
        %v2836 = vpop.permute.xlu0 %2835
        %2839 = vset.pattern.permute.xlu0 0
        %2840 = vperm.xlu0 %2839, %v2594
        %v2841 = vpop.permute.xlu0 %2840
        %2844 = vset.pattern.permute.xlu0 0
        %2845 = vperm.xlu0 %2844, %v2595
        %v2846 = vpop.permute.xlu0 %2845
        %2849 = vset.pattern.permute.xlu0 0
        %2850 = vperm.xlu0 %2849, %v2596
        %v2851 = vpop.permute.xlu0 %2850
        %2854 = vset.pattern.permute.xlu0 0
        %2855 = vperm.xlu0 %2854, %v2597
        %v2856 = vpop.permute.xlu0 %2855
        %2859 = vset.pattern.permute.xlu0 0
        %2860 = vperm.xlu0 %2859, %v2598
        %v2861 = vpop.permute.xlu0 %2860
        %2864 = vset.pattern.permute.xlu0 0
        %2865 = vperm.xlu0 %2864, %v2599
        %v2866 = vpop.permute.xlu0 %2865
        %2869 = vset.pattern.permute.xlu0 0
        %2870 = vperm.xlu0 %2869, %v2600
        %v2871 = vpop.permute.xlu0 %2870
        %2874 = vset.pattern.permute.xlu0 0
        %2875 = vperm.xlu0 %2874, %v2601
        %v2876 = vpop.permute.xlu0 %2875
        %2879 = vset.pattern.permute.xlu0 0
        %2880 = vperm.xlu0 %2879, %v2602
        %v2881 = vpop.permute.xlu0 %2880
        %2884 = vset.pattern.permute.xlu0 0
        %2885 = vperm.xlu0 %2884, %v2603
        %v2886 = vpop.permute.xlu0 %2885
        %2889 = vset.pattern.permute.xlu0 0
        %2890 = vperm.xlu0 %2889, %v2604
        %v2891 = vpop.permute.xlu0 %2890
        %2894 = vset.pattern.permute.xlu0 0
        %2895 = vperm.xlu0 %2894, %v2605
        %v2896 = vpop.permute.xlu0 %2895
        %2899 = vset.pattern.permute.xlu0 0
        %2900 = vperm.xlu0 %2899, %v2606
        %v2901 = vpop.permute.xlu0 %2900
        %2904 = vset.pattern.permute.xlu0 0
        %2905 = vperm.xlu0 %2904, %v2607
        %v2906 = vpop.permute.xlu0 %2905
        %2909 = vset.pattern.permute.xlu0 0
        %2910 = vperm.xlu0 %2909, %v2608
        %v2911 = vpop.permute.xlu0 %2910
        %2914 = vset.pattern.permute.xlu0 0
        %2915 = vperm.xlu0 %2914, %v2609
        %v2916 = vpop.permute.xlu0 %2915
        %2919 = vset.pattern.permute.xlu0 0
        %2920 = vperm.xlu0 %2919, %v2610
        %v2921 = vpop.permute.xlu0 %2920
        %2924 = vset.pattern.permute.xlu0 0
        %2925 = vperm.xlu0 %2924, %v2611
        %v2926 = vpop.permute.xlu0 %2925
        %2929 = vset.pattern.permute.xlu0 0
        %2930 = vperm.xlu0 %2929, %v2612
        %v2931 = vpop.permute.xlu0 %2930
        %v3061 = vunpack.c.l.b16 %v2373
        %v3062 = vunpack.c.h.b16 %v2373
        %v3063 = vunpack.c.l.b16 %v2374
        %v3064 = vunpack.c.l.b16 %v2375
        %v3065 = vunpack.c.h.b16 %v2375
        %v3066 = vunpack.c.l.b16 %v2376
        %v3067 = vunpack.c.l.b16 %v2377
        %v3068 = vunpack.c.h.b16 %v2377
        %v3069 = vunpack.c.l.b16 %v2378
        %v3070 = vunpack.c.l.b16 %v2379
        %v3071 = vunpack.c.h.b16 %v2379
        %v3072 = vunpack.c.l.b16 %v2380
        %v3073 = vunpack.c.l.b16 %v2381
        %v3074 = vunpack.c.h.b16 %v2381
        %v3075 = vunpack.c.l.b16 %v2382
        %v3076 = vunpack.c.l.b16 %v2383
        %v3077 = vunpack.c.h.b16 %v2383
        %v3078 = vunpack.c.l.b16 %v2384
        %v3079 = vunpack.c.l.b16 %v2385
        %v3080 = vunpack.c.h.b16 %v2385
        %v3081 = vunpack.c.l.b16 %v2386
        %v3082 = vunpack.c.l.b16 %v2387
        %v3083 = vunpack.c.h.b16 %v2387
        %v3084 = vunpack.c.l.b16 %v2388
        %v3085 = vunpack.c.l.b16 %v2389
        %v3086 = vunpack.c.h.b16 %v2389
        %v3087 = vunpack.c.l.b16 %v2390
        %v3088 = vunpack.c.l.b16 %v2391
        %v3089 = vunpack.c.h.b16 %v2391
        %v3090 = vunpack.c.l.b16 %v2392
        %v3091 = vunpack.c.l.b16 %v2393
        %v3092 = vunpack.c.h.b16 %v2393
        %v3093 = vunpack.c.l.b16 %v2394
        %v3094 = vunpack.c.l.b16 %v2395
        %v3095 = vunpack.c.h.b16 %v2395
        %v3096 = vunpack.c.l.b16 %v2396
        %v3097 = vunpack.c.l.b16 %v2397
        %v3098 = vunpack.c.h.b16 %v2397
        %v3099 = vunpack.c.l.b16 %v2398
        %v3100 = vunpack.c.l.b16 %v2399
        %v3101 = vunpack.c.h.b16 %v2399
        %v3102 = vunpack.c.l.b16 %v2400
        %v3103 = vunpack.c.l.b16 %v2401
        %v3104 = vunpack.c.h.b16 %v2401
        %v3105 = vunpack.c.l.b16 %v2402
        %v3106 = vunpack.c.l.b16 %v2403
        %v3107 = vunpack.c.h.b16 %v2403
        %v3108 = vunpack.c.l.b16 %v2404
        %v3109 = vunpack.c.l.b16 %v2405
        %v3110 = vunpack.c.h.b16 %v2405
        %v3111 = vunpack.c.l.b16 %v2406
        %v3112 = vunpack.c.l.b16 %v2407
        %v3113 = vunpack.c.h.b16 %v2407
        %v3114 = vunpack.c.l.b16 %v2408
        %v3115 = vunpack.c.l.b16 %v2409
        %v3116 = vunpack.c.h.b16 %v2409
        %v3117 = vunpack.c.l.b16 %v2410
        %v3118 = vunpack.c.l.b16 %v2411
        %v3119 = vunpack.c.h.b16 %v2411
        %v3120 = vunpack.c.l.b16 %v2412
        %v3121 = vunpack.c.l.b16 %v2413
        %v3122 = vunpack.c.h.b16 %v2413
        %v3123 = vunpack.c.l.b16 %v2414
        %v3124 = vunpack.c.l.b16 %v2415
        %v3125 = vunpack.c.h.b16 %v2415
        %v3126 = vunpack.c.l.b16 %v2416
        %v3127 = vunpack.c.l.b16 %v2417
        %v3128 = vunpack.c.h.b16 %v2417
        %v3129 = vunpack.c.l.b16 %v2418
        %v3130 = vunpack.c.l.b16 %v2419
        %v3131 = vunpack.c.h.b16 %v2419
        %v3132 = vunpack.c.l.b16 %v2420
        %v3133 = vunpack.c.l.b16 %v2421
        %v3134 = vunpack.c.h.b16 %v2421
        %v3135 = vunpack.c.l.b16 %v2422
        %v3136 = vunpack.c.l.b16 %v2423
        %v3137 = vunpack.c.h.b16 %v2423
        %v3138 = vunpack.c.l.b16 %v2424
        %v3139 = vunpack.c.l.b16 %v2425
        %v3140 = vunpack.c.h.b16 %v2425
        %v3141 = vunpack.c.l.b16 %v2426
        %v3142 = vunpack.c.l.b16 %v2427
        %v3143 = vunpack.c.h.b16 %v2427
        %v3144 = vunpack.c.l.b16 %v2428
        %v3145 = vunpack.c.l.b16 %v2429
        %v3146 = vunpack.c.h.b16 %v2429
        %v3147 = vunpack.c.l.b16 %v2430
        %v3148 = vunpack.c.l.b16 %v2431
        %v3149 = vunpack.c.h.b16 %v2431
        %v3150 = vunpack.c.l.b16 %v2432
        %v3151 = vunpack.c.l.b16 %v2433
        %v3152 = vunpack.c.h.b16 %v2433
        %v3153 = vunpack.c.l.b16 %v2434
        %v3154 = vunpack.c.l.b16 %v2435
        %v3155 = vunpack.c.h.b16 %v2435
        %v3156 = vunpack.c.l.b16 %v2436
        %v3157 = vunpack.c.l.b16 %v2437
        %v3158 = vunpack.c.h.b16 %v2437
        %v3159 = vunpack.c.l.b16 %v2438
        %v3160 = vunpack.c.l.b16 %v2439
        %v3161 = vunpack.c.h.b16 %v2439
        %v3162 = vunpack.c.l.b16 %v2440
        %v3163 = vunpack.c.l.b16 %v2441
        %v3164 = vunpack.c.h.b16 %v2441
        %v3165 = vunpack.c.l.b16 %v2442
        %v3166 = vunpack.c.l.b16 %v2443
        %v3167 = vunpack.c.h.b16 %v2443
        %v3168 = vunpack.c.l.b16 %v2444
        %v3169 = vunpack.c.l.b16 %v2445
        %v3170 = vunpack.c.h.b16 %v2445
        %v3171 = vunpack.c.l.b16 %v2446
        %v3172 = vunpack.c.l.b16 %v2447
        %v3173 = vunpack.c.h.b16 %v2447
        %v3174 = vunpack.c.l.b16 %v2448
        %v3175 = vunpack.c.l.b16 %v2449
        %v3176 = vunpack.c.h.b16 %v2449
        %v3177 = vunpack.c.l.b16 %v2450
        %v3178 = vunpack.c.l.b16 %v2451
        %v3179 = vunpack.c.h.b16 %v2451
        %v3180 = vunpack.c.l.b16 %v2452
        %v3181 = vunpack.c.l.b16 %v2453
        %v3182 = vunpack.c.h.b16 %v2453
        %v3183 = vunpack.c.l.b16 %v2454
        %v3184 = vunpack.c.l.b16 %v2455
        %v3185 = vunpack.c.h.b16 %v2455
        %v3186 = vunpack.c.l.b16 %v2456
        %v3187 = vunpack.c.l.b16 %v2457
        %v3188 = vunpack.c.h.b16 %v2457
        %v3189 = vunpack.c.l.b16 %v2458
        %v3190 = vunpack.c.l.b16 %v2459
        %v3191 = vunpack.c.h.b16 %v2459
        %v3192 = vunpack.c.l.b16 %v2460
        %v3193 = vunpack.c.l.b16 %v2461
        %v3194 = vunpack.c.h.b16 %v2461
        %v3195 = vunpack.c.l.b16 %v2462
        %v3196 = vunpack.c.l.b16 %v2463
        %v3197 = vunpack.c.h.b16 %v2463
        %v3198 = vunpack.c.l.b16 %v2464
        %v3199 = vunpack.c.l.b16 %v2465
        %v3200 = vunpack.c.h.b16 %v2465
        %v3201 = vunpack.c.l.b16 %v2466
        %v3202 = vunpack.c.l.b16 %v2467
        %v3203 = vunpack.c.h.b16 %v2467
        %v3204 = vunpack.c.l.b16 %v2468
        %v3205 = vunpack.c.l.b16 %v2469
        %v3206 = vunpack.c.h.b16 %v2469
        %v3207 = vunpack.c.l.b16 %v2470
        %v3208 = vunpack.c.l.b16 %v2471
        %v3209 = vunpack.c.h.b16 %v2471
        %v3210 = vunpack.c.l.b16 %v2472
        %v3211 = vunpack.c.l.b16 %v2473
        %v3212 = vunpack.c.h.b16 %v2473
        %v3213 = vunpack.c.l.b16 %v2474
        %v3214 = vunpack.c.l.b16 %v2475
        %v3215 = vunpack.c.h.b16 %v2475
        %v3216 = vunpack.c.l.b16 %v2476
        %v3217 = vunpack.c.l.b16 %v2477
        %v3218 = vunpack.c.h.b16 %v2477
        %v3219 = vunpack.c.l.b16 %v2478
        %v3220 = vunpack.c.l.b16 %v2479
        %v3221 = vunpack.c.h.b16 %v2479
        %v3222 = vunpack.c.l.b16 %v2480
        %v3223 = vunpack.c.l.b16 %v2481
        %v3224 = vunpack.c.h.b16 %v2481
        %v3225 = vunpack.c.l.b16 %v2482
        %v3226 = vunpack.c.l.b16 %v2483
        %v3227 = vunpack.c.h.b16 %v2483
        %v3228 = vunpack.c.l.b16 %v2484
        %v3229 = vunpack.c.l.b16 %v2485
        %v3230 = vunpack.c.h.b16 %v2485
        %v3231 = vunpack.c.l.b16 %v2486
        %v3232 = vunpack.c.l.b16 %v2487
        %v3233 = vunpack.c.h.b16 %v2487
        %v3234 = vunpack.c.l.b16 %v2488
        %v3235 = vunpack.c.l.b16 %v2489
        %v3236 = vunpack.c.h.b16 %v2489
        %v3237 = vunpack.c.l.b16 %v2490
        %v3238 = vunpack.c.l.b16 %v2491
        %v3239 = vunpack.c.h.b16 %v2491
        %v3240 = vunpack.c.l.b16 %v2492
        %v3241 = vunpack.c.l.b16 %v2493
        %v3242 = vunpack.c.h.b16 %v2493
        %v3243 = vunpack.c.l.b16 %v2494
        %v3244 = vunpack.c.l.b16 %v2495
        %v3245 = vunpack.c.h.b16 %v2495
        %v3246 = vunpack.c.l.b16 %v2496
        %v3247 = vunpack.c.l.b16 %v2497
        %v3248 = vunpack.c.h.b16 %v2497
        %v3249 = vunpack.c.l.b16 %v2498
        %v3250 = vunpack.c.l.b16 %v2499
        %v3251 = vunpack.c.h.b16 %v2499
        %v3252 = vunpack.c.l.b16 %v2500
        %v3253 = vpack.c.b16 %v3064, %v3061
        %v3254 = vpack.c.b16 %v3065, %v3062
        %v3255 = vpack.c.b16 %v3066, %v3063
        %v3256 = vpack.c.b16 %v3070, %v3067
        %v3257 = vpack.c.b16 %v3071, %v3068
        %v3258 = vpack.c.b16 %v3072, %v3069
        %v3259 = vpack.c.b16 %v3076, %v3073
        %v3260 = vpack.c.b16 %v3077, %v3074
        %v3261 = vpack.c.b16 %v3078, %v3075
        %v3262 = vpack.c.b16 %v3082, %v3079
        %v3263 = vpack.c.b16 %v3083, %v3080
        %v3264 = vpack.c.b16 %v3084, %v3081
        %v3265 = vpack.c.b16 %v3088, %v3085
        %v3266 = vpack.c.b16 %v3089, %v3086
        %v3267 = vpack.c.b16 %v3090, %v3087
        %v3268 = vpack.c.b16 %v3094, %v3091
        %v3269 = vpack.c.b16 %v3095, %v3092
        %v3270 = vpack.c.b16 %v3096, %v3093
        %v3271 = vpack.c.b16 %v3100, %v3097
        %v3272 = vpack.c.b16 %v3101, %v3098
        %v3273 = vpack.c.b16 %v3102, %v3099
        %v3274 = vpack.c.b16 %v3106, %v3103
        %v3275 = vpack.c.b16 %v3107, %v3104
        %v3276 = vpack.c.b16 %v3108, %v3105
        %v3277 = vpack.c.b16 %v3112, %v3109
        %v3278 = vpack.c.b16 %v3113, %v3110
        %v3279 = vpack.c.b16 %v3114, %v3111
        %v3280 = vpack.c.b16 %v3118, %v3115
        %v3281 = vpack.c.b16 %v3119, %v3116
        %v3282 = vpack.c.b16 %v3120, %v3117
        %v3283 = vpack.c.b16 %v3124, %v3121
        %v3284 = vpack.c.b16 %v3125, %v3122
        %v3285 = vpack.c.b16 %v3126, %v3123
        %v3286 = vpack.c.b16 %v3130, %v3127
        %v3287 = vpack.c.b16 %v3131, %v3128
        %v3288 = vpack.c.b16 %v3132, %v3129
        %v3289 = vpack.c.b16 %v3136, %v3133
        %v3290 = vpack.c.b16 %v3137, %v3134
        %v3291 = vpack.c.b16 %v3138, %v3135
        %v3292 = vpack.c.b16 %v3142, %v3139
        %v3293 = vpack.c.b16 %v3143, %v3140
        %v3294 = vpack.c.b16 %v3144, %v3141
        %v3295 = vpack.c.b16 %v3148, %v3145
        %v3296 = vpack.c.b16 %v3149, %v3146
        %v3297 = vpack.c.b16 %v3150, %v3147
        %v3298 = vpack.c.b16 %v3154, %v3151
        %v3299 = vpack.c.b16 %v3155, %v3152
        %v3300 = vpack.c.b16 %v3156, %v3153
        %v3301 = vpack.c.b16 %v3160, %v3157
        %v3302 = vpack.c.b16 %v3161, %v3158
        %v3303 = vpack.c.b16 %v3162, %v3159
        %v3304 = vpack.c.b16 %v3166, %v3163
        %v3305 = vpack.c.b16 %v3167, %v3164
        %v3306 = vpack.c.b16 %v3168, %v3165
        %v3307 = vpack.c.b16 %v3172, %v3169
        %v3308 = vpack.c.b16 %v3173, %v3170
        %v3309 = vpack.c.b16 %v3174, %v3171
        %v3310 = vpack.c.b16 %v3178, %v3175
        %v3311 = vpack.c.b16 %v3179, %v3176
        %v3312 = vpack.c.b16 %v3180, %v3177
        %v3313 = vpack.c.b16 %v3184, %v3181
        %v3314 = vpack.c.b16 %v3185, %v3182
        %v3315 = vpack.c.b16 %v3186, %v3183
        %v3316 = vpack.c.b16 %v3190, %v3187
        %v3317 = vpack.c.b16 %v3191, %v3188
        %v3318 = vpack.c.b16 %v3192, %v3189
        %v3319 = vpack.c.b16 %v3196, %v3193
        %v3320 = vpack.c.b16 %v3197, %v3194
        %v3321 = vpack.c.b16 %v3198, %v3195
        %v3322 = vpack.c.b16 %v3202, %v3199
        %v3323 = vpack.c.b16 %v3203, %v3200
        %v3324 = vpack.c.b16 %v3204, %v3201
        %v3325 = vpack.c.b16 %v3208, %v3205
        %v3326 = vpack.c.b16 %v3209, %v3206
        %v3327 = vpack.c.b16 %v3210, %v3207
        %v3328 = vpack.c.b16 %v3214, %v3211
        %v3329 = vpack.c.b16 %v3215, %v3212
        %v3330 = vpack.c.b16 %v3216, %v3213
        %v3331 = vpack.c.b16 %v3220, %v3217
        %v3332 = vpack.c.b16 %v3221, %v3218
        %v3333 = vpack.c.b16 %v3222, %v3219
        %v3334 = vpack.c.b16 %v3226, %v3223
        %v3335 = vpack.c.b16 %v3227, %v3224
        %v3336 = vpack.c.b16 %v3228, %v3225
        %v3337 = vpack.c.b16 %v3232, %v3229
        %v3338 = vpack.c.b16 %v3233, %v3230
        %v3339 = vpack.c.b16 %v3234, %v3231
        %v3340 = vpack.c.b16 %v3238, %v3235
        %v3341 = vpack.c.b16 %v3239, %v3236
        %v3342 = vpack.c.b16 %v3240, %v3237
        %v3343 = vpack.c.b16 %v3244, %v3241
        %v3344 = vpack.c.b16 %v3245, %v3242
        %v3345 = vpack.c.b16 %v3246, %v3243
        %v3346 = vpack.c.b16 %v3250, %v3247
        %v3347 = vpack.c.b16 %v3251, %v3248
        %v3348 = vpack.c.b16 %v3252, %v3249
        %3445 = vmatpush.bf16.msra.mxu0 %v2515
        %3446 = vmatpush.bf16.msra.mxu0 %v2513
        %3447 = vmatpush.bf16.msra.mxu0 %v2511
        %3448 = vmatpush.bf16.msra.mxu0 %v2509
        %3449 = vmatpush.bf16.msra.mxu0 %v2507
        %3450 = vmatpush.bf16.msra.mxu0 %v2505
        %3451 = vmatpush.bf16.msra.mxu0 %v2503
        %3452 = vmatpush.bf16.msra.mxu0 %v2501
        %3453 = vmatmul.bf16.gmra.mxu0 %v3253
        %v3454 = vpop.f32.mrf.mxu0
        %v3455 = vadd.f32 %v2616, %v3454
        %v3456 = vpop.f32.mrf.mxu0
        %v3457 = vadd.f32 %v2621, %v3456
        %3458 = vmatmul.bf16.gmra.mxu0 %v3256
        %v3459 = vpop.f32.mrf.mxu0
        %v3460 = vadd.f32 %v2626, %v3459
        %v3461 = vpop.f32.mrf.mxu0
        %v3462 = vadd.f32 %v2631, %v3461
        %3463 = vmatmul.bf16.gmra.mxu0 %v3259
        %v3464 = vpop.f32.mrf.mxu0
        %v3465 = vadd.f32 %v2636, %v3464
        %v3466 = vpop.f32.mrf.mxu0
        %v3467 = vadd.f32 %v2641, %v3466
        %3468 = vmatmul.bf16.gmra.mxu0 %v3262
        %v3469 = vpop.f32.mrf.mxu0
        %v3470 = vadd.f32 %v2646, %v3469
        %v3471 = vpop.f32.mrf.mxu0
        %v3472 = vadd.f32 %v2651, %v3471
        %3473 = vmatmul.bf16.gmra.mxu0 %v3265
        %v3474 = vpop.f32.mrf.mxu0
        %v3475 = vadd.f32 %v2656, %v3474
        %v3476 = vpop.f32.mrf.mxu0
        %v3477 = vadd.f32 %v2661, %v3476
        %3478 = vmatmul.bf16.gmra.mxu0 %v3268
        %v3479 = vpop.f32.mrf.mxu0
        %v3480 = vadd.f32 %v2666, %v3479
        %v3481 = vpop.f32.mrf.mxu0
        %v3482 = vadd.f32 %v2671, %v3481
        %3483 = vmatmul.bf16.gmra.mxu0 %v3271
        %v3484 = vpop.f32.mrf.mxu0
        %v3485 = vadd.f32 %v2676, %v3484
        %v3486 = vpop.f32.mrf.mxu0
        %v3487 = vadd.f32 %v2681, %v3486
        %3488 = vmatmul.bf16.gmra.mxu0 %v3274
        %v3489 = vpop.f32.mrf.mxu0
        %v3490 = vadd.f32 %v2686, %v3489
        %v3491 = vpop.f32.mrf.mxu0
        %v3492 = vadd.f32 %v2691, %v3491
        %3493 = vmatmul.bf16.gmra.mxu0 %v3277
        %v3494 = vpop.f32.mrf.mxu0
        %v3495 = vadd.f32 %v2696, %v3494
        %v3496 = vpop.f32.mrf.mxu0
        %v3497 = vadd.f32 %v2701, %v3496
        %3498 = vmatmul.bf16.gmra.mxu0 %v3280
        %v3499 = vpop.f32.mrf.mxu0
        %v3500 = vadd.f32 %v2706, %v3499
        %v3501 = vpop.f32.mrf.mxu0
        %v3502 = vadd.f32 %v2711, %v3501
        %3503 = vmatmul.bf16.gmra.mxu0 %v3283
        %v3504 = vpop.f32.mrf.mxu0
        %v3505 = vadd.f32 %v2716, %v3504
        %v3506 = vpop.f32.mrf.mxu0
        %v3507 = vadd.f32 %v2721, %v3506
        %3508 = vmatmul.bf16.gmra.mxu0 %v3286
        %v3509 = vpop.f32.mrf.mxu0
        %v3510 = vadd.f32 %v2726, %v3509
        %v3511 = vpop.f32.mrf.mxu0
        %v3512 = vadd.f32 %v2731, %v3511
        %3513 = vmatmul.bf16.gmra.mxu0 %v3289
        %v3514 = vpop.f32.mrf.mxu0
        %v3515 = vadd.f32 %v2736, %v3514
        %v3516 = vpop.f32.mrf.mxu0
        %v3517 = vadd.f32 %v2741, %v3516
        %3518 = vmatmul.bf16.gmra.mxu0 %v3292
        %v3519 = vpop.f32.mrf.mxu0
        %v3520 = vadd.f32 %v2746, %v3519
        %v3521 = vpop.f32.mrf.mxu0
        %v3522 = vadd.f32 %v2751, %v3521
        %3523 = vmatmul.bf16.gmra.mxu0 %v3295
        %v3524 = vpop.f32.mrf.mxu0
        %v3525 = vadd.f32 %v2756, %v3524
        %v3526 = vpop.f32.mrf.mxu0
        %v3527 = vadd.f32 %v2761, %v3526
        %3528 = vmatmul.bf16.gmra.mxu0 %v3298
        %v3529 = vpop.f32.mrf.mxu0
        %v3530 = vadd.f32 %v2766, %v3529
        %v3531 = vpop.f32.mrf.mxu0
        %v3532 = vadd.f32 %v2771, %v3531
        %3533 = vmatmul.bf16.gmra.mxu0 %v3301
        %v3534 = vpop.f32.mrf.mxu0
        %v3535 = vadd.f32 %v2776, %v3534
        %v3536 = vpop.f32.mrf.mxu0
        %v3537 = vadd.f32 %v2781, %v3536
        %3538 = vmatmul.bf16.gmra.mxu0 %v3304
        %v3539 = vpop.f32.mrf.mxu0
        %v3540 = vadd.f32 %v2786, %v3539
        %v3541 = vpop.f32.mrf.mxu0
        %v3542 = vadd.f32 %v2791, %v3541
        %3543 = vmatmul.bf16.gmra.mxu0 %v3307
        %v3544 = vpop.f32.mrf.mxu0
        %v3545 = vadd.f32 %v2796, %v3544
        %v3546 = vpop.f32.mrf.mxu0
        %v3547 = vadd.f32 %v2801, %v3546
        %3548 = vmatmul.bf16.gmra.mxu0 %v3310
        %v3549 = vpop.f32.mrf.mxu0
        %v3550 = vadd.f32 %v2806, %v3549
        %v3551 = vpop.f32.mrf.mxu0
        %v3552 = vadd.f32 %v2811, %v3551
        %3553 = vmatmul.bf16.gmra.mxu0 %v3313
        %v3554 = vpop.f32.mrf.mxu0
        %v3555 = vadd.f32 %v2816, %v3554
        %v3556 = vpop.f32.mrf.mxu0
        %v3557 = vadd.f32 %v2821, %v3556
        %3558 = vmatmul.bf16.gmra.mxu0 %v3316
        %v3559 = vpop.f32.mrf.mxu0
        %v3560 = vadd.f32 %v2826, %v3559
        %v3561 = vpop.f32.mrf.mxu0
        %v3562 = vadd.f32 %v2831, %v3561
        %3563 = vmatmul.bf16.gmra.mxu0 %v3319
        %v3564 = vpop.f32.mrf.mxu0
        %v3565 = vadd.f32 %v2836, %v3564
        %v3566 = vpop.f32.mrf.mxu0
        %v3567 = vadd.f32 %v2841, %v3566
        %3568 = vmatmul.bf16.gmra.mxu0 %v3322
        %v3569 = vpop.f32.mrf.mxu0
        %v3570 = vadd.f32 %v2846, %v3569
        %v3571 = vpop.f32.mrf.mxu0
        %v3572 = vadd.f32 %v2851, %v3571
        %3573 = vmatmul.bf16.gmra.mxu0 %v3325
        %v3574 = vpop.f32.mrf.mxu0
        %v3575 = vadd.f32 %v2856, %v3574
        %v3576 = vpop.f32.mrf.mxu0
        %v3577 = vadd.f32 %v2861, %v3576
        %3578 = vmatmul.bf16.gmra.mxu0 %v3328
        %v3579 = vpop.f32.mrf.mxu0
        %v3580 = vadd.f32 %v2866, %v3579
        %v3581 = vpop.f32.mrf.mxu0
        %v3582 = vadd.f32 %v2871, %v3581
        %3583 = vmatmul.bf16.gmra.mxu0 %v3331
        %v3584 = vpop.f32.mrf.mxu0
        %v3585 = vadd.f32 %v2876, %v3584
        %v3586 = vpop.f32.mrf.mxu0
        %v3587 = vadd.f32 %v2881, %v3586
        %3588 = vmatmul.bf16.gmra.mxu0 %v3334
        %v3589 = vpop.f32.mrf.mxu0
        %v3590 = vadd.f32 %v2886, %v3589
        %v3591 = vpop.f32.mrf.mxu0
        %v3592 = vadd.f32 %v2891, %v3591
        %3593 = vmatmul.bf16.gmra.mxu0 %v3337
        %v3594 = vpop.f32.mrf.mxu0
        %v3595 = vadd.f32 %v2896, %v3594
        %v3596 = vpop.f32.mrf.mxu0
        %v3597 = vadd.f32 %v2901, %v3596
        %3598 = vmatmul.bf16.gmra.mxu0 %v3340
        %v3599 = vpop.f32.mrf.mxu0
        %v3600 = vadd.f32 %v2906, %v3599
        %v3601 = vpop.f32.mrf.mxu0
        %v3602 = vadd.f32 %v2911, %v3601
        %3603 = vmatmul.bf16.gmra.mxu0 %v3343
        %v3604 = vpop.f32.mrf.mxu0
        %v3605 = vadd.f32 %v2916, %v3604
        %v3606 = vpop.f32.mrf.mxu0
        %v3607 = vadd.f32 %v2921, %v3606
        %3608 = vmatmul.bf16.gmra.mxu0 %v3346
        %v3609 = vpop.f32.mrf.mxu0
        %v3610 = vadd.f32 %v2926, %v3609
        %v3611 = vpop.f32.mrf.mxu0
        %v3612 = vadd.f32 %v2931, %v3611
        %3613 = vdwg.mxu0
        %3614 = vmatpush.bf16.msra.mxu0 %v2531
        %3615 = vmatpush.bf16.msra.mxu0 %v2529
        %3616 = vmatpush.bf16.msra.mxu0 %v2527
        %3617 = vmatpush.bf16.msra.mxu0 %v2525
        %3618 = vmatpush.bf16.msra.mxu0 %v2523
        %3619 = vmatpush.bf16.msra.mxu0 %v2521
        %3620 = vmatpush.bf16.msra.mxu0 %v2519
        %3621 = vmatpush.bf16.msra.mxu0 %v2517
        %3622 = vmatmul.bf16.gmra.mxu0 %v3254
        %v3623 = vpop.f32.mrf.mxu0
        %v3624 = vadd.f32 %v3455, %v3623
        %v3625 = vpop.f32.mrf.mxu0
        %v3626 = vadd.f32 %v3457, %v3625
        %3627 = vmatmul.bf16.gmra.mxu0 %v3257
        %v3628 = vpop.f32.mrf.mxu0
        %v3629 = vadd.f32 %v3460, %v3628
        %v3630 = vpop.f32.mrf.mxu0
        %v3631 = vadd.f32 %v3462, %v3630
        %3632 = vmatmul.bf16.gmra.mxu0 %v3260
        %v3633 = vpop.f32.mrf.mxu0
        %v3634 = vadd.f32 %v3465, %v3633
        %v3635 = vpop.f32.mrf.mxu0
        %v3636 = vadd.f32 %v3467, %v3635
        %3637 = vmatmul.bf16.gmra.mxu0 %v3263
        %v3638 = vpop.f32.mrf.mxu0
        %v3639 = vadd.f32 %v3470, %v3638
        %v3640 = vpop.f32.mrf.mxu0
        %v3641 = vadd.f32 %v3472, %v3640
        %3642 = vmatmul.bf16.gmra.mxu0 %v3266
        %v3643 = vpop.f32.mrf.mxu0
        %v3644 = vadd.f32 %v3475, %v3643
        %v3645 = vpop.f32.mrf.mxu0
        %v3646 = vadd.f32 %v3477, %v3645
        %3647 = vmatmul.bf16.gmra.mxu0 %v3269
        %v3648 = vpop.f32.mrf.mxu0
        %v3649 = vadd.f32 %v3480, %v3648
        %v3650 = vpop.f32.mrf.mxu0
        %v3651 = vadd.f32 %v3482, %v3650
        %3652 = vmatmul.bf16.gmra.mxu0 %v3272
        %v3653 = vpop.f32.mrf.mxu0
        %v3654 = vadd.f32 %v3485, %v3653
        %v3655 = vpop.f32.mrf.mxu0
        %v3656 = vadd.f32 %v3487, %v3655
        %3657 = vmatmul.bf16.gmra.mxu0 %v3275
        %v3658 = vpop.f32.mrf.mxu0
        %v3659 = vadd.f32 %v3490, %v3658
        %v3660 = vpop.f32.mrf.mxu0
        %v3661 = vadd.f32 %v3492, %v3660
        %3662 = vmatmul.bf16.gmra.mxu0 %v3278
        %v3663 = vpop.f32.mrf.mxu0
        %v3664 = vadd.f32 %v3495, %v3663
        %v3665 = vpop.f32.mrf.mxu0
        %v3666 = vadd.f32 %v3497, %v3665
        %3667 = vmatmul.bf16.gmra.mxu0 %v3281
        %v3668 = vpop.f32.mrf.mxu0
        %v3669 = vadd.f32 %v3500, %v3668
        %v3670 = vpop.f32.mrf.mxu0
        %v3671 = vadd.f32 %v3502, %v3670
        %3672 = vmatmul.bf16.gmra.mxu0 %v3284
        %v3673 = vpop.f32.mrf.mxu0
        %v3674 = vadd.f32 %v3505, %v3673
        %v3675 = vpop.f32.mrf.mxu0
        %v3676 = vadd.f32 %v3507, %v3675
        %3677 = vmatmul.bf16.gmra.mxu0 %v3287
        %v3678 = vpop.f32.mrf.mxu0
        %v3679 = vadd.f32 %v3510, %v3678
        %v3680 = vpop.f32.mrf.mxu0
        %v3681 = vadd.f32 %v3512, %v3680
        %3682 = vmatmul.bf16.gmra.mxu0 %v3290
        %v3683 = vpop.f32.mrf.mxu0
        %v3684 = vadd.f32 %v3515, %v3683
        %v3685 = vpop.f32.mrf.mxu0
        %v3686 = vadd.f32 %v3517, %v3685
        %3687 = vmatmul.bf16.gmra.mxu0 %v3293
        %v3688 = vpop.f32.mrf.mxu0
        %v3689 = vadd.f32 %v3520, %v3688
        %v3690 = vpop.f32.mrf.mxu0
        %v3691 = vadd.f32 %v3522, %v3690
        %3692 = vmatmul.bf16.gmra.mxu0 %v3296
        %v3693 = vpop.f32.mrf.mxu0
        %v3694 = vadd.f32 %v3525, %v3693
        %v3695 = vpop.f32.mrf.mxu0
        %v3696 = vadd.f32 %v3527, %v3695
        %3697 = vmatmul.bf16.gmra.mxu0 %v3299
        %v3698 = vpop.f32.mrf.mxu0
        %v3699 = vadd.f32 %v3530, %v3698
        %v3700 = vpop.f32.mrf.mxu0
        %v3701 = vadd.f32 %v3532, %v3700
        %3702 = vmatmul.bf16.gmra.mxu0 %v3302
        %v3703 = vpop.f32.mrf.mxu0
        %v3704 = vadd.f32 %v3535, %v3703
        %v3705 = vpop.f32.mrf.mxu0
        %v3706 = vadd.f32 %v3537, %v3705
        %3707 = vmatmul.bf16.gmra.mxu0 %v3305
        %v3708 = vpop.f32.mrf.mxu0
        %v3709 = vadd.f32 %v3540, %v3708
        %v3710 = vpop.f32.mrf.mxu0
        %v3711 = vadd.f32 %v3542, %v3710
        %3712 = vmatmul.bf16.gmra.mxu0 %v3308
        %v3713 = vpop.f32.mrf.mxu0
        %v3714 = vadd.f32 %v3545, %v3713
        %v3715 = vpop.f32.mrf.mxu0
        %v3716 = vadd.f32 %v3547, %v3715
        %3717 = vmatmul.bf16.gmra.mxu0 %v3311
        %v3718 = vpop.f32.mrf.mxu0
        %v3719 = vadd.f32 %v3550, %v3718
        %v3720 = vpop.f32.mrf.mxu0
        %v3721 = vadd.f32 %v3552, %v3720
        %3722 = vmatmul.bf16.gmra.mxu0 %v3314
        %v3723 = vpop.f32.mrf.mxu0
        %v3724 = vadd.f32 %v3555, %v3723
        %v3725 = vpop.f32.mrf.mxu0
        %v3726 = vadd.f32 %v3557, %v3725
        %3727 = vmatmul.bf16.gmra.mxu0 %v3317
        %v3728 = vpop.f32.mrf.mxu0
        %v3729 = vadd.f32 %v3560, %v3728
        %v3730 = vpop.f32.mrf.mxu0
        %v3731 = vadd.f32 %v3562, %v3730
        %3732 = vmatmul.bf16.gmra.mxu0 %v3320
        %v3733 = vpop.f32.mrf.mxu0
        %v3734 = vadd.f32 %v3565, %v3733
        %v3735 = vpop.f32.mrf.mxu0
        %v3736 = vadd.f32 %v3567, %v3735
        %3737 = vmatmul.bf16.gmra.mxu0 %v3323
        %v3738 = vpop.f32.mrf.mxu0
        %v3739 = vadd.f32 %v3570, %v3738
        %v3740 = vpop.f32.mrf.mxu0
        %v3741 = vadd.f32 %v3572, %v3740
        %3742 = vmatmul.bf16.gmra.mxu0 %v3326
        %v3743 = vpop.f32.mrf.mxu0
        %v3744 = vadd.f32 %v3575, %v3743
        %v3745 = vpop.f32.mrf.mxu0
        %v3746 = vadd.f32 %v3577, %v3745
        %3747 = vmatmul.bf16.gmra.mxu0 %v3329
        %v3748 = vpop.f32.mrf.mxu0
        %v3749 = vadd.f32 %v3580, %v3748
        %v3750 = vpop.f32.mrf.mxu0
        %v3751 = vadd.f32 %v3582, %v3750
        %3752 = vmatmul.bf16.gmra.mxu0 %v3332
        %v3753 = vpop.f32.mrf.mxu0
        %v3754 = vadd.f32 %v3585, %v3753
        %v3755 = vpop.f32.mrf.mxu0
        %v3756 = vadd.f32 %v3587, %v3755
        %3757 = vmatmul.bf16.gmra.mxu0 %v3335
        %v3758 = vpop.f32.mrf.mxu0
        %v3759 = vadd.f32 %v3590, %v3758
        %v3760 = vpop.f32.mrf.mxu0
        %v3761 = vadd.f32 %v3592, %v3760
        %3762 = vmatmul.bf16.gmra.mxu0 %v3338
        %v3763 = vpop.f32.mrf.mxu0
        %v3764 = vadd.f32 %v3595, %v3763
        %v3765 = vpop.f32.mrf.mxu0
        %v3766 = vadd.f32 %v3597, %v3765
        %3767 = vmatmul.bf16.gmra.mxu0 %v3341
        %v3768 = vpop.f32.mrf.mxu0
        %v3769 = vadd.f32 %v3600, %v3768
        %v3770 = vpop.f32.mrf.mxu0
        %v3771 = vadd.f32 %v3602, %v3770
        %3772 = vmatmul.bf16.gmra.mxu0 %v3344
        %v3773 = vpop.f32.mrf.mxu0
        %v3774 = vadd.f32 %v3605, %v3773
        %v3775 = vpop.f32.mrf.mxu0
        %v3776 = vadd.f32 %v3607, %v3775
        %3777 = vmatmul.bf16.gmra.mxu0 %v3347
        %v3778 = vpop.f32.mrf.mxu0
        %v3779 = vadd.f32 %v3610, %v3778
        %v3780 = vpop.f32.mrf.mxu0
        %v3781 = vadd.f32 %v3612, %v3780
        %3782 = vdwg.mxu0
        %3783 = vmatpush.bf16.msra.mxu0 %v2547
        %3784 = vmatpush.bf16.msra.mxu0 %v2545
        %3785 = vmatpush.bf16.msra.mxu0 %v2543
        %3786 = vmatpush.bf16.msra.mxu0 %v2541
        %3787 = vmatpush.bf16.msra.mxu0 %v2539
        %3788 = vmatpush.bf16.msra.mxu0 %v2537
        %3789 = vmatpush.bf16.msra.mxu0 %v2535
        %3790 = vmatpush.bf16.msra.mxu0 %v2533
        %3791 = vmatmul.bf16.gmra.mxu0 %v3255
        %v3792 = vpop.f32.mrf.mxu0
        %v3793 = vadd.f32 %v3624, %v3792
        %v3794 = vpop.f32.mrf.mxu0
        %v3795 = vadd.f32 %v3626, %v3794
        %3796 = vmatmul.bf16.gmra.mxu0 %v3258
        %v3797 = vpop.f32.mrf.mxu0
        %v3798 = vadd.f32 %v3629, %v3797
        %v3799 = vpop.f32.mrf.mxu0
        %v3800 = vadd.f32 %v3631, %v3799
        %3801 = vmatmul.bf16.gmra.mxu0 %v3261
        %v3802 = vpop.f32.mrf.mxu0
        %v3803 = vadd.f32 %v3634, %v3802
        %v3804 = vpop.f32.mrf.mxu0
        %v3805 = vadd.f32 %v3636, %v3804
        %3806 = vmatmul.bf16.gmra.mxu0 %v3264
        %v3807 = vpop.f32.mrf.mxu0
        %v3808 = vadd.f32 %v3639, %v3807
        %v3809 = vpop.f32.mrf.mxu0
        %v3810 = vadd.f32 %v3641, %v3809
        %3811 = vmatmul.bf16.gmra.mxu0 %v3267
        %v3812 = vpop.f32.mrf.mxu0
        %v3813 = vadd.f32 %v3644, %v3812
        %v3814 = vpop.f32.mrf.mxu0
        %v3815 = vadd.f32 %v3646, %v3814
        %3816 = vmatmul.bf16.gmra.mxu0 %v3270
        %v3817 = vpop.f32.mrf.mxu0
        %v3818 = vadd.f32 %v3649, %v3817
        %v3819 = vpop.f32.mrf.mxu0
        %v3820 = vadd.f32 %v3651, %v3819
        %3821 = vmatmul.bf16.gmra.mxu0 %v3273
        %v3822 = vpop.f32.mrf.mxu0
        %v3823 = vadd.f32 %v3654, %v3822
        %v3824 = vpop.f32.mrf.mxu0
        %v3825 = vadd.f32 %v3656, %v3824
        %3826 = vmatmul.bf16.gmra.mxu0 %v3276
        %v3827 = vpop.f32.mrf.mxu0
        %v3828 = vadd.f32 %v3659, %v3827
        %v3829 = vpop.f32.mrf.mxu0
        %v3830 = vadd.f32 %v3661, %v3829
        %3831 = vmatmul.bf16.gmra.mxu0 %v3279
        %v3832 = vpop.f32.mrf.mxu0
        %v3833 = vadd.f32 %v3664, %v3832
        %v3834 = vpop.f32.mrf.mxu0
        %v3835 = vadd.f32 %v3666, %v3834
        %3836 = vmatmul.bf16.gmra.mxu0 %v3282
        %v3837 = vpop.f32.mrf.mxu0
        %v3838 = vadd.f32 %v3669, %v3837
        %v3839 = vpop.f32.mrf.mxu0
        %v3840 = vadd.f32 %v3671, %v3839
        %3841 = vmatmul.bf16.gmra.mxu0 %v3285
        %v3842 = vpop.f32.mrf.mxu0
        %v3843 = vadd.f32 %v3674, %v3842
        %v3844 = vpop.f32.mrf.mxu0
        %v3845 = vadd.f32 %v3676, %v3844
        %3846 = vmatmul.bf16.gmra.mxu0 %v3288
        %v3847 = vpop.f32.mrf.mxu0
        %v3848 = vadd.f32 %v3679, %v3847
        %v3849 = vpop.f32.mrf.mxu0
        %v3850 = vadd.f32 %v3681, %v3849
        %3851 = vmatmul.bf16.gmra.mxu0 %v3291
        %v3852 = vpop.f32.mrf.mxu0
        %v3853 = vadd.f32 %v3684, %v3852
        %v3854 = vpop.f32.mrf.mxu0
        %v3855 = vadd.f32 %v3686, %v3854
        %3856 = vmatmul.bf16.gmra.mxu0 %v3294
        %v3857 = vpop.f32.mrf.mxu0
        %v3858 = vadd.f32 %v3689, %v3857
        %v3859 = vpop.f32.mrf.mxu0
        %v3860 = vadd.f32 %v3691, %v3859
        %3861 = vmatmul.bf16.gmra.mxu0 %v3297
        %v3862 = vpop.f32.mrf.mxu0
        %v3863 = vadd.f32 %v3694, %v3862
        %v3864 = vpop.f32.mrf.mxu0
        %v3865 = vadd.f32 %v3696, %v3864
        %3866 = vmatmul.bf16.gmra.mxu0 %v3300
        %v3867 = vpop.f32.mrf.mxu0
        %v3868 = vadd.f32 %v3699, %v3867
        %v3869 = vpop.f32.mrf.mxu0
        %v3870 = vadd.f32 %v3701, %v3869
        %3871 = vmatmul.bf16.gmra.mxu0 %v3303
        %v3872 = vpop.f32.mrf.mxu0
        %v3873 = vadd.f32 %v3704, %v3872
        %v3874 = vpop.f32.mrf.mxu0
        %v3875 = vadd.f32 %v3706, %v3874
        %3876 = vmatmul.bf16.gmra.mxu0 %v3306
        %v3877 = vpop.f32.mrf.mxu0
        %v3878 = vadd.f32 %v3709, %v3877
        %v3879 = vpop.f32.mrf.mxu0
        %v3880 = vadd.f32 %v3711, %v3879
        %3881 = vmatmul.bf16.gmra.mxu0 %v3309
        %v3882 = vpop.f32.mrf.mxu0
        %v3883 = vadd.f32 %v3714, %v3882
        %v3884 = vpop.f32.mrf.mxu0
        %v3885 = vadd.f32 %v3716, %v3884
        %3886 = vmatmul.bf16.gmra.mxu0 %v3312
        %v3887 = vpop.f32.mrf.mxu0
        %v3888 = vadd.f32 %v3719, %v3887
        %v3889 = vpop.f32.mrf.mxu0
        %v3890 = vadd.f32 %v3721, %v3889
        %3891 = vmatmul.bf16.gmra.mxu0 %v3315
        %v3892 = vpop.f32.mrf.mxu0
        %v3893 = vadd.f32 %v3724, %v3892
        %v3894 = vpop.f32.mrf.mxu0
        %v3895 = vadd.f32 %v3726, %v3894
        %3896 = vmatmul.bf16.gmra.mxu0 %v3318
        %v3897 = vpop.f32.mrf.mxu0
        %v3898 = vadd.f32 %v3729, %v3897
        %v3899 = vpop.f32.mrf.mxu0
        %v3900 = vadd.f32 %v3731, %v3899
        %3901 = vmatmul.bf16.gmra.mxu0 %v3321
        %v3902 = vpop.f32.mrf.mxu0
        %v3903 = vadd.f32 %v3734, %v3902
        %v3904 = vpop.f32.mrf.mxu0
        %v3905 = vadd.f32 %v3736, %v3904
        %3906 = vmatmul.bf16.gmra.mxu0 %v3324
        %v3907 = vpop.f32.mrf.mxu0
        %v3908 = vadd.f32 %v3739, %v3907
        %v3909 = vpop.f32.mrf.mxu0
        %v3910 = vadd.f32 %v3741, %v3909
        %3911 = vmatmul.bf16.gmra.mxu0 %v3327
        %v3912 = vpop.f32.mrf.mxu0
        %v3913 = vadd.f32 %v3744, %v3912
        %v3914 = vpop.f32.mrf.mxu0
        %v3915 = vadd.f32 %v3746, %v3914
        %3916 = vmatmul.bf16.gmra.mxu0 %v3330
        %v3917 = vpop.f32.mrf.mxu0
        %v3918 = vadd.f32 %v3749, %v3917
        %v3919 = vpop.f32.mrf.mxu0
        %v3920 = vadd.f32 %v3751, %v3919
        %3921 = vmatmul.bf16.gmra.mxu0 %v3333
        %v3922 = vpop.f32.mrf.mxu0
        %v3923 = vadd.f32 %v3754, %v3922
        %v3924 = vpop.f32.mrf.mxu0
        %v3925 = vadd.f32 %v3756, %v3924
        %3926 = vmatmul.bf16.gmra.mxu0 %v3336
        %v3927 = vpop.f32.mrf.mxu0
        %v3928 = vadd.f32 %v3759, %v3927
        %v3929 = vpop.f32.mrf.mxu0
        %v3930 = vadd.f32 %v3761, %v3929
        %3931 = vmatmul.bf16.gmra.mxu0 %v3339
        %v3932 = vpop.f32.mrf.mxu0
        %v3933 = vadd.f32 %v3764, %v3932
        %v3934 = vpop.f32.mrf.mxu0
        %v3935 = vadd.f32 %v3766, %v3934
        %3936 = vmatmul.bf16.gmra.mxu0 %v3342
        %v3937 = vpop.f32.mrf.mxu0
        %v3938 = vadd.f32 %v3769, %v3937
        %v3939 = vpop.f32.mrf.mxu0
        %v3940 = vadd.f32 %v3771, %v3939
        %3941 = vmatmul.bf16.gmra.mxu0 %v3345
        %v3942 = vpop.f32.mrf.mxu0
        %v3943 = vadd.f32 %v3774, %v3942
        %v3944 = vpop.f32.mrf.mxu0
        %v3945 = vadd.f32 %v3776, %v3944
        %3946 = vmatmul.bf16.gmra.mxu0 %v3348
        %v3947 = vpop.f32.mrf.mxu0
        %v3948 = vadd.f32 %v3779, %v3947
        %v3949 = vpop.f32.mrf.mxu0
        %v3950 = vadd.f32 %v3781, %v3949
        %3951 = vdwg.mxu0
        %3952 = vmatpush.bf16.msra.mxu0 %v2516
        %3953 = vmatpush.bf16.msra.mxu0 %v2514
        %3954 = vmatpush.bf16.msra.mxu0 %v2512
        %3955 = vmatpush.bf16.msra.mxu0 %v2510
        %3956 = vmatpush.bf16.msra.mxu0 %v2508
        %3957 = vmatpush.bf16.msra.mxu0 %v2506
        %3958 = vmatpush.bf16.msra.mxu0 %v2504
        %3959 = vmatpush.bf16.msra.mxu0 %v2502
        %3960 = vmatmul.bf16.gmra.mxu0 %v3253
        %v3961 = vpop.f32.mrf.mxu0
        %v3962 = vadd.f32 %v2616, %v3961
        %v3963 = vpop.f32.mrf.mxu0
        %v3964 = vadd.f32 %v2621, %v3963
        %3965 = vmatmul.bf16.gmra.mxu0 %v3256
        %v3966 = vpop.f32.mrf.mxu0
        %v3967 = vadd.f32 %v2626, %v3966
        %v3968 = vpop.f32.mrf.mxu0
        %v3969 = vadd.f32 %v2631, %v3968
        %3970 = vmatmul.bf16.gmra.mxu0 %v3259
        %v3971 = vpop.f32.mrf.mxu0
        %v3972 = vadd.f32 %v2636, %v3971
        %v3973 = vpop.f32.mrf.mxu0
        %v3974 = vadd.f32 %v2641, %v3973
        %3975 = vmatmul.bf16.gmra.mxu0 %v3262
        %v3976 = vpop.f32.mrf.mxu0
        %v3977 = vadd.f32 %v2646, %v3976
        %v3978 = vpop.f32.mrf.mxu0
        %v3979 = vadd.f32 %v2651, %v3978
        %3980 = vmatmul.bf16.gmra.mxu0 %v3265
        %v3981 = vpop.f32.mrf.mxu0
        %v3982 = vadd.f32 %v2656, %v3981
        %v3983 = vpop.f32.mrf.mxu0
        %v3984 = vadd.f32 %v2661, %v3983
        %3985 = vmatmul.bf16.gmra.mxu0 %v3268
        %v3986 = vpop.f32.mrf.mxu0
        %v3987 = vadd.f32 %v2666, %v3986
        %v3988 = vpop.f32.mrf.mxu0
        %v3989 = vadd.f32 %v2671, %v3988
        %3990 = vmatmul.bf16.gmra.mxu0 %v3271
        %v3991 = vpop.f32.mrf.mxu0
        %v3992 = vadd.f32 %v2676, %v3991
        %v3993 = vpop.f32.mrf.mxu0
        %v3994 = vadd.f32 %v2681, %v3993
        %3995 = vmatmul.bf16.gmra.mxu0 %v3274
        %v3996 = vpop.f32.mrf.mxu0
        %v3997 = vadd.f32 %v2686, %v3996
        %v3998 = vpop.f32.mrf.mxu0
        %v3999 = vadd.f32 %v2691, %v3998
        %4000 = vmatmul.bf16.gmra.mxu0 %v3277
        %v4001 = vpop.f32.mrf.mxu0
        %v4002 = vadd.f32 %v2696, %v4001
        %v4003 = vpop.f32.mrf.mxu0
        %v4004 = vadd.f32 %v2701, %v4003
        %4005 = vmatmul.bf16.gmra.mxu0 %v3280
        %v4006 = vpop.f32.mrf.mxu0
        %v4007 = vadd.f32 %v2706, %v4006
        %v4008 = vpop.f32.mrf.mxu0
        %v4009 = vadd.f32 %v2711, %v4008
        %4010 = vmatmul.bf16.gmra.mxu0 %v3283
        %v4011 = vpop.f32.mrf.mxu0
        %v4012 = vadd.f32 %v2716, %v4011
        %v4013 = vpop.f32.mrf.mxu0
        %v4014 = vadd.f32 %v2721, %v4013
        %4015 = vmatmul.bf16.gmra.mxu0 %v3286
        %v4016 = vpop.f32.mrf.mxu0
        %v4017 = vadd.f32 %v2726, %v4016
        %v4018 = vpop.f32.mrf.mxu0
        %v4019 = vadd.f32 %v2731, %v4018
        %4020 = vmatmul.bf16.gmra.mxu0 %v3289
        %v4021 = vpop.f32.mrf.mxu0
        %v4022 = vadd.f32 %v2736, %v4021
        %v4023 = vpop.f32.mrf.mxu0
        %v4024 = vadd.f32 %v2741, %v4023
        %4025 = vmatmul.bf16.gmra.mxu0 %v3292
        %v4026 = vpop.f32.mrf.mxu0
        %v4027 = vadd.f32 %v2746, %v4026
        %v4028 = vpop.f32.mrf.mxu0
        %v4029 = vadd.f32 %v2751, %v4028
        %4030 = vmatmul.bf16.gmra.mxu0 %v3295
        %v4031 = vpop.f32.mrf.mxu0
        %v4032 = vadd.f32 %v2756, %v4031
        %v4033 = vpop.f32.mrf.mxu0
        %v4034 = vadd.f32 %v2761, %v4033
        %4035 = vmatmul.bf16.gmra.mxu0 %v3298
        %v4036 = vpop.f32.mrf.mxu0
        %v4037 = vadd.f32 %v2766, %v4036
        %v4038 = vpop.f32.mrf.mxu0
        %v4039 = vadd.f32 %v2771, %v4038
        %4040 = vmatmul.bf16.gmra.mxu0 %v3301
        %v4041 = vpop.f32.mrf.mxu0
        %v4042 = vadd.f32 %v2776, %v4041
        %v4043 = vpop.f32.mrf.mxu0
        %v4044 = vadd.f32 %v2781, %v4043
        %4045 = vmatmul.bf16.gmra.mxu0 %v3304
        %v4046 = vpop.f32.mrf.mxu0
        %v4047 = vadd.f32 %v2786, %v4046
        %v4048 = vpop.f32.mrf.mxu0
        %v4049 = vadd.f32 %v2791, %v4048
        %4050 = vmatmul.bf16.gmra.mxu0 %v3307
        %v4051 = vpop.f32.mrf.mxu0
        %v4052 = vadd.f32 %v2796, %v4051
        %v4053 = vpop.f32.mrf.mxu0
        %v4054 = vadd.f32 %v2801, %v4053
        %4055 = vmatmul.bf16.gmra.mxu0 %v3310
        %v4056 = vpop.f32.mrf.mxu0
        %v4057 = vadd.f32 %v2806, %v4056
        %v4058 = vpop.f32.mrf.mxu0
        %v4059 = vadd.f32 %v2811, %v4058
        %4060 = vmatmul.bf16.gmra.mxu0 %v3313
        %v4061 = vpop.f32.mrf.mxu0
        %v4062 = vadd.f32 %v2816, %v4061
        %v4063 = vpop.f32.mrf.mxu0
        %v4064 = vadd.f32 %v2821, %v4063
        %4065 = vmatmul.bf16.gmra.mxu0 %v3316
        %v4066 = vpop.f32.mrf.mxu0
        %v4067 = vadd.f32 %v2826, %v4066
        %v4068 = vpop.f32.mrf.mxu0
        %v4069 = vadd.f32 %v2831, %v4068
        %4070 = vmatmul.bf16.gmra.mxu0 %v3319
        %v4071 = vpop.f32.mrf.mxu0
        %v4072 = vadd.f32 %v2836, %v4071
        %v4073 = vpop.f32.mrf.mxu0
        %v4074 = vadd.f32 %v2841, %v4073
        %4075 = vmatmul.bf16.gmra.mxu0 %v3322
        %v4076 = vpop.f32.mrf.mxu0
        %v4077 = vadd.f32 %v2846, %v4076
        %v4078 = vpop.f32.mrf.mxu0
        %v4079 = vadd.f32 %v2851, %v4078
        %4080 = vmatmul.bf16.gmra.mxu0 %v3325
        %v4081 = vpop.f32.mrf.mxu0
        %v4082 = vadd.f32 %v2856, %v4081
        %v4083 = vpop.f32.mrf.mxu0
        %v4084 = vadd.f32 %v2861, %v4083
        %4085 = vmatmul.bf16.gmra.mxu0 %v3328
        %v4086 = vpop.f32.mrf.mxu0
        %v4087 = vadd.f32 %v2866, %v4086
        %v4088 = vpop.f32.mrf.mxu0
        %v4089 = vadd.f32 %v2871, %v4088
        %4090 = vmatmul.bf16.gmra.mxu0 %v3331
        %v4091 = vpop.f32.mrf.mxu0
        %v4092 = vadd.f32 %v2876, %v4091
        %v4093 = vpop.f32.mrf.mxu0
        %v4094 = vadd.f32 %v2881, %v4093
        %4095 = vmatmul.bf16.gmra.mxu0 %v3334
        %v4096 = vpop.f32.mrf.mxu0
        %v4097 = vadd.f32 %v2886, %v4096
        %v4098 = vpop.f32.mrf.mxu0
        %v4099 = vadd.f32 %v2891, %v4098
        %4100 = vmatmul.bf16.gmra.mxu0 %v3337
        %v4101 = vpop.f32.mrf.mxu0
        %v4102 = vadd.f32 %v2896, %v4101
        %v4103 = vpop.f32.mrf.mxu0
        %v4104 = vadd.f32 %v2901, %v4103
        %4105 = vmatmul.bf16.gmra.mxu0 %v3340
        %v4106 = vpop.f32.mrf.mxu0
        %v4107 = vadd.f32 %v2906, %v4106
        %v4108 = vpop.f32.mrf.mxu0
        %v4109 = vadd.f32 %v2911, %v4108
        %4110 = vmatmul.bf16.gmra.mxu0 %v3343
        %v4111 = vpop.f32.mrf.mxu0
        %v4112 = vadd.f32 %v2916, %v4111
        %v4113 = vpop.f32.mrf.mxu0
        %v4114 = vadd.f32 %v2921, %v4113
        %4115 = vmatmul.bf16.gmra.mxu0 %v3346
        %v4116 = vpop.f32.mrf.mxu0
        %v4117 = vadd.f32 %v2926, %v4116
        %v4118 = vpop.f32.mrf.mxu0
        %v4119 = vadd.f32 %v2931, %v4118
        %4120 = vdwg.mxu0
        %4121 = vmatpush.bf16.msra.mxu0 %v2532
        %4122 = vmatpush.bf16.msra.mxu0 %v2530
        %4123 = vmatpush.bf16.msra.mxu0 %v2528
        %4124 = vmatpush.bf16.msra.mxu0 %v2526
        %4125 = vmatpush.bf16.msra.mxu0 %v2524
        %4126 = vmatpush.bf16.msra.mxu0 %v2522
        %4127 = vmatpush.bf16.msra.mxu0 %v2520
        %4128 = vmatpush.bf16.msra.mxu0 %v2518
        %4129 = vmatmul.bf16.gmra.mxu0 %v3254
        %v4130 = vpop.f32.mrf.mxu0
        %v4131 = vadd.f32 %v3962, %v4130
        %v4132 = vpop.f32.mrf.mxu0
        %v4133 = vadd.f32 %v3964, %v4132
        %4134 = vmatmul.bf16.gmra.mxu0 %v3257
        %v4135 = vpop.f32.mrf.mxu0
        %v4136 = vadd.f32 %v3967, %v4135
        %v4137 = vpop.f32.mrf.mxu0
        %v4138 = vadd.f32 %v3969, %v4137
        %4139 = vmatmul.bf16.gmra.mxu0 %v3260
        %v4140 = vpop.f32.mrf.mxu0
        %v4141 = vadd.f32 %v3972, %v4140
        %v4142 = vpop.f32.mrf.mxu0
        %v4143 = vadd.f32 %v3974, %v4142
        %4144 = vmatmul.bf16.gmra.mxu0 %v3263
        %v4145 = vpop.f32.mrf.mxu0
        %v4146 = vadd.f32 %v3977, %v4145
        %v4147 = vpop.f32.mrf.mxu0
        %v4148 = vadd.f32 %v3979, %v4147
        %4149 = vmatmul.bf16.gmra.mxu0 %v3266
        %v4150 = vpop.f32.mrf.mxu0
        %v4151 = vadd.f32 %v3982, %v4150
        %v4152 = vpop.f32.mrf.mxu0
        %v4153 = vadd.f32 %v3984, %v4152
        %4154 = vmatmul.bf16.gmra.mxu0 %v3269
        %v4155 = vpop.f32.mrf.mxu0
        %v4156 = vadd.f32 %v3987, %v4155
        %v4157 = vpop.f32.mrf.mxu0
        %v4158 = vadd.f32 %v3989, %v4157
        %4159 = vmatmul.bf16.gmra.mxu0 %v3272
        %v4160 = vpop.f32.mrf.mxu0
        %v4161 = vadd.f32 %v3992, %v4160
        %v4162 = vpop.f32.mrf.mxu0
        %v4163 = vadd.f32 %v3994, %v4162
        %4164 = vmatmul.bf16.gmra.mxu0 %v3275
        %v4165 = vpop.f32.mrf.mxu0
        %v4166 = vadd.f32 %v3997, %v4165
        %v4167 = vpop.f32.mrf.mxu0
        %v4168 = vadd.f32 %v3999, %v4167
        %4169 = vmatmul.bf16.gmra.mxu0 %v3278
        %v4170 = vpop.f32.mrf.mxu0
        %v4171 = vadd.f32 %v4002, %v4170
        %v4172 = vpop.f32.mrf.mxu0
        %v4173 = vadd.f32 %v4004, %v4172
        %4174 = vmatmul.bf16.gmra.mxu0 %v3281
        %v4175 = vpop.f32.mrf.mxu0
        %v4176 = vadd.f32 %v4007, %v4175
        %v4177 = vpop.f32.mrf.mxu0
        %v4178 = vadd.f32 %v4009, %v4177
        %4179 = vmatmul.bf16.gmra.mxu0 %v3284
        %v4180 = vpop.f32.mrf.mxu0
        %v4181 = vadd.f32 %v4012, %v4180
        %v4182 = vpop.f32.mrf.mxu0
        %v4183 = vadd.f32 %v4014, %v4182
        %4184 = vmatmul.bf16.gmra.mxu0 %v3287
        %v4185 = vpop.f32.mrf.mxu0
        %v4186 = vadd.f32 %v4017, %v4185
        %v4187 = vpop.f32.mrf.mxu0
        %v4188 = vadd.f32 %v4019, %v4187
        %4189 = vmatmul.bf16.gmra.mxu0 %v3290
        %v4190 = vpop.f32.mrf.mxu0
        %v4191 = vadd.f32 %v4022, %v4190
        %v4192 = vpop.f32.mrf.mxu0
        %v4193 = vadd.f32 %v4024, %v4192
        %4194 = vmatmul.bf16.gmra.mxu0 %v3293
        %v4195 = vpop.f32.mrf.mxu0
        %v4196 = vadd.f32 %v4027, %v4195
        %v4197 = vpop.f32.mrf.mxu0
        %v4198 = vadd.f32 %v4029, %v4197
        %4199 = vmatmul.bf16.gmra.mxu0 %v3296
        %v4200 = vpop.f32.mrf.mxu0
        %v4201 = vadd.f32 %v4032, %v4200
        %v4202 = vpop.f32.mrf.mxu0
        %v4203 = vadd.f32 %v4034, %v4202
        %4204 = vmatmul.bf16.gmra.mxu0 %v3299
        %v4205 = vpop.f32.mrf.mxu0
        %v4206 = vadd.f32 %v4037, %v4205
        %v4207 = vpop.f32.mrf.mxu0
        %v4208 = vadd.f32 %v4039, %v4207
        %4209 = vmatmul.bf16.gmra.mxu0 %v3302
        %v4210 = vpop.f32.mrf.mxu0
        %v4211 = vadd.f32 %v4042, %v4210
        %v4212 = vpop.f32.mrf.mxu0
        %v4213 = vadd.f32 %v4044, %v4212
        %4214 = vmatmul.bf16.gmra.mxu0 %v3305
        %v4215 = vpop.f32.mrf.mxu0
        %v4216 = vadd.f32 %v4047, %v4215
        %v4217 = vpop.f32.mrf.mxu0
        %v4218 = vadd.f32 %v4049, %v4217
        %4219 = vmatmul.bf16.gmra.mxu0 %v3308
        %v4220 = vpop.f32.mrf.mxu0
        %v4221 = vadd.f32 %v4052, %v4220
        %v4222 = vpop.f32.mrf.mxu0
        %v4223 = vadd.f32 %v4054, %v4222
        %4224 = vmatmul.bf16.gmra.mxu0 %v3311
        %v4225 = vpop.f32.mrf.mxu0
        %v4226 = vadd.f32 %v4057, %v4225
        %v4227 = vpop.f32.mrf.mxu0
        %v4228 = vadd.f32 %v4059, %v4227
        %4229 = vmatmul.bf16.gmra.mxu0 %v3314
        %v4230 = vpop.f32.mrf.mxu0
        %v4231 = vadd.f32 %v4062, %v4230
        %v4232 = vpop.f32.mrf.mxu0
        %v4233 = vadd.f32 %v4064, %v4232
        %4234 = vmatmul.bf16.gmra.mxu0 %v3317
        %v4235 = vpop.f32.mrf.mxu0
        %v4236 = vadd.f32 %v4067, %v4235
        %v4237 = vpop.f32.mrf.mxu0
        %v4238 = vadd.f32 %v4069, %v4237
        %4239 = vmatmul.bf16.gmra.mxu0 %v3320
        %v4240 = vpop.f32.mrf.mxu0
        %v4241 = vadd.f32 %v4072, %v4240
        %v4242 = vpop.f32.mrf.mxu0
        %v4243 = vadd.f32 %v4074, %v4242
        %4244 = vmatmul.bf16.gmra.mxu0 %v3323
        %v4245 = vpop.f32.mrf.mxu0
        %v4246 = vadd.f32 %v4077, %v4245
        %v4247 = vpop.f32.mrf.mxu0
        %v4248 = vadd.f32 %v4079, %v4247
        %4249 = vmatmul.bf16.gmra.mxu0 %v3326
        %v4250 = vpop.f32.mrf.mxu0
        %v4251 = vadd.f32 %v4082, %v4250
        %v4252 = vpop.f32.mrf.mxu0
        %v4253 = vadd.f32 %v4084, %v4252
        %4254 = vmatmul.bf16.gmra.mxu0 %v3329
        %v4255 = vpop.f32.mrf.mxu0
        %v4256 = vadd.f32 %v4087, %v4255
        %v4257 = vpop.f32.mrf.mxu0
        %v4258 = vadd.f32 %v4089, %v4257
        %4259 = vmatmul.bf16.gmra.mxu0 %v3332
        %v4260 = vpop.f32.mrf.mxu0
        %v4261 = vadd.f32 %v4092, %v4260
        %v4262 = vpop.f32.mrf.mxu0
        %v4263 = vadd.f32 %v4094, %v4262
        %4264 = vmatmul.bf16.gmra.mxu0 %v3335
        %v4265 = vpop.f32.mrf.mxu0
        %v4266 = vadd.f32 %v4097, %v4265
        %v4267 = vpop.f32.mrf.mxu0
        %v4268 = vadd.f32 %v4099, %v4267
        %4269 = vmatmul.bf16.gmra.mxu0 %v3338
        %v4270 = vpop.f32.mrf.mxu0
        %v4271 = vadd.f32 %v4102, %v4270
        %v4272 = vpop.f32.mrf.mxu0
        %v4273 = vadd.f32 %v4104, %v4272
        %4274 = vmatmul.bf16.gmra.mxu0 %v3341
        %v4275 = vpop.f32.mrf.mxu0
        %v4276 = vadd.f32 %v4107, %v4275
        %v4277 = vpop.f32.mrf.mxu0
        %v4278 = vadd.f32 %v4109, %v4277
        %4279 = vmatmul.bf16.gmra.mxu0 %v3344
        %v4280 = vpop.f32.mrf.mxu0
        %v4281 = vadd.f32 %v4112, %v4280
        %v4282 = vpop.f32.mrf.mxu0
        %v4283 = vadd.f32 %v4114, %v4282
        %4284 = vmatmul.bf16.gmra.mxu0 %v3347
        %v4285 = vpop.f32.mrf.mxu0
        %v4286 = vadd.f32 %v4117, %v4285
        %v4287 = vpop.f32.mrf.mxu0
        %v4288 = vadd.f32 %v4119, %v4287
        %4289 = vdwg.mxu0
        %4290 = vmatpush.bf16.msra.mxu0 %v2548
        %4291 = vmatpush.bf16.msra.mxu0 %v2546
        %4292 = vmatpush.bf16.msra.mxu0 %v2544
        %4293 = vmatpush.bf16.msra.mxu0 %v2542
        %4294 = vmatpush.bf16.msra.mxu0 %v2540
        %4295 = vmatpush.bf16.msra.mxu0 %v2538
        %4296 = vmatpush.bf16.msra.mxu0 %v2536
        %4297 = vmatpush.bf16.msra.mxu0 %v2534
        %4298 = vmatmul.bf16.gmra.mxu0 %v3255
        %v4299 = vpop.f32.mrf.mxu0
        %v4300 = vadd.f32 %v4131, %v4299
        %v4301 = vpop.f32.mrf.mxu0
        %v4302 = vadd.f32 %v4133, %v4301
        %4303 = vmatmul.bf16.gmra.mxu0 %v3258
        %v4304 = vpop.f32.mrf.mxu0
        %v4305 = vadd.f32 %v4136, %v4304
        %v4306 = vpop.f32.mrf.mxu0
        %v4307 = vadd.f32 %v4138, %v4306
        %4308 = vmatmul.bf16.gmra.mxu0 %v3261
        %v4309 = vpop.f32.mrf.mxu0
        %v4310 = vadd.f32 %v4141, %v4309
        %v4311 = vpop.f32.mrf.mxu0
        %v4312 = vadd.f32 %v4143, %v4311
        %4313 = vmatmul.bf16.gmra.mxu0 %v3264
        %v4314 = vpop.f32.mrf.mxu0
        %v4315 = vadd.f32 %v4146, %v4314
        %v4316 = vpop.f32.mrf.mxu0
        %v4317 = vadd.f32 %v4148, %v4316
        %4318 = vmatmul.bf16.gmra.mxu0 %v3267
        %v4319 = vpop.f32.mrf.mxu0
        %v4320 = vadd.f32 %v4151, %v4319
        %v4321 = vpop.f32.mrf.mxu0
        %v4322 = vadd.f32 %v4153, %v4321
        %4323 = vmatmul.bf16.gmra.mxu0 %v3270
        %v4324 = vpop.f32.mrf.mxu0
        %v4325 = vadd.f32 %v4156, %v4324
        %v4326 = vpop.f32.mrf.mxu0
        %v4327 = vadd.f32 %v4158, %v4326
        %4328 = vmatmul.bf16.gmra.mxu0 %v3273
        %v4329 = vpop.f32.mrf.mxu0
        %v4330 = vadd.f32 %v4161, %v4329
        %v4331 = vpop.f32.mrf.mxu0
        %v4332 = vadd.f32 %v4163, %v4331
        %4333 = vmatmul.bf16.gmra.mxu0 %v3276
        %v4334 = vpop.f32.mrf.mxu0
        %v4335 = vadd.f32 %v4166, %v4334
        %v4336 = vpop.f32.mrf.mxu0
        %v4337 = vadd.f32 %v4168, %v4336
        %4338 = vmatmul.bf16.gmra.mxu0 %v3279
        %v4339 = vpop.f32.mrf.mxu0
        %v4340 = vadd.f32 %v4171, %v4339
        %v4341 = vpop.f32.mrf.mxu0
        %v4342 = vadd.f32 %v4173, %v4341
        %4343 = vmatmul.bf16.gmra.mxu0 %v3282
        %v4344 = vpop.f32.mrf.mxu0
        %v4345 = vadd.f32 %v4176, %v4344
        %v4346 = vpop.f32.mrf.mxu0
        %v4347 = vadd.f32 %v4178, %v4346
        %4348 = vmatmul.bf16.gmra.mxu0 %v3285
        %v4349 = vpop.f32.mrf.mxu0
        %v4350 = vadd.f32 %v4181, %v4349
        %v4351 = vpop.f32.mrf.mxu0
        %v4352 = vadd.f32 %v4183, %v4351
        %4353 = vmatmul.bf16.gmra.mxu0 %v3288
        %v4354 = vpop.f32.mrf.mxu0
        %v4355 = vadd.f32 %v4186, %v4354
        %v4356 = vpop.f32.mrf.mxu0
        %v4357 = vadd.f32 %v4188, %v4356
        %4358 = vmatmul.bf16.gmra.mxu0 %v3291
        %v4359 = vpop.f32.mrf.mxu0
        %v4360 = vadd.f32 %v4191, %v4359
        %v4361 = vpop.f32.mrf.mxu0
        %v4362 = vadd.f32 %v4193, %v4361
        %4363 = vmatmul.bf16.gmra.mxu0 %v3294
        %v4364 = vpop.f32.mrf.mxu0
        %v4365 = vadd.f32 %v4196, %v4364
        %v4366 = vpop.f32.mrf.mxu0
        %v4367 = vadd.f32 %v4198, %v4366
        %4368 = vmatmul.bf16.gmra.mxu0 %v3297
        %v4369 = vpop.f32.mrf.mxu0
        %v4370 = vadd.f32 %v4201, %v4369
        %v4371 = vpop.f32.mrf.mxu0
        %v4372 = vadd.f32 %v4203, %v4371
        %4373 = vmatmul.bf16.gmra.mxu0 %v3300
        %v4374 = vpop.f32.mrf.mxu0
        %v4375 = vadd.f32 %v4206, %v4374
        %v4376 = vpop.f32.mrf.mxu0
        %v4377 = vadd.f32 %v4208, %v4376
        %4378 = vmatmul.bf16.gmra.mxu0 %v3303
        %v4379 = vpop.f32.mrf.mxu0
        %v4380 = vadd.f32 %v4211, %v4379
        %v4381 = vpop.f32.mrf.mxu0
        %v4382 = vadd.f32 %v4213, %v4381
        %4383 = vmatmul.bf16.gmra.mxu0 %v3306
        %v4384 = vpop.f32.mrf.mxu0
        %v4385 = vadd.f32 %v4216, %v4384
        %v4386 = vpop.f32.mrf.mxu0
        %v4387 = vadd.f32 %v4218, %v4386
        %4388 = vmatmul.bf16.gmra.mxu0 %v3309
        %v4389 = vpop.f32.mrf.mxu0
        %v4390 = vadd.f32 %v4221, %v4389
        %v4391 = vpop.f32.mrf.mxu0
        %v4392 = vadd.f32 %v4223, %v4391
        %4393 = vmatmul.bf16.gmra.mxu0 %v3312
        %v4394 = vpop.f32.mrf.mxu0
        %v4395 = vadd.f32 %v4226, %v4394
        %v4396 = vpop.f32.mrf.mxu0
        %v4397 = vadd.f32 %v4228, %v4396
        %4398 = vmatmul.bf16.gmra.mxu0 %v3315
        %v4399 = vpop.f32.mrf.mxu0
        %v4400 = vadd.f32 %v4231, %v4399
        %v4401 = vpop.f32.mrf.mxu0
        %v4402 = vadd.f32 %v4233, %v4401
        %4403 = vmatmul.bf16.gmra.mxu0 %v3318
        %v4404 = vpop.f32.mrf.mxu0
        %v4405 = vadd.f32 %v4236, %v4404
        %v4406 = vpop.f32.mrf.mxu0
        %v4407 = vadd.f32 %v4238, %v4406
        %4408 = vmatmul.bf16.gmra.mxu0 %v3321
        %v4409 = vpop.f32.mrf.mxu0
        %v4410 = vadd.f32 %v4241, %v4409
        %v4411 = vpop.f32.mrf.mxu0
        %v4412 = vadd.f32 %v4243, %v4411
        %4413 = vmatmul.bf16.gmra.mxu0 %v3324
        %v4414 = vpop.f32.mrf.mxu0
        %v4415 = vadd.f32 %v4246, %v4414
        %v4416 = vpop.f32.mrf.mxu0
        %v4417 = vadd.f32 %v4248, %v4416
        %4418 = vmatmul.bf16.gmra.mxu0 %v3327
        %v4419 = vpop.f32.mrf.mxu0
        %v4420 = vadd.f32 %v4251, %v4419
        %v4421 = vpop.f32.mrf.mxu0
        %v4422 = vadd.f32 %v4253, %v4421
        %4423 = vmatmul.bf16.gmra.mxu0 %v3330
        %v4424 = vpop.f32.mrf.mxu0
        %v4425 = vadd.f32 %v4256, %v4424
        %v4426 = vpop.f32.mrf.mxu0
        %v4427 = vadd.f32 %v4258, %v4426
        %4428 = vmatmul.bf16.gmra.mxu0 %v3333
        %v4429 = vpop.f32.mrf.mxu0
        %v4430 = vadd.f32 %v4261, %v4429
        %v4431 = vpop.f32.mrf.mxu0
        %v4432 = vadd.f32 %v4263, %v4431
        %4433 = vmatmul.bf16.gmra.mxu0 %v3336
        %v4434 = vpop.f32.mrf.mxu0
        %v4435 = vadd.f32 %v4266, %v4434
        %v4436 = vpop.f32.mrf.mxu0
        %v4437 = vadd.f32 %v4268, %v4436
        %4438 = vmatmul.bf16.gmra.mxu0 %v3339
        %v4439 = vpop.f32.mrf.mxu0
        %v4440 = vadd.f32 %v4271, %v4439
        %v4441 = vpop.f32.mrf.mxu0
        %v4442 = vadd.f32 %v4273, %v4441
        %4443 = vmatmul.bf16.gmra.mxu0 %v3342
        %v4444 = vpop.f32.mrf.mxu0
        %v4445 = vadd.f32 %v4276, %v4444
        %v4446 = vpop.f32.mrf.mxu0
        %v4447 = vadd.f32 %v4278, %v4446
        %4448 = vmatmul.bf16.gmra.mxu0 %v3345
        %v4449 = vpop.f32.mrf.mxu0
        %v4450 = vadd.f32 %v4281, %v4449
        %v4451 = vpop.f32.mrf.mxu0
        %v4452 = vadd.f32 %v4283, %v4451
        %4453 = vmatmul.bf16.gmra.mxu0 %v3348
        %v4454 = vpop.f32.mrf.mxu0
        %v4455 = vadd.f32 %v4286, %v4454
        %v4456 = vpop.f32.mrf.mxu0
        %v4457 = vadd.f32 %v4288, %v4456
        %4458 = vdwg.mxu0
        %v4459 = vmax.f32 %v3793, 0.0
        %v4460 = vmax.f32 %v4300, 0.0
        %v4461 = vmax.f32 %v3795, 0.0
        %v4462 = vmax.f32 %v4302, 0.0
        %v4463 = vmax.f32 %v3798, 0.0
        %v4464 = vmax.f32 %v4305, 0.0
        %v4465 = vmax.f32 %v3800, 0.0
        %v4466 = vmax.f32 %v4307, 0.0
        %v4467 = vmax.f32 %v3803, 0.0
        %v4468 = vmax.f32 %v4310, 0.0
        %v4469 = vmax.f32 %v3805, 0.0
        %v4470 = vmax.f32 %v4312, 0.0
        %v4471 = vmax.f32 %v3808, 0.0
        %v4472 = vmax.f32 %v4315, 0.0
        %v4473 = vmax.f32 %v3810, 0.0
        %v4474 = vmax.f32 %v4317, 0.0
        %v4475 = vmax.f32 %v3813, 0.0
        %v4476 = vmax.f32 %v4320, 0.0
        %v4477 = vmax.f32 %v3815, 0.0
        %v4478 = vmax.f32 %v4322, 0.0
        %v4479 = vmax.f32 %v3818, 0.0
        %v4480 = vmax.f32 %v4325, 0.0
        %v4481 = vmax.f32 %v3820, 0.0
        %v4482 = vmax.f32 %v4327, 0.0
        %v4483 = vmax.f32 %v3823, 0.0
        %v4484 = vmax.f32 %v4330, 0.0
        %v4485 = vmax.f32 %v3825, 0.0
        %v4486 = vmax.f32 %v4332, 0.0
        %v4487 = vmax.f32 %v3828, 0.0
        %v4488 = vmax.f32 %v4335, 0.0
        %v4489 = vmax.f32 %v3830, 0.0
        %v4490 = vmax.f32 %v4337, 0.0
        %v4491 = vmax.f32 %v3833, 0.0
        %v4492 = vmax.f32 %v4340, 0.0
        %v4493 = vmax.f32 %v3835, 0.0
        %v4494 = vmax.f32 %v4342, 0.0
        %v4495 = vmax.f32 %v3838, 0.0
        %v4496 = vmax.f32 %v4345, 0.0
        %v4497 = vmax.f32 %v3840, 0.0
        %v4498 = vmax.f32 %v4347, 0.0
        %v4499 = vmax.f32 %v3843, 0.0
        %v4500 = vmax.f32 %v4350, 0.0
        %v4501 = vmax.f32 %v3845, 0.0
        %v4502 = vmax.f32 %v4352, 0.0
        %v4503 = vmax.f32 %v3848, 0.0
        %v4504 = vmax.f32 %v4355, 0.0
        %v4505 = vmax.f32 %v3850, 0.0
        %v4506 = vmax.f32 %v4357, 0.0
        %v4507 = vmax.f32 %v3853, 0.0
        %v4508 = vmax.f32 %v4360, 0.0
        %v4509 = vmax.f32 %v3855, 0.0
        %v4510 = vmax.f32 %v4362, 0.0
        %v4511 = vmax.f32 %v3858, 0.0
        %v4512 = vmax.f32 %v4365, 0.0
        %v4513 = vmax.f32 %v3860, 0.0
        %v4514 = vmax.f32 %v4367, 0.0
        %v4515 = vmax.f32 %v3863, 0.0
        %v4516 = vmax.f32 %v4370, 0.0
        %v4517 = vmax.f32 %v3865, 0.0
        %v4518 = vmax.f32 %v4372, 0.0
        %v4519 = vmax.f32 %v3868, 0.0
        %v4520 = vmax.f32 %v4375, 0.0
        %v4521 = vmax.f32 %v3870, 0.0
        %v4522 = vmax.f32 %v4377, 0.0
        %v4523 = vmax.f32 %v3873, 0.0
        %v4524 = vmax.f32 %v4380, 0.0
        %v4525 = vmax.f32 %v3875, 0.0
        %v4526 = vmax.f32 %v4382, 0.0
        %v4527 = vmax.f32 %v3878, 0.0
        %v4528 = vmax.f32 %v4385, 0.0
        %v4529 = vmax.f32 %v3880, 0.0
        %v4530 = vmax.f32 %v4387, 0.0
        %v4531 = vmax.f32 %v3883, 0.0
        %v4532 = vmax.f32 %v4390, 0.0
        %v4533 = vmax.f32 %v3885, 0.0
        %v4534 = vmax.f32 %v4392, 0.0
        %v4535 = vmax.f32 %v3888, 0.0
        %v4536 = vmax.f32 %v4395, 0.0
        %v4537 = vmax.f32 %v3890, 0.0
        %v4538 = vmax.f32 %v4397, 0.0
        %v4539 = vmax.f32 %v3893, 0.0
        %v4540 = vmax.f32 %v4400, 0.0
        %v4541 = vmax.f32 %v3895, 0.0
        %v4542 = vmax.f32 %v4402, 0.0
        %v4543 = vmax.f32 %v3898, 0.0
        %v4544 = vmax.f32 %v4405, 0.0
        %v4545 = vmax.f32 %v3900, 0.0
        %v4546 = vmax.f32 %v4407, 0.0
        %v4547 = vmax.f32 %v3903, 0.0
        %v4548 = vmax.f32 %v4410, 0.0
        %v4549 = vmax.f32 %v3905, 0.0
        %v4550 = vmax.f32 %v4412, 0.0
        %v4551 = vmax.f32 %v3908, 0.0
        %v4552 = vmax.f32 %v4415, 0.0
        %v4553 = vmax.f32 %v3910, 0.0
        %v4554 = vmax.f32 %v4417, 0.0
        %v4555 = vmax.f32 %v3913, 0.0
        %v4556 = vmax.f32 %v4420, 0.0
        %v4557 = vmax.f32 %v3915, 0.0
        %v4558 = vmax.f32 %v4422, 0.0
        %v4559 = vmax.f32 %v3918, 0.0
        %v4560 = vmax.f32 %v4425, 0.0
        %v4561 = vmax.f32 %v3920, 0.0
        %v4562 = vmax.f32 %v4427, 0.0
        %v4563 = vmax.f32 %v3923, 0.0
        %v4564 = vmax.f32 %v4430, 0.0
        %v4565 = vmax.f32 %v3925, 0.0
        %v4566 = vmax.f32 %v4432, 0.0
        %v4567 = vmax.f32 %v3928, 0.0
        %v4568 = vmax.f32 %v4435, 0.0
        %v4569 = vmax.f32 %v3930, 0.0
        %v4570 = vmax.f32 %v4437, 0.0
        %v4571 = vmax.f32 %v3933, 0.0
        %v4572 = vmax.f32 %v4440, 0.0
        %v4573 = vmax.f32 %v3935, 0.0
        %v4574 = vmax.f32 %v4442, 0.0
        %v4575 = vmax.f32 %v3938, 0.0
        %v4576 = vmax.f32 %v4445, 0.0
        %v4577 = vmax.f32 %v3940, 0.0
        %v4578 = vmax.f32 %v4447, 0.0
        %v4579 = vmax.f32 %v3943, 0.0
        %v4580 = vmax.f32 %v4450, 0.0
        %v4581 = vmax.f32 %v3945, 0.0
        %v4582 = vmax.f32 %v4452, 0.0
        %v4583 = vmax.f32 %v3948, 0.0
        %v4584 = vmax.f32 %v4455, 0.0
        %v4585 = vmax.f32 %v3950, 0.0
        %v4586 = vmax.f32 %v4457, 0.0
        %v4587 = vld [vmem:[#allocation6] sm:$0xff]
        %v4588 = vld [vmem:[#allocation6 + $0x8] sm:$0xff]
        %v4589 = vld [vmem:[#allocation6 + $0x10] sm:$0xff]
        %v4590 = vld [vmem:[#allocation6 + $0x18] sm:$0xff]
        %v4591 = vld [vmem:[#allocation6 + $0x20] sm:$0xff]
        %v4592 = vld [vmem:[#allocation6 + $0x28] sm:$0xff]
        %v4593 = vld [vmem:[#allocation6 + $0x30] sm:$0xff]
        %v4594 = vld [vmem:[#allocation6 + $0x38] sm:$0xff]
        %v4595 = vld [vmem:[#allocation6 + $0x40] sm:$0xff]
        %v4596 = vld [vmem:[#allocation6 + $0x48] sm:$0xff]
        %v4597 = vld [vmem:[#allocation6 + $0x50] sm:$0xff]
        %v4598 = vld [vmem:[#allocation6 + $0x58] sm:$0xff]
        %v4599 = vld [vmem:[#allocation6 + $0x60] sm:$0xff]
        %v4600 = vld [vmem:[#allocation6 + $0x68] sm:$0xff]
        %v4601 = vld [vmem:[#allocation6 + $0x70] sm:$0xff]
        %v4602 = vld [vmem:[#allocation6 + $0x78] sm:$0xff]
        %v4603 = vld [vmem:[#allocation6 + $0x80] sm:$0xff]
        %v4604 = vld [vmem:[#allocation6 + $0x88] sm:$0xff]
        %v4605 = vld [vmem:[#allocation6 + $0x90] sm:$0xff]
        %v4606 = vld [vmem:[#allocation6 + $0x98] sm:$0xff]
        %v4607 = vld [vmem:[#allocation6 + $0xa0] sm:$0xff]
        %v4608 = vld [vmem:[#allocation6 + $0xa8] sm:$0xff]
        %v4609 = vld [vmem:[#allocation6 + $0xb0] sm:$0xff]
        %v4610 = vld [vmem:[#allocation6 + $0xb8] sm:$0xff]
        %v4611 = vld [vmem:[#allocation6 + $0xc0] sm:$0xff]
        %v4612 = vld [vmem:[#allocation6 + $0xc8] sm:$0xff]
        %v4613 = vld [vmem:[#allocation6 + $0xd0] sm:$0xff]
        %v4614 = vld [vmem:[#allocation6 + $0xd8] sm:$0xff]
        %v4615 = vld [vmem:[#allocation6 + $0xe0] sm:$0xff]
        %v4616 = vld [vmem:[#allocation6 + $0xe8] sm:$0xff]
        %v4617 = vld [vmem:[#allocation6 + $0xf0] sm:$0xff]
        %v4618 = vld [vmem:[#allocation6 + $0xf8] sm:$0xff]
        %v4619 = vld [vmem:[#allocation6 + $0x100] sm:$0xff]
        %v4620 = vld [vmem:[#allocation6 + $0x108] sm:$0xff]
        %v4621 = vld [vmem:[#allocation6 + $0x110] sm:$0xff]
        %v4622 = vld [vmem:[#allocation6 + $0x118] sm:$0xff]
        %v4623 = vld [vmem:[#allocation6 + $0x120] sm:$0xff]
        %v4624 = vld [vmem:[#allocation6 + $0x128] sm:$0xff]
        %v4625 = vld [vmem:[#allocation6 + $0x130] sm:$0xff]
        %v4626 = vld [vmem:[#allocation6 + $0x138] sm:$0xff]
        %v4627 = vld [vmem:[#allocation6 + $0x140] sm:$0xff]
        %v4628 = vld [vmem:[#allocation6 + $0x148] sm:$0xff]
        %v4629 = vld [vmem:[#allocation6 + $0x150] sm:$0xff]
        %v4630 = vld [vmem:[#allocation6 + $0x158] sm:$0xff]
        %v4631 = vld [vmem:[#allocation6 + $0x160] sm:$0xff]
        %v4632 = vld [vmem:[#allocation6 + $0x168] sm:$0xff]
        %v4633 = vld [vmem:[#allocation6 + $0x170] sm:$0xff]
        %v4634 = vld [vmem:[#allocation6 + $0x178] sm:$0xff]
        %v4635 = vld [vmem:[#allocation6 + $0x180] sm:$0xff]
        %v4636 = vld [vmem:[#allocation6 + $0x188] sm:$0xff]
        %v4637 = vld [vmem:[#allocation6 + $0x190] sm:$0xff]
        %v4638 = vld [vmem:[#allocation6 + $0x198] sm:$0xff]
        %v4639 = vld [vmem:[#allocation6 + $0x1a0] sm:$0xff]
        %v4640 = vld [vmem:[#allocation6 + $0x1a8] sm:$0xff]
        %v4641 = vld [vmem:[#allocation6 + $0x1b0] sm:$0xff]
        %v4642 = vld [vmem:[#allocation6 + $0x1b8] sm:$0xff]
        %v4643 = vld [vmem:[#allocation6 + $0x1c0] sm:$0xff]
        %v4644 = vld [vmem:[#allocation6 + $0x1c8] sm:$0xff]
        %v4645 = vld [vmem:[#allocation6 + $0x1d0] sm:$0xff]
        %v4646 = vld [vmem:[#allocation6 + $0x1d8] sm:$0xff]
        %v4647 = vld [vmem:[#allocation6 + $0x1e0] sm:$0xff]
        %v4648 = vld [vmem:[#allocation6 + $0x1e8] sm:$0xff]
        %v4649 = vld [vmem:[#allocation6 + $0x1f0] sm:$0xff]
        %v4650 = vld [vmem:[#allocation6 + $0x1f8] sm:$0xff]
        %v4651 = vld [vmem:[#allocation6 + $0x200] sm:$0xff]
        %v4652 = vld [vmem:[#allocation6 + $0x208] sm:$0xff]
        %v4653 = vld [vmem:[#allocation6 + $0x210] sm:$0xff]
        %v4654 = vld [vmem:[#allocation6 + $0x218] sm:$0xff]
        %v4655 = vld [vmem:[#allocation6 + $0x220] sm:$0xff]
        %v4656 = vld [vmem:[#allocation6 + $0x228] sm:$0xff]
        %v4657 = vld [vmem:[#allocation6 + $0x230] sm:$0xff]
        %v4658 = vld [vmem:[#allocation6 + $0x238] sm:$0xff]
        %v4659 = vld [vmem:[#allocation6 + $0x240] sm:$0xff]
        %v4660 = vld [vmem:[#allocation6 + $0x248] sm:$0xff]
        %v4661 = vld [vmem:[#allocation6 + $0x250] sm:$0xff]
        %v4662 = vld [vmem:[#allocation6 + $0x258] sm:$0xff]
        %v4663 = vld [vmem:[#allocation6 + $0x260] sm:$0xff]
        %v4664 = vld [vmem:[#allocation6 + $0x268] sm:$0xff]
        %v4665 = vld [vmem:[#allocation6 + $0x270] sm:$0xff]
        %v4666 = vld [vmem:[#allocation6 + $0x278] sm:$0xff]
        %v4667 = vld [vmem:[#allocation6 + $0x280] sm:$0xff]
        %v4668 = vld [vmem:[#allocation6 + $0x288] sm:$0xff]
        %v4669 = vld [vmem:[#allocation6 + $0x290] sm:$0xff]
        %v4670 = vld [vmem:[#allocation6 + $0x298] sm:$0xff]
        %v4671 = vld [vmem:[#allocation6 + $0x2a0] sm:$0xff]
        %v4672 = vld [vmem:[#allocation6 + $0x2a8] sm:$0xff]
        %v4673 = vld [vmem:[#allocation6 + $0x2b0] sm:$0xff]
        %v4674 = vld [vmem:[#allocation6 + $0x2b8] sm:$0xff]
        %v4675 = vld [vmem:[#allocation6 + $0x2c0] sm:$0xff]
        %v4676 = vld [vmem:[#allocation6 + $0x2c8] sm:$0xff]
        %v4677 = vld [vmem:[#allocation6 + $0x2d0] sm:$0xff]
        %v4678 = vld [vmem:[#allocation6 + $0x2d8] sm:$0xff]
        %v4679 = vld [vmem:[#allocation6 + $0x2e0] sm:$0xff]
        %v4680 = vld [vmem:[#allocation6 + $0x2e8] sm:$0xff]
        %v4681 = vld [vmem:[#allocation6 + $0x2f0] sm:$0xff]
        %v4682 = vld [vmem:[#allocation6 + $0x2f8] sm:$0xff]
        %v4683 = vld [vmem:[#allocation6 + $0x300] sm:$0xff]
        %v4684 = vld [vmem:[#allocation6 + $0x308] sm:$0xff]
        %v4685 = vld [vmem:[#allocation6 + $0x310] sm:$0xff]
        %v4686 = vld [vmem:[#allocation6 + $0x318] sm:$0xff]
        %v4687 = vld [vmem:[#allocation6 + $0x320] sm:$0xff]
        %v4688 = vld [vmem:[#allocation6 + $0x328] sm:$0xff]
        %v4689 = vld [vmem:[#allocation6 + $0x330] sm:$0xff]
        %v4690 = vld [vmem:[#allocation6 + $0x338] sm:$0xff]
        %v4691 = vld [vmem:[#allocation6 + $0x340] sm:$0xff]
        %v4692 = vld [vmem:[#allocation6 + $0x348] sm:$0xff]
        %v4693 = vld [vmem:[#allocation6 + $0x350] sm:$0xff]
        %v4694 = vld [vmem:[#allocation6 + $0x358] sm:$0xff]
        %v4695 = vld [vmem:[#allocation6 + $0x360] sm:$0xff]
        %v4696 = vld [vmem:[#allocation6 + $0x368] sm:$0xff]
        %v4697 = vld [vmem:[#allocation6 + $0x370] sm:$0xff]
        %v4698 = vld [vmem:[#allocation6 + $0x378] sm:$0xff]
        %v4699 = vld [vmem:[#allocation6 + $0x380] sm:$0xff]
        %v4700 = vld [vmem:[#allocation6 + $0x388] sm:$0xff]
        %v4701 = vld [vmem:[#allocation6 + $0x390] sm:$0xff]
        %v4702 = vld [vmem:[#allocation6 + $0x398] sm:$0xff]
        %v4703 = vld [vmem:[#allocation6 + $0x3a0] sm:$0xff]
        %v4704 = vld [vmem:[#allocation6 + $0x3a8] sm:$0xff]
        %v4705 = vld [vmem:[#allocation6 + $0x3b0] sm:$0xff]
        %v4706 = vld [vmem:[#allocation6 + $0x3b8] sm:$0xff]
        %v4707 = vld [vmem:[#allocation6 + $0x3c0] sm:$0xff]
        %v4708 = vld [vmem:[#allocation6 + $0x3c8] sm:$0xff]
        %v4709 = vld [vmem:[#allocation6 + $0x3d0] sm:$0xff]
        %v4710 = vld [vmem:[#allocation6 + $0x3d8] sm:$0xff]
        %v4711 = vld [vmem:[#allocation6 + $0x3e0] sm:$0xff]
        %v4712 = vld [vmem:[#allocation6 + $0x3e8] sm:$0xff]
        %v4713 = vld [vmem:[#allocation6 + $0x3f0] sm:$0xff]
        %v4714 = vld [vmem:[#allocation6 + $0x3f8] sm:$0xff]
        %v4715 = vld [vmem:[#allocation6 + $0x400] sm:$0xff]
        %v4716 = vld [vmem:[#allocation6 + $0x408] sm:$0xff]
        %v4717 = vld [vmem:[#allocation6 + $0x410] sm:$0xff]
        %v4718 = vld [vmem:[#allocation6 + $0x418] sm:$0xff]
        %v4719 = vld [vmem:[#allocation6 + $0x420] sm:$0xff]
        %v4720 = vld [vmem:[#allocation6 + $0x428] sm:$0xff]
        %v4721 = vld [vmem:[#allocation6 + $0x430] sm:$0xff]
        %v4722 = vld [vmem:[#allocation6 + $0x438] sm:$0xff]
        %v4723 = vld [vmem:[#allocation6 + $0x440] sm:$0xff]
        %v4724 = vld [vmem:[#allocation6 + $0x448] sm:$0xff]
        %v4725 = vld [vmem:[#allocation6 + $0x450] sm:$0xff]
        %v4726 = vld [vmem:[#allocation6 + $0x458] sm:$0xff]
        %v4727 = vld [vmem:[#allocation6 + $0x460] sm:$0xff]
        %v4728 = vld [vmem:[#allocation6 + $0x468] sm:$0xff]
        %v4729 = vld [vmem:[#allocation6 + $0x470] sm:$0xff]
        %v4730 = vld [vmem:[#allocation6 + $0x478] sm:$0xff]
        %v4731 = vld [vmem:[#allocation6 + $0x480] sm:$0xff]
        %v4732 = vld [vmem:[#allocation6 + $0x488] sm:$0xff]
        %v4733 = vld [vmem:[#allocation6 + $0x490] sm:$0xff]
        %v4734 = vld [vmem:[#allocation6 + $0x498] sm:$0xff]
        %v4735 = vld [vmem:[#allocation6 + $0x4a0] sm:$0xff]
        %v4736 = vld [vmem:[#allocation6 + $0x4a8] sm:$0xff]
        %v4737 = vld [vmem:[#allocation6 + $0x4b0] sm:$0xff]
        %v4738 = vld [vmem:[#allocation6 + $0x4b8] sm:$0xff]
        %v4739 = vld [vmem:[#allocation6 + $0x4c0] sm:$0xff]
        %v4740 = vld [vmem:[#allocation6 + $0x4c8] sm:$0xff]
        %v4741 = vld [vmem:[#allocation6 + $0x4d0] sm:$0xff]
        %v4742 = vld [vmem:[#allocation6 + $0x4d8] sm:$0xff]
        %v4743 = vld [vmem:[#allocation6 + $0x4e0] sm:$0xff]
        %v4744 = vld [vmem:[#allocation6 + $0x4e8] sm:$0xff]
        %v4745 = vld [vmem:[#allocation6 + $0x4f0] sm:$0xff]
        %v4746 = vld [vmem:[#allocation6 + $0x4f8] sm:$0xff]
        %v4747 = vld [vmem:[#allocation6 + $0x500] sm:$0xff]
        %v4748 = vld [vmem:[#allocation6 + $0x508] sm:$0xff]
        %v4749 = vld [vmem:[#allocation6 + $0x510] sm:$0xff]
        %v4750 = vld [vmem:[#allocation6 + $0x518] sm:$0xff]
        %v4751 = vld [vmem:[#allocation6 + $0x520] sm:$0xff]
        %v4752 = vld [vmem:[#allocation6 + $0x528] sm:$0xff]
        %v4753 = vld [vmem:[#allocation6 + $0x530] sm:$0xff]
        %v4754 = vld [vmem:[#allocation6 + $0x538] sm:$0xff]
        %v4755 = vld [vmem:[#allocation6 + $0x540] sm:$0xff]
        %v4756 = vld [vmem:[#allocation6 + $0x548] sm:$0xff]
        %v4757 = vld [vmem:[#allocation6 + $0x550] sm:$0xff]
        %v4758 = vld [vmem:[#allocation6 + $0x558] sm:$0xff]
        %v4759 = vld [vmem:[#allocation6 + $0x560] sm:$0xff]
        %v4760 = vld [vmem:[#allocation6 + $0x568] sm:$0xff]
        %v4761 = vld [vmem:[#allocation6 + $0x570] sm:$0xff]
        %v4762 = vld [vmem:[#allocation6 + $0x578] sm:$0xff]
        %v4763 = vld [vmem:[#allocation6 + $0x580] sm:$0xff]
        %v4764 = vld [vmem:[#allocation6 + $0x588] sm:$0xff]
        %v4765 = vld [vmem:[#allocation6 + $0x590] sm:$0xff]
        %v4766 = vld [vmem:[#allocation6 + $0x598] sm:$0xff]
        %v4767 = vld [vmem:[#allocation6 + $0x5a0] sm:$0xff]
        %v4768 = vld [vmem:[#allocation6 + $0x5a8] sm:$0xff]
        %v4769 = vld [vmem:[#allocation6 + $0x5b0] sm:$0xff]
        %v4770 = vld [vmem:[#allocation6 + $0x5b8] sm:$0xff]
        %v4771 = vld [vmem:[#allocation6 + $0x5c0] sm:$0xff]
        %v4772 = vld [vmem:[#allocation6 + $0x5c8] sm:$0xff]
        %v4773 = vld [vmem:[#allocation6 + $0x5d0] sm:$0xff]
        %v4774 = vld [vmem:[#allocation6 + $0x5d8] sm:$0xff]
        %v4775 = vld [vmem:[#allocation6 + $0x5e0] sm:$0xff]
        %v4776 = vld [vmem:[#allocation6 + $0x5e8] sm:$0xff]
        %v4777 = vld [vmem:[#allocation6 + $0x5f0] sm:$0xff]
        %v4778 = vld [vmem:[#allocation6 + $0x5f8] sm:$0xff]
        %v4779 = vld [vmem:[#allocation6 + $0x600] sm:$0xff]
        %v4780 = vld [vmem:[#allocation6 + $0x608] sm:$0xff]
        %v4781 = vld [vmem:[#allocation6 + $0x610] sm:$0xff]
        %v4782 = vld [vmem:[#allocation6 + $0x618] sm:$0xff]
        %v4783 = vld [vmem:[#allocation6 + $0x620] sm:$0xff]
        %v4784 = vld [vmem:[#allocation6 + $0x628] sm:$0xff]
        %v4785 = vld [vmem:[#allocation6 + $0x630] sm:$0xff]
        %v4786 = vld [vmem:[#allocation6 + $0x638] sm:$0xff]
        %v4787 = vld [vmem:[#allocation6 + $0x640] sm:$0xff]
        %v4788 = vld [vmem:[#allocation6 + $0x648] sm:$0xff]
        %v4789 = vld [vmem:[#allocation6 + $0x650] sm:$0xff]
        %v4790 = vld [vmem:[#allocation6 + $0x658] sm:$0xff]
        %v4791 = vld [vmem:[#allocation6 + $0x660] sm:$0xff]
        %v4792 = vld [vmem:[#allocation6 + $0x668] sm:$0xff]
        %v4793 = vld [vmem:[#allocation6 + $0x670] sm:$0xff]
        %v4794 = vld [vmem:[#allocation6 + $0x678] sm:$0xff]
        %v4795 = vld [vmem:[#allocation6 + $0x680] sm:$0xff]
        %v4796 = vld [vmem:[#allocation6 + $0x688] sm:$0xff]
        %v4797 = vld [vmem:[#allocation6 + $0x690] sm:$0xff]
        %v4798 = vld [vmem:[#allocation6 + $0x698] sm:$0xff]
        %v4799 = vld [vmem:[#allocation6 + $0x6a0] sm:$0xff]
        %v4800 = vld [vmem:[#allocation6 + $0x6a8] sm:$0xff]
        %v4801 = vld [vmem:[#allocation6 + $0x6b0] sm:$0xff]
        %v4802 = vld [vmem:[#allocation6 + $0x6b8] sm:$0xff]
        %v4803 = vld [vmem:[#allocation6 + $0x6c0] sm:$0xff]
        %v4804 = vld [vmem:[#allocation6 + $0x6c8] sm:$0xff]
        %v4805 = vld [vmem:[#allocation6 + $0x6d0] sm:$0xff]
        %v4806 = vld [vmem:[#allocation6 + $0x6d8] sm:$0xff]
        %v4807 = vld [vmem:[#allocation6 + $0x6e0] sm:$0xff]
        %v4808 = vld [vmem:[#allocation6 + $0x6e8] sm:$0xff]
        %v4809 = vld [vmem:[#allocation6 + $0x6f0] sm:$0xff]
        %v4810 = vld [vmem:[#allocation6 + $0x6f8] sm:$0xff]
        %v4811 = vld [vmem:[#allocation6 + $0x700] sm:$0xff]
        %v4812 = vld [vmem:[#allocation6 + $0x708] sm:$0xff]
        %v4813 = vld [vmem:[#allocation6 + $0x710] sm:$0xff]
        %v4814 = vld [vmem:[#allocation6 + $0x718] sm:$0xff]
        %v4815 = vld [vmem:[#allocation6 + $0x720] sm:$0xff]
        %v4816 = vld [vmem:[#allocation6 + $0x728] sm:$0xff]
        %v4817 = vld [vmem:[#allocation6 + $0x730] sm:$0xff]
        %v4818 = vld [vmem:[#allocation6 + $0x738] sm:$0xff]
        %v4819 = vld [vmem:[#allocation6 + $0x740] sm:$0xff]
        %v4820 = vld [vmem:[#allocation6 + $0x748] sm:$0xff]
        %v4821 = vld [vmem:[#allocation6 + $0x750] sm:$0xff]
        %v4822 = vld [vmem:[#allocation6 + $0x758] sm:$0xff]
        %v4823 = vld [vmem:[#allocation6 + $0x760] sm:$0xff]
        %v4824 = vld [vmem:[#allocation6 + $0x768] sm:$0xff]
        %v4825 = vld [vmem:[#allocation6 + $0x770] sm:$0xff]
        %v4826 = vld [vmem:[#allocation6 + $0x778] sm:$0xff]
        %v4827 = vld [vmem:[#allocation6 + $0x780] sm:$0xff]
        %v4828 = vld [vmem:[#allocation6 + $0x788] sm:$0xff]
        %v4829 = vld [vmem:[#allocation6 + $0x790] sm:$0xff]
        %v4830 = vld [vmem:[#allocation6 + $0x798] sm:$0xff]
        %v4831 = vld [vmem:[#allocation6 + $0x7a0] sm:$0xff]
        %v4832 = vld [vmem:[#allocation6 + $0x7a8] sm:$0xff]
        %v4833 = vld [vmem:[#allocation6 + $0x7b0] sm:$0xff]
        %v4834 = vld [vmem:[#allocation6 + $0x7b8] sm:$0xff]
        %v4835 = vld [vmem:[#allocation6 + $0x7c0] sm:$0xff]
        %v4836 = vld [vmem:[#allocation6 + $0x7c8] sm:$0xff]
        %v4837 = vld [vmem:[#allocation6 + $0x7d0] sm:$0xff]
        %v4838 = vld [vmem:[#allocation6 + $0x7d8] sm:$0xff]
        %v4839 = vld [vmem:[#allocation6 + $0x7e0] sm:$0xff]
        %v4840 = vld [vmem:[#allocation6 + $0x7e8] sm:$0xff]
        %v4841 = vld [vmem:[#allocation6 + $0x7f0] sm:$0xff]
        %v4842 = vld [vmem:[#allocation6 + $0x7f8] sm:$0xff]
        %v4843 = vpack.c.bf16 %v4461, %v4459
        %v4844 = vpack.c.bf16 %v4462, %v4460
        %v4845 = vpack.c.bf16 %v4465, %v4463
        %v4846 = vpack.c.bf16 %v4466, %v4464
        %v4847 = vpack.c.bf16 %v4469, %v4467
        %v4848 = vpack.c.bf16 %v4470, %v4468
        %v4849 = vpack.c.bf16 %v4473, %v4471
        %v4850 = vpack.c.bf16 %v4474, %v4472
        %v4851 = vpack.c.bf16 %v4477, %v4475
        %v4852 = vpack.c.bf16 %v4478, %v4476
        %v4853 = vpack.c.bf16 %v4481, %v4479
        %v4854 = vpack.c.bf16 %v4482, %v4480
        %v4855 = vpack.c.bf16 %v4485, %v4483
        %v4856 = vpack.c.bf16 %v4486, %v4484
        %v4857 = vpack.c.bf16 %v4489, %v4487
        %v4858 = vpack.c.bf16 %v4490, %v4488
        %v4859 = vpack.c.bf16 %v4493, %v4491
        %v4860 = vpack.c.bf16 %v4494, %v4492
        %v4861 = vpack.c.bf16 %v4497, %v4495
        %v4862 = vpack.c.bf16 %v4498, %v4496
        %v4863 = vpack.c.bf16 %v4501, %v4499
        %v4864 = vpack.c.bf16 %v4502, %v4500
        %v4865 = vpack.c.bf16 %v4505, %v4503
        %v4866 = vpack.c.bf16 %v4506, %v4504
        %v4867 = vpack.c.bf16 %v4509, %v4507
        %v4868 = vpack.c.bf16 %v4510, %v4508
        %v4869 = vpack.c.bf16 %v4513, %v4511
        %v4870 = vpack.c.bf16 %v4514, %v4512
        %v4871 = vpack.c.bf16 %v4517, %v4515
        %v4872 = vpack.c.bf16 %v4518, %v4516
        %v4873 = vpack.c.bf16 %v4521, %v4519
        %v4874 = vpack.c.bf16 %v4522, %v4520
        %v4875 = vpack.c.bf16 %v4525, %v4523
        %v4876 = vpack.c.bf16 %v4526, %v4524
        %v4877 = vpack.c.bf16 %v4529, %v4527
        %v4878 = vpack.c.bf16 %v4530, %v4528
        %v4879 = vpack.c.bf16 %v4533, %v4531
        %v4880 = vpack.c.bf16 %v4534, %v4532
        %v4881 = vpack.c.bf16 %v4537, %v4535
        %v4882 = vpack.c.bf16 %v4538, %v4536
        %v4883 = vpack.c.bf16 %v4541, %v4539
        %v4884 = vpack.c.bf16 %v4542, %v4540
        %v4885 = vpack.c.bf16 %v4545, %v4543
        %v4886 = vpack.c.bf16 %v4546, %v4544
        %v4887 = vpack.c.bf16 %v4549, %v4547
        %v4888 = vpack.c.bf16 %v4550, %v4548
        %v4889 = vpack.c.bf16 %v4553, %v4551
        %v4890 = vpack.c.bf16 %v4554, %v4552
        %v4891 = vpack.c.bf16 %v4557, %v4555
        %v4892 = vpack.c.bf16 %v4558, %v4556
        %v4893 = vpack.c.bf16 %v4561, %v4559
        %v4894 = vpack.c.bf16 %v4562, %v4560
        %v4895 = vpack.c.bf16 %v4565, %v4563
        %v4896 = vpack.c.bf16 %v4566, %v4564
        %v4897 = vpack.c.bf16 %v4569, %v4567
        %v4898 = vpack.c.bf16 %v4570, %v4568
        %v4899 = vpack.c.bf16 %v4573, %v4571
        %v4900 = vpack.c.bf16 %v4574, %v4572
        %v4901 = vpack.c.bf16 %v4577, %v4575
        %v4902 = vpack.c.bf16 %v4578, %v4576
        %v4903 = vpack.c.bf16 %v4581, %v4579
        %v4904 = vpack.c.bf16 %v4582, %v4580
        %v4905 = vpack.c.bf16 %v4585, %v4583
        %v4906 = vpack.c.bf16 %v4586, %v4584
        %v4907 = vld [vmem:[%s8] sm:$0xff]
        %v4908 = vld [vmem:[%s8 + $0x8] sm:$0xff]
        %v4909 = vld [vmem:[%s8 + $0x10] sm:$0xff]
        %v4910 = vld [vmem:[%s8 + $0x18] sm:$0xff]
        %v4911 = vld [vmem:[%s8 + $0x20] sm:$0xff]
        %v4912 = vld [vmem:[%s8 + $0x28] sm:$0xff]
        %v4913 = vld [vmem:[%s8 + $0x30] sm:$0xff]
        %v4914 = vld [vmem:[%s8 + $0x38] sm:$0xff]
        %v4915 = vld [vmem:[%s8 + $0x40] sm:$0xff]
        %v4916 = vld [vmem:[%s8 + $0x48] sm:$0xff]
        %v4917 = vld [vmem:[%s8 + $0x50] sm:$0xff]
        %v4918 = vld [vmem:[%s8 + $0x58] sm:$0xff]
        %v4919 = vld [vmem:[%s8 + $0x60] sm:$0xff]
        %v4920 = vld [vmem:[%s8 + $0x68] sm:$0xff]
        %v4921 = vld [vmem:[%s8 + $0x70] sm:$0xff]
        %v4922 = vld [vmem:[%s8 + $0x78] sm:$0xff]
        %v4923 = vld [vmem:[%s8 + $0x80] sm:$0xff]
        %v4924 = vld [vmem:[%s8 + $0x88] sm:$0xff]
        %v4925 = vld [vmem:[%s8 + $0x90] sm:$0xff]
        %v4926 = vld [vmem:[%s8 + $0x98] sm:$0xff]
        %v4927 = vld [vmem:[%s8 + $0xa0] sm:$0xff]
        %v4928 = vld [vmem:[%s8 + $0xa8] sm:$0xff]
        %v4929 = vld [vmem:[%s8 + $0xb0] sm:$0xff]
        %v4930 = vld [vmem:[%s8 + $0xb8] sm:$0xff]
        %v4931 = vld [vmem:[%s8 + $0xc0] sm:$0xff]
        %v4932 = vld [vmem:[%s8 + $0xc8] sm:$0xff]
        %v4933 = vld [vmem:[%s8 + $0xd0] sm:$0xff]
        %v4934 = vld [vmem:[%s8 + $0xd8] sm:$0xff]
        %v4935 = vld [vmem:[%s8 + $0xe0] sm:$0xff]
        %v4936 = vld [vmem:[%s8 + $0xe8] sm:$0xff]
        %v4937 = vld [vmem:[%s8 + $0xf0] sm:$0xff]
        %v4938 = vld [vmem:[%s8 + $0xf8] sm:$0xff]
        %v4939 = vld [vmem:[%s8 + $0x100] sm:$0xff]
        %v4940 = vld [vmem:[%s8 + $0x108] sm:$0xff]
        %v4941 = vld [vmem:[%s8 + $0x110] sm:$0xff]
        %v4942 = vld [vmem:[%s8 + $0x118] sm:$0xff]
        %v4943 = vld [vmem:[%s8 + $0x120] sm:$0xff]
        %v4944 = vld [vmem:[%s8 + $0x128] sm:$0xff]
        %v4945 = vld [vmem:[%s8 + $0x130] sm:$0xff]
        %v4946 = vld [vmem:[%s8 + $0x138] sm:$0xff]
        %v4947 = vld [vmem:[%s8 + $0x140] sm:$0xff]
        %v4948 = vld [vmem:[%s8 + $0x148] sm:$0xff]
        %v4949 = vld [vmem:[%s8 + $0x150] sm:$0xff]
        %v4950 = vld [vmem:[%s8 + $0x158] sm:$0xff]
        %v4951 = vld [vmem:[%s8 + $0x160] sm:$0xff]
        %v4952 = vld [vmem:[%s8 + $0x168] sm:$0xff]
        %v4953 = vld [vmem:[%s8 + $0x170] sm:$0xff]
        %v4954 = vld [vmem:[%s8 + $0x178] sm:$0xff]
        %v4955 = vld [vmem:[%s8 + $0x180] sm:$0xff]
        %v4956 = vld [vmem:[%s8 + $0x188] sm:$0xff]
        %v4957 = vld [vmem:[%s8 + $0x190] sm:$0xff]
        %v4958 = vld [vmem:[%s8 + $0x198] sm:$0xff]
        %v4959 = vld [vmem:[%s8 + $0x1a0] sm:$0xff]
        %v4960 = vld [vmem:[%s8 + $0x1a8] sm:$0xff]
        %v4961 = vld [vmem:[%s8 + $0x1b0] sm:$0xff]
        %v4962 = vld [vmem:[%s8 + $0x1b8] sm:$0xff]
        %v4963 = vld [vmem:[%s8 + $0x1c0] sm:$0xff]
        %v4964 = vld [vmem:[%s8 + $0x1c8] sm:$0xff]
        %v4965 = vld [vmem:[%s8 + $0x1d0] sm:$0xff]
        %v4966 = vld [vmem:[%s8 + $0x1d8] sm:$0xff]
        %v4967 = vld [vmem:[%s8 + $0x1e0] sm:$0xff]
        %v4968 = vld [vmem:[%s8 + $0x1e8] sm:$0xff]
        %v4969 = vld [vmem:[%s8 + $0x1f0] sm:$0xff]
        %v4970 = vld [vmem:[%s8 + $0x1f8] sm:$0xff]
        %v4971 = vld [vmem:[%s8 + $0x200] sm:$0xff]
        %v4972 = vld [vmem:[%s8 + $0x208] sm:$0xff]
        %v4973 = vld [vmem:[%s8 + $0x210] sm:$0xff]
        %v4974 = vld [vmem:[%s8 + $0x218] sm:$0xff]
        %v4975 = vld [vmem:[%s8 + $0x220] sm:$0xff]
        %v4976 = vld [vmem:[%s8 + $0x228] sm:$0xff]
        %v4977 = vld [vmem:[%s8 + $0x230] sm:$0xff]
        %v4978 = vld [vmem:[%s8 + $0x238] sm:$0xff]
        %v4979 = vld [vmem:[%s8 + $0x240] sm:$0xff]
        %v4980 = vld [vmem:[%s8 + $0x248] sm:$0xff]
        %v4981 = vld [vmem:[%s8 + $0x250] sm:$0xff]
        %v4982 = vld [vmem:[%s8 + $0x258] sm:$0xff]
        %v4983 = vld [vmem:[%s8 + $0x260] sm:$0xff]
        %v4984 = vld [vmem:[%s8 + $0x268] sm:$0xff]
        %v4985 = vld [vmem:[%s8 + $0x270] sm:$0xff]
        %v4986 = vld [vmem:[%s8 + $0x278] sm:$0xff]
        %v4987 = vld [vmem:[%s8 + $0x280] sm:$0xff]
        %v4988 = vld [vmem:[%s8 + $0x288] sm:$0xff]
        %v4989 = vld [vmem:[%s8 + $0x290] sm:$0xff]
        %v4990 = vld [vmem:[%s8 + $0x298] sm:$0xff]
        %v4991 = vld [vmem:[%s8 + $0x2a0] sm:$0xff]
        %v4992 = vld [vmem:[%s8 + $0x2a8] sm:$0xff]
        %v4993 = vld [vmem:[%s8 + $0x2b0] sm:$0xff]
        %v4994 = vld [vmem:[%s8 + $0x2b8] sm:$0xff]
        %v4995 = vld [vmem:[%s8 + $0x2c0] sm:$0xff]
        %v4996 = vld [vmem:[%s8 + $0x2c8] sm:$0xff]
        %v4997 = vld [vmem:[%s8 + $0x2d0] sm:$0xff]
        %v4998 = vld [vmem:[%s8 + $0x2d8] sm:$0xff]
        %v4999 = vld [vmem:[%s8 + $0x2e0] sm:$0xff]
        %v5000 = vld [vmem:[%s8 + $0x2e8] sm:$0xff]
        %v5001 = vld [vmem:[%s8 + $0x2f0] sm:$0xff]
        %v5002 = vld [vmem:[%s8 + $0x2f8] sm:$0xff]
        %v5003 = vld [vmem:[%s8 + $0x300] sm:$0xff]
        %v5004 = vld [vmem:[%s8 + $0x308] sm:$0xff]
        %v5005 = vld [vmem:[%s8 + $0x310] sm:$0xff]
        %v5006 = vld [vmem:[%s8 + $0x318] sm:$0xff]
        %v5007 = vld [vmem:[%s8 + $0x320] sm:$0xff]
        %v5008 = vld [vmem:[%s8 + $0x328] sm:$0xff]
        %v5009 = vld [vmem:[%s8 + $0x330] sm:$0xff]
        %v5010 = vld [vmem:[%s8 + $0x338] sm:$0xff]
        %v5011 = vld [vmem:[%s8 + $0x340] sm:$0xff]
        %v5012 = vld [vmem:[%s8 + $0x348] sm:$0xff]
        %v5013 = vld [vmem:[%s8 + $0x350] sm:$0xff]
        %v5014 = vld [vmem:[%s8 + $0x358] sm:$0xff]
        %v5015 = vld [vmem:[%s8 + $0x360] sm:$0xff]
        %v5016 = vld [vmem:[%s8 + $0x368] sm:$0xff]
        %v5017 = vld [vmem:[%s8 + $0x370] sm:$0xff]
        %v5018 = vld [vmem:[%s8 + $0x378] sm:$0xff]
        %v5019 = vld [vmem:[%s8 + $0x380] sm:$0xff]
        %v5020 = vld [vmem:[%s8 + $0x388] sm:$0xff]
        %v5021 = vld [vmem:[%s8 + $0x390] sm:$0xff]
        %v5022 = vld [vmem:[%s8 + $0x398] sm:$0xff]
        %v5023 = vld [vmem:[%s8 + $0x3a0] sm:$0xff]
        %v5024 = vld [vmem:[%s8 + $0x3a8] sm:$0xff]
        %v5025 = vld [vmem:[%s8 + $0x3b0] sm:$0xff]
        %v5026 = vld [vmem:[%s8 + $0x3b8] sm:$0xff]
        %v5027 = vld [vmem:[%s8 + $0x3c0] sm:$0xff]
        %v5028 = vld [vmem:[%s8 + $0x3c8] sm:$0xff]
        %v5029 = vld [vmem:[%s8 + $0x3d0] sm:$0xff]
        %v5030 = vld [vmem:[%s8 + $0x3d8] sm:$0xff]
        %v5031 = vld [vmem:[%s8 + $0x3e0] sm:$0xff]
        %v5032 = vld [vmem:[%s8 + $0x3e8] sm:$0xff]
        %v5033 = vld [vmem:[%s8 + $0x3f0] sm:$0xff]
        %v5034 = vld [vmem:[%s8 + $0x3f8] sm:$0xff]
        %5036 = vset.pattern.permute.xlu0 0
        %5037 = vperm.xlu0 %5036, %v4907
        %v5038 = vpop.permute.xlu0 %5037
        %5041 = vset.pattern.permute.xlu0 0
        %5042 = vperm.xlu0 %5041, %v4908
        %v5043 = vpop.permute.xlu0 %5042
        %5046 = vset.pattern.permute.xlu0 0
        %5047 = vperm.xlu0 %5046, %v4909
        %v5048 = vpop.permute.xlu0 %5047
        %5051 = vset.pattern.permute.xlu0 0
        %5052 = vperm.xlu0 %5051, %v4910
        %v5053 = vpop.permute.xlu0 %5052
        %5056 = vset.pattern.permute.xlu0 0
        %5057 = vperm.xlu0 %5056, %v4911
        %v5058 = vpop.permute.xlu0 %5057
        %5061 = vset.pattern.permute.xlu0 0
        %5062 = vperm.xlu0 %5061, %v4912
        %v5063 = vpop.permute.xlu0 %5062
        %5066 = vset.pattern.permute.xlu0 0
        %5067 = vperm.xlu0 %5066, %v4913
        %v5068 = vpop.permute.xlu0 %5067
        %5071 = vset.pattern.permute.xlu0 0
        %5072 = vperm.xlu0 %5071, %v4914
        %v5073 = vpop.permute.xlu0 %5072
        %5076 = vset.pattern.permute.xlu0 0
        %5077 = vperm.xlu0 %5076, %v4915
        %v5078 = vpop.permute.xlu0 %5077
        %5081 = vset.pattern.permute.xlu0 0
        %5082 = vperm.xlu0 %5081, %v4916
        %v5083 = vpop.permute.xlu0 %5082
        %5086 = vset.pattern.permute.xlu0 0
        %5087 = vperm.xlu0 %5086, %v4917
        %v5088 = vpop.permute.xlu0 %5087
        %5091 = vset.pattern.permute.xlu0 0
        %5092 = vperm.xlu0 %5091, %v4918
        %v5093 = vpop.permute.xlu0 %5092
        %5096 = vset.pattern.permute.xlu0 0
        %5097 = vperm.xlu0 %5096, %v4919
        %v5098 = vpop.permute.xlu0 %5097
        %5101 = vset.pattern.permute.xlu0 0
        %5102 = vperm.xlu0 %5101, %v4920
        %v5103 = vpop.permute.xlu0 %5102
        %5106 = vset.pattern.permute.xlu0 0
        %5107 = vperm.xlu0 %5106, %v4921
        %v5108 = vpop.permute.xlu0 %5107
        %5111 = vset.pattern.permute.xlu0 0
        %5112 = vperm.xlu0 %5111, %v4922
        %v5113 = vpop.permute.xlu0 %5112
        %5116 = vset.pattern.permute.xlu0 0
        %5117 = vperm.xlu0 %5116, %v4923
        %v5118 = vpop.permute.xlu0 %5117
        %5121 = vset.pattern.permute.xlu0 0
        %5122 = vperm.xlu0 %5121, %v4924
        %v5123 = vpop.permute.xlu0 %5122
        %5126 = vset.pattern.permute.xlu0 0
        %5127 = vperm.xlu0 %5126, %v4925
        %v5128 = vpop.permute.xlu0 %5127
        %5131 = vset.pattern.permute.xlu0 0
        %5132 = vperm.xlu0 %5131, %v4926
        %v5133 = vpop.permute.xlu0 %5132
        %5136 = vset.pattern.permute.xlu0 0
        %5137 = vperm.xlu0 %5136, %v4927
        %v5138 = vpop.permute.xlu0 %5137
        %5141 = vset.pattern.permute.xlu0 0
        %5142 = vperm.xlu0 %5141, %v4928
        %v5143 = vpop.permute.xlu0 %5142
        %5146 = vset.pattern.permute.xlu0 0
        %5147 = vperm.xlu0 %5146, %v4929
        %v5148 = vpop.permute.xlu0 %5147
        %5151 = vset.pattern.permute.xlu0 0
        %5152 = vperm.xlu0 %5151, %v4930
        %v5153 = vpop.permute.xlu0 %5152
        %5156 = vset.pattern.permute.xlu0 0
        %5157 = vperm.xlu0 %5156, %v4931
        %v5158 = vpop.permute.xlu0 %5157
        %5161 = vset.pattern.permute.xlu0 0
        %5162 = vperm.xlu0 %5161, %v4932
        %v5163 = vpop.permute.xlu0 %5162
        %5166 = vset.pattern.permute.xlu0 0
        %5167 = vperm.xlu0 %5166, %v4933
        %v5168 = vpop.permute.xlu0 %5167
        %5171 = vset.pattern.permute.xlu0 0
        %5172 = vperm.xlu0 %5171, %v4934
        %v5173 = vpop.permute.xlu0 %5172
        %5176 = vset.pattern.permute.xlu0 0
        %5177 = vperm.xlu0 %5176, %v4935
        %v5178 = vpop.permute.xlu0 %5177
        %5181 = vset.pattern.permute.xlu0 0
        %5182 = vperm.xlu0 %5181, %v4936
        %v5183 = vpop.permute.xlu0 %5182
        %5186 = vset.pattern.permute.xlu0 0
        %5187 = vperm.xlu0 %5186, %v4937
        %v5188 = vpop.permute.xlu0 %5187
        %5191 = vset.pattern.permute.xlu0 0
        %5192 = vperm.xlu0 %5191, %v4938
        %v5193 = vpop.permute.xlu0 %5192
        %5196 = vset.pattern.permute.xlu0 0
        %5197 = vperm.xlu0 %5196, %v4939
        %v5198 = vpop.permute.xlu0 %5197
        %5201 = vset.pattern.permute.xlu0 0
        %5202 = vperm.xlu0 %5201, %v4940
        %v5203 = vpop.permute.xlu0 %5202
        %5206 = vset.pattern.permute.xlu0 0
        %5207 = vperm.xlu0 %5206, %v4941
        %v5208 = vpop.permute.xlu0 %5207
        %5211 = vset.pattern.permute.xlu0 0
        %5212 = vperm.xlu0 %5211, %v4942
        %v5213 = vpop.permute.xlu0 %5212
        %5216 = vset.pattern.permute.xlu0 0
        %5217 = vperm.xlu0 %5216, %v4943
        %v5218 = vpop.permute.xlu0 %5217
        %5221 = vset.pattern.permute.xlu0 0
        %5222 = vperm.xlu0 %5221, %v4944
        %v5223 = vpop.permute.xlu0 %5222
        %5226 = vset.pattern.permute.xlu0 0
        %5227 = vperm.xlu0 %5226, %v4945
        %v5228 = vpop.permute.xlu0 %5227
        %5231 = vset.pattern.permute.xlu0 0
        %5232 = vperm.xlu0 %5231, %v4946
        %v5233 = vpop.permute.xlu0 %5232
        %5236 = vset.pattern.permute.xlu0 0
        %5237 = vperm.xlu0 %5236, %v4947
        %v5238 = vpop.permute.xlu0 %5237
        %5241 = vset.pattern.permute.xlu0 0
        %5242 = vperm.xlu0 %5241, %v4948
        %v5243 = vpop.permute.xlu0 %5242
        %5246 = vset.pattern.permute.xlu0 0
        %5247 = vperm.xlu0 %5246, %v4949
        %v5248 = vpop.permute.xlu0 %5247
        %5251 = vset.pattern.permute.xlu0 0
        %5252 = vperm.xlu0 %5251, %v4950
        %v5253 = vpop.permute.xlu0 %5252
        %5256 = vset.pattern.permute.xlu0 0
        %5257 = vperm.xlu0 %5256, %v4951
        %v5258 = vpop.permute.xlu0 %5257
        %5261 = vset.pattern.permute.xlu0 0
        %5262 = vperm.xlu0 %5261, %v4952
        %v5263 = vpop.permute.xlu0 %5262
        %5266 = vset.pattern.permute.xlu0 0
        %5267 = vperm.xlu0 %5266, %v4953
        %v5268 = vpop.permute.xlu0 %5267
        %5271 = vset.pattern.permute.xlu0 0
        %5272 = vperm.xlu0 %5271, %v4954
        %v5273 = vpop.permute.xlu0 %5272
        %5276 = vset.pattern.permute.xlu0 0
        %5277 = vperm.xlu0 %5276, %v4955
        %v5278 = vpop.permute.xlu0 %5277
        %5281 = vset.pattern.permute.xlu0 0
        %5282 = vperm.xlu0 %5281, %v4956
        %v5283 = vpop.permute.xlu0 %5282
        %5286 = vset.pattern.permute.xlu0 0
        %5287 = vperm.xlu0 %5286, %v4957
        %v5288 = vpop.permute.xlu0 %5287
        %5291 = vset.pattern.permute.xlu0 0
        %5292 = vperm.xlu0 %5291, %v4958
        %v5293 = vpop.permute.xlu0 %5292
        %5296 = vset.pattern.permute.xlu0 0
        %5297 = vperm.xlu0 %5296, %v4959
        %v5298 = vpop.permute.xlu0 %5297
        %5301 = vset.pattern.permute.xlu0 0
        %5302 = vperm.xlu0 %5301, %v4960
        %v5303 = vpop.permute.xlu0 %5302
        %5306 = vset.pattern.permute.xlu0 0
        %5307 = vperm.xlu0 %5306, %v4961
        %v5308 = vpop.permute.xlu0 %5307
        %5311 = vset.pattern.permute.xlu0 0
        %5312 = vperm.xlu0 %5311, %v4962
        %v5313 = vpop.permute.xlu0 %5312
        %5316 = vset.pattern.permute.xlu0 0
        %5317 = vperm.xlu0 %5316, %v4963
        %v5318 = vpop.permute.xlu0 %5317
        %5321 = vset.pattern.permute.xlu0 0
        %5322 = vperm.xlu0 %5321, %v4964
        %v5323 = vpop.permute.xlu0 %5322
        %5326 = vset.pattern.permute.xlu0 0
        %5327 = vperm.xlu0 %5326, %v4965
        %v5328 = vpop.permute.xlu0 %5327
        %5331 = vset.pattern.permute.xlu0 0
        %5332 = vperm.xlu0 %5331, %v4966
        %v5333 = vpop.permute.xlu0 %5332
        %5336 = vset.pattern.permute.xlu0 0
        %5337 = vperm.xlu0 %5336, %v4967
        %v5338 = vpop.permute.xlu0 %5337
        %5341 = vset.pattern.permute.xlu0 0
        %5342 = vperm.xlu0 %5341, %v4968
        %v5343 = vpop.permute.xlu0 %5342
        %5346 = vset.pattern.permute.xlu0 0
        %5347 = vperm.xlu0 %5346, %v4969
        %v5348 = vpop.permute.xlu0 %5347
        %5351 = vset.pattern.permute.xlu0 0
        %5352 = vperm.xlu0 %5351, %v4970
        %v5353 = vpop.permute.xlu0 %5352
        %5356 = vset.pattern.permute.xlu0 0
        %5357 = vperm.xlu0 %5356, %v4971
        %v5358 = vpop.permute.xlu0 %5357
        %5361 = vset.pattern.permute.xlu0 0
        %5362 = vperm.xlu0 %5361, %v4972
        %v5363 = vpop.permute.xlu0 %5362
        %5366 = vset.pattern.permute.xlu0 0
        %5367 = vperm.xlu0 %5366, %v4973
        %v5368 = vpop.permute.xlu0 %5367
        %5371 = vset.pattern.permute.xlu0 0
        %5372 = vperm.xlu0 %5371, %v4974
        %v5373 = vpop.permute.xlu0 %5372
        %5376 = vset.pattern.permute.xlu0 0
        %5377 = vperm.xlu0 %5376, %v4975
        %v5378 = vpop.permute.xlu0 %5377
        %5381 = vset.pattern.permute.xlu0 0
        %5382 = vperm.xlu0 %5381, %v4976
        %v5383 = vpop.permute.xlu0 %5382
        %5386 = vset.pattern.permute.xlu0 0
        %5387 = vperm.xlu0 %5386, %v4977
        %v5388 = vpop.permute.xlu0 %5387
        %5391 = vset.pattern.permute.xlu0 0
        %5392 = vperm.xlu0 %5391, %v4978
        %v5393 = vpop.permute.xlu0 %5392
        %5396 = vset.pattern.permute.xlu0 0
        %5397 = vperm.xlu0 %5396, %v4979
        %v5398 = vpop.permute.xlu0 %5397
        %5401 = vset.pattern.permute.xlu0 0
        %5402 = vperm.xlu0 %5401, %v4980
        %v5403 = vpop.permute.xlu0 %5402
        %5406 = vset.pattern.permute.xlu0 0
        %5407 = vperm.xlu0 %5406, %v4981
        %v5408 = vpop.permute.xlu0 %5407
        %5411 = vset.pattern.permute.xlu0 0
        %5412 = vperm.xlu0 %5411, %v4982
        %v5413 = vpop.permute.xlu0 %5412
        %5416 = vset.pattern.permute.xlu0 0
        %5417 = vperm.xlu0 %5416, %v4983
        %v5418 = vpop.permute.xlu0 %5417
        %5421 = vset.pattern.permute.xlu0 0
        %5422 = vperm.xlu0 %5421, %v4984
        %v5423 = vpop.permute.xlu0 %5422
        %5426 = vset.pattern.permute.xlu0 0
        %5427 = vperm.xlu0 %5426, %v4985
        %v5428 = vpop.permute.xlu0 %5427
        %5431 = vset.pattern.permute.xlu0 0
        %5432 = vperm.xlu0 %5431, %v4986
        %v5433 = vpop.permute.xlu0 %5432
        %5436 = vset.pattern.permute.xlu0 0
        %5437 = vperm.xlu0 %5436, %v4987
        %v5438 = vpop.permute.xlu0 %5437
        %5441 = vset.pattern.permute.xlu0 0
        %5442 = vperm.xlu0 %5441, %v4988
        %v5443 = vpop.permute.xlu0 %5442
        %5446 = vset.pattern.permute.xlu0 0
        %5447 = vperm.xlu0 %5446, %v4989
        %v5448 = vpop.permute.xlu0 %5447
        %5451 = vset.pattern.permute.xlu0 0
        %5452 = vperm.xlu0 %5451, %v4990
        %v5453 = vpop.permute.xlu0 %5452
        %5456 = vset.pattern.permute.xlu0 0
        %5457 = vperm.xlu0 %5456, %v4991
        %v5458 = vpop.permute.xlu0 %5457
        %5461 = vset.pattern.permute.xlu0 0
        %5462 = vperm.xlu0 %5461, %v4992
        %v5463 = vpop.permute.xlu0 %5462
        %5466 = vset.pattern.permute.xlu0 0
        %5467 = vperm.xlu0 %5466, %v4993
        %v5468 = vpop.permute.xlu0 %5467
        %5471 = vset.pattern.permute.xlu0 0
        %5472 = vperm.xlu0 %5471, %v4994
        %v5473 = vpop.permute.xlu0 %5472
        %5476 = vset.pattern.permute.xlu0 0
        %5477 = vperm.xlu0 %5476, %v4995
        %v5478 = vpop.permute.xlu0 %5477
        %5481 = vset.pattern.permute.xlu0 0
        %5482 = vperm.xlu0 %5481, %v4996
        %v5483 = vpop.permute.xlu0 %5482
        %5486 = vset.pattern.permute.xlu0 0
        %5487 = vperm.xlu0 %5486, %v4997
        %v5488 = vpop.permute.xlu0 %5487
        %5491 = vset.pattern.permute.xlu0 0
        %5492 = vperm.xlu0 %5491, %v4998
        %v5493 = vpop.permute.xlu0 %5492
        %5496 = vset.pattern.permute.xlu0 0
        %5497 = vperm.xlu0 %5496, %v4999
        %v5498 = vpop.permute.xlu0 %5497
        %5501 = vset.pattern.permute.xlu0 0
        %5502 = vperm.xlu0 %5501, %v5000
        %v5503 = vpop.permute.xlu0 %5502
        %5506 = vset.pattern.permute.xlu0 0
        %5507 = vperm.xlu0 %5506, %v5001
        %v5508 = vpop.permute.xlu0 %5507
        %5511 = vset.pattern.permute.xlu0 0
        %5512 = vperm.xlu0 %5511, %v5002
        %v5513 = vpop.permute.xlu0 %5512
        %5516 = vset.pattern.permute.xlu0 0
        %5517 = vperm.xlu0 %5516, %v5003
        %v5518 = vpop.permute.xlu0 %5517
        %5521 = vset.pattern.permute.xlu0 0
        %5522 = vperm.xlu0 %5521, %v5004
        %v5523 = vpop.permute.xlu0 %5522
        %5526 = vset.pattern.permute.xlu0 0
        %5527 = vperm.xlu0 %5526, %v5005
        %v5528 = vpop.permute.xlu0 %5527
        %5531 = vset.pattern.permute.xlu0 0
        %5532 = vperm.xlu0 %5531, %v5006
        %v5533 = vpop.permute.xlu0 %5532
        %5536 = vset.pattern.permute.xlu0 0
        %5537 = vperm.xlu0 %5536, %v5007
        %v5538 = vpop.permute.xlu0 %5537
        %5541 = vset.pattern.permute.xlu0 0
        %5542 = vperm.xlu0 %5541, %v5008
        %v5543 = vpop.permute.xlu0 %5542
        %5546 = vset.pattern.permute.xlu0 0
        %5547 = vperm.xlu0 %5546, %v5009
        %v5548 = vpop.permute.xlu0 %5547
        %5551 = vset.pattern.permute.xlu0 0
        %5552 = vperm.xlu0 %5551, %v5010
        %v5553 = vpop.permute.xlu0 %5552
        %5556 = vset.pattern.permute.xlu0 0
        %5557 = vperm.xlu0 %5556, %v5011
        %v5558 = vpop.permute.xlu0 %5557
        %5561 = vset.pattern.permute.xlu0 0
        %5562 = vperm.xlu0 %5561, %v5012
        %v5563 = vpop.permute.xlu0 %5562
        %5566 = vset.pattern.permute.xlu0 0
        %5567 = vperm.xlu0 %5566, %v5013
        %v5568 = vpop.permute.xlu0 %5567
        %5571 = vset.pattern.permute.xlu0 0
        %5572 = vperm.xlu0 %5571, %v5014
        %v5573 = vpop.permute.xlu0 %5572
        %5576 = vset.pattern.permute.xlu0 0
        %5577 = vperm.xlu0 %5576, %v5015
        %v5578 = vpop.permute.xlu0 %5577
        %5581 = vset.pattern.permute.xlu0 0
        %5582 = vperm.xlu0 %5581, %v5016
        %v5583 = vpop.permute.xlu0 %5582
        %5586 = vset.pattern.permute.xlu0 0
        %5587 = vperm.xlu0 %5586, %v5017
        %v5588 = vpop.permute.xlu0 %5587
        %5591 = vset.pattern.permute.xlu0 0
        %5592 = vperm.xlu0 %5591, %v5018
        %v5593 = vpop.permute.xlu0 %5592
        %5596 = vset.pattern.permute.xlu0 0
        %5597 = vperm.xlu0 %5596, %v5019
        %v5598 = vpop.permute.xlu0 %5597
        %5601 = vset.pattern.permute.xlu0 0
        %5602 = vperm.xlu0 %5601, %v5020
        %v5603 = vpop.permute.xlu0 %5602
        %5606 = vset.pattern.permute.xlu0 0
        %5607 = vperm.xlu0 %5606, %v5021
        %v5608 = vpop.permute.xlu0 %5607
        %5611 = vset.pattern.permute.xlu0 0
        %5612 = vperm.xlu0 %5611, %v5022
        %v5613 = vpop.permute.xlu0 %5612
        %5616 = vset.pattern.permute.xlu0 0
        %5617 = vperm.xlu0 %5616, %v5023
        %v5618 = vpop.permute.xlu0 %5617
        %5621 = vset.pattern.permute.xlu0 0
        %5622 = vperm.xlu0 %5621, %v5024
        %v5623 = vpop.permute.xlu0 %5622
        %5626 = vset.pattern.permute.xlu0 0
        %5627 = vperm.xlu0 %5626, %v5025
        %v5628 = vpop.permute.xlu0 %5627
        %5631 = vset.pattern.permute.xlu0 0
        %5632 = vperm.xlu0 %5631, %v5026
        %v5633 = vpop.permute.xlu0 %5632
        %5636 = vset.pattern.permute.xlu0 0
        %5637 = vperm.xlu0 %5636, %v5027
        %v5638 = vpop.permute.xlu0 %5637
        %5641 = vset.pattern.permute.xlu0 0
        %5642 = vperm.xlu0 %5641, %v5028
        %v5643 = vpop.permute.xlu0 %5642
        %5646 = vset.pattern.permute.xlu0 0
        %5647 = vperm.xlu0 %5646, %v5029
        %v5648 = vpop.permute.xlu0 %5647
        %5651 = vset.pattern.permute.xlu0 0
        %5652 = vperm.xlu0 %5651, %v5030
        %v5653 = vpop.permute.xlu0 %5652
        %5656 = vset.pattern.permute.xlu0 0
        %5657 = vperm.xlu0 %5656, %v5031
        %v5658 = vpop.permute.xlu0 %5657
        %5661 = vset.pattern.permute.xlu0 0
        %5662 = vperm.xlu0 %5661, %v5032
        %v5663 = vpop.permute.xlu0 %5662
        %5666 = vset.pattern.permute.xlu0 0
        %5667 = vperm.xlu0 %5666, %v5033
        %v5668 = vpop.permute.xlu0 %5667
        %5671 = vset.pattern.permute.xlu0 0
        %5672 = vperm.xlu0 %5671, %v5034
        %v5673 = vpop.permute.xlu0 %5672
        %v5931 = vunpack.c.l.b16 %v4587
        %v5932 = vunpack.c.h.b16 %v4587
        %v5933 = vunpack.c.l.b16 %v4588
        %v5934 = vunpack.c.h.b16 %v4588
        %v5935 = vunpack.c.l.b16 %v4589
        %v5936 = vunpack.c.h.b16 %v4589
        %v5937 = vunpack.c.l.b16 %v4590
        %v5938 = vunpack.c.h.b16 %v4590
        %v5939 = vunpack.c.l.b16 %v4591
        %v5940 = vunpack.c.h.b16 %v4591
        %v5941 = vunpack.c.l.b16 %v4592
        %v5942 = vunpack.c.h.b16 %v4592
        %v5943 = vunpack.c.l.b16 %v4593
        %v5944 = vunpack.c.h.b16 %v4593
        %v5945 = vunpack.c.l.b16 %v4594
        %v5946 = vunpack.c.h.b16 %v4594
        %v5947 = vunpack.c.l.b16 %v4595
        %v5948 = vunpack.c.h.b16 %v4595
        %v5949 = vunpack.c.l.b16 %v4596
        %v5950 = vunpack.c.h.b16 %v4596
        %v5951 = vunpack.c.l.b16 %v4597
        %v5952 = vunpack.c.h.b16 %v4597
        %v5953 = vunpack.c.l.b16 %v4598
        %v5954 = vunpack.c.h.b16 %v4598
        %v5955 = vunpack.c.l.b16 %v4599
        %v5956 = vunpack.c.h.b16 %v4599
        %v5957 = vunpack.c.l.b16 %v4600
        %v5958 = vunpack.c.h.b16 %v4600
        %v5959 = vunpack.c.l.b16 %v4601
        %v5960 = vunpack.c.h.b16 %v4601
        %v5961 = vunpack.c.l.b16 %v4602
        %v5962 = vunpack.c.h.b16 %v4602
        %v5963 = vunpack.c.l.b16 %v4603
        %v5964 = vunpack.c.h.b16 %v4603
        %v5965 = vunpack.c.l.b16 %v4604
        %v5966 = vunpack.c.h.b16 %v4604
        %v5967 = vunpack.c.l.b16 %v4605
        %v5968 = vunpack.c.h.b16 %v4605
        %v5969 = vunpack.c.l.b16 %v4606
        %v5970 = vunpack.c.h.b16 %v4606
        %v5971 = vunpack.c.l.b16 %v4607
        %v5972 = vunpack.c.h.b16 %v4607
        %v5973 = vunpack.c.l.b16 %v4608
        %v5974 = vunpack.c.h.b16 %v4608
        %v5975 = vunpack.c.l.b16 %v4609
        %v5976 = vunpack.c.h.b16 %v4609
        %v5977 = vunpack.c.l.b16 %v4610
        %v5978 = vunpack.c.h.b16 %v4610
        %v5979 = vunpack.c.l.b16 %v4611
        %v5980 = vunpack.c.h.b16 %v4611
        %v5981 = vunpack.c.l.b16 %v4612
        %v5982 = vunpack.c.h.b16 %v4612
        %v5983 = vunpack.c.l.b16 %v4613
        %v5984 = vunpack.c.h.b16 %v4613
        %v5985 = vunpack.c.l.b16 %v4614
        %v5986 = vunpack.c.h.b16 %v4614
        %v5987 = vunpack.c.l.b16 %v4615
        %v5988 = vunpack.c.h.b16 %v4615
        %v5989 = vunpack.c.l.b16 %v4616
        %v5990 = vunpack.c.h.b16 %v4616
        %v5991 = vunpack.c.l.b16 %v4617
        %v5992 = vunpack.c.h.b16 %v4617
        %v5993 = vunpack.c.l.b16 %v4618
        %v5994 = vunpack.c.h.b16 %v4618
        %v5995 = vunpack.c.l.b16 %v4619
        %v5996 = vunpack.c.h.b16 %v4619
        %v5997 = vunpack.c.l.b16 %v4620
        %v5998 = vunpack.c.h.b16 %v4620
        %v5999 = vunpack.c.l.b16 %v4621
        %v6000 = vunpack.c.h.b16 %v4621
        %v6001 = vunpack.c.l.b16 %v4622
        %v6002 = vunpack.c.h.b16 %v4622
        %v6003 = vunpack.c.l.b16 %v4623
        %v6004 = vunpack.c.h.b16 %v4623
        %v6005 = vunpack.c.l.b16 %v4624
        %v6006 = vunpack.c.h.b16 %v4624
        %v6007 = vunpack.c.l.b16 %v4625
        %v6008 = vunpack.c.h.b16 %v4625
        %v6009 = vunpack.c.l.b16 %v4626
        %v6010 = vunpack.c.h.b16 %v4626
        %v6011 = vunpack.c.l.b16 %v4627
        %v6012 = vunpack.c.h.b16 %v4627
        %v6013 = vunpack.c.l.b16 %v4628
        %v6014 = vunpack.c.h.b16 %v4628
        %v6015 = vunpack.c.l.b16 %v4629
        %v6016 = vunpack.c.h.b16 %v4629
        %v6017 = vunpack.c.l.b16 %v4630
        %v6018 = vunpack.c.h.b16 %v4630
        %v6019 = vunpack.c.l.b16 %v4631
        %v6020 = vunpack.c.h.b16 %v4631
        %v6021 = vunpack.c.l.b16 %v4632
        %v6022 = vunpack.c.h.b16 %v4632
        %v6023 = vunpack.c.l.b16 %v4633
        %v6024 = vunpack.c.h.b16 %v4633
        %v6025 = vunpack.c.l.b16 %v4634
        %v6026 = vunpack.c.h.b16 %v4634
        %v6027 = vunpack.c.l.b16 %v4635
        %v6028 = vunpack.c.h.b16 %v4635
        %v6029 = vunpack.c.l.b16 %v4636
        %v6030 = vunpack.c.h.b16 %v4636
        %v6031 = vunpack.c.l.b16 %v4637
        %v6032 = vunpack.c.h.b16 %v4637
        %v6033 = vunpack.c.l.b16 %v4638
        %v6034 = vunpack.c.h.b16 %v4638
        %v6035 = vunpack.c.l.b16 %v4639
        %v6036 = vunpack.c.h.b16 %v4639
        %v6037 = vunpack.c.l.b16 %v4640
        %v6038 = vunpack.c.h.b16 %v4640
        %v6039 = vunpack.c.l.b16 %v4641
        %v6040 = vunpack.c.h.b16 %v4641
        %v6041 = vunpack.c.l.b16 %v4642
        %v6042 = vunpack.c.h.b16 %v4642
        %v6043 = vunpack.c.l.b16 %v4643
        %v6044 = vunpack.c.h.b16 %v4643
        %v6045 = vunpack.c.l.b16 %v4644
        %v6046 = vunpack.c.h.b16 %v4644
        %v6047 = vunpack.c.l.b16 %v4645
        %v6048 = vunpack.c.h.b16 %v4645
        %v6049 = vunpack.c.l.b16 %v4646
        %v6050 = vunpack.c.h.b16 %v4646
        %v6051 = vunpack.c.l.b16 %v4647
        %v6052 = vunpack.c.h.b16 %v4647
        %v6053 = vunpack.c.l.b16 %v4648
        %v6054 = vunpack.c.h.b16 %v4648
        %v6055 = vunpack.c.l.b16 %v4649
        %v6056 = vunpack.c.h.b16 %v4649
        %v6057 = vunpack.c.l.b16 %v4650
        %v6058 = vunpack.c.h.b16 %v4650
        %v6059 = vunpack.c.l.b16 %v4651
        %v6060 = vunpack.c.h.b16 %v4651
        %v6061 = vunpack.c.l.b16 %v4652
        %v6062 = vunpack.c.h.b16 %v4652
        %v6063 = vunpack.c.l.b16 %v4653
        %v6064 = vunpack.c.h.b16 %v4653
        %v6065 = vunpack.c.l.b16 %v4654
        %v6066 = vunpack.c.h.b16 %v4654
        %v6067 = vunpack.c.l.b16 %v4655
        %v6068 = vunpack.c.h.b16 %v4655
        %v6069 = vunpack.c.l.b16 %v4656
        %v6070 = vunpack.c.h.b16 %v4656
        %v6071 = vunpack.c.l.b16 %v4657
        %v6072 = vunpack.c.h.b16 %v4657
        %v6073 = vunpack.c.l.b16 %v4658
        %v6074 = vunpack.c.h.b16 %v4658
        %v6075 = vunpack.c.l.b16 %v4659
        %v6076 = vunpack.c.h.b16 %v4659
        %v6077 = vunpack.c.l.b16 %v4660
        %v6078 = vunpack.c.h.b16 %v4660
        %v6079 = vunpack.c.l.b16 %v4661
        %v6080 = vunpack.c.h.b16 %v4661
        %v6081 = vunpack.c.l.b16 %v4662
        %v6082 = vunpack.c.h.b16 %v4662
        %v6083 = vunpack.c.l.b16 %v4663
        %v6084 = vunpack.c.h.b16 %v4663
        %v6085 = vunpack.c.l.b16 %v4664
        %v6086 = vunpack.c.h.b16 %v4664
        %v6087 = vunpack.c.l.b16 %v4665
        %v6088 = vunpack.c.h.b16 %v4665
        %v6089 = vunpack.c.l.b16 %v4666
        %v6090 = vunpack.c.h.b16 %v4666
        %v6091 = vunpack.c.l.b16 %v4667
        %v6092 = vunpack.c.h.b16 %v4667
        %v6093 = vunpack.c.l.b16 %v4668
        %v6094 = vunpack.c.h.b16 %v4668
        %v6095 = vunpack.c.l.b16 %v4669
        %v6096 = vunpack.c.h.b16 %v4669
        %v6097 = vunpack.c.l.b16 %v4670
        %v6098 = vunpack.c.h.b16 %v4670
        %v6099 = vunpack.c.l.b16 %v4671
        %v6100 = vunpack.c.h.b16 %v4671
        %v6101 = vunpack.c.l.b16 %v4672
        %v6102 = vunpack.c.h.b16 %v4672
        %v6103 = vunpack.c.l.b16 %v4673
        %v6104 = vunpack.c.h.b16 %v4673
        %v6105 = vunpack.c.l.b16 %v4674
        %v6106 = vunpack.c.h.b16 %v4674
        %v6107 = vunpack.c.l.b16 %v4675
        %v6108 = vunpack.c.h.b16 %v4675
        %v6109 = vunpack.c.l.b16 %v4676
        %v6110 = vunpack.c.h.b16 %v4676
        %v6111 = vunpack.c.l.b16 %v4677
        %v6112 = vunpack.c.h.b16 %v4677
        %v6113 = vunpack.c.l.b16 %v4678
        %v6114 = vunpack.c.h.b16 %v4678
        %v6115 = vunpack.c.l.b16 %v4679
        %v6116 = vunpack.c.h.b16 %v4679
        %v6117 = vunpack.c.l.b16 %v4680
        %v6118 = vunpack.c.h.b16 %v4680
        %v6119 = vunpack.c.l.b16 %v4681
        %v6120 = vunpack.c.h.b16 %v4681
        %v6121 = vunpack.c.l.b16 %v4682
        %v6122 = vunpack.c.h.b16 %v4682
        %v6123 = vunpack.c.l.b16 %v4683
        %v6124 = vunpack.c.h.b16 %v4683
        %v6125 = vunpack.c.l.b16 %v4684
        %v6126 = vunpack.c.h.b16 %v4684
        %v6127 = vunpack.c.l.b16 %v4685
        %v6128 = vunpack.c.h.b16 %v4685
        %v6129 = vunpack.c.l.b16 %v4686
        %v6130 = vunpack.c.h.b16 %v4686
        %v6131 = vunpack.c.l.b16 %v4687
        %v6132 = vunpack.c.h.b16 %v4687
        %v6133 = vunpack.c.l.b16 %v4688
        %v6134 = vunpack.c.h.b16 %v4688
        %v6135 = vunpack.c.l.b16 %v4689
        %v6136 = vunpack.c.h.b16 %v4689
        %v6137 = vunpack.c.l.b16 %v4690
        %v6138 = vunpack.c.h.b16 %v4690
        %v6139 = vunpack.c.l.b16 %v4691
        %v6140 = vunpack.c.h.b16 %v4691
        %v6141 = vunpack.c.l.b16 %v4692
        %v6142 = vunpack.c.h.b16 %v4692
        %v6143 = vunpack.c.l.b16 %v4693
        %v6144 = vunpack.c.h.b16 %v4693
        %v6145 = vunpack.c.l.b16 %v4694
        %v6146 = vunpack.c.h.b16 %v4694
        %v6147 = vunpack.c.l.b16 %v4695
        %v6148 = vunpack.c.h.b16 %v4695
        %v6149 = vunpack.c.l.b16 %v4696
        %v6150 = vunpack.c.h.b16 %v4696
        %v6151 = vunpack.c.l.b16 %v4697
        %v6152 = vunpack.c.h.b16 %v4697
        %v6153 = vunpack.c.l.b16 %v4698
        %v6154 = vunpack.c.h.b16 %v4698
        %v6155 = vunpack.c.l.b16 %v4699
        %v6156 = vunpack.c.h.b16 %v4699
        %v6157 = vunpack.c.l.b16 %v4700
        %v6158 = vunpack.c.h.b16 %v4700
        %v6159 = vunpack.c.l.b16 %v4701
        %v6160 = vunpack.c.h.b16 %v4701
        %v6161 = vunpack.c.l.b16 %v4702
        %v6162 = vunpack.c.h.b16 %v4702
        %v6163 = vunpack.c.l.b16 %v4703
        %v6164 = vunpack.c.h.b16 %v4703
        %v6165 = vunpack.c.l.b16 %v4704
        %v6166 = vunpack.c.h.b16 %v4704
        %v6167 = vunpack.c.l.b16 %v4705
        %v6168 = vunpack.c.h.b16 %v4705
        %v6169 = vunpack.c.l.b16 %v4706
        %v6170 = vunpack.c.h.b16 %v4706
        %v6171 = vunpack.c.l.b16 %v4707
        %v6172 = vunpack.c.h.b16 %v4707
        %v6173 = vunpack.c.l.b16 %v4708
        %v6174 = vunpack.c.h.b16 %v4708
        %v6175 = vunpack.c.l.b16 %v4709
        %v6176 = vunpack.c.h.b16 %v4709
        %v6177 = vunpack.c.l.b16 %v4710
        %v6178 = vunpack.c.h.b16 %v4710
        %v6179 = vunpack.c.l.b16 %v4711
        %v6180 = vunpack.c.h.b16 %v4711
        %v6181 = vunpack.c.l.b16 %v4712
        %v6182 = vunpack.c.h.b16 %v4712
        %v6183 = vunpack.c.l.b16 %v4713
        %v6184 = vunpack.c.h.b16 %v4713
        %v6185 = vunpack.c.l.b16 %v4714
        %v6186 = vunpack.c.h.b16 %v4714
        %v6187 = vunpack.c.l.b16 %v4715
        %v6188 = vunpack.c.h.b16 %v4715
        %v6189 = vunpack.c.l.b16 %v4716
        %v6190 = vunpack.c.h.b16 %v4716
        %v6191 = vunpack.c.l.b16 %v4717
        %v6192 = vunpack.c.h.b16 %v4717
        %v6193 = vunpack.c.l.b16 %v4718
        %v6194 = vunpack.c.h.b16 %v4718
        %v6195 = vunpack.c.l.b16 %v4719
        %v6196 = vunpack.c.h.b16 %v4719
        %v6197 = vunpack.c.l.b16 %v4720
        %v6198 = vunpack.c.h.b16 %v4720
        %v6199 = vunpack.c.l.b16 %v4721
        %v6200 = vunpack.c.h.b16 %v4721
        %v6201 = vunpack.c.l.b16 %v4722
        %v6202 = vunpack.c.h.b16 %v4722
        %v6203 = vunpack.c.l.b16 %v4723
        %v6204 = vunpack.c.h.b16 %v4723
        %v6205 = vunpack.c.l.b16 %v4724
        %v6206 = vunpack.c.h.b16 %v4724
        %v6207 = vunpack.c.l.b16 %v4725
        %v6208 = vunpack.c.h.b16 %v4725
        %v6209 = vunpack.c.l.b16 %v4726
        %v6210 = vunpack.c.h.b16 %v4726
        %v6211 = vunpack.c.l.b16 %v4727
        %v6212 = vunpack.c.h.b16 %v4727
        %v6213 = vunpack.c.l.b16 %v4728
        %v6214 = vunpack.c.h.b16 %v4728
        %v6215 = vunpack.c.l.b16 %v4729
        %v6216 = vunpack.c.h.b16 %v4729
        %v6217 = vunpack.c.l.b16 %v4730
        %v6218 = vunpack.c.h.b16 %v4730
        %v6219 = vunpack.c.l.b16 %v4731
        %v6220 = vunpack.c.h.b16 %v4731
        %v6221 = vunpack.c.l.b16 %v4732
        %v6222 = vunpack.c.h.b16 %v4732
        %v6223 = vunpack.c.l.b16 %v4733
        %v6224 = vunpack.c.h.b16 %v4733
        %v6225 = vunpack.c.l.b16 %v4734
        %v6226 = vunpack.c.h.b16 %v4734
        %v6227 = vunpack.c.l.b16 %v4735
        %v6228 = vunpack.c.h.b16 %v4735
        %v6229 = vunpack.c.l.b16 %v4736
        %v6230 = vunpack.c.h.b16 %v4736
        %v6231 = vunpack.c.l.b16 %v4737
        %v6232 = vunpack.c.h.b16 %v4737
        %v6233 = vunpack.c.l.b16 %v4738
        %v6234 = vunpack.c.h.b16 %v4738
        %v6235 = vunpack.c.l.b16 %v4739
        %v6236 = vunpack.c.h.b16 %v4739
        %v6237 = vunpack.c.l.b16 %v4740
        %v6238 = vunpack.c.h.b16 %v4740
        %v6239 = vunpack.c.l.b16 %v4741
        %v6240 = vunpack.c.h.b16 %v4741
        %v6241 = vunpack.c.l.b16 %v4742
        %v6242 = vunpack.c.h.b16 %v4742
        %v6243 = vunpack.c.l.b16 %v4743
        %v6244 = vunpack.c.h.b16 %v4743
        %v6245 = vunpack.c.l.b16 %v4744
        %v6246 = vunpack.c.h.b16 %v4744
        %v6247 = vunpack.c.l.b16 %v4745
        %v6248 = vunpack.c.h.b16 %v4745
        %v6249 = vunpack.c.l.b16 %v4746
        %v6250 = vunpack.c.h.b16 %v4746
        %v6251 = vunpack.c.l.b16 %v4747
        %v6252 = vunpack.c.h.b16 %v4747
        %v6253 = vunpack.c.l.b16 %v4748
        %v6254 = vunpack.c.h.b16 %v4748
        %v6255 = vunpack.c.l.b16 %v4749
        %v6256 = vunpack.c.h.b16 %v4749
        %v6257 = vunpack.c.l.b16 %v4750
        %v6258 = vunpack.c.h.b16 %v4750
        %v6259 = vunpack.c.l.b16 %v4751
        %v6260 = vunpack.c.h.b16 %v4751
        %v6261 = vunpack.c.l.b16 %v4752
        %v6262 = vunpack.c.h.b16 %v4752
        %v6263 = vunpack.c.l.b16 %v4753
        %v6264 = vunpack.c.h.b16 %v4753
        %v6265 = vunpack.c.l.b16 %v4754
        %v6266 = vunpack.c.h.b16 %v4754
        %v6267 = vunpack.c.l.b16 %v4755
        %v6268 = vunpack.c.h.b16 %v4755
        %v6269 = vunpack.c.l.b16 %v4756
        %v6270 = vunpack.c.h.b16 %v4756
        %v6271 = vunpack.c.l.b16 %v4757
        %v6272 = vunpack.c.h.b16 %v4757
        %v6273 = vunpack.c.l.b16 %v4758
        %v6274 = vunpack.c.h.b16 %v4758
        %v6275 = vunpack.c.l.b16 %v4759
        %v6276 = vunpack.c.h.b16 %v4759
        %v6277 = vunpack.c.l.b16 %v4760
        %v6278 = vunpack.c.h.b16 %v4760
        %v6279 = vunpack.c.l.b16 %v4761
        %v6280 = vunpack.c.h.b16 %v4761
        %v6281 = vunpack.c.l.b16 %v4762
        %v6282 = vunpack.c.h.b16 %v4762
        %v6283 = vunpack.c.l.b16 %v4763
        %v6284 = vunpack.c.h.b16 %v4763
        %v6285 = vunpack.c.l.b16 %v4764
        %v6286 = vunpack.c.h.b16 %v4764
        %v6287 = vunpack.c.l.b16 %v4765
        %v6288 = vunpack.c.h.b16 %v4765
        %v6289 = vunpack.c.l.b16 %v4766
        %v6290 = vunpack.c.h.b16 %v4766
        %v6291 = vunpack.c.l.b16 %v4767
        %v6292 = vunpack.c.h.b16 %v4767
        %v6293 = vunpack.c.l.b16 %v4768
        %v6294 = vunpack.c.h.b16 %v4768
        %v6295 = vunpack.c.l.b16 %v4769
        %v6296 = vunpack.c.h.b16 %v4769
        %v6297 = vunpack.c.l.b16 %v4770
        %v6298 = vunpack.c.h.b16 %v4770
        %v6299 = vunpack.c.l.b16 %v4771
        %v6300 = vunpack.c.h.b16 %v4771
        %v6301 = vunpack.c.l.b16 %v4772
        %v6302 = vunpack.c.h.b16 %v4772
        %v6303 = vunpack.c.l.b16 %v4773
        %v6304 = vunpack.c.h.b16 %v4773
        %v6305 = vunpack.c.l.b16 %v4774
        %v6306 = vunpack.c.h.b16 %v4774
        %v6307 = vunpack.c.l.b16 %v4775
        %v6308 = vunpack.c.h.b16 %v4775
        %v6309 = vunpack.c.l.b16 %v4776
        %v6310 = vunpack.c.h.b16 %v4776
        %v6311 = vunpack.c.l.b16 %v4777
        %v6312 = vunpack.c.h.b16 %v4777
        %v6313 = vunpack.c.l.b16 %v4778
        %v6314 = vunpack.c.h.b16 %v4778
        %v6315 = vunpack.c.l.b16 %v4779
        %v6316 = vunpack.c.h.b16 %v4779
        %v6317 = vunpack.c.l.b16 %v4780
        %v6318 = vunpack.c.h.b16 %v4780
        %v6319 = vunpack.c.l.b16 %v4781
        %v6320 = vunpack.c.h.b16 %v4781
        %v6321 = vunpack.c.l.b16 %v4782
        %v6322 = vunpack.c.h.b16 %v4782
        %v6323 = vunpack.c.l.b16 %v4783
        %v6324 = vunpack.c.h.b16 %v4783
        %v6325 = vunpack.c.l.b16 %v4784
        %v6326 = vunpack.c.h.b16 %v4784
        %v6327 = vunpack.c.l.b16 %v4785
        %v6328 = vunpack.c.h.b16 %v4785
        %v6329 = vunpack.c.l.b16 %v4786
        %v6330 = vunpack.c.h.b16 %v4786
        %v6331 = vunpack.c.l.b16 %v4787
        %v6332 = vunpack.c.h.b16 %v4787
        %v6333 = vunpack.c.l.b16 %v4788
        %v6334 = vunpack.c.h.b16 %v4788
        %v6335 = vunpack.c.l.b16 %v4789
        %v6336 = vunpack.c.h.b16 %v4789
        %v6337 = vunpack.c.l.b16 %v4790
        %v6338 = vunpack.c.h.b16 %v4790
        %v6339 = vunpack.c.l.b16 %v4791
        %v6340 = vunpack.c.h.b16 %v4791
        %v6341 = vunpack.c.l.b16 %v4792
        %v6342 = vunpack.c.h.b16 %v4792
        %v6343 = vunpack.c.l.b16 %v4793
        %v6344 = vunpack.c.h.b16 %v4793
        %v6345 = vunpack.c.l.b16 %v4794
        %v6346 = vunpack.c.h.b16 %v4794
        %v6347 = vunpack.c.l.b16 %v4795
        %v6348 = vunpack.c.h.b16 %v4795
        %v6349 = vunpack.c.l.b16 %v4796
        %v6350 = vunpack.c.h.b16 %v4796
        %v6351 = vunpack.c.l.b16 %v4797
        %v6352 = vunpack.c.h.b16 %v4797
        %v6353 = vunpack.c.l.b16 %v4798
        %v6354 = vunpack.c.h.b16 %v4798
        %v6355 = vunpack.c.l.b16 %v4799
        %v6356 = vunpack.c.h.b16 %v4799
        %v6357 = vunpack.c.l.b16 %v4800
        %v6358 = vunpack.c.h.b16 %v4800
        %v6359 = vunpack.c.l.b16 %v4801
        %v6360 = vunpack.c.h.b16 %v4801
        %v6361 = vunpack.c.l.b16 %v4802
        %v6362 = vunpack.c.h.b16 %v4802
        %v6363 = vunpack.c.l.b16 %v4803
        %v6364 = vunpack.c.h.b16 %v4803
        %v6365 = vunpack.c.l.b16 %v4804
        %v6366 = vunpack.c.h.b16 %v4804
        %v6367 = vunpack.c.l.b16 %v4805
        %v6368 = vunpack.c.h.b16 %v4805
        %v6369 = vunpack.c.l.b16 %v4806
        %v6370 = vunpack.c.h.b16 %v4806
        %v6371 = vunpack.c.l.b16 %v4807
        %v6372 = vunpack.c.h.b16 %v4807
        %v6373 = vunpack.c.l.b16 %v4808
        %v6374 = vunpack.c.h.b16 %v4808
        %v6375 = vunpack.c.l.b16 %v4809
        %v6376 = vunpack.c.h.b16 %v4809
        %v6377 = vunpack.c.l.b16 %v4810
        %v6378 = vunpack.c.h.b16 %v4810
        %v6379 = vunpack.c.l.b16 %v4811
        %v6380 = vunpack.c.h.b16 %v4811
        %v6381 = vunpack.c.l.b16 %v4812
        %v6382 = vunpack.c.h.b16 %v4812
        %v6383 = vunpack.c.l.b16 %v4813
        %v6384 = vunpack.c.h.b16 %v4813
        %v6385 = vunpack.c.l.b16 %v4814
        %v6386 = vunpack.c.h.b16 %v4814
        %v6387 = vunpack.c.l.b16 %v4815
        %v6388 = vunpack.c.h.b16 %v4815
        %v6389 = vunpack.c.l.b16 %v4816
        %v6390 = vunpack.c.h.b16 %v4816
        %v6391 = vunpack.c.l.b16 %v4817
        %v6392 = vunpack.c.h.b16 %v4817
        %v6393 = vunpack.c.l.b16 %v4818
        %v6394 = vunpack.c.h.b16 %v4818
        %v6395 = vunpack.c.l.b16 %v4819
        %v6396 = vunpack.c.h.b16 %v4819
        %v6397 = vunpack.c.l.b16 %v4820
        %v6398 = vunpack.c.h.b16 %v4820
        %v6399 = vunpack.c.l.b16 %v4821
        %v6400 = vunpack.c.h.b16 %v4821
        %v6401 = vunpack.c.l.b16 %v4822
        %v6402 = vunpack.c.h.b16 %v4822
        %v6403 = vunpack.c.l.b16 %v4823
        %v6404 = vunpack.c.h.b16 %v4823
        %v6405 = vunpack.c.l.b16 %v4824
        %v6406 = vunpack.c.h.b16 %v4824
        %v6407 = vunpack.c.l.b16 %v4825
        %v6408 = vunpack.c.h.b16 %v4825
        %v6409 = vunpack.c.l.b16 %v4826
        %v6410 = vunpack.c.h.b16 %v4826
        %v6411 = vunpack.c.l.b16 %v4827
        %v6412 = vunpack.c.h.b16 %v4827
        %v6413 = vunpack.c.l.b16 %v4828
        %v6414 = vunpack.c.h.b16 %v4828
        %v6415 = vunpack.c.l.b16 %v4829
        %v6416 = vunpack.c.h.b16 %v4829
        %v6417 = vunpack.c.l.b16 %v4830
        %v6418 = vunpack.c.h.b16 %v4830
        %v6419 = vunpack.c.l.b16 %v4831
        %v6420 = vunpack.c.h.b16 %v4831
        %v6421 = vunpack.c.l.b16 %v4832
        %v6422 = vunpack.c.h.b16 %v4832
        %v6423 = vunpack.c.l.b16 %v4833
        %v6424 = vunpack.c.h.b16 %v4833
        %v6425 = vunpack.c.l.b16 %v4834
        %v6426 = vunpack.c.h.b16 %v4834
        %v6427 = vunpack.c.l.b16 %v4835
        %v6428 = vunpack.c.h.b16 %v4835
        %v6429 = vunpack.c.l.b16 %v4836
        %v6430 = vunpack.c.h.b16 %v4836
        %v6431 = vunpack.c.l.b16 %v4837
        %v6432 = vunpack.c.h.b16 %v4837
        %v6433 = vunpack.c.l.b16 %v4838
        %v6434 = vunpack.c.h.b16 %v4838
        %v6435 = vunpack.c.l.b16 %v4839
        %v6436 = vunpack.c.h.b16 %v4839
        %v6437 = vunpack.c.l.b16 %v4840
        %v6438 = vunpack.c.h.b16 %v4840
        %v6439 = vunpack.c.l.b16 %v4841
        %v6440 = vunpack.c.h.b16 %v4841
        %v6441 = vunpack.c.l.b16 %v4842
        %v6442 = vunpack.c.h.b16 %v4842
        %v6443 = vpack.c.b16 %v5935, %v5931
        %v6444 = vpack.c.b16 %v5936, %v5932
        %v6445 = vpack.c.b16 %v5937, %v5933
        %v6446 = vpack.c.b16 %v5938, %v5934
        %v6447 = vpack.c.b16 %v5943, %v5939
        %v6448 = vpack.c.b16 %v5944, %v5940
        %v6449 = vpack.c.b16 %v5945, %v5941
        %v6450 = vpack.c.b16 %v5946, %v5942
        %v6451 = vpack.c.b16 %v5951, %v5947
        %v6452 = vpack.c.b16 %v5952, %v5948
        %v6453 = vpack.c.b16 %v5953, %v5949
        %v6454 = vpack.c.b16 %v5954, %v5950
        %v6455 = vpack.c.b16 %v5959, %v5955
        %v6456 = vpack.c.b16 %v5960, %v5956
        %v6457 = vpack.c.b16 %v5961, %v5957
        %v6458 = vpack.c.b16 %v5962, %v5958
        %v6459 = vpack.c.b16 %v5967, %v5963
        %v6460 = vpack.c.b16 %v5968, %v5964
        %v6461 = vpack.c.b16 %v5969, %v5965
        %v6462 = vpack.c.b16 %v5970, %v5966
        %v6463 = vpack.c.b16 %v5975, %v5971
        %v6464 = vpack.c.b16 %v5976, %v5972
        %v6465 = vpack.c.b16 %v5977, %v5973
        %v6466 = vpack.c.b16 %v5978, %v5974
        %v6467 = vpack.c.b16 %v5983, %v5979
        %v6468 = vpack.c.b16 %v5984, %v5980
        %v6469 = vpack.c.b16 %v5985, %v5981
        %v6470 = vpack.c.b16 %v5986, %v5982
        %v6471 = vpack.c.b16 %v5991, %v5987
        %v6472 = vpack.c.b16 %v5992, %v5988
        %v6473 = vpack.c.b16 %v5993, %v5989
        %v6474 = vpack.c.b16 %v5994, %v5990
        %v6475 = vpack.c.b16 %v5999, %v5995
        %v6476 = vpack.c.b16 %v6000, %v5996
        %v6477 = vpack.c.b16 %v6001, %v5997
        %v6478 = vpack.c.b16 %v6002, %v5998
        %v6479 = vpack.c.b16 %v6007, %v6003
        %v6480 = vpack.c.b16 %v6008, %v6004
        %v6481 = vpack.c.b16 %v6009, %v6005
        %v6482 = vpack.c.b16 %v6010, %v6006
        %v6483 = vpack.c.b16 %v6015, %v6011
        %v6484 = vpack.c.b16 %v6016, %v6012
        %v6485 = vpack.c.b16 %v6017, %v6013
        %v6486 = vpack.c.b16 %v6018, %v6014
        %v6487 = vpack.c.b16 %v6023, %v6019
        %v6488 = vpack.c.b16 %v6024, %v6020
        %v6489 = vpack.c.b16 %v6025, %v6021
        %v6490 = vpack.c.b16 %v6026, %v6022
        %v6491 = vpack.c.b16 %v6031, %v6027
        %v6492 = vpack.c.b16 %v6032, %v6028
        %v6493 = vpack.c.b16 %v6033, %v6029
        %v6494 = vpack.c.b16 %v6034, %v6030
        %v6495 = vpack.c.b16 %v6039, %v6035
        %v6496 = vpack.c.b16 %v6040, %v6036
        %v6497 = vpack.c.b16 %v6041, %v6037
        %v6498 = vpack.c.b16 %v6042, %v6038
        %v6499 = vpack.c.b16 %v6047, %v6043
        %v6500 = vpack.c.b16 %v6048, %v6044
        %v6501 = vpack.c.b16 %v6049, %v6045
        %v6502 = vpack.c.b16 %v6050, %v6046
        %v6503 = vpack.c.b16 %v6055, %v6051
        %v6504 = vpack.c.b16 %v6056, %v6052
        %v6505 = vpack.c.b16 %v6057, %v6053
        %v6506 = vpack.c.b16 %v6058, %v6054
        %v6507 = vpack.c.b16 %v6063, %v6059
        %v6508 = vpack.c.b16 %v6064, %v6060
        %v6509 = vpack.c.b16 %v6065, %v6061
        %v6510 = vpack.c.b16 %v6066, %v6062
        %v6511 = vpack.c.b16 %v6071, %v6067
        %v6512 = vpack.c.b16 %v6072, %v6068
        %v6513 = vpack.c.b16 %v6073, %v6069
        %v6514 = vpack.c.b16 %v6074, %v6070
        %v6515 = vpack.c.b16 %v6079, %v6075
        %v6516 = vpack.c.b16 %v6080, %v6076
        %v6517 = vpack.c.b16 %v6081, %v6077
        %v6518 = vpack.c.b16 %v6082, %v6078
        %v6519 = vpack.c.b16 %v6087, %v6083
        %v6520 = vpack.c.b16 %v6088, %v6084
        %v6521 = vpack.c.b16 %v6089, %v6085
        %v6522 = vpack.c.b16 %v6090, %v6086
        %v6523 = vpack.c.b16 %v6095, %v6091
        %v6524 = vpack.c.b16 %v6096, %v6092
        %v6525 = vpack.c.b16 %v6097, %v6093
        %v6526 = vpack.c.b16 %v6098, %v6094
        %v6527 = vpack.c.b16 %v6103, %v6099
        %v6528 = vpack.c.b16 %v6104, %v6100
        %v6529 = vpack.c.b16 %v6105, %v6101
        %v6530 = vpack.c.b16 %v6106, %v6102
        %v6531 = vpack.c.b16 %v6111, %v6107
        %v6532 = vpack.c.b16 %v6112, %v6108
        %v6533 = vpack.c.b16 %v6113, %v6109
        %v6534 = vpack.c.b16 %v6114, %v6110
        %v6535 = vpack.c.b16 %v6119, %v6115
        %v6536 = vpack.c.b16 %v6120, %v6116
        %v6537 = vpack.c.b16 %v6121, %v6117
        %v6538 = vpack.c.b16 %v6122, %v6118
        %v6539 = vpack.c.b16 %v6127, %v6123
        %v6540 = vpack.c.b16 %v6128, %v6124
        %v6541 = vpack.c.b16 %v6129, %v6125
        %v6542 = vpack.c.b16 %v6130, %v6126
        %v6543 = vpack.c.b16 %v6135, %v6131
        %v6544 = vpack.c.b16 %v6136, %v6132
        %v6545 = vpack.c.b16 %v6137, %v6133
        %v6546 = vpack.c.b16 %v6138, %v6134
        %v6547 = vpack.c.b16 %v6143, %v6139
        %v6548 = vpack.c.b16 %v6144, %v6140
        %v6549 = vpack.c.b16 %v6145, %v6141
        %v6550 = vpack.c.b16 %v6146, %v6142
        %v6551 = vpack.c.b16 %v6151, %v6147
        %v6552 = vpack.c.b16 %v6152, %v6148
        %v6553 = vpack.c.b16 %v6153, %v6149
        %v6554 = vpack.c.b16 %v6154, %v6150
        %v6555 = vpack.c.b16 %v6159, %v6155
        %v6556 = vpack.c.b16 %v6160, %v6156
        %v6557 = vpack.c.b16 %v6161, %v6157
        %v6558 = vpack.c.b16 %v6162, %v6158
        %v6559 = vpack.c.b16 %v6167, %v6163
        %v6560 = vpack.c.b16 %v6168, %v6164
        %v6561 = vpack.c.b16 %v6169, %v6165
        %v6562 = vpack.c.b16 %v6170, %v6166
        %v6563 = vpack.c.b16 %v6175, %v6171
        %v6564 = vpack.c.b16 %v6176, %v6172
        %v6565 = vpack.c.b16 %v6177, %v6173
        %v6566 = vpack.c.b16 %v6178, %v6174
        %v6567 = vpack.c.b16 %v6183, %v6179
        %v6568 = vpack.c.b16 %v6184, %v6180
        %v6569 = vpack.c.b16 %v6185, %v6181
        %v6570 = vpack.c.b16 %v6186, %v6182
        %v6571 = vpack.c.b16 %v6191, %v6187
        %v6572 = vpack.c.b16 %v6192, %v6188
        %v6573 = vpack.c.b16 %v6193, %v6189
        %v6574 = vpack.c.b16 %v6194, %v6190
        %v6575 = vpack.c.b16 %v6199, %v6195
        %v6576 = vpack.c.b16 %v6200, %v6196
        %v6577 = vpack.c.b16 %v6201, %v6197
        %v6578 = vpack.c.b16 %v6202, %v6198
        %v6579 = vpack.c.b16 %v6207, %v6203
        %v6580 = vpack.c.b16 %v6208, %v6204
        %v6581 = vpack.c.b16 %v6209, %v6205
        %v6582 = vpack.c.b16 %v6210, %v6206
        %v6583 = vpack.c.b16 %v6215, %v6211
        %v6584 = vpack.c.b16 %v6216, %v6212
        %v6585 = vpack.c.b16 %v6217, %v6213
        %v6586 = vpack.c.b16 %v6218, %v6214
        %v6587 = vpack.c.b16 %v6223, %v6219
        %v6588 = vpack.c.b16 %v6224, %v6220
        %v6589 = vpack.c.b16 %v6225, %v6221
        %v6590 = vpack.c.b16 %v6226, %v6222
        %v6591 = vpack.c.b16 %v6231, %v6227
        %v6592 = vpack.c.b16 %v6232, %v6228
        %v6593 = vpack.c.b16 %v6233, %v6229
        %v6594 = vpack.c.b16 %v6234, %v6230
        %v6595 = vpack.c.b16 %v6239, %v6235
        %v6596 = vpack.c.b16 %v6240, %v6236
        %v6597 = vpack.c.b16 %v6241, %v6237
        %v6598 = vpack.c.b16 %v6242, %v6238
        %v6599 = vpack.c.b16 %v6247, %v6243
        %v6600 = vpack.c.b16 %v6248, %v6244
        %v6601 = vpack.c.b16 %v6249, %v6245
        %v6602 = vpack.c.b16 %v6250, %v6246
        %v6603 = vpack.c.b16 %v6255, %v6251
        %v6604 = vpack.c.b16 %v6256, %v6252
        %v6605 = vpack.c.b16 %v6257, %v6253
        %v6606 = vpack.c.b16 %v6258, %v6254
        %v6607 = vpack.c.b16 %v6263, %v6259
        %v6608 = vpack.c.b16 %v6264, %v6260
        %v6609 = vpack.c.b16 %v6265, %v6261
        %v6610 = vpack.c.b16 %v6266, %v6262
        %v6611 = vpack.c.b16 %v6271, %v6267
        %v6612 = vpack.c.b16 %v6272, %v6268
        %v6613 = vpack.c.b16 %v6273, %v6269
        %v6614 = vpack.c.b16 %v6274, %v6270
        %v6615 = vpack.c.b16 %v6279, %v6275
        %v6616 = vpack.c.b16 %v6280, %v6276
        %v6617 = vpack.c.b16 %v6281, %v6277
        %v6618 = vpack.c.b16 %v6282, %v6278
        %v6619 = vpack.c.b16 %v6287, %v6283
        %v6620 = vpack.c.b16 %v6288, %v6284
        %v6621 = vpack.c.b16 %v6289, %v6285
        %v6622 = vpack.c.b16 %v6290, %v6286
        %v6623 = vpack.c.b16 %v6295, %v6291
        %v6624 = vpack.c.b16 %v6296, %v6292
        %v6625 = vpack.c.b16 %v6297, %v6293
        %v6626 = vpack.c.b16 %v6298, %v6294
        %v6627 = vpack.c.b16 %v6303, %v6299
        %v6628 = vpack.c.b16 %v6304, %v6300
        %v6629 = vpack.c.b16 %v6305, %v6301
        %v6630 = vpack.c.b16 %v6306, %v6302
        %v6631 = vpack.c.b16 %v6311, %v6307
        %v6632 = vpack.c.b16 %v6312, %v6308
        %v6633 = vpack.c.b16 %v6313, %v6309
        %v6634 = vpack.c.b16 %v6314, %v6310
        %v6635 = vpack.c.b16 %v6319, %v6315
        %v6636 = vpack.c.b16 %v6320, %v6316
        %v6637 = vpack.c.b16 %v6321, %v6317
        %v6638 = vpack.c.b16 %v6322, %v6318
        %v6639 = vpack.c.b16 %v6327, %v6323
        %v6640 = vpack.c.b16 %v6328, %v6324
        %v6641 = vpack.c.b16 %v6329, %v6325
        %v6642 = vpack.c.b16 %v6330, %v6326
        %v6643 = vpack.c.b16 %v6335, %v6331
        %v6644 = vpack.c.b16 %v6336, %v6332
        %v6645 = vpack.c.b16 %v6337, %v6333
        %v6646 = vpack.c.b16 %v6338, %v6334
        %v6647 = vpack.c.b16 %v6343, %v6339
        %v6648 = vpack.c.b16 %v6344, %v6340
        %v6649 = vpack.c.b16 %v6345, %v6341
        %v6650 = vpack.c.b16 %v6346, %v6342
        %v6651 = vpack.c.b16 %v6351, %v6347
        %v6652 = vpack.c.b16 %v6352, %v6348
        %v6653 = vpack.c.b16 %v6353, %v6349
        %v6654 = vpack.c.b16 %v6354, %v6350
        %v6655 = vpack.c.b16 %v6359, %v6355
        %v6656 = vpack.c.b16 %v6360, %v6356
        %v6657 = vpack.c.b16 %v6361, %v6357
        %v6658 = vpack.c.b16 %v6362, %v6358
        %v6659 = vpack.c.b16 %v6367, %v6363
        %v6660 = vpack.c.b16 %v6368, %v6364
        %v6661 = vpack.c.b16 %v6369, %v6365
        %v6662 = vpack.c.b16 %v6370, %v6366
        %v6663 = vpack.c.b16 %v6375, %v6371
        %v6664 = vpack.c.b16 %v6376, %v6372
        %v6665 = vpack.c.b16 %v6377, %v6373
        %v6666 = vpack.c.b16 %v6378, %v6374
        %v6667 = vpack.c.b16 %v6383, %v6379
        %v6668 = vpack.c.b16 %v6384, %v6380
        %v6669 = vpack.c.b16 %v6385, %v6381
        %v6670 = vpack.c.b16 %v6386, %v6382
        %v6671 = vpack.c.b16 %v6391, %v6387
        %v6672 = vpack.c.b16 %v6392, %v6388
        %v6673 = vpack.c.b16 %v6393, %v6389
        %v6674 = vpack.c.b16 %v6394, %v6390
        %v6675 = vpack.c.b16 %v6399, %v6395
        %v6676 = vpack.c.b16 %v6400, %v6396
        %v6677 = vpack.c.b16 %v6401, %v6397
        %v6678 = vpack.c.b16 %v6402, %v6398
        %v6679 = vpack.c.b16 %v6407, %v6403
        %v6680 = vpack.c.b16 %v6408, %v6404
        %v6681 = vpack.c.b16 %v6409, %v6405
        %v6682 = vpack.c.b16 %v6410, %v6406
        %v6683 = vpack.c.b16 %v6415, %v6411
        %v6684 = vpack.c.b16 %v6416, %v6412
        %v6685 = vpack.c.b16 %v6417, %v6413
        %v6686 = vpack.c.b16 %v6418, %v6414
        %v6687 = vpack.c.b16 %v6423, %v6419
        %v6688 = vpack.c.b16 %v6424, %v6420
        %v6689 = vpack.c.b16 %v6425, %v6421
        %v6690 = vpack.c.b16 %v6426, %v6422
        %v6691 = vpack.c.b16 %v6431, %v6427
        %v6692 = vpack.c.b16 %v6432, %v6428
        %v6693 = vpack.c.b16 %v6433, %v6429
        %v6694 = vpack.c.b16 %v6434, %v6430
        %v6695 = vpack.c.b16 %v6439, %v6435
        %v6696 = vpack.c.b16 %v6440, %v6436
        %v6697 = vpack.c.b16 %v6441, %v6437
        %v6698 = vpack.c.b16 %v6442, %v6438
        %6955 = vmatpush.bf16.msra.mxu0 %v4857
        %6956 = vmatpush.bf16.msra.mxu0 %v4855
        %6957 = vmatpush.bf16.msra.mxu0 %v4853
        %6958 = vmatpush.bf16.msra.mxu0 %v4851
        %6959 = vmatpush.bf16.msra.mxu0 %v4849
        %6960 = vmatpush.bf16.msra.mxu0 %v4847
        %6961 = vmatpush.bf16.msra.mxu0 %v4845
        %6962 = vmatpush.bf16.msra.mxu0 %v4843
        %6963 = vmatmul.bf16.gmra.mxu0 %v6443
        %v6964 = vpop.f32.mrf.mxu0
        %v6965 = vadd.f32 %v5038, %v6964
        %v6966 = vpop.f32.mrf.mxu0
        %v6967 = vadd.f32 %v5043, %v6966
        %6968 = vmatmul.bf16.gmra.mxu0 %v6447
        %v6969 = vpop.f32.mrf.mxu0
        %v6970 = vadd.f32 %v5048, %v6969
        %v6971 = vpop.f32.mrf.mxu0
        %v6972 = vadd.f32 %v5053, %v6971
        %6973 = vmatmul.bf16.gmra.mxu0 %v6451
        %v6974 = vpop.f32.mrf.mxu0
        %v6975 = vadd.f32 %v5058, %v6974
        %v6976 = vpop.f32.mrf.mxu0
        %v6977 = vadd.f32 %v5063, %v6976
        %6978 = vmatmul.bf16.gmra.mxu0 %v6455
        %v6979 = vpop.f32.mrf.mxu0
        %v6980 = vadd.f32 %v5068, %v6979
        %v6981 = vpop.f32.mrf.mxu0
        %v6982 = vadd.f32 %v5073, %v6981
        %6983 = vmatmul.bf16.gmra.mxu0 %v6459
        %v6984 = vpop.f32.mrf.mxu0
        %v6985 = vadd.f32 %v5078, %v6984
        %v6986 = vpop.f32.mrf.mxu0
        %v6987 = vadd.f32 %v5083, %v6986
        %6988 = vmatmul.bf16.gmra.mxu0 %v6463
        %v6989 = vpop.f32.mrf.mxu0
        %v6990 = vadd.f32 %v5088, %v6989
        %v6991 = vpop.f32.mrf.mxu0
        %v6992 = vadd.f32 %v5093, %v6991
        %6993 = vmatmul.bf16.gmra.mxu0 %v6467
        %v6994 = vpop.f32.mrf.mxu0
        %v6995 = vadd.f32 %v5098, %v6994
        %v6996 = vpop.f32.mrf.mxu0
        %v6997 = vadd.f32 %v5103, %v6996
        %6998 = vmatmul.bf16.gmra.mxu0 %v6471
        %v6999 = vpop.f32.mrf.mxu0
        %v7000 = vadd.f32 %v5108, %v6999
        %v7001 = vpop.f32.mrf.mxu0
        %v7002 = vadd.f32 %v5113, %v7001
        %7003 = vmatmul.bf16.gmra.mxu0 %v6475
        %v7004 = vpop.f32.mrf.mxu0
        %v7005 = vadd.f32 %v5118, %v7004
        %v7006 = vpop.f32.mrf.mxu0
        %v7007 = vadd.f32 %v5123, %v7006
        %7008 = vmatmul.bf16.gmra.mxu0 %v6479
        %v7009 = vpop.f32.mrf.mxu0
        %v7010 = vadd.f32 %v5128, %v7009
        %v7011 = vpop.f32.mrf.mxu0
        %v7012 = vadd.f32 %v5133, %v7011
        %7013 = vmatmul.bf16.gmra.mxu0 %v6483
        %v7014 = vpop.f32.mrf.mxu0
        %v7015 = vadd.f32 %v5138, %v7014
        %v7016 = vpop.f32.mrf.mxu0
        %v7017 = vadd.f32 %v5143, %v7016
        %7018 = vmatmul.bf16.gmra.mxu0 %v6487
        %v7019 = vpop.f32.mrf.mxu0
        %v7020 = vadd.f32 %v5148, %v7019
        %v7021 = vpop.f32.mrf.mxu0
        %v7022 = vadd.f32 %v5153, %v7021
        %7023 = vmatmul.bf16.gmra.mxu0 %v6491
        %v7024 = vpop.f32.mrf.mxu0
        %v7025 = vadd.f32 %v5158, %v7024
        %v7026 = vpop.f32.mrf.mxu0
        %v7027 = vadd.f32 %v5163, %v7026
        %7028 = vmatmul.bf16.gmra.mxu0 %v6495
        %v7029 = vpop.f32.mrf.mxu0
        %v7030 = vadd.f32 %v5168, %v7029
        %v7031 = vpop.f32.mrf.mxu0
        %v7032 = vadd.f32 %v5173, %v7031
        %7033 = vmatmul.bf16.gmra.mxu0 %v6499
        %v7034 = vpop.f32.mrf.mxu0
        %v7035 = vadd.f32 %v5178, %v7034
        %v7036 = vpop.f32.mrf.mxu0
        %v7037 = vadd.f32 %v5183, %v7036
        %7038 = vmatmul.bf16.gmra.mxu0 %v6503
        %v7039 = vpop.f32.mrf.mxu0
        %v7040 = vadd.f32 %v5188, %v7039
        %v7041 = vpop.f32.mrf.mxu0
        %v7042 = vadd.f32 %v5193, %v7041
        %7043 = vmatmul.bf16.gmra.mxu0 %v6507
        %v7044 = vpop.f32.mrf.mxu0
        %v7045 = vadd.f32 %v5198, %v7044
        %v7046 = vpop.f32.mrf.mxu0
        %v7047 = vadd.f32 %v5203, %v7046
        %7048 = vmatmul.bf16.gmra.mxu0 %v6511
        %v7049 = vpop.f32.mrf.mxu0
        %v7050 = vadd.f32 %v5208, %v7049
        %v7051 = vpop.f32.mrf.mxu0
        %v7052 = vadd.f32 %v5213, %v7051
        %7053 = vmatmul.bf16.gmra.mxu0 %v6515
        %v7054 = vpop.f32.mrf.mxu0
        %v7055 = vadd.f32 %v5218, %v7054
        %v7056 = vpop.f32.mrf.mxu0
        %v7057 = vadd.f32 %v5223, %v7056
        %7058 = vmatmul.bf16.gmra.mxu0 %v6519
        %v7059 = vpop.f32.mrf.mxu0
        %v7060 = vadd.f32 %v5228, %v7059
        %v7061 = vpop.f32.mrf.mxu0
        %v7062 = vadd.f32 %v5233, %v7061
        %7063 = vmatmul.bf16.gmra.mxu0 %v6523
        %v7064 = vpop.f32.mrf.mxu0
        %v7065 = vadd.f32 %v5238, %v7064
        %v7066 = vpop.f32.mrf.mxu0
        %v7067 = vadd.f32 %v5243, %v7066
        %7068 = vmatmul.bf16.gmra.mxu0 %v6527
        %v7069 = vpop.f32.mrf.mxu0
        %v7070 = vadd.f32 %v5248, %v7069
        %v7071 = vpop.f32.mrf.mxu0
        %v7072 = vadd.f32 %v5253, %v7071
        %7073 = vmatmul.bf16.gmra.mxu0 %v6531
        %v7074 = vpop.f32.mrf.mxu0
        %v7075 = vadd.f32 %v5258, %v7074
        %v7076 = vpop.f32.mrf.mxu0
        %v7077 = vadd.f32 %v5263, %v7076
        %7078 = vmatmul.bf16.gmra.mxu0 %v6535
        %v7079 = vpop.f32.mrf.mxu0
        %v7080 = vadd.f32 %v5268, %v7079
        %v7081 = vpop.f32.mrf.mxu0
        %v7082 = vadd.f32 %v5273, %v7081
        %7083 = vmatmul.bf16.gmra.mxu0 %v6539
        %v7084 = vpop.f32.mrf.mxu0
        %v7085 = vadd.f32 %v5278, %v7084
        %v7086 = vpop.f32.mrf.mxu0
        %v7087 = vadd.f32 %v5283, %v7086
        %7088 = vmatmul.bf16.gmra.mxu0 %v6543
        %v7089 = vpop.f32.mrf.mxu0
        %v7090 = vadd.f32 %v5288, %v7089
        %v7091 = vpop.f32.mrf.mxu0
        %v7092 = vadd.f32 %v5293, %v7091
        %7093 = vmatmul.bf16.gmra.mxu0 %v6547
        %v7094 = vpop.f32.mrf.mxu0
        %v7095 = vadd.f32 %v5298, %v7094
        %v7096 = vpop.f32.mrf.mxu0
        %v7097 = vadd.f32 %v5303, %v7096
        %7098 = vmatmul.bf16.gmra.mxu0 %v6551
        %v7099 = vpop.f32.mrf.mxu0
        %v7100 = vadd.f32 %v5308, %v7099
        %v7101 = vpop.f32.mrf.mxu0
        %v7102 = vadd.f32 %v5313, %v7101
        %7103 = vmatmul.bf16.gmra.mxu0 %v6555
        %v7104 = vpop.f32.mrf.mxu0
        %v7105 = vadd.f32 %v5318, %v7104
        %v7106 = vpop.f32.mrf.mxu0
        %v7107 = vadd.f32 %v5323, %v7106
        %7108 = vmatmul.bf16.gmra.mxu0 %v6559
        %v7109 = vpop.f32.mrf.mxu0
        %v7110 = vadd.f32 %v5328, %v7109
        %v7111 = vpop.f32.mrf.mxu0
        %v7112 = vadd.f32 %v5333, %v7111
        %7113 = vmatmul.bf16.gmra.mxu0 %v6563
        %v7114 = vpop.f32.mrf.mxu0
        %v7115 = vadd.f32 %v5338, %v7114
        %v7116 = vpop.f32.mrf.mxu0
        %v7117 = vadd.f32 %v5343, %v7116
        %7118 = vmatmul.bf16.gmra.mxu0 %v6567
        %v7119 = vpop.f32.mrf.mxu0
        %v7120 = vadd.f32 %v5348, %v7119
        %v7121 = vpop.f32.mrf.mxu0
        %v7122 = vadd.f32 %v5353, %v7121
        %7123 = vmatmul.bf16.gmra.mxu0 %v6571
        %v7124 = vpop.f32.mrf.mxu0
        %v7125 = vadd.f32 %v5358, %v7124
        %v7126 = vpop.f32.mrf.mxu0
        %v7127 = vadd.f32 %v5363, %v7126
        %7128 = vmatmul.bf16.gmra.mxu0 %v6575
        %v7129 = vpop.f32.mrf.mxu0
        %v7130 = vadd.f32 %v5368, %v7129
        %v7131 = vpop.f32.mrf.mxu0
        %v7132 = vadd.f32 %v5373, %v7131
        %7133 = vmatmul.bf16.gmra.mxu0 %v6579
        %v7134 = vpop.f32.mrf.mxu0
        %v7135 = vadd.f32 %v5378, %v7134
        %v7136 = vpop.f32.mrf.mxu0
        %v7137 = vadd.f32 %v5383, %v7136
        %7138 = vmatmul.bf16.gmra.mxu0 %v6583
        %v7139 = vpop.f32.mrf.mxu0
        %v7140 = vadd.f32 %v5388, %v7139
        %v7141 = vpop.f32.mrf.mxu0
        %v7142 = vadd.f32 %v5393, %v7141
        %7143 = vmatmul.bf16.gmra.mxu0 %v6587
        %v7144 = vpop.f32.mrf.mxu0
        %v7145 = vadd.f32 %v5398, %v7144
        %v7146 = vpop.f32.mrf.mxu0
        %v7147 = vadd.f32 %v5403, %v7146
        %7148 = vmatmul.bf16.gmra.mxu0 %v6591
        %v7149 = vpop.f32.mrf.mxu0
        %v7150 = vadd.f32 %v5408, %v7149
        %v7151 = vpop.f32.mrf.mxu0
        %v7152 = vadd.f32 %v5413, %v7151
        %7153 = vmatmul.bf16.gmra.mxu0 %v6595
        %v7154 = vpop.f32.mrf.mxu0
        %v7155 = vadd.f32 %v5418, %v7154
        %v7156 = vpop.f32.mrf.mxu0
        %v7157 = vadd.f32 %v5423, %v7156
        %7158 = vmatmul.bf16.gmra.mxu0 %v6599
        %v7159 = vpop.f32.mrf.mxu0
        %v7160 = vadd.f32 %v5428, %v7159
        %v7161 = vpop.f32.mrf.mxu0
        %v7162 = vadd.f32 %v5433, %v7161
        %7163 = vmatmul.bf16.gmra.mxu0 %v6603
        %v7164 = vpop.f32.mrf.mxu0
        %v7165 = vadd.f32 %v5438, %v7164
        %v7166 = vpop.f32.mrf.mxu0
        %v7167 = vadd.f32 %v5443, %v7166
        %7168 = vmatmul.bf16.gmra.mxu0 %v6607
        %v7169 = vpop.f32.mrf.mxu0
        %v7170 = vadd.f32 %v5448, %v7169
        %v7171 = vpop.f32.mrf.mxu0
        %v7172 = vadd.f32 %v5453, %v7171
        %7173 = vmatmul.bf16.gmra.mxu0 %v6611
        %v7174 = vpop.f32.mrf.mxu0
        %v7175 = vadd.f32 %v5458, %v7174
        %v7176 = vpop.f32.mrf.mxu0
        %v7177 = vadd.f32 %v5463, %v7176
        %7178 = vmatmul.bf16.gmra.mxu0 %v6615
        %v7179 = vpop.f32.mrf.mxu0
        %v7180 = vadd.f32 %v5468, %v7179
        %v7181 = vpop.f32.mrf.mxu0
        %v7182 = vadd.f32 %v5473, %v7181
        %7183 = vmatmul.bf16.gmra.mxu0 %v6619
        %v7184 = vpop.f32.mrf.mxu0
        %v7185 = vadd.f32 %v5478, %v7184
        %v7186 = vpop.f32.mrf.mxu0
        %v7187 = vadd.f32 %v5483, %v7186
        %7188 = vmatmul.bf16.gmra.mxu0 %v6623
        %v7189 = vpop.f32.mrf.mxu0
        %v7190 = vadd.f32 %v5488, %v7189
        %v7191 = vpop.f32.mrf.mxu0
        %v7192 = vadd.f32 %v5493, %v7191
        %7193 = vmatmul.bf16.gmra.mxu0 %v6627
        %v7194 = vpop.f32.mrf.mxu0
        %v7195 = vadd.f32 %v5498, %v7194
        %v7196 = vpop.f32.mrf.mxu0
        %v7197 = vadd.f32 %v5503, %v7196
        %7198 = vmatmul.bf16.gmra.mxu0 %v6631
        %v7199 = vpop.f32.mrf.mxu0
        %v7200 = vadd.f32 %v5508, %v7199
        %v7201 = vpop.f32.mrf.mxu0
        %v7202 = vadd.f32 %v5513, %v7201
        %7203 = vmatmul.bf16.gmra.mxu0 %v6635
        %v7204 = vpop.f32.mrf.mxu0
        %v7205 = vadd.f32 %v5518, %v7204
        %v7206 = vpop.f32.mrf.mxu0
        %v7207 = vadd.f32 %v5523, %v7206
        %7208 = vmatmul.bf16.gmra.mxu0 %v6639
        %v7209 = vpop.f32.mrf.mxu0
        %v7210 = vadd.f32 %v5528, %v7209
        %v7211 = vpop.f32.mrf.mxu0
        %v7212 = vadd.f32 %v5533, %v7211
        %7213 = vmatmul.bf16.gmra.mxu0 %v6643
        %v7214 = vpop.f32.mrf.mxu0
        %v7215 = vadd.f32 %v5538, %v7214
        %v7216 = vpop.f32.mrf.mxu0
        %v7217 = vadd.f32 %v5543, %v7216
        %7218 = vmatmul.bf16.gmra.mxu0 %v6647
        %v7219 = vpop.f32.mrf.mxu0
        %v7220 = vadd.f32 %v5548, %v7219
        %v7221 = vpop.f32.mrf.mxu0
        %v7222 = vadd.f32 %v5553, %v7221
        %7223 = vmatmul.bf16.gmra.mxu0 %v6651
        %v7224 = vpop.f32.mrf.mxu0
        %v7225 = vadd.f32 %v5558, %v7224
        %v7226 = vpop.f32.mrf.mxu0
        %v7227 = vadd.f32 %v5563, %v7226
        %7228 = vmatmul.bf16.gmra.mxu0 %v6655
        %v7229 = vpop.f32.mrf.mxu0
        %v7230 = vadd.f32 %v5568, %v7229
        %v7231 = vpop.f32.mrf.mxu0
        %v7232 = vadd.f32 %v5573, %v7231
        %7233 = vmatmul.bf16.gmra.mxu0 %v6659
        %v7234 = vpop.f32.mrf.mxu0
        %v7235 = vadd.f32 %v5578, %v7234
        %v7236 = vpop.f32.mrf.mxu0
        %v7237 = vadd.f32 %v5583, %v7236
        %7238 = vmatmul.bf16.gmra.mxu0 %v6663
        %v7239 = vpop.f32.mrf.mxu0
        %v7240 = vadd.f32 %v5588, %v7239
        %v7241 = vpop.f32.mrf.mxu0
        %v7242 = vadd.f32 %v5593, %v7241
        %7243 = vmatmul.bf16.gmra.mxu0 %v6667
        %v7244 = vpop.f32.mrf.mxu0
        %v7245 = vadd.f32 %v5598, %v7244
        %v7246 = vpop.f32.mrf.mxu0
        %v7247 = vadd.f32 %v5603, %v7246
        %7248 = vmatmul.bf16.gmra.mxu0 %v6671
        %v7249 = vpop.f32.mrf.mxu0
        %v7250 = vadd.f32 %v5608, %v7249
        %v7251 = vpop.f32.mrf.mxu0
        %v7252 = vadd.f32 %v5613, %v7251
        %7253 = vmatmul.bf16.gmra.mxu0 %v6675
        %v7254 = vpop.f32.mrf.mxu0
        %v7255 = vadd.f32 %v5618, %v7254
        %v7256 = vpop.f32.mrf.mxu0
        %v7257 = vadd.f32 %v5623, %v7256
        %7258 = vmatmul.bf16.gmra.mxu0 %v6679
        %v7259 = vpop.f32.mrf.mxu0
        %v7260 = vadd.f32 %v5628, %v7259
        %v7261 = vpop.f32.mrf.mxu0
        %v7262 = vadd.f32 %v5633, %v7261
        %7263 = vmatmul.bf16.gmra.mxu0 %v6683
        %v7264 = vpop.f32.mrf.mxu0
        %v7265 = vadd.f32 %v5638, %v7264
        %v7266 = vpop.f32.mrf.mxu0
        %v7267 = vadd.f32 %v5643, %v7266
        %7268 = vmatmul.bf16.gmra.mxu0 %v6687
        %v7269 = vpop.f32.mrf.mxu0
        %v7270 = vadd.f32 %v5648, %v7269
        %v7271 = vpop.f32.mrf.mxu0
        %v7272 = vadd.f32 %v5653, %v7271
        %7273 = vmatmul.bf16.gmra.mxu0 %v6691
        %v7274 = vpop.f32.mrf.mxu0
        %v7275 = vadd.f32 %v5658, %v7274
        %v7276 = vpop.f32.mrf.mxu0
        %v7277 = vadd.f32 %v5663, %v7276
        %7278 = vmatmul.bf16.gmra.mxu0 %v6695
        %v7279 = vpop.f32.mrf.mxu0
        %v7280 = vadd.f32 %v5668, %v7279
        %v7281 = vpop.f32.mrf.mxu0
        %v7282 = vadd.f32 %v5673, %v7281
        %7283 = vdwg.mxu0
        %7284 = vmatpush.bf16.msra.mxu0 %v4873
        %7285 = vmatpush.bf16.msra.mxu0 %v4871
        %7286 = vmatpush.bf16.msra.mxu0 %v4869
        %7287 = vmatpush.bf16.msra.mxu0 %v4867
        %7288 = vmatpush.bf16.msra.mxu0 %v4865
        %7289 = vmatpush.bf16.msra.mxu0 %v4863
        %7290 = vmatpush.bf16.msra.mxu0 %v4861
        %7291 = vmatpush.bf16.msra.mxu0 %v4859
        %7292 = vmatmul.bf16.gmra.mxu0 %v6444
        %v7293 = vpop.f32.mrf.mxu0
        %v7294 = vadd.f32 %v6965, %v7293
        %v7295 = vpop.f32.mrf.mxu0
        %v7296 = vadd.f32 %v6967, %v7295
        %7297 = vmatmul.bf16.gmra.mxu0 %v6448
        %v7298 = vpop.f32.mrf.mxu0
        %v7299 = vadd.f32 %v6970, %v7298
        %v7300 = vpop.f32.mrf.mxu0
        %v7301 = vadd.f32 %v6972, %v7300
        %7302 = vmatmul.bf16.gmra.mxu0 %v6452
        %v7303 = vpop.f32.mrf.mxu0
        %v7304 = vadd.f32 %v6975, %v7303
        %v7305 = vpop.f32.mrf.mxu0
        %v7306 = vadd.f32 %v6977, %v7305
        %7307 = vmatmul.bf16.gmra.mxu0 %v6456
        %v7308 = vpop.f32.mrf.mxu0
        %v7309 = vadd.f32 %v6980, %v7308
        %v7310 = vpop.f32.mrf.mxu0
        %v7311 = vadd.f32 %v6982, %v7310
        %7312 = vmatmul.bf16.gmra.mxu0 %v6460
        %v7313 = vpop.f32.mrf.mxu0
        %v7314 = vadd.f32 %v6985, %v7313
        %v7315 = vpop.f32.mrf.mxu0
        %v7316 = vadd.f32 %v6987, %v7315
        %7317 = vmatmul.bf16.gmra.mxu0 %v6464
        %v7318 = vpop.f32.mrf.mxu0
        %v7319 = vadd.f32 %v6990, %v7318
        %v7320 = vpop.f32.mrf.mxu0
        %v7321 = vadd.f32 %v6992, %v7320
        %7322 = vmatmul.bf16.gmra.mxu0 %v6468
        %v7323 = vpop.f32.mrf.mxu0
        %v7324 = vadd.f32 %v6995, %v7323
        %v7325 = vpop.f32.mrf.mxu0
        %v7326 = vadd.f32 %v6997, %v7325
        %7327 = vmatmul.bf16.gmra.mxu0 %v6472
        %v7328 = vpop.f32.mrf.mxu0
        %v7329 = vadd.f32 %v7000, %v7328
        %v7330 = vpop.f32.mrf.mxu0
        %v7331 = vadd.f32 %v7002, %v7330
        %7332 = vmatmul.bf16.gmra.mxu0 %v6476
        %v7333 = vpop.f32.mrf.mxu0
        %v7334 = vadd.f32 %v7005, %v7333
        %v7335 = vpop.f32.mrf.mxu0
        %v7336 = vadd.f32 %v7007, %v7335
        %7337 = vmatmul.bf16.gmra.mxu0 %v6480
        %v7338 = vpop.f32.mrf.mxu0
        %v7339 = vadd.f32 %v7010, %v7338
        %v7340 = vpop.f32.mrf.mxu0
        %v7341 = vadd.f32 %v7012, %v7340
        %7342 = vmatmul.bf16.gmra.mxu0 %v6484
        %v7343 = vpop.f32.mrf.mxu0
        %v7344 = vadd.f32 %v7015, %v7343
        %v7345 = vpop.f32.mrf.mxu0
        %v7346 = vadd.f32 %v7017, %v7345
        %7347 = vmatmul.bf16.gmra.mxu0 %v6488
        %v7348 = vpop.f32.mrf.mxu0
        %v7349 = vadd.f32 %v7020, %v7348
        %v7350 = vpop.f32.mrf.mxu0
        %v7351 = vadd.f32 %v7022, %v7350
        %7352 = vmatmul.bf16.gmra.mxu0 %v6492
        %v7353 = vpop.f32.mrf.mxu0
        %v7354 = vadd.f32 %v7025, %v7353
        %v7355 = vpop.f32.mrf.mxu0
        %v7356 = vadd.f32 %v7027, %v7355
        %7357 = vmatmul.bf16.gmra.mxu0 %v6496
        %v7358 = vpop.f32.mrf.mxu0
        %v7359 = vadd.f32 %v7030, %v7358
        %v7360 = vpop.f32.mrf.mxu0
        %v7361 = vadd.f32 %v7032, %v7360
        %7362 = vmatmul.bf16.gmra.mxu0 %v6500
        %v7363 = vpop.f32.mrf.mxu0
        %v7364 = vadd.f32 %v7035, %v7363
        %v7365 = vpop.f32.mrf.mxu0
        %v7366 = vadd.f32 %v7037, %v7365
        %7367 = vmatmul.bf16.gmra.mxu0 %v6504
        %v7368 = vpop.f32.mrf.mxu0
        %v7369 = vadd.f32 %v7040, %v7368
        %v7370 = vpop.f32.mrf.mxu0
        %v7371 = vadd.f32 %v7042, %v7370
        %7372 = vmatmul.bf16.gmra.mxu0 %v6508
        %v7373 = vpop.f32.mrf.mxu0
        %v7374 = vadd.f32 %v7045, %v7373
        %v7375 = vpop.f32.mrf.mxu0
        %v7376 = vadd.f32 %v7047, %v7375
        %7377 = vmatmul.bf16.gmra.mxu0 %v6512
        %v7378 = vpop.f32.mrf.mxu0
        %v7379 = vadd.f32 %v7050, %v7378
        %v7380 = vpop.f32.mrf.mxu0
        %v7381 = vadd.f32 %v7052, %v7380
        %7382 = vmatmul.bf16.gmra.mxu0 %v6516
        %v7383 = vpop.f32.mrf.mxu0
        %v7384 = vadd.f32 %v7055, %v7383
        %v7385 = vpop.f32.mrf.mxu0
        %v7386 = vadd.f32 %v7057, %v7385
        %7387 = vmatmul.bf16.gmra.mxu0 %v6520
        %v7388 = vpop.f32.mrf.mxu0
        %v7389 = vadd.f32 %v7060, %v7388
        %v7390 = vpop.f32.mrf.mxu0
        %v7391 = vadd.f32 %v7062, %v7390
        %7392 = vmatmul.bf16.gmra.mxu0 %v6524
        %v7393 = vpop.f32.mrf.mxu0
        %v7394 = vadd.f32 %v7065, %v7393
        %v7395 = vpop.f32.mrf.mxu0
        %v7396 = vadd.f32 %v7067, %v7395
        %7397 = vmatmul.bf16.gmra.mxu0 %v6528
        %v7398 = vpop.f32.mrf.mxu0
        %v7399 = vadd.f32 %v7070, %v7398
        %v7400 = vpop.f32.mrf.mxu0
        %v7401 = vadd.f32 %v7072, %v7400
        %7402 = vmatmul.bf16.gmra.mxu0 %v6532
        %v7403 = vpop.f32.mrf.mxu0
        %v7404 = vadd.f32 %v7075, %v7403
        %v7405 = vpop.f32.mrf.mxu0
        %v7406 = vadd.f32 %v7077, %v7405
        %7407 = vmatmul.bf16.gmra.mxu0 %v6536
        %v7408 = vpop.f32.mrf.mxu0
        %v7409 = vadd.f32 %v7080, %v7408
        %v7410 = vpop.f32.mrf.mxu0
        %v7411 = vadd.f32 %v7082, %v7410
        %7412 = vmatmul.bf16.gmra.mxu0 %v6540
        %v7413 = vpop.f32.mrf.mxu0
        %v7414 = vadd.f32 %v7085, %v7413
        %v7415 = vpop.f32.mrf.mxu0
        %v7416 = vadd.f32 %v7087, %v7415
        %7417 = vmatmul.bf16.gmra.mxu0 %v6544
        %v7418 = vpop.f32.mrf.mxu0
        %v7419 = vadd.f32 %v7090, %v7418
        %v7420 = vpop.f32.mrf.mxu0
        %v7421 = vadd.f32 %v7092, %v7420
        %7422 = vmatmul.bf16.gmra.mxu0 %v6548
        %v7423 = vpop.f32.mrf.mxu0
        %v7424 = vadd.f32 %v7095, %v7423
        %v7425 = vpop.f32.mrf.mxu0
        %v7426 = vadd.f32 %v7097, %v7425
        %7427 = vmatmul.bf16.gmra.mxu0 %v6552
        %v7428 = vpop.f32.mrf.mxu0
        %v7429 = vadd.f32 %v7100, %v7428
        %v7430 = vpop.f32.mrf.mxu0
        %v7431 = vadd.f32 %v7102, %v7430
        %7432 = vmatmul.bf16.gmra.mxu0 %v6556
        %v7433 = vpop.f32.mrf.mxu0
        %v7434 = vadd.f32 %v7105, %v7433
        %v7435 = vpop.f32.mrf.mxu0
        %v7436 = vadd.f32 %v7107, %v7435
        %7437 = vmatmul.bf16.gmra.mxu0 %v6560
        %v7438 = vpop.f32.mrf.mxu0
        %v7439 = vadd.f32 %v7110, %v7438
        %v7440 = vpop.f32.mrf.mxu0
        %v7441 = vadd.f32 %v7112, %v7440
        %7442 = vmatmul.bf16.gmra.mxu0 %v6564
        %v7443 = vpop.f32.mrf.mxu0
        %v7444 = vadd.f32 %v7115, %v7443
        %v7445 = vpop.f32.mrf.mxu0
        %v7446 = vadd.f32 %v7117, %v7445
        %7447 = vmatmul.bf16.gmra.mxu0 %v6568
        %v7448 = vpop.f32.mrf.mxu0
        %v7449 = vadd.f32 %v7120, %v7448
        %v7450 = vpop.f32.mrf.mxu0
        %v7451 = vadd.f32 %v7122, %v7450
        %7452 = vmatmul.bf16.gmra.mxu0 %v6572
        %v7453 = vpop.f32.mrf.mxu0
        %v7454 = vadd.f32 %v7125, %v7453
        %v7455 = vpop.f32.mrf.mxu0
        %v7456 = vadd.f32 %v7127, %v7455
        %7457 = vmatmul.bf16.gmra.mxu0 %v6576
        %v7458 = vpop.f32.mrf.mxu0
        %v7459 = vadd.f32 %v7130, %v7458
        %v7460 = vpop.f32.mrf.mxu0
        %v7461 = vadd.f32 %v7132, %v7460
        %7462 = vmatmul.bf16.gmra.mxu0 %v6580
        %v7463 = vpop.f32.mrf.mxu0
        %v7464 = vadd.f32 %v7135, %v7463
        %v7465 = vpop.f32.mrf.mxu0
        %v7466 = vadd.f32 %v7137, %v7465
        %7467 = vmatmul.bf16.gmra.mxu0 %v6584
        %v7468 = vpop.f32.mrf.mxu0
        %v7469 = vadd.f32 %v7140, %v7468
        %v7470 = vpop.f32.mrf.mxu0
        %v7471 = vadd.f32 %v7142, %v7470
        %7472 = vmatmul.bf16.gmra.mxu0 %v6588
        %v7473 = vpop.f32.mrf.mxu0
        %v7474 = vadd.f32 %v7145, %v7473
        %v7475 = vpop.f32.mrf.mxu0
        %v7476 = vadd.f32 %v7147, %v7475
        %7477 = vmatmul.bf16.gmra.mxu0 %v6592
        %v7478 = vpop.f32.mrf.mxu0
        %v7479 = vadd.f32 %v7150, %v7478
        %v7480 = vpop.f32.mrf.mxu0
        %v7481 = vadd.f32 %v7152, %v7480
        %7482 = vmatmul.bf16.gmra.mxu0 %v6596
        %v7483 = vpop.f32.mrf.mxu0
        %v7484 = vadd.f32 %v7155, %v7483
        %v7485 = vpop.f32.mrf.mxu0
        %v7486 = vadd.f32 %v7157, %v7485
        %7487 = vmatmul.bf16.gmra.mxu0 %v6600
        %v7488 = vpop.f32.mrf.mxu0
        %v7489 = vadd.f32 %v7160, %v7488
        %v7490 = vpop.f32.mrf.mxu0
        %v7491 = vadd.f32 %v7162, %v7490
        %7492 = vmatmul.bf16.gmra.mxu0 %v6604
        %v7493 = vpop.f32.mrf.mxu0
        %v7494 = vadd.f32 %v7165, %v7493
        %v7495 = vpop.f32.mrf.mxu0
        %v7496 = vadd.f32 %v7167, %v7495
        %7497 = vmatmul.bf16.gmra.mxu0 %v6608
        %v7498 = vpop.f32.mrf.mxu0
        %v7499 = vadd.f32 %v7170, %v7498
        %v7500 = vpop.f32.mrf.mxu0
        %v7501 = vadd.f32 %v7172, %v7500
        %7502 = vmatmul.bf16.gmra.mxu0 %v6612
        %v7503 = vpop.f32.mrf.mxu0
        %v7504 = vadd.f32 %v7175, %v7503
        %v7505 = vpop.f32.mrf.mxu0
        %v7506 = vadd.f32 %v7177, %v7505
        %7507 = vmatmul.bf16.gmra.mxu0 %v6616
        %v7508 = vpop.f32.mrf.mxu0
        %v7509 = vadd.f32 %v7180, %v7508
        %v7510 = vpop.f32.mrf.mxu0
        %v7511 = vadd.f32 %v7182, %v7510
        %7512 = vmatmul.bf16.gmra.mxu0 %v6620
        %v7513 = vpop.f32.mrf.mxu0
        %v7514 = vadd.f32 %v7185, %v7513
        %v7515 = vpop.f32.mrf.mxu0
        %v7516 = vadd.f32 %v7187, %v7515
        %7517 = vmatmul.bf16.gmra.mxu0 %v6624
        %v7518 = vpop.f32.mrf.mxu0
        %v7519 = vadd.f32 %v7190, %v7518
        %v7520 = vpop.f32.mrf.mxu0
        %v7521 = vadd.f32 %v7192, %v7520
        %7522 = vmatmul.bf16.gmra.mxu0 %v6628
        %v7523 = vpop.f32.mrf.mxu0
        %v7524 = vadd.f32 %v7195, %v7523
        %v7525 = vpop.f32.mrf.mxu0
        %v7526 = vadd.f32 %v7197, %v7525
        %7527 = vmatmul.bf16.gmra.mxu0 %v6632
        %v7528 = vpop.f32.mrf.mxu0
        %v7529 = vadd.f32 %v7200, %v7528
        %v7530 = vpop.f32.mrf.mxu0
        %v7531 = vadd.f32 %v7202, %v7530
        %7532 = vmatmul.bf16.gmra.mxu0 %v6636
        %v7533 = vpop.f32.mrf.mxu0
        %v7534 = vadd.f32 %v7205, %v7533
        %v7535 = vpop.f32.mrf.mxu0
        %v7536 = vadd.f32 %v7207, %v7535
        %7537 = vmatmul.bf16.gmra.mxu0 %v6640
        %v7538 = vpop.f32.mrf.mxu0
        %v7539 = vadd.f32 %v7210, %v7538
        %v7540 = vpop.f32.mrf.mxu0
        %v7541 = vadd.f32 %v7212, %v7540
        %7542 = vmatmul.bf16.gmra.mxu0 %v6644
        %v7543 = vpop.f32.mrf.mxu0
        %v7544 = vadd.f32 %v7215, %v7543
        %v7545 = vpop.f32.mrf.mxu0
        %v7546 = vadd.f32 %v7217, %v7545
        %7547 = vmatmul.bf16.gmra.mxu0 %v6648
        %v7548 = vpop.f32.mrf.mxu0
        %v7549 = vadd.f32 %v7220, %v7548
        %v7550 = vpop.f32.mrf.mxu0
        %v7551 = vadd.f32 %v7222, %v7550
        %7552 = vmatmul.bf16.gmra.mxu0 %v6652
        %v7553 = vpop.f32.mrf.mxu0
        %v7554 = vadd.f32 %v7225, %v7553
        %v7555 = vpop.f32.mrf.mxu0
        %v7556 = vadd.f32 %v7227, %v7555
        %7557 = vmatmul.bf16.gmra.mxu0 %v6656
        %v7558 = vpop.f32.mrf.mxu0
        %v7559 = vadd.f32 %v7230, %v7558
        %v7560 = vpop.f32.mrf.mxu0
        %v7561 = vadd.f32 %v7232, %v7560
        %7562 = vmatmul.bf16.gmra.mxu0 %v6660
        %v7563 = vpop.f32.mrf.mxu0
        %v7564 = vadd.f32 %v7235, %v7563
        %v7565 = vpop.f32.mrf.mxu0
        %v7566 = vadd.f32 %v7237, %v7565
        %7567 = vmatmul.bf16.gmra.mxu0 %v6664
        %v7568 = vpop.f32.mrf.mxu0
        %v7569 = vadd.f32 %v7240, %v7568
        %v7570 = vpop.f32.mrf.mxu0
        %v7571 = vadd.f32 %v7242, %v7570
        %7572 = vmatmul.bf16.gmra.mxu0 %v6668
        %v7573 = vpop.f32.mrf.mxu0
        %v7574 = vadd.f32 %v7245, %v7573
        %v7575 = vpop.f32.mrf.mxu0
        %v7576 = vadd.f32 %v7247, %v7575
        %7577 = vmatmul.bf16.gmra.mxu0 %v6672
        %v7578 = vpop.f32.mrf.mxu0
        %v7579 = vadd.f32 %v7250, %v7578
        %v7580 = vpop.f32.mrf.mxu0
        %v7581 = vadd.f32 %v7252, %v7580
        %7582 = vmatmul.bf16.gmra.mxu0 %v6676
        %v7583 = vpop.f32.mrf.mxu0
        %v7584 = vadd.f32 %v7255, %v7583
        %v7585 = vpop.f32.mrf.mxu0
        %v7586 = vadd.f32 %v7257, %v7585
        %7587 = vmatmul.bf16.gmra.mxu0 %v6680
        %v7588 = vpop.f32.mrf.mxu0
        %v7589 = vadd.f32 %v7260, %v7588
        %v7590 = vpop.f32.mrf.mxu0
        %v7591 = vadd.f32 %v7262, %v7590
        %7592 = vmatmul.bf16.gmra.mxu0 %v6684
        %v7593 = vpop.f32.mrf.mxu0
        %v7594 = vadd.f32 %v7265, %v7593
        %v7595 = vpop.f32.mrf.mxu0
        %v7596 = vadd.f32 %v7267, %v7595
        %7597 = vmatmul.bf16.gmra.mxu0 %v6688
        %v7598 = vpop.f32.mrf.mxu0
        %v7599 = vadd.f32 %v7270, %v7598
        %v7600 = vpop.f32.mrf.mxu0
        %v7601 = vadd.f32 %v7272, %v7600
        %7602 = vmatmul.bf16.gmra.mxu0 %v6692
        %v7603 = vpop.f32.mrf.mxu0
        %v7604 = vadd.f32 %v7275, %v7603
        %v7605 = vpop.f32.mrf.mxu0
        %v7606 = vadd.f32 %v7277, %v7605
        %7607 = vmatmul.bf16.gmra.mxu0 %v6696
        %v7608 = vpop.f32.mrf.mxu0
        %v7609 = vadd.f32 %v7280, %v7608
        %v7610 = vpop.f32.mrf.mxu0
        %v7611 = vadd.f32 %v7282, %v7610
        %7612 = vdwg.mxu0
        %7613 = vmatpush.bf16.msra.mxu0 %v4889
        %7614 = vmatpush.bf16.msra.mxu0 %v4887
        %7615 = vmatpush.bf16.msra.mxu0 %v4885
        %7616 = vmatpush.bf16.msra.mxu0 %v4883
        %7617 = vmatpush.bf16.msra.mxu0 %v4881
        %7618 = vmatpush.bf16.msra.mxu0 %v4879
        %7619 = vmatpush.bf16.msra.mxu0 %v4877
        %7620 = vmatpush.bf16.msra.mxu0 %v4875
        %7621 = vmatmul.bf16.gmra.mxu0 %v6445
        %v7622 = vpop.f32.mrf.mxu0
        %v7623 = vadd.f32 %v7294, %v7622
        %v7624 = vpop.f32.mrf.mxu0
        %v7625 = vadd.f32 %v7296, %v7624
        %7626 = vmatmul.bf16.gmra.mxu0 %v6449
        %v7627 = vpop.f32.mrf.mxu0
        %v7628 = vadd.f32 %v7299, %v7627
        %v7629 = vpop.f32.mrf.mxu0
        %v7630 = vadd.f32 %v7301, %v7629
        %7631 = vmatmul.bf16.gmra.mxu0 %v6453
        %v7632 = vpop.f32.mrf.mxu0
        %v7633 = vadd.f32 %v7304, %v7632
        %v7634 = vpop.f32.mrf.mxu0
        %v7635 = vadd.f32 %v7306, %v7634
        %7636 = vmatmul.bf16.gmra.mxu0 %v6457
        %v7637 = vpop.f32.mrf.mxu0
        %v7638 = vadd.f32 %v7309, %v7637
        %v7639 = vpop.f32.mrf.mxu0
        %v7640 = vadd.f32 %v7311, %v7639
        %7641 = vmatmul.bf16.gmra.mxu0 %v6461
        %v7642 = vpop.f32.mrf.mxu0
        %v7643 = vadd.f32 %v7314, %v7642
        %v7644 = vpop.f32.mrf.mxu0
        %v7645 = vadd.f32 %v7316, %v7644
        %7646 = vmatmul.bf16.gmra.mxu0 %v6465
        %v7647 = vpop.f32.mrf.mxu0
        %v7648 = vadd.f32 %v7319, %v7647
        %v7649 = vpop.f32.mrf.mxu0
        %v7650 = vadd.f32 %v7321, %v7649
        %7651 = vmatmul.bf16.gmra.mxu0 %v6469
        %v7652 = vpop.f32.mrf.mxu0
        %v7653 = vadd.f32 %v7324, %v7652
        %v7654 = vpop.f32.mrf.mxu0
        %v7655 = vadd.f32 %v7326, %v7654
        %7656 = vmatmul.bf16.gmra.mxu0 %v6473
        %v7657 = vpop.f32.mrf.mxu0
        %v7658 = vadd.f32 %v7329, %v7657
        %v7659 = vpop.f32.mrf.mxu0
        %v7660 = vadd.f32 %v7331, %v7659
        %7661 = vmatmul.bf16.gmra.mxu0 %v6477
        %v7662 = vpop.f32.mrf.mxu0
        %v7663 = vadd.f32 %v7334, %v7662
        %v7664 = vpop.f32.mrf.mxu0
        %v7665 = vadd.f32 %v7336, %v7664
        %7666 = vmatmul.bf16.gmra.mxu0 %v6481
        %v7667 = vpop.f32.mrf.mxu0
        %v7668 = vadd.f32 %v7339, %v7667
        %v7669 = vpop.f32.mrf.mxu0
        %v7670 = vadd.f32 %v7341, %v7669
        %7671 = vmatmul.bf16.gmra.mxu0 %v6485
        %v7672 = vpop.f32.mrf.mxu0
        %v7673 = vadd.f32 %v7344, %v7672
        %v7674 = vpop.f32.mrf.mxu0
        %v7675 = vadd.f32 %v7346, %v7674
        %7676 = vmatmul.bf16.gmra.mxu0 %v6489
        %v7677 = vpop.f32.mrf.mxu0
        %v7678 = vadd.f32 %v7349, %v7677
        %v7679 = vpop.f32.mrf.mxu0
        %v7680 = vadd.f32 %v7351, %v7679
        %7681 = vmatmul.bf16.gmra.mxu0 %v6493
        %v7682 = vpop.f32.mrf.mxu0
        %v7683 = vadd.f32 %v7354, %v7682
        %v7684 = vpop.f32.mrf.mxu0
        %v7685 = vadd.f32 %v7356, %v7684
        %7686 = vmatmul.bf16.gmra.mxu0 %v6497
        %v7687 = vpop.f32.mrf.mxu0
        %v7688 = vadd.f32 %v7359, %v7687
        %v7689 = vpop.f32.mrf.mxu0
        %v7690 = vadd.f32 %v7361, %v7689
        %7691 = vmatmul.bf16.gmra.mxu0 %v6501
        %v7692 = vpop.f32.mrf.mxu0
        %v7693 = vadd.f32 %v7364, %v7692
        %v7694 = vpop.f32.mrf.mxu0
        %v7695 = vadd.f32 %v7366, %v7694
        %7696 = vmatmul.bf16.gmra.mxu0 %v6505
        %v7697 = vpop.f32.mrf.mxu0
        %v7698 = vadd.f32 %v7369, %v7697
        %v7699 = vpop.f32.mrf.mxu0
        %v7700 = vadd.f32 %v7371, %v7699
        %7701 = vmatmul.bf16.gmra.mxu0 %v6509
        %v7702 = vpop.f32.mrf.mxu0
        %v7703 = vadd.f32 %v7374, %v7702
        %v7704 = vpop.f32.mrf.mxu0
        %v7705 = vadd.f32 %v7376, %v7704
        %7706 = vmatmul.bf16.gmra.mxu0 %v6513
        %v7707 = vpop.f32.mrf.mxu0
        %v7708 = vadd.f32 %v7379, %v7707
        %v7709 = vpop.f32.mrf.mxu0
        %v7710 = vadd.f32 %v7381, %v7709
        %7711 = vmatmul.bf16.gmra.mxu0 %v6517
        %v7712 = vpop.f32.mrf.mxu0
        %v7713 = vadd.f32 %v7384, %v7712
        %v7714 = vpop.f32.mrf.mxu0
        %v7715 = vadd.f32 %v7386, %v7714
        %7716 = vmatmul.bf16.gmra.mxu0 %v6521
        %v7717 = vpop.f32.mrf.mxu0
        %v7718 = vadd.f32 %v7389, %v7717
        %v7719 = vpop.f32.mrf.mxu0
        %v7720 = vadd.f32 %v7391, %v7719
        %7721 = vmatmul.bf16.gmra.mxu0 %v6525
        %v7722 = vpop.f32.mrf.mxu0
        %v7723 = vadd.f32 %v7394, %v7722
        %v7724 = vpop.f32.mrf.mxu0
        %v7725 = vadd.f32 %v7396, %v7724
        %7726 = vmatmul.bf16.gmra.mxu0 %v6529
        %v7727 = vpop.f32.mrf.mxu0
        %v7728 = vadd.f32 %v7399, %v7727
        %v7729 = vpop.f32.mrf.mxu0
        %v7730 = vadd.f32 %v7401, %v7729
        %7731 = vmatmul.bf16.gmra.mxu0 %v6533
        %v7732 = vpop.f32.mrf.mxu0
        %v7733 = vadd.f32 %v7404, %v7732
        %v7734 = vpop.f32.mrf.mxu0
        %v7735 = vadd.f32 %v7406, %v7734
        %7736 = vmatmul.bf16.gmra.mxu0 %v6537
        %v7737 = vpop.f32.mrf.mxu0
        %v7738 = vadd.f32 %v7409, %v7737
        %v7739 = vpop.f32.mrf.mxu0
        %v7740 = vadd.f32 %v7411, %v7739
        %7741 = vmatmul.bf16.gmra.mxu0 %v6541
        %v7742 = vpop.f32.mrf.mxu0
        %v7743 = vadd.f32 %v7414, %v7742
        %v7744 = vpop.f32.mrf.mxu0
        %v7745 = vadd.f32 %v7416, %v7744
        %7746 = vmatmul.bf16.gmra.mxu0 %v6545
        %v7747 = vpop.f32.mrf.mxu0
        %v7748 = vadd.f32 %v7419, %v7747
        %v7749 = vpop.f32.mrf.mxu0
        %v7750 = vadd.f32 %v7421, %v7749
        %7751 = vmatmul.bf16.gmra.mxu0 %v6549
        %v7752 = vpop.f32.mrf.mxu0
        %v7753 = vadd.f32 %v7424, %v7752
        %v7754 = vpop.f32.mrf.mxu0
        %v7755 = vadd.f32 %v7426, %v7754
        %7756 = vmatmul.bf16.gmra.mxu0 %v6553
        %v7757 = vpop.f32.mrf.mxu0
        %v7758 = vadd.f32 %v7429, %v7757
        %v7759 = vpop.f32.mrf.mxu0
        %v7760 = vadd.f32 %v7431, %v7759
        %7761 = vmatmul.bf16.gmra.mxu0 %v6557
        %v7762 = vpop.f32.mrf.mxu0
        %v7763 = vadd.f32 %v7434, %v7762
        %v7764 = vpop.f32.mrf.mxu0
        %v7765 = vadd.f32 %v7436, %v7764
        %7766 = vmatmul.bf16.gmra.mxu0 %v6561
        %v7767 = vpop.f32.mrf.mxu0
        %v7768 = vadd.f32 %v7439, %v7767
        %v7769 = vpop.f32.mrf.mxu0
        %v7770 = vadd.f32 %v7441, %v7769
        %7771 = vmatmul.bf16.gmra.mxu0 %v6565
        %v7772 = vpop.f32.mrf.mxu0
        %v7773 = vadd.f32 %v7444, %v7772
        %v7774 = vpop.f32.mrf.mxu0
        %v7775 = vadd.f32 %v7446, %v7774
        %7776 = vmatmul.bf16.gmra.mxu0 %v6569
        %v7777 = vpop.f32.mrf.mxu0
        %v7778 = vadd.f32 %v7449, %v7777
        %v7779 = vpop.f32.mrf.mxu0
        %v7780 = vadd.f32 %v7451, %v7779
        %7781 = vmatmul.bf16.gmra.mxu0 %v6573
        %v7782 = vpop.f32.mrf.mxu0
        %v7783 = vadd.f32 %v7454, %v7782
        %v7784 = vpop.f32.mrf.mxu0
        %v7785 = vadd.f32 %v7456, %v7784
        %7786 = vmatmul.bf16.gmra.mxu0 %v6577
        %v7787 = vpop.f32.mrf.mxu0
        %v7788 = vadd.f32 %v7459, %v7787
        %v7789 = vpop.f32.mrf.mxu0
        %v7790 = vadd.f32 %v7461, %v7789
        %7791 = vmatmul.bf16.gmra.mxu0 %v6581
        %v7792 = vpop.f32.mrf.mxu0
        %v7793 = vadd.f32 %v7464, %v7792
        %v7794 = vpop.f32.mrf.mxu0
        %v7795 = vadd.f32 %v7466, %v7794
        %7796 = vmatmul.bf16.gmra.mxu0 %v6585
        %v7797 = vpop.f32.mrf.mxu0
        %v7798 = vadd.f32 %v7469, %v7797
        %v7799 = vpop.f32.mrf.mxu0
        %v7800 = vadd.f32 %v7471, %v7799
        %7801 = vmatmul.bf16.gmra.mxu0 %v6589
        %v7802 = vpop.f32.mrf.mxu0
        %v7803 = vadd.f32 %v7474, %v7802
        %v7804 = vpop.f32.mrf.mxu0
        %v7805 = vadd.f32 %v7476, %v7804
        %7806 = vmatmul.bf16.gmra.mxu0 %v6593
        %v7807 = vpop.f32.mrf.mxu0
        %v7808 = vadd.f32 %v7479, %v7807
        %v7809 = vpop.f32.mrf.mxu0
        %v7810 = vadd.f32 %v7481, %v7809
        %7811 = vmatmul.bf16.gmra.mxu0 %v6597
        %v7812 = vpop.f32.mrf.mxu0
        %v7813 = vadd.f32 %v7484, %v7812
        %v7814 = vpop.f32.mrf.mxu0
        %v7815 = vadd.f32 %v7486, %v7814
        %7816 = vmatmul.bf16.gmra.mxu0 %v6601
        %v7817 = vpop.f32.mrf.mxu0
        %v7818 = vadd.f32 %v7489, %v7817
        %v7819 = vpop.f32.mrf.mxu0
        %v7820 = vadd.f32 %v7491, %v7819
        %7821 = vmatmul.bf16.gmra.mxu0 %v6605
        %v7822 = vpop.f32.mrf.mxu0
        %v7823 = vadd.f32 %v7494, %v7822
        %v7824 = vpop.f32.mrf.mxu0
        %v7825 = vadd.f32 %v7496, %v7824
        %7826 = vmatmul.bf16.gmra.mxu0 %v6609
        %v7827 = vpop.f32.mrf.mxu0
        %v7828 = vadd.f32 %v7499, %v7827
        %v7829 = vpop.f32.mrf.mxu0
        %v7830 = vadd.f32 %v7501, %v7829
        %7831 = vmatmul.bf16.gmra.mxu0 %v6613
        %v7832 = vpop.f32.mrf.mxu0
        %v7833 = vadd.f32 %v7504, %v7832
        %v7834 = vpop.f32.mrf.mxu0
        %v7835 = vadd.f32 %v7506, %v7834
        %7836 = vmatmul.bf16.gmra.mxu0 %v6617
        %v7837 = vpop.f32.mrf.mxu0
        %v7838 = vadd.f32 %v7509, %v7837
        %v7839 = vpop.f32.mrf.mxu0
        %v7840 = vadd.f32 %v7511, %v7839
        %7841 = vmatmul.bf16.gmra.mxu0 %v6621
        %v7842 = vpop.f32.mrf.mxu0
        %v7843 = vadd.f32 %v7514, %v7842
        %v7844 = vpop.f32.mrf.mxu0
        %v7845 = vadd.f32 %v7516, %v7844
        %7846 = vmatmul.bf16.gmra.mxu0 %v6625
        %v7847 = vpop.f32.mrf.mxu0
        %v7848 = vadd.f32 %v7519, %v7847
        %v7849 = vpop.f32.mrf.mxu0
        %v7850 = vadd.f32 %v7521, %v7849
        %7851 = vmatmul.bf16.gmra.mxu0 %v6629
        %v7852 = vpop.f32.mrf.mxu0
        %v7853 = vadd.f32 %v7524, %v7852
        %v7854 = vpop.f32.mrf.mxu0
        %v7855 = vadd.f32 %v7526, %v7854
        %7856 = vmatmul.bf16.gmra.mxu0 %v6633
        %v7857 = vpop.f32.mrf.mxu0
        %v7858 = vadd.f32 %v7529, %v7857
        %v7859 = vpop.f32.mrf.mxu0
        %v7860 = vadd.f32 %v7531, %v7859
        %7861 = vmatmul.bf16.gmra.mxu0 %v6637
        %v7862 = vpop.f32.mrf.mxu0
        %v7863 = vadd.f32 %v7534, %v7862
        %v7864 = vpop.f32.mrf.mxu0
        %v7865 = vadd.f32 %v7536, %v7864
        %7866 = vmatmul.bf16.gmra.mxu0 %v6641
        %v7867 = vpop.f32.mrf.mxu0
        %v7868 = vadd.f32 %v7539, %v7867
        %v7869 = vpop.f32.mrf.mxu0
        %v7870 = vadd.f32 %v7541, %v7869
        %7871 = vmatmul.bf16.gmra.mxu0 %v6645
        %v7872 = vpop.f32.mrf.mxu0
        %v7873 = vadd.f32 %v7544, %v7872
        %v7874 = vpop.f32.mrf.mxu0
        %v7875 = vadd.f32 %v7546, %v7874
        %7876 = vmatmul.bf16.gmra.mxu0 %v6649
        %v7877 = vpop.f32.mrf.mxu0
        %v7878 = vadd.f32 %v7549, %v7877
        %v7879 = vpop.f32.mrf.mxu0
        %v7880 = vadd.f32 %v7551, %v7879
        %7881 = vmatmul.bf16.gmra.mxu0 %v6653
        %v7882 = vpop.f32.mrf.mxu0
        %v7883 = vadd.f32 %v7554, %v7882
        %v7884 = vpop.f32.mrf.mxu0
        %v7885 = vadd.f32 %v7556, %v7884
        %7886 = vmatmul.bf16.gmra.mxu0 %v6657
        %v7887 = vpop.f32.mrf.mxu0
        %v7888 = vadd.f32 %v7559, %v7887
        %v7889 = vpop.f32.mrf.mxu0
        %v7890 = vadd.f32 %v7561, %v7889
        %7891 = vmatmul.bf16.gmra.mxu0 %v6661
        %v7892 = vpop.f32.mrf.mxu0
        %v7893 = vadd.f32 %v7564, %v7892
        %v7894 = vpop.f32.mrf.mxu0
        %v7895 = vadd.f32 %v7566, %v7894
        %7896 = vmatmul.bf16.gmra.mxu0 %v6665
        %v7897 = vpop.f32.mrf.mxu0
        %v7898 = vadd.f32 %v7569, %v7897
        %v7899 = vpop.f32.mrf.mxu0
        %v7900 = vadd.f32 %v7571, %v7899
        %7901 = vmatmul.bf16.gmra.mxu0 %v6669
        %v7902 = vpop.f32.mrf.mxu0
        %v7903 = vadd.f32 %v7574, %v7902
        %v7904 = vpop.f32.mrf.mxu0
        %v7905 = vadd.f32 %v7576, %v7904
        %7906 = vmatmul.bf16.gmra.mxu0 %v6673
        %v7907 = vpop.f32.mrf.mxu0
        %v7908 = vadd.f32 %v7579, %v7907
        %v7909 = vpop.f32.mrf.mxu0
        %v7910 = vadd.f32 %v7581, %v7909
        %7911 = vmatmul.bf16.gmra.mxu0 %v6677
        %v7912 = vpop.f32.mrf.mxu0
        %v7913 = vadd.f32 %v7584, %v7912
        %v7914 = vpop.f32.mrf.mxu0
        %v7915 = vadd.f32 %v7586, %v7914
        %7916 = vmatmul.bf16.gmra.mxu0 %v6681
        %v7917 = vpop.f32.mrf.mxu0
        %v7918 = vadd.f32 %v7589, %v7917
        %v7919 = vpop.f32.mrf.mxu0
        %v7920 = vadd.f32 %v7591, %v7919
        %7921 = vmatmul.bf16.gmra.mxu0 %v6685
        %v7922 = vpop.f32.mrf.mxu0
        %v7923 = vadd.f32 %v7594, %v7922
        %v7924 = vpop.f32.mrf.mxu0
        %v7925 = vadd.f32 %v7596, %v7924
        %7926 = vmatmul.bf16.gmra.mxu0 %v6689
        %v7927 = vpop.f32.mrf.mxu0
        %v7928 = vadd.f32 %v7599, %v7927
        %v7929 = vpop.f32.mrf.mxu0
        %v7930 = vadd.f32 %v7601, %v7929
        %7931 = vmatmul.bf16.gmra.mxu0 %v6693
        %v7932 = vpop.f32.mrf.mxu0
        %v7933 = vadd.f32 %v7604, %v7932
        %v7934 = vpop.f32.mrf.mxu0
        %v7935 = vadd.f32 %v7606, %v7934
        %7936 = vmatmul.bf16.gmra.mxu0 %v6697
        %v7937 = vpop.f32.mrf.mxu0
        %v7938 = vadd.f32 %v7609, %v7937
        %v7939 = vpop.f32.mrf.mxu0
        %v7940 = vadd.f32 %v7611, %v7939
        %7941 = vdwg.mxu0
        %7942 = vmatpush.bf16.msra.mxu0 %v4905
        %7943 = vmatpush.bf16.msra.mxu0 %v4903
        %7944 = vmatpush.bf16.msra.mxu0 %v4901
        %7945 = vmatpush.bf16.msra.mxu0 %v4899
        %7946 = vmatpush.bf16.msra.mxu0 %v4897
        %7947 = vmatpush.bf16.msra.mxu0 %v4895
        %7948 = vmatpush.bf16.msra.mxu0 %v4893
        %7949 = vmatpush.bf16.msra.mxu0 %v4891
        %7950 = vmatmul.bf16.gmra.mxu0 %v6446
        %v7951 = vpop.f32.mrf.mxu0
        %v7952 = vadd.f32 %v7623, %v7951
        %v7953 = vpop.f32.mrf.mxu0
        %v7954 = vadd.f32 %v7625, %v7953
        %7955 = vmatmul.bf16.gmra.mxu0 %v6450
        %v7956 = vpop.f32.mrf.mxu0
        %v7957 = vadd.f32 %v7628, %v7956
        %v7958 = vpop.f32.mrf.mxu0
        %v7959 = vadd.f32 %v7630, %v7958
        %7960 = vmatmul.bf16.gmra.mxu0 %v6454
        %v7961 = vpop.f32.mrf.mxu0
        %v7962 = vadd.f32 %v7633, %v7961
        %v7963 = vpop.f32.mrf.mxu0
        %v7964 = vadd.f32 %v7635, %v7963
        %7965 = vmatmul.bf16.gmra.mxu0 %v6458
        %v7966 = vpop.f32.mrf.mxu0
        %v7967 = vadd.f32 %v7638, %v7966
        %v7968 = vpop.f32.mrf.mxu0
        %v7969 = vadd.f32 %v7640, %v7968
        %7970 = vmatmul.bf16.gmra.mxu0 %v6462
        %v7971 = vpop.f32.mrf.mxu0
        %v7972 = vadd.f32 %v7643, %v7971
        %v7973 = vpop.f32.mrf.mxu0
        %v7974 = vadd.f32 %v7645, %v7973
        %7975 = vmatmul.bf16.gmra.mxu0 %v6466
        %v7976 = vpop.f32.mrf.mxu0
        %v7977 = vadd.f32 %v7648, %v7976
        %v7978 = vpop.f32.mrf.mxu0
        %v7979 = vadd.f32 %v7650, %v7978
        %7980 = vmatmul.bf16.gmra.mxu0 %v6470
        %v7981 = vpop.f32.mrf.mxu0
        %v7982 = vadd.f32 %v7653, %v7981
        %v7983 = vpop.f32.mrf.mxu0
        %v7984 = vadd.f32 %v7655, %v7983
        %7985 = vmatmul.bf16.gmra.mxu0 %v6474
        %v7986 = vpop.f32.mrf.mxu0
        %v7987 = vadd.f32 %v7658, %v7986
        %v7988 = vpop.f32.mrf.mxu0
        %v7989 = vadd.f32 %v7660, %v7988
        %7990 = vmatmul.bf16.gmra.mxu0 %v6478
        %v7991 = vpop.f32.mrf.mxu0
        %v7992 = vadd.f32 %v7663, %v7991
        %v7993 = vpop.f32.mrf.mxu0
        %v7994 = vadd.f32 %v7665, %v7993
        %7995 = vmatmul.bf16.gmra.mxu0 %v6482
        %v7996 = vpop.f32.mrf.mxu0
        %v7997 = vadd.f32 %v7668, %v7996
        %v7998 = vpop.f32.mrf.mxu0
        %v7999 = vadd.f32 %v7670, %v7998
        %8000 = vmatmul.bf16.gmra.mxu0 %v6486
        %v8001 = vpop.f32.mrf.mxu0
        %v8002 = vadd.f32 %v7673, %v8001
        %v8003 = vpop.f32.mrf.mxu0
        %v8004 = vadd.f32 %v7675, %v8003
        %8005 = vmatmul.bf16.gmra.mxu0 %v6490
        %v8006 = vpop.f32.mrf.mxu0
        %v8007 = vadd.f32 %v7678, %v8006
        %v8008 = vpop.f32.mrf.mxu0
        %v8009 = vadd.f32 %v7680, %v8008
        %8010 = vmatmul.bf16.gmra.mxu0 %v6494
        %v8011 = vpop.f32.mrf.mxu0
        %v8012 = vadd.f32 %v7683, %v8011
        %v8013 = vpop.f32.mrf.mxu0
        %v8014 = vadd.f32 %v7685, %v8013
        %8015 = vmatmul.bf16.gmra.mxu0 %v6498
        %v8016 = vpop.f32.mrf.mxu0
        %v8017 = vadd.f32 %v7688, %v8016
        %v8018 = vpop.f32.mrf.mxu0
        %v8019 = vadd.f32 %v7690, %v8018
        %8020 = vmatmul.bf16.gmra.mxu0 %v6502
        %v8021 = vpop.f32.mrf.mxu0
        %v8022 = vadd.f32 %v7693, %v8021
        %v8023 = vpop.f32.mrf.mxu0
        %v8024 = vadd.f32 %v7695, %v8023
        %8025 = vmatmul.bf16.gmra.mxu0 %v6506
        %v8026 = vpop.f32.mrf.mxu0
        %v8027 = vadd.f32 %v7698, %v8026
        %v8028 = vpop.f32.mrf.mxu0
        %v8029 = vadd.f32 %v7700, %v8028
        %8030 = vmatmul.bf16.gmra.mxu0 %v6510
        %v8031 = vpop.f32.mrf.mxu0
        %v8032 = vadd.f32 %v7703, %v8031
        %v8033 = vpop.f32.mrf.mxu0
        %v8034 = vadd.f32 %v7705, %v8033
        %8035 = vmatmul.bf16.gmra.mxu0 %v6514
        %v8036 = vpop.f32.mrf.mxu0
        %v8037 = vadd.f32 %v7708, %v8036
        %v8038 = vpop.f32.mrf.mxu0
        %v8039 = vadd.f32 %v7710, %v8038
        %8040 = vmatmul.bf16.gmra.mxu0 %v6518
        %v8041 = vpop.f32.mrf.mxu0
        %v8042 = vadd.f32 %v7713, %v8041
        %v8043 = vpop.f32.mrf.mxu0
        %v8044 = vadd.f32 %v7715, %v8043
        %8045 = vmatmul.bf16.gmra.mxu0 %v6522
        %v8046 = vpop.f32.mrf.mxu0
        %v8047 = vadd.f32 %v7718, %v8046
        %v8048 = vpop.f32.mrf.mxu0
        %v8049 = vadd.f32 %v7720, %v8048
        %8050 = vmatmul.bf16.gmra.mxu0 %v6526
        %v8051 = vpop.f32.mrf.mxu0
        %v8052 = vadd.f32 %v7723, %v8051
        %v8053 = vpop.f32.mrf.mxu0
        %v8054 = vadd.f32 %v7725, %v8053
        %8055 = vmatmul.bf16.gmra.mxu0 %v6530
        %v8056 = vpop.f32.mrf.mxu0
        %v8057 = vadd.f32 %v7728, %v8056
        %v8058 = vpop.f32.mrf.mxu0
        %v8059 = vadd.f32 %v7730, %v8058
        %8060 = vmatmul.bf16.gmra.mxu0 %v6534
        %v8061 = vpop.f32.mrf.mxu0
        %v8062 = vadd.f32 %v7733, %v8061
        %v8063 = vpop.f32.mrf.mxu0
        %v8064 = vadd.f32 %v7735, %v8063
        %8065 = vmatmul.bf16.gmra.mxu0 %v6538
        %v8066 = vpop.f32.mrf.mxu0
        %v8067 = vadd.f32 %v7738, %v8066
        %v8068 = vpop.f32.mrf.mxu0
        %v8069 = vadd.f32 %v7740, %v8068
        %8070 = vmatmul.bf16.gmra.mxu0 %v6542
        %v8071 = vpop.f32.mrf.mxu0
        %v8072 = vadd.f32 %v7743, %v8071
        %v8073 = vpop.f32.mrf.mxu0
        %v8074 = vadd.f32 %v7745, %v8073
        %8075 = vmatmul.bf16.gmra.mxu0 %v6546
        %v8076 = vpop.f32.mrf.mxu0
        %v8077 = vadd.f32 %v7748, %v8076
        %v8078 = vpop.f32.mrf.mxu0
        %v8079 = vadd.f32 %v7750, %v8078
        %8080 = vmatmul.bf16.gmra.mxu0 %v6550
        %v8081 = vpop.f32.mrf.mxu0
        %v8082 = vadd.f32 %v7753, %v8081
        %v8083 = vpop.f32.mrf.mxu0
        %v8084 = vadd.f32 %v7755, %v8083
        %8085 = vmatmul.bf16.gmra.mxu0 %v6554
        %v8086 = vpop.f32.mrf.mxu0
        %v8087 = vadd.f32 %v7758, %v8086
        %v8088 = vpop.f32.mrf.mxu0
        %v8089 = vadd.f32 %v7760, %v8088
        %8090 = vmatmul.bf16.gmra.mxu0 %v6558
        %v8091 = vpop.f32.mrf.mxu0
        %v8092 = vadd.f32 %v7763, %v8091
        %v8093 = vpop.f32.mrf.mxu0
        %v8094 = vadd.f32 %v7765, %v8093
        %8095 = vmatmul.bf16.gmra.mxu0 %v6562
        %v8096 = vpop.f32.mrf.mxu0
        %v8097 = vadd.f32 %v7768, %v8096
        %v8098 = vpop.f32.mrf.mxu0
        %v8099 = vadd.f32 %v7770, %v8098
        %8100 = vmatmul.bf16.gmra.mxu0 %v6566
        %v8101 = vpop.f32.mrf.mxu0
        %v8102 = vadd.f32 %v7773, %v8101
        %v8103 = vpop.f32.mrf.mxu0
        %v8104 = vadd.f32 %v7775, %v8103
        %8105 = vmatmul.bf16.gmra.mxu0 %v6570
        %v8106 = vpop.f32.mrf.mxu0
        %v8107 = vadd.f32 %v7778, %v8106
        %v8108 = vpop.f32.mrf.mxu0
        %v8109 = vadd.f32 %v7780, %v8108
        %8110 = vmatmul.bf16.gmra.mxu0 %v6574
        %v8111 = vpop.f32.mrf.mxu0
        %v8112 = vadd.f32 %v7783, %v8111
        %v8113 = vpop.f32.mrf.mxu0
        %v8114 = vadd.f32 %v7785, %v8113
        %8115 = vmatmul.bf16.gmra.mxu0 %v6578
        %v8116 = vpop.f32.mrf.mxu0
        %v8117 = vadd.f32 %v7788, %v8116
        %v8118 = vpop.f32.mrf.mxu0
        %v8119 = vadd.f32 %v7790, %v8118
        %8120 = vmatmul.bf16.gmra.mxu0 %v6582
        %v8121 = vpop.f32.mrf.mxu0
        %v8122 = vadd.f32 %v7793, %v8121
        %v8123 = vpop.f32.mrf.mxu0
        %v8124 = vadd.f32 %v7795, %v8123
        %8125 = vmatmul.bf16.gmra.mxu0 %v6586
        %v8126 = vpop.f32.mrf.mxu0
        %v8127 = vadd.f32 %v7798, %v8126
        %v8128 = vpop.f32.mrf.mxu0
        %v8129 = vadd.f32 %v7800, %v8128
        %8130 = vmatmul.bf16.gmra.mxu0 %v6590
        %v8131 = vpop.f32.mrf.mxu0
        %v8132 = vadd.f32 %v7803, %v8131
        %v8133 = vpop.f32.mrf.mxu0
        %v8134 = vadd.f32 %v7805, %v8133
        %8135 = vmatmul.bf16.gmra.mxu0 %v6594
        %v8136 = vpop.f32.mrf.mxu0
        %v8137 = vadd.f32 %v7808, %v8136
        %v8138 = vpop.f32.mrf.mxu0
        %v8139 = vadd.f32 %v7810, %v8138
        %8140 = vmatmul.bf16.gmra.mxu0 %v6598
        %v8141 = vpop.f32.mrf.mxu0
        %v8142 = vadd.f32 %v7813, %v8141
        %v8143 = vpop.f32.mrf.mxu0
        %v8144 = vadd.f32 %v7815, %v8143
        %8145 = vmatmul.bf16.gmra.mxu0 %v6602
        %v8146 = vpop.f32.mrf.mxu0
        %v8147 = vadd.f32 %v7818, %v8146
        %v8148 = vpop.f32.mrf.mxu0
        %v8149 = vadd.f32 %v7820, %v8148
        %8150 = vmatmul.bf16.gmra.mxu0 %v6606
        %v8151 = vpop.f32.mrf.mxu0
        %v8152 = vadd.f32 %v7823, %v8151
        %v8153 = vpop.f32.mrf.mxu0
        %v8154 = vadd.f32 %v7825, %v8153
        %8155 = vmatmul.bf16.gmra.mxu0 %v6610
        %v8156 = vpop.f32.mrf.mxu0
        %v8157 = vadd.f32 %v7828, %v8156
        %v8158 = vpop.f32.mrf.mxu0
        %v8159 = vadd.f32 %v7830, %v8158
        %8160 = vmatmul.bf16.gmra.mxu0 %v6614
        %v8161 = vpop.f32.mrf.mxu0
        %v8162 = vadd.f32 %v7833, %v8161
        %v8163 = vpop.f32.mrf.mxu0
        %v8164 = vadd.f32 %v7835, %v8163
        %8165 = vmatmul.bf16.gmra.mxu0 %v6618
        %v8166 = vpop.f32.mrf.mxu0
        %v8167 = vadd.f32 %v7838, %v8166
        %v8168 = vpop.f32.mrf.mxu0
        %v8169 = vadd.f32 %v7840, %v8168
        %8170 = vmatmul.bf16.gmra.mxu0 %v6622
        %v8171 = vpop.f32.mrf.mxu0
        %v8172 = vadd.f32 %v7843, %v8171
        %v8173 = vpop.f32.mrf.mxu0
        %v8174 = vadd.f32 %v7845, %v8173
        %8175 = vmatmul.bf16.gmra.mxu0 %v6626
        %v8176 = vpop.f32.mrf.mxu0
        %v8177 = vadd.f32 %v7848, %v8176
        %v8178 = vpop.f32.mrf.mxu0
        %v8179 = vadd.f32 %v7850, %v8178
        %8180 = vmatmul.bf16.gmra.mxu0 %v6630
        %v8181 = vpop.f32.mrf.mxu0
        %v8182 = vadd.f32 %v7853, %v8181
        %v8183 = vpop.f32.mrf.mxu0
        %v8184 = vadd.f32 %v7855, %v8183
        %8185 = vmatmul.bf16.gmra.mxu0 %v6634
        %v8186 = vpop.f32.mrf.mxu0
        %v8187 = vadd.f32 %v7858, %v8186
        %v8188 = vpop.f32.mrf.mxu0
        %v8189 = vadd.f32 %v7860, %v8188
        %8190 = vmatmul.bf16.gmra.mxu0 %v6638
        %v8191 = vpop.f32.mrf.mxu0
        %v8192 = vadd.f32 %v7863, %v8191
        %v8193 = vpop.f32.mrf.mxu0
        %v8194 = vadd.f32 %v7865, %v8193
        %8195 = vmatmul.bf16.gmra.mxu0 %v6642
        %v8196 = vpop.f32.mrf.mxu0
        %v8197 = vadd.f32 %v7868, %v8196
        %v8198 = vpop.f32.mrf.mxu0
        %v8199 = vadd.f32 %v7870, %v8198
        %8200 = vmatmul.bf16.gmra.mxu0 %v6646
        %v8201 = vpop.f32.mrf.mxu0
        %v8202 = vadd.f32 %v7873, %v8201
        %v8203 = vpop.f32.mrf.mxu0
        %v8204 = vadd.f32 %v7875, %v8203
        %8205 = vmatmul.bf16.gmra.mxu0 %v6650
        %v8206 = vpop.f32.mrf.mxu0
        %v8207 = vadd.f32 %v7878, %v8206
        %v8208 = vpop.f32.mrf.mxu0
        %v8209 = vadd.f32 %v7880, %v8208
        %8210 = vmatmul.bf16.gmra.mxu0 %v6654
        %v8211 = vpop.f32.mrf.mxu0
        %v8212 = vadd.f32 %v7883, %v8211
        %v8213 = vpop.f32.mrf.mxu0
        %v8214 = vadd.f32 %v7885, %v8213
        %8215 = vmatmul.bf16.gmra.mxu0 %v6658
        %v8216 = vpop.f32.mrf.mxu0
        %v8217 = vadd.f32 %v7888, %v8216
        %v8218 = vpop.f32.mrf.mxu0
        %v8219 = vadd.f32 %v7890, %v8218
        %8220 = vmatmul.bf16.gmra.mxu0 %v6662
        %v8221 = vpop.f32.mrf.mxu0
        %v8222 = vadd.f32 %v7893, %v8221
        %v8223 = vpop.f32.mrf.mxu0
        %v8224 = vadd.f32 %v7895, %v8223
        %8225 = vmatmul.bf16.gmra.mxu0 %v6666
        %v8226 = vpop.f32.mrf.mxu0
        %v8227 = vadd.f32 %v7898, %v8226
        %v8228 = vpop.f32.mrf.mxu0
        %v8229 = vadd.f32 %v7900, %v8228
        %8230 = vmatmul.bf16.gmra.mxu0 %v6670
        %v8231 = vpop.f32.mrf.mxu0
        %v8232 = vadd.f32 %v7903, %v8231
        %v8233 = vpop.f32.mrf.mxu0
        %v8234 = vadd.f32 %v7905, %v8233
        %8235 = vmatmul.bf16.gmra.mxu0 %v6674
        %v8236 = vpop.f32.mrf.mxu0
        %v8237 = vadd.f32 %v7908, %v8236
        %v8238 = vpop.f32.mrf.mxu0
        %v8239 = vadd.f32 %v7910, %v8238
        %8240 = vmatmul.bf16.gmra.mxu0 %v6678
        %v8241 = vpop.f32.mrf.mxu0
        %v8242 = vadd.f32 %v7913, %v8241
        %v8243 = vpop.f32.mrf.mxu0
        %v8244 = vadd.f32 %v7915, %v8243
        %8245 = vmatmul.bf16.gmra.mxu0 %v6682
        %v8246 = vpop.f32.mrf.mxu0
        %v8247 = vadd.f32 %v7918, %v8246
        %v8248 = vpop.f32.mrf.mxu0
        %v8249 = vadd.f32 %v7920, %v8248
        %8250 = vmatmul.bf16.gmra.mxu0 %v6686
        %v8251 = vpop.f32.mrf.mxu0
        %v8252 = vadd.f32 %v7923, %v8251
        %v8253 = vpop.f32.mrf.mxu0
        %v8254 = vadd.f32 %v7925, %v8253
        %8255 = vmatmul.bf16.gmra.mxu0 %v6690
        %v8256 = vpop.f32.mrf.mxu0
        %v8257 = vadd.f32 %v7928, %v8256
        %v8258 = vpop.f32.mrf.mxu0
        %v8259 = vadd.f32 %v7930, %v8258
        %8260 = vmatmul.bf16.gmra.mxu0 %v6694
        %v8261 = vpop.f32.mrf.mxu0
        %v8262 = vadd.f32 %v7933, %v8261
        %v8263 = vpop.f32.mrf.mxu0
        %v8264 = vadd.f32 %v7935, %v8263
        %8265 = vmatmul.bf16.gmra.mxu0 %v6698
        %v8266 = vpop.f32.mrf.mxu0
        %v8267 = vadd.f32 %v7938, %v8266
        %v8268 = vpop.f32.mrf.mxu0
        %v8269 = vadd.f32 %v7940, %v8268
        %8270 = vdwg.mxu0
        %8271 = vmatpush.bf16.msra.mxu0 %v4858
        %8272 = vmatpush.bf16.msra.mxu0 %v4856
        %8273 = vmatpush.bf16.msra.mxu0 %v4854
        %8274 = vmatpush.bf16.msra.mxu0 %v4852
        %8275 = vmatpush.bf16.msra.mxu0 %v4850
        %8276 = vmatpush.bf16.msra.mxu0 %v4848
        %8277 = vmatpush.bf16.msra.mxu0 %v4846
        %8278 = vmatpush.bf16.msra.mxu0 %v4844
        %8279 = vmatmul.bf16.gmra.mxu0 %v6443
        %v8280 = vpop.f32.mrf.mxu0
        %v8281 = vadd.f32 %v5038, %v8280
        %v8282 = vpop.f32.mrf.mxu0
        %v8283 = vadd.f32 %v5043, %v8282
        %8284 = vmatmul.bf16.gmra.mxu0 %v6447
        %v8285 = vpop.f32.mrf.mxu0
        %v8286 = vadd.f32 %v5048, %v8285
        %v8287 = vpop.f32.mrf.mxu0
        %v8288 = vadd.f32 %v5053, %v8287
        %8289 = vmatmul.bf16.gmra.mxu0 %v6451
        %v8290 = vpop.f32.mrf.mxu0
        %v8291 = vadd.f32 %v5058, %v8290
        %v8292 = vpop.f32.mrf.mxu0
        %v8293 = vadd.f32 %v5063, %v8292
        %8294 = vmatmul.bf16.gmra.mxu0 %v6455
        %v8295 = vpop.f32.mrf.mxu0
        %v8296 = vadd.f32 %v5068, %v8295
        %v8297 = vpop.f32.mrf.mxu0
        %v8298 = vadd.f32 %v5073, %v8297
        %8299 = vmatmul.bf16.gmra.mxu0 %v6459
        %v8300 = vpop.f32.mrf.mxu0
        %v8301 = vadd.f32 %v5078, %v8300
        %v8302 = vpop.f32.mrf.mxu0
        %v8303 = vadd.f32 %v5083, %v8302
        %8304 = vmatmul.bf16.gmra.mxu0 %v6463
        %v8305 = vpop.f32.mrf.mxu0
        %v8306 = vadd.f32 %v5088, %v8305
        %v8307 = vpop.f32.mrf.mxu0
        %v8308 = vadd.f32 %v5093, %v8307
        %8309 = vmatmul.bf16.gmra.mxu0 %v6467
        %v8310 = vpop.f32.mrf.mxu0
        %v8311 = vadd.f32 %v5098, %v8310
        %v8312 = vpop.f32.mrf.mxu0
        %v8313 = vadd.f32 %v5103, %v8312
        %8314 = vmatmul.bf16.gmra.mxu0 %v6471
        %v8315 = vpop.f32.mrf.mxu0
        %v8316 = vadd.f32 %v5108, %v8315
        %v8317 = vpop.f32.mrf.mxu0
        %v8318 = vadd.f32 %v5113, %v8317
        %8319 = vmatmul.bf16.gmra.mxu0 %v6475
        %v8320 = vpop.f32.mrf.mxu0
        %v8321 = vadd.f32 %v5118, %v8320
        %v8322 = vpop.f32.mrf.mxu0
        %v8323 = vadd.f32 %v5123, %v8322
        %8324 = vmatmul.bf16.gmra.mxu0 %v6479
        %v8325 = vpop.f32.mrf.mxu0
        %v8326 = vadd.f32 %v5128, %v8325
        %v8327 = vpop.f32.mrf.mxu0
        %v8328 = vadd.f32 %v5133, %v8327
        %8329 = vmatmul.bf16.gmra.mxu0 %v6483
        %v8330 = vpop.f32.mrf.mxu0
        %v8331 = vadd.f32 %v5138, %v8330
        %v8332 = vpop.f32.mrf.mxu0
        %v8333 = vadd.f32 %v5143, %v8332
        %8334 = vmatmul.bf16.gmra.mxu0 %v6487
        %v8335 = vpop.f32.mrf.mxu0
        %v8336 = vadd.f32 %v5148, %v8335
        %v8337 = vpop.f32.mrf.mxu0
        %v8338 = vadd.f32 %v5153, %v8337
        %8339 = vmatmul.bf16.gmra.mxu0 %v6491
        %v8340 = vpop.f32.mrf.mxu0
        %v8341 = vadd.f32 %v5158, %v8340
        %v8342 = vpop.f32.mrf.mxu0
        %v8343 = vadd.f32 %v5163, %v8342
        %8344 = vmatmul.bf16.gmra.mxu0 %v6495
        %v8345 = vpop.f32.mrf.mxu0
        %v8346 = vadd.f32 %v5168, %v8345
        %v8347 = vpop.f32.mrf.mxu0
        %v8348 = vadd.f32 %v5173, %v8347
        %8349 = vmatmul.bf16.gmra.mxu0 %v6499
        %v8350 = vpop.f32.mrf.mxu0
        %v8351 = vadd.f32 %v5178, %v8350
        %v8352 = vpop.f32.mrf.mxu0
        %v8353 = vadd.f32 %v5183, %v8352
        %8354 = vmatmul.bf16.gmra.mxu0 %v6503
        %v8355 = vpop.f32.mrf.mxu0
        %v8356 = vadd.f32 %v5188, %v8355
        %v8357 = vpop.f32.mrf.mxu0
        %v8358 = vadd.f32 %v5193, %v8357
        %8359 = vmatmul.bf16.gmra.mxu0 %v6507
        %v8360 = vpop.f32.mrf.mxu0
        %v8361 = vadd.f32 %v5198, %v8360
        %v8362 = vpop.f32.mrf.mxu0
        %v8363 = vadd.f32 %v5203, %v8362
        %8364 = vmatmul.bf16.gmra.mxu0 %v6511
        %v8365 = vpop.f32.mrf.mxu0
        %v8366 = vadd.f32 %v5208, %v8365
        %v8367 = vpop.f32.mrf.mxu0
        %v8368 = vadd.f32 %v5213, %v8367
        %8369 = vmatmul.bf16.gmra.mxu0 %v6515
        %v8370 = vpop.f32.mrf.mxu0
        %v8371 = vadd.f32 %v5218, %v8370
        %v8372 = vpop.f32.mrf.mxu0
        %v8373 = vadd.f32 %v5223, %v8372
        %8374 = vmatmul.bf16.gmra.mxu0 %v6519
        %v8375 = vpop.f32.mrf.mxu0
        %v8376 = vadd.f32 %v5228, %v8375
        %v8377 = vpop.f32.mrf.mxu0
        %v8378 = vadd.f32 %v5233, %v8377
        %8379 = vmatmul.bf16.gmra.mxu0 %v6523
        %v8380 = vpop.f32.mrf.mxu0
        %v8381 = vadd.f32 %v5238, %v8380
        %v8382 = vpop.f32.mrf.mxu0
        %v8383 = vadd.f32 %v5243, %v8382
        %8384 = vmatmul.bf16.gmra.mxu0 %v6527
        %v8385 = vpop.f32.mrf.mxu0
        %v8386 = vadd.f32 %v5248, %v8385
        %v8387 = vpop.f32.mrf.mxu0
        %v8388 = vadd.f32 %v5253, %v8387
        %8389 = vmatmul.bf16.gmra.mxu0 %v6531
        %v8390 = vpop.f32.mrf.mxu0
        %v8391 = vadd.f32 %v5258, %v8390
        %v8392 = vpop.f32.mrf.mxu0
        %v8393 = vadd.f32 %v5263, %v8392
        %8394 = vmatmul.bf16.gmra.mxu0 %v6535
        %v8395 = vpop.f32.mrf.mxu0
        %v8396 = vadd.f32 %v5268, %v8395
        %v8397 = vpop.f32.mrf.mxu0
        %v8398 = vadd.f32 %v5273, %v8397
        %8399 = vmatmul.bf16.gmra.mxu0 %v6539
        %v8400 = vpop.f32.mrf.mxu0
        %v8401 = vadd.f32 %v5278, %v8400
        %v8402 = vpop.f32.mrf.mxu0
        %v8403 = vadd.f32 %v5283, %v8402
        %8404 = vmatmul.bf16.gmra.mxu0 %v6543
        %v8405 = vpop.f32.mrf.mxu0
        %v8406 = vadd.f32 %v5288, %v8405
        %v8407 = vpop.f32.mrf.mxu0
        %v8408 = vadd.f32 %v5293, %v8407
        %8409 = vmatmul.bf16.gmra.mxu0 %v6547
        %v8410 = vpop.f32.mrf.mxu0
        %v8411 = vadd.f32 %v5298, %v8410
        %v8412 = vpop.f32.mrf.mxu0
        %v8413 = vadd.f32 %v5303, %v8412
        %8414 = vmatmul.bf16.gmra.mxu0 %v6551
        %v8415 = vpop.f32.mrf.mxu0
        %v8416 = vadd.f32 %v5308, %v8415
        %v8417 = vpop.f32.mrf.mxu0
        %v8418 = vadd.f32 %v5313, %v8417
        %8419 = vmatmul.bf16.gmra.mxu0 %v6555
        %v8420 = vpop.f32.mrf.mxu0
        %v8421 = vadd.f32 %v5318, %v8420
        %v8422 = vpop.f32.mrf.mxu0
        %v8423 = vadd.f32 %v5323, %v8422
        %8424 = vmatmul.bf16.gmra.mxu0 %v6559
        %v8425 = vpop.f32.mrf.mxu0
        %v8426 = vadd.f32 %v5328, %v8425
        %v8427 = vpop.f32.mrf.mxu0
        %v8428 = vadd.f32 %v5333, %v8427
        %8429 = vmatmul.bf16.gmra.mxu0 %v6563
        %v8430 = vpop.f32.mrf.mxu0
        %v8431 = vadd.f32 %v5338, %v8430
        %v8432 = vpop.f32.mrf.mxu0
        %v8433 = vadd.f32 %v5343, %v8432
        %8434 = vmatmul.bf16.gmra.mxu0 %v6567
        %v8435 = vpop.f32.mrf.mxu0
        %v8436 = vadd.f32 %v5348, %v8435
        %v8437 = vpop.f32.mrf.mxu0
        %v8438 = vadd.f32 %v5353, %v8437
        %8439 = vmatmul.bf16.gmra.mxu0 %v6571
        %v8440 = vpop.f32.mrf.mxu0
        %v8441 = vadd.f32 %v5358, %v8440
        %v8442 = vpop.f32.mrf.mxu0
        %v8443 = vadd.f32 %v5363, %v8442
        %8444 = vmatmul.bf16.gmra.mxu0 %v6575
        %v8445 = vpop.f32.mrf.mxu0
        %v8446 = vadd.f32 %v5368, %v8445
        %v8447 = vpop.f32.mrf.mxu0
        %v8448 = vadd.f32 %v5373, %v8447
        %8449 = vmatmul.bf16.gmra.mxu0 %v6579
        %v8450 = vpop.f32.mrf.mxu0
        %v8451 = vadd.f32 %v5378, %v8450
        %v8452 = vpop.f32.mrf.mxu0
        %v8453 = vadd.f32 %v5383, %v8452
        %8454 = vmatmul.bf16.gmra.mxu0 %v6583
        %v8455 = vpop.f32.mrf.mxu0
        %v8456 = vadd.f32 %v5388, %v8455
        %v8457 = vpop.f32.mrf.mxu0
        %v8458 = vadd.f32 %v5393, %v8457
        %8459 = vmatmul.bf16.gmra.mxu0 %v6587
        %v8460 = vpop.f32.mrf.mxu0
        %v8461 = vadd.f32 %v5398, %v8460
        %v8462 = vpop.f32.mrf.mxu0
        %v8463 = vadd.f32 %v5403, %v8462
        %8464 = vmatmul.bf16.gmra.mxu0 %v6591
        %v8465 = vpop.f32.mrf.mxu0
        %v8466 = vadd.f32 %v5408, %v8465
        %v8467 = vpop.f32.mrf.mxu0
        %v8468 = vadd.f32 %v5413, %v8467
        %8469 = vmatmul.bf16.gmra.mxu0 %v6595
        %v8470 = vpop.f32.mrf.mxu0
        %v8471 = vadd.f32 %v5418, %v8470
        %v8472 = vpop.f32.mrf.mxu0
        %v8473 = vadd.f32 %v5423, %v8472
        %8474 = vmatmul.bf16.gmra.mxu0 %v6599
        %v8475 = vpop.f32.mrf.mxu0
        %v8476 = vadd.f32 %v5428, %v8475
        %v8477 = vpop.f32.mrf.mxu0
        %v8478 = vadd.f32 %v5433, %v8477
        %8479 = vmatmul.bf16.gmra.mxu0 %v6603
        %v8480 = vpop.f32.mrf.mxu0
        %v8481 = vadd.f32 %v5438, %v8480
        %v8482 = vpop.f32.mrf.mxu0
        %v8483 = vadd.f32 %v5443, %v8482
        %8484 = vmatmul.bf16.gmra.mxu0 %v6607
        %v8485 = vpop.f32.mrf.mxu0
        %v8486 = vadd.f32 %v5448, %v8485
        %v8487 = vpop.f32.mrf.mxu0
        %v8488 = vadd.f32 %v5453, %v8487
        %8489 = vmatmul.bf16.gmra.mxu0 %v6611
        %v8490 = vpop.f32.mrf.mxu0
        %v8491 = vadd.f32 %v5458, %v8490
        %v8492 = vpop.f32.mrf.mxu0
        %v8493 = vadd.f32 %v5463, %v8492
        %8494 = vmatmul.bf16.gmra.mxu0 %v6615
        %v8495 = vpop.f32.mrf.mxu0
        %v8496 = vadd.f32 %v5468, %v8495
        %v8497 = vpop.f32.mrf.mxu0
        %v8498 = vadd.f32 %v5473, %v8497
        %8499 = vmatmul.bf16.gmra.mxu0 %v6619
        %v8500 = vpop.f32.mrf.mxu0
        %v8501 = vadd.f32 %v5478, %v8500
        %v8502 = vpop.f32.mrf.mxu0
        %v8503 = vadd.f32 %v5483, %v8502
        %8504 = vmatmul.bf16.gmra.mxu0 %v6623
        %v8505 = vpop.f32.mrf.mxu0
        %v8506 = vadd.f32 %v5488, %v8505
        %v8507 = vpop.f32.mrf.mxu0
        %v8508 = vadd.f32 %v5493, %v8507
        %8509 = vmatmul.bf16.gmra.mxu0 %v6627
        %v8510 = vpop.f32.mrf.mxu0
        %v8511 = vadd.f32 %v5498, %v8510
        %v8512 = vpop.f32.mrf.mxu0
        %v8513 = vadd.f32 %v5503, %v8512
        %8514 = vmatmul.bf16.gmra.mxu0 %v6631
        %v8515 = vpop.f32.mrf.mxu0
        %v8516 = vadd.f32 %v5508, %v8515
        %v8517 = vpop.f32.mrf.mxu0
        %v8518 = vadd.f32 %v5513, %v8517
        %8519 = vmatmul.bf16.gmra.mxu0 %v6635
        %v8520 = vpop.f32.mrf.mxu0
        %v8521 = vadd.f32 %v5518, %v8520
        %v8522 = vpop.f32.mrf.mxu0
        %v8523 = vadd.f32 %v5523, %v8522
        %8524 = vmatmul.bf16.gmra.mxu0 %v6639
        %v8525 = vpop.f32.mrf.mxu0
        %v8526 = vadd.f32 %v5528, %v8525
        %v8527 = vpop.f32.mrf.mxu0
        %v8528 = vadd.f32 %v5533, %v8527
        %8529 = vmatmul.bf16.gmra.mxu0 %v6643
        %v8530 = vpop.f32.mrf.mxu0
        %v8531 = vadd.f32 %v5538, %v8530
        %v8532 = vpop.f32.mrf.mxu0
        %v8533 = vadd.f32 %v5543, %v8532
        %8534 = vmatmul.bf16.gmra.mxu0 %v6647
        %v8535 = vpop.f32.mrf.mxu0
        %v8536 = vadd.f32 %v5548, %v8535
        %v8537 = vpop.f32.mrf.mxu0
        %v8538 = vadd.f32 %v5553, %v8537
        %8539 = vmatmul.bf16.gmra.mxu0 %v6651
        %v8540 = vpop.f32.mrf.mxu0
        %v8541 = vadd.f32 %v5558, %v8540
        %v8542 = vpop.f32.mrf.mxu0
        %v8543 = vadd.f32 %v5563, %v8542
        %8544 = vmatmul.bf16.gmra.mxu0 %v6655
        %v8545 = vpop.f32.mrf.mxu0
        %v8546 = vadd.f32 %v5568, %v8545
        %v8547 = vpop.f32.mrf.mxu0
        %v8548 = vadd.f32 %v5573, %v8547
        %8549 = vmatmul.bf16.gmra.mxu0 %v6659
        %v8550 = vpop.f32.mrf.mxu0
        %v8551 = vadd.f32 %v5578, %v8550
        %v8552 = vpop.f32.mrf.mxu0
        %v8553 = vadd.f32 %v5583, %v8552
        %8554 = vmatmul.bf16.gmra.mxu0 %v6663
        %v8555 = vpop.f32.mrf.mxu0
        %v8556 = vadd.f32 %v5588, %v8555
        %v8557 = vpop.f32.mrf.mxu0
        %v8558 = vadd.f32 %v5593, %v8557
        %8559 = vmatmul.bf16.gmra.mxu0 %v6667
        %v8560 = vpop.f32.mrf.mxu0
        %v8561 = vadd.f32 %v5598, %v8560
        %v8562 = vpop.f32.mrf.mxu0
        %v8563 = vadd.f32 %v5603, %v8562
        %8564 = vmatmul.bf16.gmra.mxu0 %v6671
        %v8565 = vpop.f32.mrf.mxu0
        %v8566 = vadd.f32 %v5608, %v8565
        %v8567 = vpop.f32.mrf.mxu0
        %v8568 = vadd.f32 %v5613, %v8567
        %8569 = vmatmul.bf16.gmra.mxu0 %v6675
        %v8570 = vpop.f32.mrf.mxu0
        %v8571 = vadd.f32 %v5618, %v8570
        %v8572 = vpop.f32.mrf.mxu0
        %v8573 = vadd.f32 %v5623, %v8572
        %8574 = vmatmul.bf16.gmra.mxu0 %v6679
        %v8575 = vpop.f32.mrf.mxu0
        %v8576 = vadd.f32 %v5628, %v8575
        %v8577 = vpop.f32.mrf.mxu0
        %v8578 = vadd.f32 %v5633, %v8577
        %8579 = vmatmul.bf16.gmra.mxu0 %v6683
        %v8580 = vpop.f32.mrf.mxu0
        %v8581 = vadd.f32 %v5638, %v8580
        %v8582 = vpop.f32.mrf.mxu0
        %v8583 = vadd.f32 %v5643, %v8582
        %8584 = vmatmul.bf16.gmra.mxu0 %v6687
        %v8585 = vpop.f32.mrf.mxu0
        %v8586 = vadd.f32 %v5648, %v8585
        %v8587 = vpop.f32.mrf.mxu0
        %v8588 = vadd.f32 %v5653, %v8587
        %8589 = vmatmul.bf16.gmra.mxu0 %v6691
        %v8590 = vpop.f32.mrf.mxu0
        %v8591 = vadd.f32 %v5658, %v8590
        %v8592 = vpop.f32.mrf.mxu0
        %v8593 = vadd.f32 %v5663, %v8592
        %8594 = vmatmul.bf16.gmra.mxu0 %v6695
        %v8595 = vpop.f32.mrf.mxu0
        %v8596 = vadd.f32 %v5668, %v8595
        %v8597 = vpop.f32.mrf.mxu0
        %v8598 = vadd.f32 %v5673, %v8597
        %8599 = vdwg.mxu0
        %8600 = vmatpush.bf16.msra.mxu0 %v4874
        %8601 = vmatpush.bf16.msra.mxu0 %v4872
        %8602 = vmatpush.bf16.msra.mxu0 %v4870
        %8603 = vmatpush.bf16.msra.mxu0 %v4868
        %8604 = vmatpush.bf16.msra.mxu0 %v4866
        %8605 = vmatpush.bf16.msra.mxu0 %v4864
        %8606 = vmatpush.bf16.msra.mxu0 %v4862
        %8607 = vmatpush.bf16.msra.mxu0 %v4860
        %8608 = vmatmul.bf16.gmra.mxu0 %v6444
        %v8609 = vpop.f32.mrf.mxu0
        %v8610 = vadd.f32 %v8281, %v8609
        %v8611 = vpop.f32.mrf.mxu0
        %v8612 = vadd.f32 %v8283, %v8611
        %8613 = vmatmul.bf16.gmra.mxu0 %v6448
        %v8614 = vpop.f32.mrf.mxu0
        %v8615 = vadd.f32 %v8286, %v8614
        %v8616 = vpop.f32.mrf.mxu0
        %v8617 = vadd.f32 %v8288, %v8616
        %8618 = vmatmul.bf16.gmra.mxu0 %v6452
        %v8619 = vpop.f32.mrf.mxu0
        %v8620 = vadd.f32 %v8291, %v8619
        %v8621 = vpop.f32.mrf.mxu0
        %v8622 = vadd.f32 %v8293, %v8621
        %8623 = vmatmul.bf16.gmra.mxu0 %v6456
        %v8624 = vpop.f32.mrf.mxu0
        %v8625 = vadd.f32 %v8296, %v8624
        %v8626 = vpop.f32.mrf.mxu0
        %v8627 = vadd.f32 %v8298, %v8626
        %8628 = vmatmul.bf16.gmra.mxu0 %v6460
        %v8629 = vpop.f32.mrf.mxu0
        %v8630 = vadd.f32 %v8301, %v8629
        %v8631 = vpop.f32.mrf.mxu0
        %v8632 = vadd.f32 %v8303, %v8631
        %8633 = vmatmul.bf16.gmra.mxu0 %v6464
        %v8634 = vpop.f32.mrf.mxu0
        %v8635 = vadd.f32 %v8306, %v8634
        %v8636 = vpop.f32.mrf.mxu0
        %v8637 = vadd.f32 %v8308, %v8636
        %8638 = vmatmul.bf16.gmra.mxu0 %v6468
        %v8639 = vpop.f32.mrf.mxu0
        %v8640 = vadd.f32 %v8311, %v8639
        %v8641 = vpop.f32.mrf.mxu0
        %v8642 = vadd.f32 %v8313, %v8641
        %8643 = vmatmul.bf16.gmra.mxu0 %v6472
        %v8644 = vpop.f32.mrf.mxu0
        %v8645 = vadd.f32 %v8316, %v8644
        %v8646 = vpop.f32.mrf.mxu0
        %v8647 = vadd.f32 %v8318, %v8646
        %8648 = vmatmul.bf16.gmra.mxu0 %v6476
        %v8649 = vpop.f32.mrf.mxu0
        %v8650 = vadd.f32 %v8321, %v8649
        %v8651 = vpop.f32.mrf.mxu0
        %v8652 = vadd.f32 %v8323, %v8651
        %8653 = vmatmul.bf16.gmra.mxu0 %v6480
        %v8654 = vpop.f32.mrf.mxu0
        %v8655 = vadd.f32 %v8326, %v8654
        %v8656 = vpop.f32.mrf.mxu0
        %v8657 = vadd.f32 %v8328, %v8656
        %8658 = vmatmul.bf16.gmra.mxu0 %v6484
        %v8659 = vpop.f32.mrf.mxu0
        %v8660 = vadd.f32 %v8331, %v8659
        %v8661 = vpop.f32.mrf.mxu0
        %v8662 = vadd.f32 %v8333, %v8661
        %8663 = vmatmul.bf16.gmra.mxu0 %v6488
        %v8664 = vpop.f32.mrf.mxu0
        %v8665 = vadd.f32 %v8336, %v8664
        %v8666 = vpop.f32.mrf.mxu0
        %v8667 = vadd.f32 %v8338, %v8666
        %8668 = vmatmul.bf16.gmra.mxu0 %v6492
        %v8669 = vpop.f32.mrf.mxu0
        %v8670 = vadd.f32 %v8341, %v8669
        %v8671 = vpop.f32.mrf.mxu0
        %v8672 = vadd.f32 %v8343, %v8671
        %8673 = vmatmul.bf16.gmra.mxu0 %v6496
        %v8674 = vpop.f32.mrf.mxu0
        %v8675 = vadd.f32 %v8346, %v8674
        %v8676 = vpop.f32.mrf.mxu0
        %v8677 = vadd.f32 %v8348, %v8676
        %8678 = vmatmul.bf16.gmra.mxu0 %v6500
        %v8679 = vpop.f32.mrf.mxu0
        %v8680 = vadd.f32 %v8351, %v8679
        %v8681 = vpop.f32.mrf.mxu0
        %v8682 = vadd.f32 %v8353, %v8681
        %8683 = vmatmul.bf16.gmra.mxu0 %v6504
        %v8684 = vpop.f32.mrf.mxu0
        %v8685 = vadd.f32 %v8356, %v8684
        %v8686 = vpop.f32.mrf.mxu0
        %v8687 = vadd.f32 %v8358, %v8686
        %8688 = vmatmul.bf16.gmra.mxu0 %v6508
        %v8689 = vpop.f32.mrf.mxu0
        %v8690 = vadd.f32 %v8361, %v8689
        %v8691 = vpop.f32.mrf.mxu0
        %v8692 = vadd.f32 %v8363, %v8691
        %8693 = vmatmul.bf16.gmra.mxu0 %v6512
        %v8694 = vpop.f32.mrf.mxu0
        %v8695 = vadd.f32 %v8366, %v8694
        %v8696 = vpop.f32.mrf.mxu0
        %v8697 = vadd.f32 %v8368, %v8696
        %8698 = vmatmul.bf16.gmra.mxu0 %v6516
        %v8699 = vpop.f32.mrf.mxu0
        %v8700 = vadd.f32 %v8371, %v8699
        %v8701 = vpop.f32.mrf.mxu0
        %v8702 = vadd.f32 %v8373, %v8701
        %8703 = vmatmul.bf16.gmra.mxu0 %v6520
        %v8704 = vpop.f32.mrf.mxu0
        %v8705 = vadd.f32 %v8376, %v8704
        %v8706 = vpop.f32.mrf.mxu0
        %v8707 = vadd.f32 %v8378, %v8706
        %8708 = vmatmul.bf16.gmra.mxu0 %v6524
        %v8709 = vpop.f32.mrf.mxu0
        %v8710 = vadd.f32 %v8381, %v8709
        %v8711 = vpop.f32.mrf.mxu0
        %v8712 = vadd.f32 %v8383, %v8711
        %8713 = vmatmul.bf16.gmra.mxu0 %v6528
        %v8714 = vpop.f32.mrf.mxu0
        %v8715 = vadd.f32 %v8386, %v8714
        %v8716 = vpop.f32.mrf.mxu0
        %v8717 = vadd.f32 %v8388, %v8716
        %8718 = vmatmul.bf16.gmra.mxu0 %v6532
        %v8719 = vpop.f32.mrf.mxu0
        %v8720 = vadd.f32 %v8391, %v8719
        %v8721 = vpop.f32.mrf.mxu0
        %v8722 = vadd.f32 %v8393, %v8721
        %8723 = vmatmul.bf16.gmra.mxu0 %v6536
        %v8724 = vpop.f32.mrf.mxu0
        %v8725 = vadd.f32 %v8396, %v8724
        %v8726 = vpop.f32.mrf.mxu0
        %v8727 = vadd.f32 %v8398, %v8726
        %8728 = vmatmul.bf16.gmra.mxu0 %v6540
        %v8729 = vpop.f32.mrf.mxu0
        %v8730 = vadd.f32 %v8401, %v8729
        %v8731 = vpop.f32.mrf.mxu0
        %v8732 = vadd.f32 %v8403, %v8731
        %8733 = vmatmul.bf16.gmra.mxu0 %v6544
        %v8734 = vpop.f32.mrf.mxu0
        %v8735 = vadd.f32 %v8406, %v8734
        %v8736 = vpop.f32.mrf.mxu0
        %v8737 = vadd.f32 %v8408, %v8736
        %8738 = vmatmul.bf16.gmra.mxu0 %v6548
        %v8739 = vpop.f32.mrf.mxu0
        %v8740 = vadd.f32 %v8411, %v8739
        %v8741 = vpop.f32.mrf.mxu0
        %v8742 = vadd.f32 %v8413, %v8741
        %8743 = vmatmul.bf16.gmra.mxu0 %v6552
        %v8744 = vpop.f32.mrf.mxu0
        %v8745 = vadd.f32 %v8416, %v8744
        %v8746 = vpop.f32.mrf.mxu0
        %v8747 = vadd.f32 %v8418, %v8746
        %8748 = vmatmul.bf16.gmra.mxu0 %v6556
        %v8749 = vpop.f32.mrf.mxu0
        %v8750 = vadd.f32 %v8421, %v8749
        %v8751 = vpop.f32.mrf.mxu0
        %v8752 = vadd.f32 %v8423, %v8751
        %8753 = vmatmul.bf16.gmra.mxu0 %v6560
        %v8754 = vpop.f32.mrf.mxu0
        %v8755 = vadd.f32 %v8426, %v8754
        %v8756 = vpop.f32.mrf.mxu0
        %v8757 = vadd.f32 %v8428, %v8756
        %8758 = vmatmul.bf16.gmra.mxu0 %v6564
        %v8759 = vpop.f32.mrf.mxu0
        %v8760 = vadd.f32 %v8431, %v8759
        %v8761 = vpop.f32.mrf.mxu0
        %v8762 = vadd.f32 %v8433, %v8761
        %8763 = vmatmul.bf16.gmra.mxu0 %v6568
        %v8764 = vpop.f32.mrf.mxu0
        %v8765 = vadd.f32 %v8436, %v8764
        %v8766 = vpop.f32.mrf.mxu0
        %v8767 = vadd.f32 %v8438, %v8766
        %8768 = vmatmul.bf16.gmra.mxu0 %v6572
        %v8769 = vpop.f32.mrf.mxu0
        %v8770 = vadd.f32 %v8441, %v8769
        %v8771 = vpop.f32.mrf.mxu0
        %v8772 = vadd.f32 %v8443, %v8771
        %8773 = vmatmul.bf16.gmra.mxu0 %v6576
        %v8774 = vpop.f32.mrf.mxu0
        %v8775 = vadd.f32 %v8446, %v8774
        %v8776 = vpop.f32.mrf.mxu0
        %v8777 = vadd.f32 %v8448, %v8776
        %8778 = vmatmul.bf16.gmra.mxu0 %v6580
        %v8779 = vpop.f32.mrf.mxu0
        %v8780 = vadd.f32 %v8451, %v8779
        %v8781 = vpop.f32.mrf.mxu0
        %v8782 = vadd.f32 %v8453, %v8781
        %8783 = vmatmul.bf16.gmra.mxu0 %v6584
        %v8784 = vpop.f32.mrf.mxu0
        %v8785 = vadd.f32 %v8456, %v8784
        %v8786 = vpop.f32.mrf.mxu0
        %v8787 = vadd.f32 %v8458, %v8786
        %8788 = vmatmul.bf16.gmra.mxu0 %v6588
        %v8789 = vpop.f32.mrf.mxu0
        %v8790 = vadd.f32 %v8461, %v8789
        %v8791 = vpop.f32.mrf.mxu0
        %v8792 = vadd.f32 %v8463, %v8791
        %8793 = vmatmul.bf16.gmra.mxu0 %v6592
        %v8794 = vpop.f32.mrf.mxu0
        %v8795 = vadd.f32 %v8466, %v8794
        %v8796 = vpop.f32.mrf.mxu0
        %v8797 = vadd.f32 %v8468, %v8796
        %8798 = vmatmul.bf16.gmra.mxu0 %v6596
        %v8799 = vpop.f32.mrf.mxu0
        %v8800 = vadd.f32 %v8471, %v8799
        %v8801 = vpop.f32.mrf.mxu0
        %v8802 = vadd.f32 %v8473, %v8801
        %8803 = vmatmul.bf16.gmra.mxu0 %v6600
        %v8804 = vpop.f32.mrf.mxu0
        %v8805 = vadd.f32 %v8476, %v8804
        %v8806 = vpop.f32.mrf.mxu0
        %v8807 = vadd.f32 %v8478, %v8806
        %8808 = vmatmul.bf16.gmra.mxu0 %v6604
        %v8809 = vpop.f32.mrf.mxu0
        %v8810 = vadd.f32 %v8481, %v8809
        %v8811 = vpop.f32.mrf.mxu0
        %v8812 = vadd.f32 %v8483, %v8811
        %8813 = vmatmul.bf16.gmra.mxu0 %v6608
        %v8814 = vpop.f32.mrf.mxu0
        %v8815 = vadd.f32 %v8486, %v8814
        %v8816 = vpop.f32.mrf.mxu0
        %v8817 = vadd.f32 %v8488, %v8816
        %8818 = vmatmul.bf16.gmra.mxu0 %v6612
        %v8819 = vpop.f32.mrf.mxu0
        %v8820 = vadd.f32 %v8491, %v8819
        %v8821 = vpop.f32.mrf.mxu0
        %v8822 = vadd.f32 %v8493, %v8821
        %8823 = vmatmul.bf16.gmra.mxu0 %v6616
        %v8824 = vpop.f32.mrf.mxu0
        %v8825 = vadd.f32 %v8496, %v8824
        %v8826 = vpop.f32.mrf.mxu0
        %v8827 = vadd.f32 %v8498, %v8826
        %8828 = vmatmul.bf16.gmra.mxu0 %v6620
        %v8829 = vpop.f32.mrf.mxu0
        %v8830 = vadd.f32 %v8501, %v8829
        %v8831 = vpop.f32.mrf.mxu0
        %v8832 = vadd.f32 %v8503, %v8831
        %8833 = vmatmul.bf16.gmra.mxu0 %v6624
        %v8834 = vpop.f32.mrf.mxu0
        %v8835 = vadd.f32 %v8506, %v8834
        %v8836 = vpop.f32.mrf.mxu0
        %v8837 = vadd.f32 %v8508, %v8836
        %8838 = vmatmul.bf16.gmra.mxu0 %v6628
        %v8839 = vpop.f32.mrf.mxu0
        %v8840 = vadd.f32 %v8511, %v8839
        %v8841 = vpop.f32.mrf.mxu0
        %v8842 = vadd.f32 %v8513, %v8841
        %8843 = vmatmul.bf16.gmra.mxu0 %v6632
        %v8844 = vpop.f32.mrf.mxu0
        %v8845 = vadd.f32 %v8516, %v8844
        %v8846 = vpop.f32.mrf.mxu0
        %v8847 = vadd.f32 %v8518, %v8846
        %8848 = vmatmul.bf16.gmra.mxu0 %v6636
        %v8849 = vpop.f32.mrf.mxu0
        %v8850 = vadd.f32 %v8521, %v8849
        %v8851 = vpop.f32.mrf.mxu0
        %v8852 = vadd.f32 %v8523, %v8851
        %8853 = vmatmul.bf16.gmra.mxu0 %v6640
        %v8854 = vpop.f32.mrf.mxu0
        %v8855 = vadd.f32 %v8526, %v8854
        %v8856 = vpop.f32.mrf.mxu0
        %v8857 = vadd.f32 %v8528, %v8856
        %8858 = vmatmul.bf16.gmra.mxu0 %v6644
        %v8859 = vpop.f32.mrf.mxu0
        %v8860 = vadd.f32 %v8531, %v8859
        %v8861 = vpop.f32.mrf.mxu0
        %v8862 = vadd.f32 %v8533, %v8861
        %8863 = vmatmul.bf16.gmra.mxu0 %v6648
        %v8864 = vpop.f32.mrf.mxu0
        %v8865 = vadd.f32 %v8536, %v8864
        %v8866 = vpop.f32.mrf.mxu0
        %v8867 = vadd.f32 %v8538, %v8866
        %8868 = vmatmul.bf16.gmra.mxu0 %v6652
        %v8869 = vpop.f32.mrf.mxu0
        %v8870 = vadd.f32 %v8541, %v8869
        %v8871 = vpop.f32.mrf.mxu0
        %v8872 = vadd.f32 %v8543, %v8871
        %8873 = vmatmul.bf16.gmra.mxu0 %v6656
        %v8874 = vpop.f32.mrf.mxu0
        %v8875 = vadd.f32 %v8546, %v8874
        %v8876 = vpop.f32.mrf.mxu0
        %v8877 = vadd.f32 %v8548, %v8876
        %8878 = vmatmul.bf16.gmra.mxu0 %v6660
        %v8879 = vpop.f32.mrf.mxu0
        %v8880 = vadd.f32 %v8551, %v8879
        %v8881 = vpop.f32.mrf.mxu0
        %v8882 = vadd.f32 %v8553, %v8881
        %8883 = vmatmul.bf16.gmra.mxu0 %v6664
        %v8884 = vpop.f32.mrf.mxu0
        %v8885 = vadd.f32 %v8556, %v8884
        %v8886 = vpop.f32.mrf.mxu0
        %v8887 = vadd.f32 %v8558, %v8886
        %8888 = vmatmul.bf16.gmra.mxu0 %v6668
        %v8889 = vpop.f32.mrf.mxu0
        %v8890 = vadd.f32 %v8561, %v8889
        %v8891 = vpop.f32.mrf.mxu0
        %v8892 = vadd.f32 %v8563, %v8891
        %8893 = vmatmul.bf16.gmra.mxu0 %v6672
        %v8894 = vpop.f32.mrf.mxu0
        %v8895 = vadd.f32 %v8566, %v8894
        %v8896 = vpop.f32.mrf.mxu0
        %v8897 = vadd.f32 %v8568, %v8896
        %8898 = vmatmul.bf16.gmra.mxu0 %v6676
        %v8899 = vpop.f32.mrf.mxu0
        %v8900 = vadd.f32 %v8571, %v8899
        %v8901 = vpop.f32.mrf.mxu0
        %v8902 = vadd.f32 %v8573, %v8901
        %8903 = vmatmul.bf16.gmra.mxu0 %v6680
        %v8904 = vpop.f32.mrf.mxu0
        %v8905 = vadd.f32 %v8576, %v8904
        %v8906 = vpop.f32.mrf.mxu0
        %v8907 = vadd.f32 %v8578, %v8906
        %8908 = vmatmul.bf16.gmra.mxu0 %v6684
        %v8909 = vpop.f32.mrf.mxu0
        %v8910 = vadd.f32 %v8581, %v8909
        %v8911 = vpop.f32.mrf.mxu0
        %v8912 = vadd.f32 %v8583, %v8911
        %8913 = vmatmul.bf16.gmra.mxu0 %v6688
        %v8914 = vpop.f32.mrf.mxu0
        %v8915 = vadd.f32 %v8586, %v8914
        %v8916 = vpop.f32.mrf.mxu0
        %v8917 = vadd.f32 %v8588, %v8916
        %8918 = vmatmul.bf16.gmra.mxu0 %v6692
        %v8919 = vpop.f32.mrf.mxu0
        %v8920 = vadd.f32 %v8591, %v8919
        %v8921 = vpop.f32.mrf.mxu0
        %v8922 = vadd.f32 %v8593, %v8921
        %8923 = vmatmul.bf16.gmra.mxu0 %v6696
        %v8924 = vpop.f32.mrf.mxu0
        %v8925 = vadd.f32 %v8596, %v8924
        %v8926 = vpop.f32.mrf.mxu0
        %v8927 = vadd.f32 %v8598, %v8926
        %8928 = vdwg.mxu0
        %8929 = vmatpush.bf16.msra.mxu0 %v4890
        %8930 = vmatpush.bf16.msra.mxu0 %v4888
        %8931 = vmatpush.bf16.msra.mxu0 %v4886
        %8932 = vmatpush.bf16.msra.mxu0 %v4884
        %8933 = vmatpush.bf16.msra.mxu0 %v4882
        %8934 = vmatpush.bf16.msra.mxu0 %v4880
        %8935 = vmatpush.bf16.msra.mxu0 %v4878
        %8936 = vmatpush.bf16.msra.mxu0 %v4876
        %8937 = vmatmul.bf16.gmra.mxu0 %v6445
        %v8938 = vpop.f32.mrf.mxu0
        %v8939 = vadd.f32 %v8610, %v8938
        %v8940 = vpop.f32.mrf.mxu0
        %v8941 = vadd.f32 %v8612, %v8940
        %8942 = vmatmul.bf16.gmra.mxu0 %v6449
        %v8943 = vpop.f32.mrf.mxu0
        %v8944 = vadd.f32 %v8615, %v8943
        %v8945 = vpop.f32.mrf.mxu0
        %v8946 = vadd.f32 %v8617, %v8945
        %8947 = vmatmul.bf16.gmra.mxu0 %v6453
        %v8948 = vpop.f32.mrf.mxu0
        %v8949 = vadd.f32 %v8620, %v8948
        %v8950 = vpop.f32.mrf.mxu0
        %v8951 = vadd.f32 %v8622, %v8950
        %8952 = vmatmul.bf16.gmra.mxu0 %v6457
        %v8953 = vpop.f32.mrf.mxu0
        %v8954 = vadd.f32 %v8625, %v8953
        %v8955 = vpop.f32.mrf.mxu0
        %v8956 = vadd.f32 %v8627, %v8955
        %8957 = vmatmul.bf16.gmra.mxu0 %v6461
        %v8958 = vpop.f32.mrf.mxu0
        %v8959 = vadd.f32 %v8630, %v8958
        %v8960 = vpop.f32.mrf.mxu0
        %v8961 = vadd.f32 %v8632, %v8960
        %8962 = vmatmul.bf16.gmra.mxu0 %v6465
        %v8963 = vpop.f32.mrf.mxu0
        %v8964 = vadd.f32 %v8635, %v8963
        %v8965 = vpop.f32.mrf.mxu0
        %v8966 = vadd.f32 %v8637, %v8965
        %8967 = vmatmul.bf16.gmra.mxu0 %v6469
        %v8968 = vpop.f32.mrf.mxu0
        %v8969 = vadd.f32 %v8640, %v8968
        %v8970 = vpop.f32.mrf.mxu0
        %v8971 = vadd.f32 %v8642, %v8970
        %8972 = vmatmul.bf16.gmra.mxu0 %v6473
        %v8973 = vpop.f32.mrf.mxu0
        %v8974 = vadd.f32 %v8645, %v8973
        %v8975 = vpop.f32.mrf.mxu0
        %v8976 = vadd.f32 %v8647, %v8975
        %8977 = vmatmul.bf16.gmra.mxu0 %v6477
        %v8978 = vpop.f32.mrf.mxu0
        %v8979 = vadd.f32 %v8650, %v8978
        %v8980 = vpop.f32.mrf.mxu0
        %v8981 = vadd.f32 %v8652, %v8980
        %8982 = vmatmul.bf16.gmra.mxu0 %v6481
        %v8983 = vpop.f32.mrf.mxu0
        %v8984 = vadd.f32 %v8655, %v8983
        %v8985 = vpop.f32.mrf.mxu0
        %v8986 = vadd.f32 %v8657, %v8985
        %8987 = vmatmul.bf16.gmra.mxu0 %v6485
        %v8988 = vpop.f32.mrf.mxu0
        %v8989 = vadd.f32 %v8660, %v8988
        %v8990 = vpop.f32.mrf.mxu0
        %v8991 = vadd.f32 %v8662, %v8990
        %8992 = vmatmul.bf16.gmra.mxu0 %v6489
        %v8993 = vpop.f32.mrf.mxu0
        %v8994 = vadd.f32 %v8665, %v8993
        %v8995 = vpop.f32.mrf.mxu0
        %v8996 = vadd.f32 %v8667, %v8995
        %8997 = vmatmul.bf16.gmra.mxu0 %v6493
        %v8998 = vpop.f32.mrf.mxu0
        %v8999 = vadd.f32 %v8670, %v8998
        %v9000 = vpop.f32.mrf.mxu0
        %v9001 = vadd.f32 %v8672, %v9000
        %9002 = vmatmul.bf16.gmra.mxu0 %v6497
        %v9003 = vpop.f32.mrf.mxu0
        %v9004 = vadd.f32 %v8675, %v9003
        %v9005 = vpop.f32.mrf.mxu0
        %v9006 = vadd.f32 %v8677, %v9005
        %9007 = vmatmul.bf16.gmra.mxu0 %v6501
        %v9008 = vpop.f32.mrf.mxu0
        %v9009 = vadd.f32 %v8680, %v9008
        %v9010 = vpop.f32.mrf.mxu0
        %v9011 = vadd.f32 %v8682, %v9010
        %9012 = vmatmul.bf16.gmra.mxu0 %v6505
        %v9013 = vpop.f32.mrf.mxu0
        %v9014 = vadd.f32 %v8685, %v9013
        %v9015 = vpop.f32.mrf.mxu0
        %v9016 = vadd.f32 %v8687, %v9015
        %9017 = vmatmul.bf16.gmra.mxu0 %v6509
        %v9018 = vpop.f32.mrf.mxu0
        %v9019 = vadd.f32 %v8690, %v9018
        %v9020 = vpop.f32.mrf.mxu0
        %v9021 = vadd.f32 %v8692, %v9020
        %9022 = vmatmul.bf16.gmra.mxu0 %v6513
        %v9023 = vpop.f32.mrf.mxu0
        %v9024 = vadd.f32 %v8695, %v9023
        %v9025 = vpop.f32.mrf.mxu0
        %v9026 = vadd.f32 %v8697, %v9025
        %9027 = vmatmul.bf16.gmra.mxu0 %v6517
        %v9028 = vpop.f32.mrf.mxu0
        %v9029 = vadd.f32 %v8700, %v9028
        %v9030 = vpop.f32.mrf.mxu0
        %v9031 = vadd.f32 %v8702, %v9030
        %9032 = vmatmul.bf16.gmra.mxu0 %v6521
        %v9033 = vpop.f32.mrf.mxu0
        %v9034 = vadd.f32 %v8705, %v9033
        %v9035 = vpop.f32.mrf.mxu0
        %v9036 = vadd.f32 %v8707, %v9035
        %9037 = vmatmul.bf16.gmra.mxu0 %v6525
        %v9038 = vpop.f32.mrf.mxu0
        %v9039 = vadd.f32 %v8710, %v9038
        %v9040 = vpop.f32.mrf.mxu0
        %v9041 = vadd.f32 %v8712, %v9040
        %9042 = vmatmul.bf16.gmra.mxu0 %v6529
        %v9043 = vpop.f32.mrf.mxu0
        %v9044 = vadd.f32 %v8715, %v9043
        %v9045 = vpop.f32.mrf.mxu0
        %v9046 = vadd.f32 %v8717, %v9045
        %9047 = vmatmul.bf16.gmra.mxu0 %v6533
        %v9048 = vpop.f32.mrf.mxu0
        %v9049 = vadd.f32 %v8720, %v9048
        %v9050 = vpop.f32.mrf.mxu0
        %v9051 = vadd.f32 %v8722, %v9050
        %9052 = vmatmul.bf16.gmra.mxu0 %v6537
        %v9053 = vpop.f32.mrf.mxu0
        %v9054 = vadd.f32 %v8725, %v9053
        %v9055 = vpop.f32.mrf.mxu0
        %v9056 = vadd.f32 %v8727, %v9055
        %9057 = vmatmul.bf16.gmra.mxu0 %v6541
        %v9058 = vpop.f32.mrf.mxu0
        %v9059 = vadd.f32 %v8730, %v9058
        %v9060 = vpop.f32.mrf.mxu0
        %v9061 = vadd.f32 %v8732, %v9060
        %9062 = vmatmul.bf16.gmra.mxu0 %v6545
        %v9063 = vpop.f32.mrf.mxu0
        %v9064 = vadd.f32 %v8735, %v9063
        %v9065 = vpop.f32.mrf.mxu0
        %v9066 = vadd.f32 %v8737, %v9065
        %9067 = vmatmul.bf16.gmra.mxu0 %v6549
        %v9068 = vpop.f32.mrf.mxu0
        %v9069 = vadd.f32 %v8740, %v9068
        %v9070 = vpop.f32.mrf.mxu0
        %v9071 = vadd.f32 %v8742, %v9070
        %9072 = vmatmul.bf16.gmra.mxu0 %v6553
        %v9073 = vpop.f32.mrf.mxu0
        %v9074 = vadd.f32 %v8745, %v9073
        %v9075 = vpop.f32.mrf.mxu0
        %v9076 = vadd.f32 %v8747, %v9075
        %9077 = vmatmul.bf16.gmra.mxu0 %v6557
        %v9078 = vpop.f32.mrf.mxu0
        %v9079 = vadd.f32 %v8750, %v9078
        %v9080 = vpop.f32.mrf.mxu0
        %v9081 = vadd.f32 %v8752, %v9080
        %9082 = vmatmul.bf16.gmra.mxu0 %v6561
        %v9083 = vpop.f32.mrf.mxu0
        %v9084 = vadd.f32 %v8755, %v9083
        %v9085 = vpop.f32.mrf.mxu0
        %v9086 = vadd.f32 %v8757, %v9085
        %9087 = vmatmul.bf16.gmra.mxu0 %v6565
        %v9088 = vpop.f32.mrf.mxu0
        %v9089 = vadd.f32 %v8760, %v9088
        %v9090 = vpop.f32.mrf.mxu0
        %v9091 = vadd.f32 %v8762, %v9090
        %9092 = vmatmul.bf16.gmra.mxu0 %v6569
        %v9093 = vpop.f32.mrf.mxu0
        %v9094 = vadd.f32 %v8765, %v9093
        %v9095 = vpop.f32.mrf.mxu0
        %v9096 = vadd.f32 %v8767, %v9095
        %9097 = vmatmul.bf16.gmra.mxu0 %v6573
        %v9098 = vpop.f32.mrf.mxu0
        %v9099 = vadd.f32 %v8770, %v9098
        %v9100 = vpop.f32.mrf.mxu0
        %v9101 = vadd.f32 %v8772, %v9100
        %9102 = vmatmul.bf16.gmra.mxu0 %v6577
        %v9103 = vpop.f32.mrf.mxu0
        %v9104 = vadd.f32 %v8775, %v9103
        %v9105 = vpop.f32.mrf.mxu0
        %v9106 = vadd.f32 %v8777, %v9105
        %9107 = vmatmul.bf16.gmra.mxu0 %v6581
        %v9108 = vpop.f32.mrf.mxu0
        %v9109 = vadd.f32 %v8780, %v9108
        %v9110 = vpop.f32.mrf.mxu0
        %v9111 = vadd.f32 %v8782, %v9110
        %9112 = vmatmul.bf16.gmra.mxu0 %v6585
        %v9113 = vpop.f32.mrf.mxu0
        %v9114 = vadd.f32 %v8785, %v9113
        %v9115 = vpop.f32.mrf.mxu0
        %v9116 = vadd.f32 %v8787, %v9115
        %9117 = vmatmul.bf16.gmra.mxu0 %v6589
        %v9118 = vpop.f32.mrf.mxu0
        %v9119 = vadd.f32 %v8790, %v9118
        %v9120 = vpop.f32.mrf.mxu0
        %v9121 = vadd.f32 %v8792, %v9120
        %9122 = vmatmul.bf16.gmra.mxu0 %v6593
        %v9123 = vpop.f32.mrf.mxu0
        %v9124 = vadd.f32 %v8795, %v9123
        %v9125 = vpop.f32.mrf.mxu0
        %v9126 = vadd.f32 %v8797, %v9125
        %9127 = vmatmul.bf16.gmra.mxu0 %v6597
        %v9128 = vpop.f32.mrf.mxu0
        %v9129 = vadd.f32 %v8800, %v9128
        %v9130 = vpop.f32.mrf.mxu0
        %v9131 = vadd.f32 %v8802, %v9130
        %9132 = vmatmul.bf16.gmra.mxu0 %v6601
        %v9133 = vpop.f32.mrf.mxu0
        %v9134 = vadd.f32 %v8805, %v9133
        %v9135 = vpop.f32.mrf.mxu0
        %v9136 = vadd.f32 %v8807, %v9135
        %9137 = vmatmul.bf16.gmra.mxu0 %v6605
        %v9138 = vpop.f32.mrf.mxu0
        %v9139 = vadd.f32 %v8810, %v9138
        %v9140 = vpop.f32.mrf.mxu0
        %v9141 = vadd.f32 %v8812, %v9140
        %9142 = vmatmul.bf16.gmra.mxu0 %v6609
        %v9143 = vpop.f32.mrf.mxu0
        %v9144 = vadd.f32 %v8815, %v9143
        %v9145 = vpop.f32.mrf.mxu0
        %v9146 = vadd.f32 %v8817, %v9145
        %9147 = vmatmul.bf16.gmra.mxu0 %v6613
        %v9148 = vpop.f32.mrf.mxu0
        %v9149 = vadd.f32 %v8820, %v9148
        %v9150 = vpop.f32.mrf.mxu0
        %v9151 = vadd.f32 %v8822, %v9150
        %9152 = vmatmul.bf16.gmra.mxu0 %v6617
        %v9153 = vpop.f32.mrf.mxu0
        %v9154 = vadd.f32 %v8825, %v9153
        %v9155 = vpop.f32.mrf.mxu0
        %v9156 = vadd.f32 %v8827, %v9155
        %9157 = vmatmul.bf16.gmra.mxu0 %v6621
        %v9158 = vpop.f32.mrf.mxu0
        %v9159 = vadd.f32 %v8830, %v9158
        %v9160 = vpop.f32.mrf.mxu0
        %v9161 = vadd.f32 %v8832, %v9160
        %9162 = vmatmul.bf16.gmra.mxu0 %v6625
        %v9163 = vpop.f32.mrf.mxu0
        %v9164 = vadd.f32 %v8835, %v9163
        %v9165 = vpop.f32.mrf.mxu0
        %v9166 = vadd.f32 %v8837, %v9165
        %9167 = vmatmul.bf16.gmra.mxu0 %v6629
        %v9168 = vpop.f32.mrf.mxu0
        %v9169 = vadd.f32 %v8840, %v9168
        %v9170 = vpop.f32.mrf.mxu0
        %v9171 = vadd.f32 %v8842, %v9170
        %9172 = vmatmul.bf16.gmra.mxu0 %v6633
        %v9173 = vpop.f32.mrf.mxu0
        %v9174 = vadd.f32 %v8845, %v9173
        %v9175 = vpop.f32.mrf.mxu0
        %v9176 = vadd.f32 %v8847, %v9175
        %9177 = vmatmul.bf16.gmra.mxu0 %v6637
        %v9178 = vpop.f32.mrf.mxu0
        %v9179 = vadd.f32 %v8850, %v9178
        %v9180 = vpop.f32.mrf.mxu0
        %v9181 = vadd.f32 %v8852, %v9180
        %9182 = vmatmul.bf16.gmra.mxu0 %v6641
        %v9183 = vpop.f32.mrf.mxu0
        %v9184 = vadd.f32 %v8855, %v9183
        %v9185 = vpop.f32.mrf.mxu0
        %v9186 = vadd.f32 %v8857, %v9185
        %9187 = vmatmul.bf16.gmra.mxu0 %v6645
        %v9188 = vpop.f32.mrf.mxu0
        %v9189 = vadd.f32 %v8860, %v9188
        %v9190 = vpop.f32.mrf.mxu0
        %v9191 = vadd.f32 %v8862, %v9190
        %9192 = vmatmul.bf16.gmra.mxu0 %v6649
        %v9193 = vpop.f32.mrf.mxu0
        %v9194 = vadd.f32 %v8865, %v9193
        %v9195 = vpop.f32.mrf.mxu0
        %v9196 = vadd.f32 %v8867, %v9195
        %9197 = vmatmul.bf16.gmra.mxu0 %v6653
        %v9198 = vpop.f32.mrf.mxu0
        %v9199 = vadd.f32 %v8870, %v9198
        %v9200 = vpop.f32.mrf.mxu0
        %v9201 = vadd.f32 %v8872, %v9200
        %9202 = vmatmul.bf16.gmra.mxu0 %v6657
        %v9203 = vpop.f32.mrf.mxu0
        %v9204 = vadd.f32 %v8875, %v9203
        %v9205 = vpop.f32.mrf.mxu0
        %v9206 = vadd.f32 %v8877, %v9205
        %9207 = vmatmul.bf16.gmra.mxu0 %v6661
        %v9208 = vpop.f32.mrf.mxu0
        %v9209 = vadd.f32 %v8880, %v9208
        %v9210 = vpop.f32.mrf.mxu0
        %v9211 = vadd.f32 %v8882, %v9210
        %9212 = vmatmul.bf16.gmra.mxu0 %v6665
        %v9213 = vpop.f32.mrf.mxu0
        %v9214 = vadd.f32 %v8885, %v9213
        %v9215 = vpop.f32.mrf.mxu0
        %v9216 = vadd.f32 %v8887, %v9215
        %9217 = vmatmul.bf16.gmra.mxu0 %v6669
        %v9218 = vpop.f32.mrf.mxu0
        %v9219 = vadd.f32 %v8890, %v9218
        %v9220 = vpop.f32.mrf.mxu0
        %v9221 = vadd.f32 %v8892, %v9220
        %9222 = vmatmul.bf16.gmra.mxu0 %v6673
        %v9223 = vpop.f32.mrf.mxu0
        %v9224 = vadd.f32 %v8895, %v9223
        %v9225 = vpop.f32.mrf.mxu0
        %v9226 = vadd.f32 %v8897, %v9225
        %9227 = vmatmul.bf16.gmra.mxu0 %v6677
        %v9228 = vpop.f32.mrf.mxu0
        %v9229 = vadd.f32 %v8900, %v9228
        %v9230 = vpop.f32.mrf.mxu0
        %v9231 = vadd.f32 %v8902, %v9230
        %9232 = vmatmul.bf16.gmra.mxu0 %v6681
        %v9233 = vpop.f32.mrf.mxu0
        %v9234 = vadd.f32 %v8905, %v9233
        %v9235 = vpop.f32.mrf.mxu0
        %v9236 = vadd.f32 %v8907, %v9235
        %9237 = vmatmul.bf16.gmra.mxu0 %v6685
        %v9238 = vpop.f32.mrf.mxu0
        %v9239 = vadd.f32 %v8910, %v9238
        %v9240 = vpop.f32.mrf.mxu0
        %v9241 = vadd.f32 %v8912, %v9240
        %9242 = vmatmul.bf16.gmra.mxu0 %v6689
        %v9243 = vpop.f32.mrf.mxu0
        %v9244 = vadd.f32 %v8915, %v9243
        %v9245 = vpop.f32.mrf.mxu0
        %v9246 = vadd.f32 %v8917, %v9245
        %9247 = vmatmul.bf16.gmra.mxu0 %v6693
        %v9248 = vpop.f32.mrf.mxu0
        %v9249 = vadd.f32 %v8920, %v9248
        %v9250 = vpop.f32.mrf.mxu0
        %v9251 = vadd.f32 %v8922, %v9250
        %9252 = vmatmul.bf16.gmra.mxu0 %v6697
        %v9253 = vpop.f32.mrf.mxu0
        %v9254 = vadd.f32 %v8925, %v9253
        %v9255 = vpop.f32.mrf.mxu0
        %v9256 = vadd.f32 %v8927, %v9255
        %9257 = vdwg.mxu0
        %9258 = vmatpush.bf16.msra.mxu0 %v4906
        %9259 = vmatpush.bf16.msra.mxu0 %v4904
        %9260 = vmatpush.bf16.msra.mxu0 %v4902
        %9261 = vmatpush.bf16.msra.mxu0 %v4900
        %9262 = vmatpush.bf16.msra.mxu0 %v4898
        %9263 = vmatpush.bf16.msra.mxu0 %v4896
        %9264 = vmatpush.bf16.msra.mxu0 %v4894
        %9265 = vmatpush.bf16.msra.mxu0 %v4892
        %9266 = vmatmul.bf16.gmra.mxu0 %v6446
        %v9267 = vpop.f32.mrf.mxu0
        %v9268 = vadd.f32 %v8939, %v9267
        %v9269 = vpop.f32.mrf.mxu0
        %v9270 = vadd.f32 %v8941, %v9269
        %9271 = vmatmul.bf16.gmra.mxu0 %v6450
        %v9272 = vpop.f32.mrf.mxu0
        %v9273 = vadd.f32 %v8944, %v9272
        %v9274 = vpop.f32.mrf.mxu0
        %v9275 = vadd.f32 %v8946, %v9274
        %9276 = vmatmul.bf16.gmra.mxu0 %v6454
        %v9277 = vpop.f32.mrf.mxu0
        %v9278 = vadd.f32 %v8949, %v9277
        %v9279 = vpop.f32.mrf.mxu0
        %v9280 = vadd.f32 %v8951, %v9279
        %9281 = vmatmul.bf16.gmra.mxu0 %v6458
        %v9282 = vpop.f32.mrf.mxu0
        %v9283 = vadd.f32 %v8954, %v9282
        %v9284 = vpop.f32.mrf.mxu0
        %v9285 = vadd.f32 %v8956, %v9284
        %9286 = vmatmul.bf16.gmra.mxu0 %v6462
        %v9287 = vpop.f32.mrf.mxu0
        %v9288 = vadd.f32 %v8959, %v9287
        %v9289 = vpop.f32.mrf.mxu0
        %v9290 = vadd.f32 %v8961, %v9289
        %9291 = vmatmul.bf16.gmra.mxu0 %v6466
        %v9292 = vpop.f32.mrf.mxu0
        %v9293 = vadd.f32 %v8964, %v9292
        %v9294 = vpop.f32.mrf.mxu0
        %v9295 = vadd.f32 %v8966, %v9294
        %9296 = vmatmul.bf16.gmra.mxu0 %v6470
        %v9297 = vpop.f32.mrf.mxu0
        %v9298 = vadd.f32 %v8969, %v9297
        %v9299 = vpop.f32.mrf.mxu0
        %v9300 = vadd.f32 %v8971, %v9299
        %9301 = vmatmul.bf16.gmra.mxu0 %v6474
        %v9302 = vpop.f32.mrf.mxu0
        %v9303 = vadd.f32 %v8974, %v9302
        %v9304 = vpop.f32.mrf.mxu0
        %v9305 = vadd.f32 %v8976, %v9304
        %9306 = vmatmul.bf16.gmra.mxu0 %v6478
        %v9307 = vpop.f32.mrf.mxu0
        %v9308 = vadd.f32 %v8979, %v9307
        %v9309 = vpop.f32.mrf.mxu0
        %v9310 = vadd.f32 %v8981, %v9309
        %9311 = vmatmul.bf16.gmra.mxu0 %v6482
        %v9312 = vpop.f32.mrf.mxu0
        %v9313 = vadd.f32 %v8984, %v9312
        %v9314 = vpop.f32.mrf.mxu0
        %v9315 = vadd.f32 %v8986, %v9314
        %9316 = vmatmul.bf16.gmra.mxu0 %v6486
        %v9317 = vpop.f32.mrf.mxu0
        %v9318 = vadd.f32 %v8989, %v9317
        %v9319 = vpop.f32.mrf.mxu0
        %v9320 = vadd.f32 %v8991, %v9319
        %9321 = vmatmul.bf16.gmra.mxu0 %v6490
        %v9322 = vpop.f32.mrf.mxu0
        %v9323 = vadd.f32 %v8994, %v9322
        %v9324 = vpop.f32.mrf.mxu0
        %v9325 = vadd.f32 %v8996, %v9324
        %9326 = vmatmul.bf16.gmra.mxu0 %v6494
        %v9327 = vpop.f32.mrf.mxu0
        %v9328 = vadd.f32 %v8999, %v9327
        %v9329 = vpop.f32.mrf.mxu0
        %v9330 = vadd.f32 %v9001, %v9329
        %9331 = vmatmul.bf16.gmra.mxu0 %v6498
        %v9332 = vpop.f32.mrf.mxu0
        %v9333 = vadd.f32 %v9004, %v9332
        %v9334 = vpop.f32.mrf.mxu0
        %v9335 = vadd.f32 %v9006, %v9334
        %9336 = vmatmul.bf16.gmra.mxu0 %v6502
        %v9337 = vpop.f32.mrf.mxu0
        %v9338 = vadd.f32 %v9009, %v9337
        %v9339 = vpop.f32.mrf.mxu0
        %v9340 = vadd.f32 %v9011, %v9339
        %9341 = vmatmul.bf16.gmra.mxu0 %v6506
        %v9342 = vpop.f32.mrf.mxu0
        %v9343 = vadd.f32 %v9014, %v9342
        %v9344 = vpop.f32.mrf.mxu0
        %v9345 = vadd.f32 %v9016, %v9344
        %9346 = vmatmul.bf16.gmra.mxu0 %v6510
        %v9347 = vpop.f32.mrf.mxu0
        %v9348 = vadd.f32 %v9019, %v9347
        %v9349 = vpop.f32.mrf.mxu0
        %v9350 = vadd.f32 %v9021, %v9349
        %9351 = vmatmul.bf16.gmra.mxu0 %v6514
        %v9352 = vpop.f32.mrf.mxu0
        %v9353 = vadd.f32 %v9024, %v9352
        %v9354 = vpop.f32.mrf.mxu0
        %v9355 = vadd.f32 %v9026, %v9354
        %9356 = vmatmul.bf16.gmra.mxu0 %v6518
        %v9357 = vpop.f32.mrf.mxu0
        %v9358 = vadd.f32 %v9029, %v9357
        %v9359 = vpop.f32.mrf.mxu0
        %v9360 = vadd.f32 %v9031, %v9359
        %9361 = vmatmul.bf16.gmra.mxu0 %v6522
        %v9362 = vpop.f32.mrf.mxu0
        %v9363 = vadd.f32 %v9034, %v9362
        %v9364 = vpop.f32.mrf.mxu0
        %v9365 = vadd.f32 %v9036, %v9364
        %9366 = vmatmul.bf16.gmra.mxu0 %v6526
        %v9367 = vpop.f32.mrf.mxu0
        %v9368 = vadd.f32 %v9039, %v9367
        %v9369 = vpop.f32.mrf.mxu0
        %v9370 = vadd.f32 %v9041, %v9369
        %9371 = vmatmul.bf16.gmra.mxu0 %v6530
        %v9372 = vpop.f32.mrf.mxu0
        %v9373 = vadd.f32 %v9044, %v9372
        %v9374 = vpop.f32.mrf.mxu0
        %v9375 = vadd.f32 %v9046, %v9374
        %9376 = vmatmul.bf16.gmra.mxu0 %v6534
        %v9377 = vpop.f32.mrf.mxu0
        %v9378 = vadd.f32 %v9049, %v9377
        %v9379 = vpop.f32.mrf.mxu0
        %v9380 = vadd.f32 %v9051, %v9379
        %9381 = vmatmul.bf16.gmra.mxu0 %v6538
        %v9382 = vpop.f32.mrf.mxu0
        %v9383 = vadd.f32 %v9054, %v9382
        %v9384 = vpop.f32.mrf.mxu0
        %v9385 = vadd.f32 %v9056, %v9384
        %9386 = vmatmul.bf16.gmra.mxu0 %v6542
        %v9387 = vpop.f32.mrf.mxu0
        %v9388 = vadd.f32 %v9059, %v9387
        %v9389 = vpop.f32.mrf.mxu0
        %v9390 = vadd.f32 %v9061, %v9389
        %9391 = vmatmul.bf16.gmra.mxu0 %v6546
        %v9392 = vpop.f32.mrf.mxu0
        %v9393 = vadd.f32 %v9064, %v9392
        %v9394 = vpop.f32.mrf.mxu0
        %v9395 = vadd.f32 %v9066, %v9394
        %9396 = vmatmul.bf16.gmra.mxu0 %v6550
        %v9397 = vpop.f32.mrf.mxu0
        %v9398 = vadd.f32 %v9069, %v9397
        %v9399 = vpop.f32.mrf.mxu0
        %v9400 = vadd.f32 %v9071, %v9399
        %9401 = vmatmul.bf16.gmra.mxu0 %v6554
        %v9402 = vpop.f32.mrf.mxu0
        %v9403 = vadd.f32 %v9074, %v9402
        %v9404 = vpop.f32.mrf.mxu0
        %v9405 = vadd.f32 %v9076, %v9404
        %9406 = vmatmul.bf16.gmra.mxu0 %v6558
        %v9407 = vpop.f32.mrf.mxu0
        %v9408 = vadd.f32 %v9079, %v9407
        %v9409 = vpop.f32.mrf.mxu0
        %v9410 = vadd.f32 %v9081, %v9409
        %9411 = vmatmul.bf16.gmra.mxu0 %v6562
        %v9412 = vpop.f32.mrf.mxu0
        %v9413 = vadd.f32 %v9084, %v9412
        %v9414 = vpop.f32.mrf.mxu0
        %v9415 = vadd.f32 %v9086, %v9414
        %9416 = vmatmul.bf16.gmra.mxu0 %v6566
        %v9417 = vpop.f32.mrf.mxu0
        %v9418 = vadd.f32 %v9089, %v9417
        %v9419 = vpop.f32.mrf.mxu0
        %v9420 = vadd.f32 %v9091, %v9419
        %9421 = vmatmul.bf16.gmra.mxu0 %v6570
        %v9422 = vpop.f32.mrf.mxu0
        %v9423 = vadd.f32 %v9094, %v9422
        %v9424 = vpop.f32.mrf.mxu0
        %v9425 = vadd.f32 %v9096, %v9424
        %9426 = vmatmul.bf16.gmra.mxu0 %v6574
        %v9427 = vpop.f32.mrf.mxu0
        %v9428 = vadd.f32 %v9099, %v9427
        %v9429 = vpop.f32.mrf.mxu0
        %v9430 = vadd.f32 %v9101, %v9429
        %9431 = vmatmul.bf16.gmra.mxu0 %v6578
        %v9432 = vpop.f32.mrf.mxu0
        %v9433 = vadd.f32 %v9104, %v9432
        %v9434 = vpop.f32.mrf.mxu0
        %v9435 = vadd.f32 %v9106, %v9434
        %9436 = vmatmul.bf16.gmra.mxu0 %v6582
        %v9437 = vpop.f32.mrf.mxu0
        %v9438 = vadd.f32 %v9109, %v9437
        %v9439 = vpop.f32.mrf.mxu0
        %v9440 = vadd.f32 %v9111, %v9439
        %9441 = vmatmul.bf16.gmra.mxu0 %v6586
        %v9442 = vpop.f32.mrf.mxu0
        %v9443 = vadd.f32 %v9114, %v9442
        %v9444 = vpop.f32.mrf.mxu0
        %v9445 = vadd.f32 %v9116, %v9444
        %9446 = vmatmul.bf16.gmra.mxu0 %v6590
        %v9447 = vpop.f32.mrf.mxu0
        %v9448 = vadd.f32 %v9119, %v9447
        %v9449 = vpop.f32.mrf.mxu0
        %v9450 = vadd.f32 %v9121, %v9449
        %9451 = vmatmul.bf16.gmra.mxu0 %v6594
        %v9452 = vpop.f32.mrf.mxu0
        %v9453 = vadd.f32 %v9124, %v9452
        %v9454 = vpop.f32.mrf.mxu0
        %v9455 = vadd.f32 %v9126, %v9454
        %9456 = vmatmul.bf16.gmra.mxu0 %v6598
        %v9457 = vpop.f32.mrf.mxu0
        %v9458 = vadd.f32 %v9129, %v9457
        %v9459 = vpop.f32.mrf.mxu0
        %v9460 = vadd.f32 %v9131, %v9459
        %9461 = vmatmul.bf16.gmra.mxu0 %v6602
        %v9462 = vpop.f32.mrf.mxu0
        %v9463 = vadd.f32 %v9134, %v9462
        %v9464 = vpop.f32.mrf.mxu0
        %v9465 = vadd.f32 %v9136, %v9464
        %9466 = vmatmul.bf16.gmra.mxu0 %v6606
        %v9467 = vpop.f32.mrf.mxu0
        %v9468 = vadd.f32 %v9139, %v9467
        %v9469 = vpop.f32.mrf.mxu0
        %v9470 = vadd.f32 %v9141, %v9469
        %9471 = vmatmul.bf16.gmra.mxu0 %v6610
        %v9472 = vpop.f32.mrf.mxu0
        %v9473 = vadd.f32 %v9144, %v9472
        %v9474 = vpop.f32.mrf.mxu0
        %v9475 = vadd.f32 %v9146, %v9474
        %9476 = vmatmul.bf16.gmra.mxu0 %v6614
        %v9477 = vpop.f32.mrf.mxu0
        %v9478 = vadd.f32 %v9149, %v9477
        %v9479 = vpop.f32.mrf.mxu0
        %v9480 = vadd.f32 %v9151, %v9479
        %9481 = vmatmul.bf16.gmra.mxu0 %v6618
        %v9482 = vpop.f32.mrf.mxu0
        %v9483 = vadd.f32 %v9154, %v9482
        %v9484 = vpop.f32.mrf.mxu0
        %v9485 = vadd.f32 %v9156, %v9484
        %9486 = vmatmul.bf16.gmra.mxu0 %v6622
        %v9487 = vpop.f32.mrf.mxu0
        %v9488 = vadd.f32 %v9159, %v9487
        %v9489 = vpop.f32.mrf.mxu0
        %v9490 = vadd.f32 %v9161, %v9489
        %9491 = vmatmul.bf16.gmra.mxu0 %v6626
        %v9492 = vpop.f32.mrf.mxu0
        %v9493 = vadd.f32 %v9164, %v9492
        %v9494 = vpop.f32.mrf.mxu0
        %v9495 = vadd.f32 %v9166, %v9494
        %9496 = vmatmul.bf16.gmra.mxu0 %v6630
        %v9497 = vpop.f32.mrf.mxu0
        %v9498 = vadd.f32 %v9169, %v9497
        %v9499 = vpop.f32.mrf.mxu0
        %v9500 = vadd.f32 %v9171, %v9499
        %9501 = vmatmul.bf16.gmra.mxu0 %v6634
        %v9502 = vpop.f32.mrf.mxu0
        %v9503 = vadd.f32 %v9174, %v9502
        %v9504 = vpop.f32.mrf.mxu0
        %v9505 = vadd.f32 %v9176, %v9504
        %9506 = vmatmul.bf16.gmra.mxu0 %v6638
        %v9507 = vpop.f32.mrf.mxu0
        %v9508 = vadd.f32 %v9179, %v9507
        %v9509 = vpop.f32.mrf.mxu0
        %v9510 = vadd.f32 %v9181, %v9509
        %9511 = vmatmul.bf16.gmra.mxu0 %v6642
        %v9512 = vpop.f32.mrf.mxu0
        %v9513 = vadd.f32 %v9184, %v9512
        %v9514 = vpop.f32.mrf.mxu0
        %v9515 = vadd.f32 %v9186, %v9514
        %9516 = vmatmul.bf16.gmra.mxu0 %v6646
        %v9517 = vpop.f32.mrf.mxu0
        %v9518 = vadd.f32 %v9189, %v9517
        %v9519 = vpop.f32.mrf.mxu0
        %v9520 = vadd.f32 %v9191, %v9519
        %9521 = vmatmul.bf16.gmra.mxu0 %v6650
        %v9522 = vpop.f32.mrf.mxu0
        %v9523 = vadd.f32 %v9194, %v9522
        %v9524 = vpop.f32.mrf.mxu0
        %v9525 = vadd.f32 %v9196, %v9524
        %9526 = vmatmul.bf16.gmra.mxu0 %v6654
        %v9527 = vpop.f32.mrf.mxu0
        %v9528 = vadd.f32 %v9199, %v9527
        %v9529 = vpop.f32.mrf.mxu0
        %v9530 = vadd.f32 %v9201, %v9529
        %9531 = vmatmul.bf16.gmra.mxu0 %v6658
        %v9532 = vpop.f32.mrf.mxu0
        %v9533 = vadd.f32 %v9204, %v9532
        %v9534 = vpop.f32.mrf.mxu0
        %v9535 = vadd.f32 %v9206, %v9534
        %9536 = vmatmul.bf16.gmra.mxu0 %v6662
        %v9537 = vpop.f32.mrf.mxu0
        %v9538 = vadd.f32 %v9209, %v9537
        %v9539 = vpop.f32.mrf.mxu0
        %v9540 = vadd.f32 %v9211, %v9539
        %9541 = vmatmul.bf16.gmra.mxu0 %v6666
        %v9542 = vpop.f32.mrf.mxu0
        %v9543 = vadd.f32 %v9214, %v9542
        %v9544 = vpop.f32.mrf.mxu0
        %v9545 = vadd.f32 %v9216, %v9544
        %9546 = vmatmul.bf16.gmra.mxu0 %v6670
        %v9547 = vpop.f32.mrf.mxu0
        %v9548 = vadd.f32 %v9219, %v9547
        %v9549 = vpop.f32.mrf.mxu0
        %v9550 = vadd.f32 %v9221, %v9549
        %9551 = vmatmul.bf16.gmra.mxu0 %v6674
        %v9552 = vpop.f32.mrf.mxu0
        %v9553 = vadd.f32 %v9224, %v9552
        %v9554 = vpop.f32.mrf.mxu0
        %v9555 = vadd.f32 %v9226, %v9554
        %9556 = vmatmul.bf16.gmra.mxu0 %v6678
        %v9557 = vpop.f32.mrf.mxu0
        %v9558 = vadd.f32 %v9229, %v9557
        %v9559 = vpop.f32.mrf.mxu0
        %v9560 = vadd.f32 %v9231, %v9559
        %9561 = vmatmul.bf16.gmra.mxu0 %v6682
        %v9562 = vpop.f32.mrf.mxu0
        %v9563 = vadd.f32 %v9234, %v9562
        %v9564 = vpop.f32.mrf.mxu0
        %v9565 = vadd.f32 %v9236, %v9564
        %9566 = vmatmul.bf16.gmra.mxu0 %v6686
        %v9567 = vpop.f32.mrf.mxu0
        %v9568 = vadd.f32 %v9239, %v9567
        %v9569 = vpop.f32.mrf.mxu0
        %v9570 = vadd.f32 %v9241, %v9569
        %9571 = vmatmul.bf16.gmra.mxu0 %v6690
        %v9572 = vpop.f32.mrf.mxu0
        %v9573 = vadd.f32 %v9244, %v9572
        %v9574 = vpop.f32.mrf.mxu0
        %v9575 = vadd.f32 %v9246, %v9574
        %9576 = vmatmul.bf16.gmra.mxu0 %v6694
        %v9577 = vpop.f32.mrf.mxu0
        %v9578 = vadd.f32 %v9249, %v9577
        %v9579 = vpop.f32.mrf.mxu0
        %v9580 = vadd.f32 %v9251, %v9579
        %9581 = vmatmul.bf16.gmra.mxu0 %v6698
        %v9582 = vpop.f32.mrf.mxu0
        %v9583 = vadd.f32 %v9254, %v9582
        %v9584 = vpop.f32.mrf.mxu0
        %v9585 = vadd.f32 %v9256, %v9584
        %9586 = vdwg.mxu0
        %v9587 = vmax.f32 %v7952, %v9268
        %9588 = vmax.xlane.f32.xlu0 %v9587
        %v9589 = vpop.xlane.xlu0 %9588
        %v9590 = vmax.f32 %v7954, %v9270
        %9591 = vmax.xlane.f32.xlu0 %v9590
        %v9592 = vpop.xlane.xlu0 %9591
        %v9593 = vmax.f32 %v7957, %v9273
        %9594 = vmax.xlane.f32.xlu0 %v9593
        %v9595 = vpop.xlane.xlu0 %9594
        %v9596 = vmax.f32 %v7959, %v9275
        %9597 = vmax.xlane.f32.xlu0 %v9596
        %v9598 = vpop.xlane.xlu0 %9597
        %v9599 = vmax.f32 %v7962, %v9278
        %9600 = vmax.xlane.f32.xlu0 %v9599
        %v9601 = vpop.xlane.xlu0 %9600
        %v9602 = vmax.f32 %v7964, %v9280
        %9603 = vmax.xlane.f32.xlu0 %v9602
        %v9604 = vpop.xlane.xlu0 %9603
        %v9605 = vmax.f32 %v7967, %v9283
        %9606 = vmax.xlane.f32.xlu0 %v9605
        %v9607 = vpop.xlane.xlu0 %9606
        %v9608 = vmax.f32 %v7969, %v9285
        %9609 = vmax.xlane.f32.xlu0 %v9608
        %v9610 = vpop.xlane.xlu0 %9609
        %v9611 = vmax.f32 %v7972, %v9288
        %9612 = vmax.xlane.f32.xlu0 %v9611
        %v9613 = vpop.xlane.xlu0 %9612
        %v9614 = vmax.f32 %v7974, %v9290
        %9615 = vmax.xlane.f32.xlu0 %v9614
        %v9616 = vpop.xlane.xlu0 %9615
        %v9617 = vmax.f32 %v7977, %v9293
        %9618 = vmax.xlane.f32.xlu0 %v9617
        %v9619 = vpop.xlane.xlu0 %9618
        %v9620 = vmax.f32 %v7979, %v9295
        %9621 = vmax.xlane.f32.xlu0 %v9620
        %v9622 = vpop.xlane.xlu0 %9621
        %v9623 = vmax.f32 %v7982, %v9298
        %9624 = vmax.xlane.f32.xlu0 %v9623
        %v9625 = vpop.xlane.xlu0 %9624
        %v9626 = vmax.f32 %v7984, %v9300
        %9627 = vmax.xlane.f32.xlu0 %v9626
        %v9628 = vpop.xlane.xlu0 %9627
        %v9629 = vmax.f32 %v7987, %v9303
        %9630 = vmax.xlane.f32.xlu0 %v9629
        %v9631 = vpop.xlane.xlu0 %9630
        %v9632 = vmax.f32 %v7989, %v9305
        %9633 = vmax.xlane.f32.xlu0 %v9632
        %v9634 = vpop.xlane.xlu0 %9633
        %v9635 = vmax.f32 %v7992, %v9308
        %9636 = vmax.xlane.f32.xlu0 %v9635
        %v9637 = vpop.xlane.xlu0 %9636
        %v9638 = vmax.f32 %v7994, %v9310
        %9639 = vmax.xlane.f32.xlu0 %v9638
        %v9640 = vpop.xlane.xlu0 %9639
        %v9641 = vmax.f32 %v7997, %v9313
        %9642 = vmax.xlane.f32.xlu0 %v9641
        %v9643 = vpop.xlane.xlu0 %9642
        %v9644 = vmax.f32 %v7999, %v9315
        %9645 = vmax.xlane.f32.xlu0 %v9644
        %v9646 = vpop.xlane.xlu0 %9645
        %v9647 = vmax.f32 %v8002, %v9318
        %9648 = vmax.xlane.f32.xlu0 %v9647
        %v9649 = vpop.xlane.xlu0 %9648
        %v9650 = vmax.f32 %v8004, %v9320
        %9651 = vmax.xlane.f32.xlu0 %v9650
        %v9652 = vpop.xlane.xlu0 %9651
        %v9653 = vmax.f32 %v8007, %v9323
        %9654 = vmax.xlane.f32.xlu0 %v9653
        %v9655 = vpop.xlane.xlu0 %9654
        %v9656 = vmax.f32 %v8009, %v9325
        %9657 = vmax.xlane.f32.xlu0 %v9656
        %v9658 = vpop.xlane.xlu0 %9657
        %v9659 = vmax.f32 %v8012, %v9328
        %9660 = vmax.xlane.f32.xlu0 %v9659
        %v9661 = vpop.xlane.xlu0 %9660
        %v9662 = vmax.f32 %v8014, %v9330
        %9663 = vmax.xlane.f32.xlu0 %v9662
        %v9664 = vpop.xlane.xlu0 %9663
        %v9665 = vmax.f32 %v8017, %v9333
        %9666 = vmax.xlane.f32.xlu0 %v9665
        %v9667 = vpop.xlane.xlu0 %9666
        %v9668 = vmax.f32 %v8019, %v9335
        %9669 = vmax.xlane.f32.xlu0 %v9668
        %v9670 = vpop.xlane.xlu0 %9669
        %v9671 = vmax.f32 %v8022, %v9338
        %9672 = vmax.xlane.f32.xlu0 %v9671
        %v9673 = vpop.xlane.xlu0 %9672
        %v9674 = vmax.f32 %v8024, %v9340
        %9675 = vmax.xlane.f32.xlu0 %v9674
        %v9676 = vpop.xlane.xlu0 %9675
        %v9677 = vmax.f32 %v8027, %v9343
        %9678 = vmax.xlane.f32.xlu0 %v9677
        %v9679 = vpop.xlane.xlu0 %9678
        %v9680 = vmax.f32 %v8029, %v9345
        %9681 = vmax.xlane.f32.xlu0 %v9680
        %v9682 = vpop.xlane.xlu0 %9681
        %v9683 = vmax.f32 %v8032, %v9348
        %9684 = vmax.xlane.f32.xlu0 %v9683
        %v9685 = vpop.xlane.xlu0 %9684
        %v9686 = vmax.f32 %v8034, %v9350
        %9687 = vmax.xlane.f32.xlu0 %v9686
        %v9688 = vpop.xlane.xlu0 %9687
        %v9689 = vmax.f32 %v8037, %v9353
        %9690 = vmax.xlane.f32.xlu0 %v9689
        %v9691 = vpop.xlane.xlu0 %9690
        %v9692 = vmax.f32 %v8039, %v9355
        %9693 = vmax.xlane.f32.xlu0 %v9692
        %v9694 = vpop.xlane.xlu0 %9693
        %v9695 = vmax.f32 %v8042, %v9358
        %9696 = vmax.xlane.f32.xlu0 %v9695
        %v9697 = vpop.xlane.xlu0 %9696
        %v9698 = vmax.f32 %v8044, %v9360
        %9699 = vmax.xlane.f32.xlu0 %v9698
        %v9700 = vpop.xlane.xlu0 %9699
        %v9701 = vmax.f32 %v8047, %v9363
        %9702 = vmax.xlane.f32.xlu0 %v9701
        %v9703 = vpop.xlane.xlu0 %9702
        %v9704 = vmax.f32 %v8049, %v9365
        %9705 = vmax.xlane.f32.xlu0 %v9704
        %v9706 = vpop.xlane.xlu0 %9705
        %v9707 = vmax.f32 %v8052, %v9368
        %9708 = vmax.xlane.f32.xlu0 %v9707
        %v9709 = vpop.xlane.xlu0 %9708
        %v9710 = vmax.f32 %v8054, %v9370
        %9711 = vmax.xlane.f32.xlu0 %v9710
        %v9712 = vpop.xlane.xlu0 %9711
        %v9713 = vmax.f32 %v8057, %v9373
        %9714 = vmax.xlane.f32.xlu0 %v9713
        %v9715 = vpop.xlane.xlu0 %9714
        %v9716 = vmax.f32 %v8059, %v9375
        %9717 = vmax.xlane.f32.xlu0 %v9716
        %v9718 = vpop.xlane.xlu0 %9717
        %v9719 = vmax.f32 %v8062, %v9378
        %9720 = vmax.xlane.f32.xlu0 %v9719
        %v9721 = vpop.xlane.xlu0 %9720
        %v9722 = vmax.f32 %v8064, %v9380
        %9723 = vmax.xlane.f32.xlu0 %v9722
        %v9724 = vpop.xlane.xlu0 %9723
        %v9725 = vmax.f32 %v8067, %v9383
        %9726 = vmax.xlane.f32.xlu0 %v9725
        %v9727 = vpop.xlane.xlu0 %9726
        %v9728 = vmax.f32 %v8069, %v9385
        %9729 = vmax.xlane.f32.xlu0 %v9728
        %v9730 = vpop.xlane.xlu0 %9729
        %v9731 = vmax.f32 %v8072, %v9388
        %9732 = vmax.xlane.f32.xlu0 %v9731
        %v9733 = vpop.xlane.xlu0 %9732
        %v9734 = vmax.f32 %v8074, %v9390
        %9735 = vmax.xlane.f32.xlu0 %v9734
        %v9736 = vpop.xlane.xlu0 %9735
        %v9737 = vmax.f32 %v8077, %v9393
        %9738 = vmax.xlane.f32.xlu0 %v9737
        %v9739 = vpop.xlane.xlu0 %9738
        %v9740 = vmax.f32 %v8079, %v9395
        %9741 = vmax.xlane.f32.xlu0 %v9740
        %v9742 = vpop.xlane.xlu0 %9741
        %v9743 = vmax.f32 %v8082, %v9398
        %9744 = vmax.xlane.f32.xlu0 %v9743
        %v9745 = vpop.xlane.xlu0 %9744
        %v9746 = vmax.f32 %v8084, %v9400
        %9747 = vmax.xlane.f32.xlu0 %v9746
        %v9748 = vpop.xlane.xlu0 %9747
        %v9749 = vmax.f32 %v8087, %v9403
        %9750 = vmax.xlane.f32.xlu0 %v9749
        %v9751 = vpop.xlane.xlu0 %9750
        %v9752 = vmax.f32 %v8089, %v9405
        %9753 = vmax.xlane.f32.xlu0 %v9752
        %v9754 = vpop.xlane.xlu0 %9753
        %v9755 = vmax.f32 %v8092, %v9408
        %9756 = vmax.xlane.f32.xlu0 %v9755
        %v9757 = vpop.xlane.xlu0 %9756
        %v9758 = vmax.f32 %v8094, %v9410
        %9759 = vmax.xlane.f32.xlu0 %v9758
        %v9760 = vpop.xlane.xlu0 %9759
        %v9761 = vmax.f32 %v8097, %v9413
        %9762 = vmax.xlane.f32.xlu0 %v9761
        %v9763 = vpop.xlane.xlu0 %9762
        %v9764 = vmax.f32 %v8099, %v9415
        %9765 = vmax.xlane.f32.xlu0 %v9764
        %v9766 = vpop.xlane.xlu0 %9765
        %v9767 = vmax.f32 %v8102, %v9418
        %9768 = vmax.xlane.f32.xlu0 %v9767
        %v9769 = vpop.xlane.xlu0 %9768
        %v9770 = vmax.f32 %v8104, %v9420
        %9771 = vmax.xlane.f32.xlu0 %v9770
        %v9772 = vpop.xlane.xlu0 %9771
        %v9773 = vmax.f32 %v8107, %v9423
        %9774 = vmax.xlane.f32.xlu0 %v9773
        %v9775 = vpop.xlane.xlu0 %9774
        %v9776 = vmax.f32 %v8109, %v9425
        %9777 = vmax.xlane.f32.xlu0 %v9776
        %v9778 = vpop.xlane.xlu0 %9777
        %v9779 = vmax.f32 %v8112, %v9428
        %9780 = vmax.xlane.f32.xlu0 %v9779
        %v9781 = vpop.xlane.xlu0 %9780
        %v9782 = vmax.f32 %v8114, %v9430
        %9783 = vmax.xlane.f32.xlu0 %v9782
        %v9784 = vpop.xlane.xlu0 %9783
        %v9785 = vmax.f32 %v8117, %v9433
        %9786 = vmax.xlane.f32.xlu0 %v9785
        %v9787 = vpop.xlane.xlu0 %9786
        %v9788 = vmax.f32 %v8119, %v9435
        %9789 = vmax.xlane.f32.xlu0 %v9788
        %v9790 = vpop.xlane.xlu0 %9789
        %v9791 = vmax.f32 %v8122, %v9438
        %9792 = vmax.xlane.f32.xlu0 %v9791
        %v9793 = vpop.xlane.xlu0 %9792
        %v9794 = vmax.f32 %v8124, %v9440
        %9795 = vmax.xlane.f32.xlu0 %v9794
        %v9796 = vpop.xlane.xlu0 %9795
        %v9797 = vmax.f32 %v8127, %v9443
        %9798 = vmax.xlane.f32.xlu0 %v9797
        %v9799 = vpop.xlane.xlu0 %9798
        %v9800 = vmax.f32 %v8129, %v9445
        %9801 = vmax.xlane.f32.xlu0 %v9800
        %v9802 = vpop.xlane.xlu0 %9801
        %v9803 = vmax.f32 %v8132, %v9448
        %9804 = vmax.xlane.f32.xlu0 %v9803
        %v9805 = vpop.xlane.xlu0 %9804
        %v9806 = vmax.f32 %v8134, %v9450
        %9807 = vmax.xlane.f32.xlu0 %v9806
        %v9808 = vpop.xlane.xlu0 %9807
        %v9809 = vmax.f32 %v8137, %v9453
        %9810 = vmax.xlane.f32.xlu0 %v9809
        %v9811 = vpop.xlane.xlu0 %9810
        %v9812 = vmax.f32 %v8139, %v9455
        %9813 = vmax.xlane.f32.xlu0 %v9812
        %v9814 = vpop.xlane.xlu0 %9813
        %v9815 = vmax.f32 %v8142, %v9458
        %9816 = vmax.xlane.f32.xlu0 %v9815
        %v9817 = vpop.xlane.xlu0 %9816
        %v9818 = vmax.f32 %v8144, %v9460
        %9819 = vmax.xlane.f32.xlu0 %v9818
        %v9820 = vpop.xlane.xlu0 %9819
        %v9821 = vmax.f32 %v8147, %v9463
        %9822 = vmax.xlane.f32.xlu0 %v9821
        %v9823 = vpop.xlane.xlu0 %9822
        %v9824 = vmax.f32 %v8149, %v9465
        %9825 = vmax.xlane.f32.xlu0 %v9824
        %v9826 = vpop.xlane.xlu0 %9825
        %v9827 = vmax.f32 %v8152, %v9468
        %9828 = vmax.xlane.f32.xlu0 %v9827
        %v9829 = vpop.xlane.xlu0 %9828
        %v9830 = vmax.f32 %v8154, %v9470
        %9831 = vmax.xlane.f32.xlu0 %v9830
        %v9832 = vpop.xlane.xlu0 %9831
        %v9833 = vmax.f32 %v8157, %v9473
        %9834 = vmax.xlane.f32.xlu0 %v9833
        %v9835 = vpop.xlane.xlu0 %9834
        %v9836 = vmax.f32 %v8159, %v9475
        %9837 = vmax.xlane.f32.xlu0 %v9836
        %v9838 = vpop.xlane.xlu0 %9837
        %v9839 = vmax.f32 %v8162, %v9478
        %9840 = vmax.xlane.f32.xlu0 %v9839
        %v9841 = vpop.xlane.xlu0 %9840
        %v9842 = vmax.f32 %v8164, %v9480
        %9843 = vmax.xlane.f32.xlu0 %v9842
        %v9844 = vpop.xlane.xlu0 %9843
        %v9845 = vmax.f32 %v8167, %v9483
        %9846 = vmax.xlane.f32.xlu0 %v9845
        %v9847 = vpop.xlane.xlu0 %9846
        %v9848 = vmax.f32 %v8169, %v9485
        %9849 = vmax.xlane.f32.xlu0 %v9848
        %v9850 = vpop.xlane.xlu0 %9849
        %v9851 = vmax.f32 %v8172, %v9488
        %9852 = vmax.xlane.f32.xlu0 %v9851
        %v9853 = vpop.xlane.xlu0 %9852
        %v9854 = vmax.f32 %v8174, %v9490
        %9855 = vmax.xlane.f32.xlu0 %v9854
        %v9856 = vpop.xlane.xlu0 %9855
        %v9857 = vmax.f32 %v8177, %v9493
        %9858 = vmax.xlane.f32.xlu0 %v9857
        %v9859 = vpop.xlane.xlu0 %9858
        %v9860 = vmax.f32 %v8179, %v9495
        %9861 = vmax.xlane.f32.xlu0 %v9860
        %v9862 = vpop.xlane.xlu0 %9861
        %v9863 = vmax.f32 %v8182, %v9498
        %9864 = vmax.xlane.f32.xlu0 %v9863
        %v9865 = vpop.xlane.xlu0 %9864
        %v9866 = vmax.f32 %v8184, %v9500
        %9867 = vmax.xlane.f32.xlu0 %v9866
        %v9868 = vpop.xlane.xlu0 %9867
        %v9869 = vmax.f32 %v8187, %v9503
        %9870 = vmax.xlane.f32.xlu0 %v9869
        %v9871 = vpop.xlane.xlu0 %9870
        %v9872 = vmax.f32 %v8189, %v9505
        %9873 = vmax.xlane.f32.xlu0 %v9872
        %v9874 = vpop.xlane.xlu0 %9873
        %v9875 = vmax.f32 %v8192, %v9508
        %9876 = vmax.xlane.f32.xlu0 %v9875
        %v9877 = vpop.xlane.xlu0 %9876
        %v9878 = vmax.f32 %v8194, %v9510
        %9879 = vmax.xlane.f32.xlu0 %v9878
        %v9880 = vpop.xlane.xlu0 %9879
        %v9881 = vmax.f32 %v8197, %v9513
        %9882 = vmax.xlane.f32.xlu0 %v9881
        %v9883 = vpop.xlane.xlu0 %9882
        %v9884 = vmax.f32 %v8199, %v9515
        %9885 = vmax.xlane.f32.xlu0 %v9884
        %v9886 = vpop.xlane.xlu0 %9885
        %v9887 = vmax.f32 %v8202, %v9518
        %9888 = vmax.xlane.f32.xlu0 %v9887
        %v9889 = vpop.xlane.xlu0 %9888
        %v9890 = vmax.f32 %v8204, %v9520
        %9891 = vmax.xlane.f32.xlu0 %v9890
        %v9892 = vpop.xlane.xlu0 %9891
        %v9893 = vmax.f32 %v8207, %v9523
        %9894 = vmax.xlane.f32.xlu0 %v9893
        %v9895 = vpop.xlane.xlu0 %9894
        %v9896 = vmax.f32 %v8209, %v9525
        %9897 = vmax.xlane.f32.xlu0 %v9896
        %v9898 = vpop.xlane.xlu0 %9897
        %v9899 = vmax.f32 %v8212, %v9528
        %9900 = vmax.xlane.f32.xlu0 %v9899
        %v9901 = vpop.xlane.xlu0 %9900
        %v9902 = vmax.f32 %v8214, %v9530
        %9903 = vmax.xlane.f32.xlu0 %v9902
        %v9904 = vpop.xlane.xlu0 %9903
        %v9905 = vmax.f32 %v8217, %v9533
        %9906 = vmax.xlane.f32.xlu0 %v9905
        %v9907 = vpop.xlane.xlu0 %9906
        %v9908 = vmax.f32 %v8219, %v9535
        %9909 = vmax.xlane.f32.xlu0 %v9908
        %v9910 = vpop.xlane.xlu0 %9909
        %v9911 = vmax.f32 %v8222, %v9538
        %9912 = vmax.xlane.f32.xlu0 %v9911
        %v9913 = vpop.xlane.xlu0 %9912
        %v9914 = vmax.f32 %v8224, %v9540
        %9915 = vmax.xlane.f32.xlu0 %v9914
        %v9916 = vpop.xlane.xlu0 %9915
        %v9917 = vmax.f32 %v8227, %v9543
        %9918 = vmax.xlane.f32.xlu0 %v9917
        %v9919 = vpop.xlane.xlu0 %9918
        %v9920 = vmax.f32 %v8229, %v9545
        %9921 = vmax.xlane.f32.xlu0 %v9920
        %v9922 = vpop.xlane.xlu0 %9921
        %v9923 = vmax.f32 %v8232, %v9548
        %9924 = vmax.xlane.f32.xlu0 %v9923
        %v9925 = vpop.xlane.xlu0 %9924
        %v9926 = vmax.f32 %v8234, %v9550
        %9927 = vmax.xlane.f32.xlu0 %v9926
        %v9928 = vpop.xlane.xlu0 %9927
        %v9929 = vmax.f32 %v8237, %v9553
        %9930 = vmax.xlane.f32.xlu0 %v9929
        %v9931 = vpop.xlane.xlu0 %9930
        %v9932 = vmax.f32 %v8239, %v9555
        %9933 = vmax.xlane.f32.xlu0 %v9932
        %v9934 = vpop.xlane.xlu0 %9933
        %v9935 = vmax.f32 %v8242, %v9558
        %9936 = vmax.xlane.f32.xlu0 %v9935
        %v9937 = vpop.xlane.xlu0 %9936
        %v9938 = vmax.f32 %v8244, %v9560
        %9939 = vmax.xlane.f32.xlu0 %v9938
        %v9940 = vpop.xlane.xlu0 %9939
        %v9941 = vmax.f32 %v8247, %v9563
        %9942 = vmax.xlane.f32.xlu0 %v9941
        %v9943 = vpop.xlane.xlu0 %9942
        %v9944 = vmax.f32 %v8249, %v9565
        %9945 = vmax.xlane.f32.xlu0 %v9944
        %v9946 = vpop.xlane.xlu0 %9945
        %v9947 = vmax.f32 %v8252, %v9568
        %9948 = vmax.xlane.f32.xlu0 %v9947
        %v9949 = vpop.xlane.xlu0 %9948
        %v9950 = vmax.f32 %v8254, %v9570
        %9951 = vmax.xlane.f32.xlu0 %v9950
        %v9952 = vpop.xlane.xlu0 %9951
        %v9953 = vmax.f32 %v8257, %v9573
        %9954 = vmax.xlane.f32.xlu0 %v9953
        %v9955 = vpop.xlane.xlu0 %9954
        %v9956 = vmax.f32 %v8259, %v9575
        %9957 = vmax.xlane.f32.xlu0 %v9956
        %v9958 = vpop.xlane.xlu0 %9957
        %v9959 = vmax.f32 %v8262, %v9578
        %9960 = vmax.xlane.f32.xlu0 %v9959
        %v9961 = vpop.xlane.xlu0 %9960
        %v9962 = vmax.f32 %v8264, %v9580
        %9963 = vmax.xlane.f32.xlu0 %v9962
        %v9964 = vpop.xlane.xlu0 %9963
        %v9965 = vmax.f32 %v8267, %v9583
        %9966 = vmax.xlane.f32.xlu0 %v9965
        %v9967 = vpop.xlane.xlu0 %9966
        %v9968 = vmax.f32 %v8269, %v9585
        %9969 = vmax.xlane.f32.xlu0 %v9968
        %v9970 = vpop.xlane.xlu0 %9969
        %v9971 = vmax.f32 %v9589, 0.0
        %v9972 = vmax.f32 %v9592, 0.0
        %v9973 = vmax.f32 %v9595, 0.0
        %v9974 = vmax.f32 %v9598, 0.0
        %v9975 = vmax.f32 %v9601, 0.0
        %v9976 = vmax.f32 %v9604, 0.0
        %v9977 = vmax.f32 %v9607, 0.0
        %v9978 = vmax.f32 %v9610, 0.0
        %v9979 = vmax.f32 %v9613, 0.0
        %v9980 = vmax.f32 %v9616, 0.0
        %v9981 = vmax.f32 %v9619, 0.0
        %v9982 = vmax.f32 %v9622, 0.0
        %v9983 = vmax.f32 %v9625, 0.0
        %v9984 = vmax.f32 %v9628, 0.0
        %v9985 = vmax.f32 %v9631, 0.0
        %v9986 = vmax.f32 %v9634, 0.0
        %v9987 = vmax.f32 %v9637, 0.0
        %v9988 = vmax.f32 %v9640, 0.0
        %v9989 = vmax.f32 %v9643, 0.0
        %v9990 = vmax.f32 %v9646, 0.0
        %v9991 = vmax.f32 %v9649, 0.0
        %v9992 = vmax.f32 %v9652, 0.0
        %v9993 = vmax.f32 %v9655, 0.0
        %v9994 = vmax.f32 %v9658, 0.0
        %v9995 = vmax.f32 %v9661, 0.0
        %v9996 = vmax.f32 %v9664, 0.0
        %v9997 = vmax.f32 %v9667, 0.0
        %v9998 = vmax.f32 %v9670, 0.0
        %v9999 = vmax.f32 %v9673, 0.0
        %v10000 = vmax.f32 %v9676, 0.0
        %v10001 = vmax.f32 %v9679, 0.0
        %v10002 = vmax.f32 %v9682, 0.0
        %v10003 = vmax.f32 %v9685, 0.0
        %v10004 = vmax.f32 %v9688, 0.0
        %v10005 = vmax.f32 %v9691, 0.0
        %v10006 = vmax.f32 %v9694, 0.0
        %v10007 = vmax.f32 %v9697, 0.0
        %v10008 = vmax.f32 %v9700, 0.0
        %v10009 = vmax.f32 %v9703, 0.0
        %v10010 = vmax.f32 %v9706, 0.0
        %v10011 = vmax.f32 %v9709, 0.0
        %v10012 = vmax.f32 %v9712, 0.0
        %v10013 = vmax.f32 %v9715, 0.0
        %v10014 = vmax.f32 %v9718, 0.0
        %v10015 = vmax.f32 %v9721, 0.0
        %v10016 = vmax.f32 %v9724, 0.0
        %v10017 = vmax.f32 %v9727, 0.0
        %v10018 = vmax.f32 %v9730, 0.0
        %v10019 = vmax.f32 %v9733, 0.0
        %v10020 = vmax.f32 %v9736, 0.0
        %v10021 = vmax.f32 %v9739, 0.0
        %v10022 = vmax.f32 %v9742, 0.0
        %v10023 = vmax.f32 %v9745, 0.0
        %v10024 = vmax.f32 %v9748, 0.0
        %v10025 = vmax.f32 %v9751, 0.0
        %v10026 = vmax.f32 %v9754, 0.0
        %v10027 = vmax.f32 %v9757, 0.0
        %v10028 = vmax.f32 %v9760, 0.0
        %v10029 = vmax.f32 %v9763, 0.0
        %v10030 = vmax.f32 %v9766, 0.0
        %v10031 = vmax.f32 %v9769, 0.0
        %v10032 = vmax.f32 %v9772, 0.0
        %v10033 = vmax.f32 %v9775, 0.0
        %v10034 = vmax.f32 %v9778, 0.0
        %v10035 = vmax.f32 %v9781, 0.0
        %v10036 = vmax.f32 %v9784, 0.0
        %v10037 = vmax.f32 %v9787, 0.0
        %v10038 = vmax.f32 %v9790, 0.0
        %v10039 = vmax.f32 %v9793, 0.0
        %v10040 = vmax.f32 %v9796, 0.0
        %v10041 = vmax.f32 %v9799, 0.0
        %v10042 = vmax.f32 %v9802, 0.0
        %v10043 = vmax.f32 %v9805, 0.0
        %v10044 = vmax.f32 %v9808, 0.0
        %v10045 = vmax.f32 %v9811, 0.0
        %v10046 = vmax.f32 %v9814, 0.0
        %v10047 = vmax.f32 %v9817, 0.0
        %v10048 = vmax.f32 %v9820, 0.0
        %v10049 = vmax.f32 %v9823, 0.0
        %v10050 = vmax.f32 %v9826, 0.0
        %v10051 = vmax.f32 %v9829, 0.0
        %v10052 = vmax.f32 %v9832, 0.0
        %v10053 = vmax.f32 %v9835, 0.0
        %v10054 = vmax.f32 %v9838, 0.0
        %v10055 = vmax.f32 %v9841, 0.0
        %v10056 = vmax.f32 %v9844, 0.0
        %v10057 = vmax.f32 %v9847, 0.0
        %v10058 = vmax.f32 %v9850, 0.0
        %v10059 = vmax.f32 %v9853, 0.0
        %v10060 = vmax.f32 %v9856, 0.0
        %v10061 = vmax.f32 %v9859, 0.0
        %v10062 = vmax.f32 %v9862, 0.0
        %v10063 = vmax.f32 %v9865, 0.0
        %v10064 = vmax.f32 %v9868, 0.0
        %v10065 = vmax.f32 %v9871, 0.0
        %v10066 = vmax.f32 %v9874, 0.0
        %v10067 = vmax.f32 %v9877, 0.0
        %v10068 = vmax.f32 %v9880, 0.0
        %v10069 = vmax.f32 %v9883, 0.0
        %v10070 = vmax.f32 %v9886, 0.0
        %v10071 = vmax.f32 %v9889, 0.0
        %v10072 = vmax.f32 %v9892, 0.0
        %v10073 = vmax.f32 %v9895, 0.0
        %v10074 = vmax.f32 %v9898, 0.0
        %v10075 = vmax.f32 %v9901, 0.0
        %v10076 = vmax.f32 %v9904, 0.0
        %v10077 = vmax.f32 %v9907, 0.0
        %v10078 = vmax.f32 %v9910, 0.0
        %v10079 = vmax.f32 %v9913, 0.0
        %v10080 = vmax.f32 %v9916, 0.0
        %v10081 = vmax.f32 %v9919, 0.0
        %v10082 = vmax.f32 %v9922, 0.0
        %v10083 = vmax.f32 %v9925, 0.0
        %v10084 = vmax.f32 %v9928, 0.0
        %v10085 = vmax.f32 %v9931, 0.0
        %v10086 = vmax.f32 %v9934, 0.0
        %v10087 = vmax.f32 %v9937, 0.0
        %v10088 = vmax.f32 %v9940, 0.0
        %v10089 = vmax.f32 %v9943, 0.0
        %v10090 = vmax.f32 %v9946, 0.0
        %v10091 = vmax.f32 %v9949, 0.0
        %v10092 = vmax.f32 %v9952, 0.0
        %v10093 = vmax.f32 %v9955, 0.0
        %v10094 = vmax.f32 %v9958, 0.0
        %v10095 = vmax.f32 %v9961, 0.0
        %v10096 = vmax.f32 %v9964, 0.0
        %v10097 = vmax.f32 %v9967, 0.0
        %v10098 = vmax.f32 %v9970, 0.0
        %p10099 = scmp.eq.s32.totalorder %s34, 0
        // Predicated region
        $region103: #{tpu_custom_call.1} parent=89 // pred_check
          %p10100 = pneg %p10099
        $region104: #{tpu_custom_call.1} parent=89 // pred_check_branch
          %10102 = sbr.rel (%p10100) target = $region106
        $region105: #{tpu_custom_call.1} parent=89 // pred_region
          %vm10103 = vcmask 7168
          %10104 = vst.msk [vmem:[%s495] sm:$0xff] %vm10103, %v9971
          %10105 = vst.msk [vmem:[%s495 + $0x8] sm:$0xff] %vm10103, %v9972
          %10106 = vst.msk [vmem:[%s495 + $0x10] sm:$0xff] %vm10103, %v9973
          %10107 = vst.msk [vmem:[%s495 + $0x18] sm:$0xff] %vm10103, %v9974
          %10108 = vst.msk [vmem:[%s495 + $0x20] sm:$0xff] %vm10103, %v9975
          %10109 = vst.msk [vmem:[%s495 + $0x28] sm:$0xff] %vm10103, %v9976
          %10110 = vst.msk [vmem:[%s495 + $0x30] sm:$0xff] %vm10103, %v9977
          %10111 = vst.msk [vmem:[%s495 + $0x38] sm:$0xff] %vm10103, %v9978
          %10112 = vst.msk [vmem:[%s495 + $0x40] sm:$0xff] %vm10103, %v9979
          %10113 = vst.msk [vmem:[%s495 + $0x48] sm:$0xff] %vm10103, %v9980
          %10114 = vst.msk [vmem:[%s495 + $0x50] sm:$0xff] %vm10103, %v9981
          %10115 = vst.msk [vmem:[%s495 + $0x58] sm:$0xff] %vm10103, %v9982
          %10116 = vst.msk [vmem:[%s495 + $0x60] sm:$0xff] %vm10103, %v9983
          %10117 = vst.msk [vmem:[%s495 + $0x68] sm:$0xff] %vm10103, %v9984
          %10118 = vst.msk [vmem:[%s495 + $0x70] sm:$0xff] %vm10103, %v9985
          %10119 = vst.msk [vmem:[%s495 + $0x78] sm:$0xff] %vm10103, %v9986
          %10120 = vst.msk [vmem:[%s495 + $0x80] sm:$0xff] %vm10103, %v9987
          %10121 = vst.msk [vmem:[%s495 + $0x88] sm:$0xff] %vm10103, %v9988
          %10122 = vst.msk [vmem:[%s495 + $0x90] sm:$0xff] %vm10103, %v9989
          %10123 = vst.msk [vmem:[%s495 + $0x98] sm:$0xff] %vm10103, %v9990
          %10124 = vst.msk [vmem:[%s495 + $0xa0] sm:$0xff] %vm10103, %v9991
          %10125 = vst.msk [vmem:[%s495 + $0xa8] sm:$0xff] %vm10103, %v9992
          %10126 = vst.msk [vmem:[%s495 + $0xb0] sm:$0xff] %vm10103, %v9993
          %10127 = vst.msk [vmem:[%s495 + $0xb8] sm:$0xff] %vm10103, %v9994
          %10128 = vst.msk [vmem:[%s495 + $0xc0] sm:$0xff] %vm10103, %v9995
          %10129 = vst.msk [vmem:[%s495 + $0xc8] sm:$0xff] %vm10103, %v9996
          %10130 = vst.msk [vmem:[%s495 + $0xd0] sm:$0xff] %vm10103, %v9997
          %10131 = vst.msk [vmem:[%s495 + $0xd8] sm:$0xff] %vm10103, %v9998
          %10132 = vst.msk [vmem:[%s495 + $0xe0] sm:$0xff] %vm10103, %v9999
          %10133 = vst.msk [vmem:[%s495 + $0xe8] sm:$0xff] %vm10103, %v10000
          %10134 = vst.msk [vmem:[%s495 + $0xf0] sm:$0xff] %vm10103, %v10001
          %10135 = vst.msk [vmem:[%s495 + $0xf8] sm:$0xff] %vm10103, %v10002
          %10136 = vst.msk [vmem:[%s495 + $0x100] sm:$0xff] %vm10103, %v10003
          %10137 = vst.msk [vmem:[%s495 + $0x108] sm:$0xff] %vm10103, %v10004
          %10138 = vst.msk [vmem:[%s495 + $0x110] sm:$0xff] %vm10103, %v10005
          %10139 = vst.msk [vmem:[%s495 + $0x118] sm:$0xff] %vm10103, %v10006
          %10140 = vst.msk [vmem:[%s495 + $0x120] sm:$0xff] %vm10103, %v10007
          %10141 = vst.msk [vmem:[%s495 + $0x128] sm:$0xff] %vm10103, %v10008
          %10142 = vst.msk [vmem:[%s495 + $0x130] sm:$0xff] %vm10103, %v10009
          %10143 = vst.msk [vmem:[%s495 + $0x138] sm:$0xff] %vm10103, %v10010
          %10144 = vst.msk [vmem:[%s495 + $0x140] sm:$0xff] %vm10103, %v10011
          %10145 = vst.msk [vmem:[%s495 + $0x148] sm:$0xff] %vm10103, %v10012
          %10146 = vst.msk [vmem:[%s495 + $0x150] sm:$0xff] %vm10103, %v10013
          %10147 = vst.msk [vmem:[%s495 + $0x158] sm:$0xff] %vm10103, %v10014
          %10148 = vst.msk [vmem:[%s495 + $0x160] sm:$0xff] %vm10103, %v10015
          %10149 = vst.msk [vmem:[%s495 + $0x168] sm:$0xff] %vm10103, %v10016
          %10150 = vst.msk [vmem:[%s495 + $0x170] sm:$0xff] %vm10103, %v10017
          %10151 = vst.msk [vmem:[%s495 + $0x178] sm:$0xff] %vm10103, %v10018
          %10152 = vst.msk [vmem:[%s495 + $0x180] sm:$0xff] %vm10103, %v10019
          %10153 = vst.msk [vmem:[%s495 + $0x188] sm:$0xff] %vm10103, %v10020
          %10154 = vst.msk [vmem:[%s495 + $0x190] sm:$0xff] %vm10103, %v10021
          %10155 = vst.msk [vmem:[%s495 + $0x198] sm:$0xff] %vm10103, %v10022
          %10156 = vst.msk [vmem:[%s495 + $0x1a0] sm:$0xff] %vm10103, %v10023
          %10157 = vst.msk [vmem:[%s495 + $0x1a8] sm:$0xff] %vm10103, %v10024
          %10158 = vst.msk [vmem:[%s495 + $0x1b0] sm:$0xff] %vm10103, %v10025
          %10159 = vst.msk [vmem:[%s495 + $0x1b8] sm:$0xff] %vm10103, %v10026
          %10160 = vst.msk [vmem:[%s495 + $0x1c0] sm:$0xff] %vm10103, %v10027
          %10161 = vst.msk [vmem:[%s495 + $0x1c8] sm:$0xff] %vm10103, %v10028
          %10162 = vst.msk [vmem:[%s495 + $0x1d0] sm:$0xff] %vm10103, %v10029
          %10163 = vst.msk [vmem:[%s495 + $0x1d8] sm:$0xff] %vm10103, %v10030
          %10164 = vst.msk [vmem:[%s495 + $0x1e0] sm:$0xff] %vm10103, %v10031
          %10165 = vst.msk [vmem:[%s495 + $0x1e8] sm:$0xff] %vm10103, %v10032
          %10166 = vst.msk [vmem:[%s495 + $0x1f0] sm:$0xff] %vm10103, %v10033
          %10167 = vst.msk [vmem:[%s495 + $0x1f8] sm:$0xff] %vm10103, %v10034
          %10168 = vst.msk [vmem:[%s495 + $0x200] sm:$0xff] %vm10103, %v10035
          %10169 = vst.msk [vmem:[%s495 + $0x208] sm:$0xff] %vm10103, %v10036
          %10170 = vst.msk [vmem:[%s495 + $0x210] sm:$0xff] %vm10103, %v10037
          %10171 = vst.msk [vmem:[%s495 + $0x218] sm:$0xff] %vm10103, %v10038
          %10172 = vst.msk [vmem:[%s495 + $0x220] sm:$0xff] %vm10103, %v10039
          %10173 = vst.msk [vmem:[%s495 + $0x228] sm:$0xff] %vm10103, %v10040
          %10174 = vst.msk [vmem:[%s495 + $0x230] sm:$0xff] %vm10103, %v10041
          %10175 = vst.msk [vmem:[%s495 + $0x238] sm:$0xff] %vm10103, %v10042
          %10176 = vst.msk [vmem:[%s495 + $0x240] sm:$0xff] %vm10103, %v10043
          %10177 = vst.msk [vmem:[%s495 + $0x248] sm:$0xff] %vm10103, %v10044
          %10178 = vst.msk [vmem:[%s495 + $0x250] sm:$0xff] %vm10103, %v10045
          %10179 = vst.msk [vmem:[%s495 + $0x258] sm:$0xff] %vm10103, %v10046
          %10180 = vst.msk [vmem:[%s495 + $0x260] sm:$0xff] %vm10103, %v10047
          %10181 = vst.msk [vmem:[%s495 + $0x268] sm:$0xff] %vm10103, %v10048
          %10182 = vst.msk [vmem:[%s495 + $0x270] sm:$0xff] %vm10103, %v10049
          %10183 = vst.msk [vmem:[%s495 + $0x278] sm:$0xff] %vm10103, %v10050
          %10184 = vst.msk [vmem:[%s495 + $0x280] sm:$0xff] %vm10103, %v10051
          %10185 = vst.msk [vmem:[%s495 + $0x288] sm:$0xff] %vm10103, %v10052
          %10186 = vst.msk [vmem:[%s495 + $0x290] sm:$0xff] %vm10103, %v10053
          %10187 = vst.msk [vmem:[%s495 + $0x298] sm:$0xff] %vm10103, %v10054
          %10188 = vst.msk [vmem:[%s495 + $0x2a0] sm:$0xff] %vm10103, %v10055
          %10189 = vst.msk [vmem:[%s495 + $0x2a8] sm:$0xff] %vm10103, %v10056
          %10190 = vst.msk [vmem:[%s495 + $0x2b0] sm:$0xff] %vm10103, %v10057
          %10191 = vst.msk [vmem:[%s495 + $0x2b8] sm:$0xff] %vm10103, %v10058
          %10192 = vst.msk [vmem:[%s495 + $0x2c0] sm:$0xff] %vm10103, %v10059
          %10193 = vst.msk [vmem:[%s495 + $0x2c8] sm:$0xff] %vm10103, %v10060
          %10194 = vst.msk [vmem:[%s495 + $0x2d0] sm:$0xff] %vm10103, %v10061
          %10195 = vst.msk [vmem:[%s495 + $0x2d8] sm:$0xff] %vm10103, %v10062
          %10196 = vst.msk [vmem:[%s495 + $0x2e0] sm:$0xff] %vm10103, %v10063
          %10197 = vst.msk [vmem:[%s495 + $0x2e8] sm:$0xff] %vm10103, %v10064
          %10198 = vst.msk [vmem:[%s495 + $0x2f0] sm:$0xff] %vm10103, %v10065
          %10199 = vst.msk [vmem:[%s495 + $0x2f8] sm:$0xff] %vm10103, %v10066
          %10200 = vst.msk [vmem:[%s495 + $0x300] sm:$0xff] %vm10103, %v10067
          %10201 = vst.msk [vmem:[%s495 + $0x308] sm:$0xff] %vm10103, %v10068
          %10202 = vst.msk [vmem:[%s495 + $0x310] sm:$0xff] %vm10103, %v10069
          %10203 = vst.msk [vmem:[%s495 + $0x318] sm:$0xff] %vm10103, %v10070
          %10204 = vst.msk [vmem:[%s495 + $0x320] sm:$0xff] %vm10103, %v10071
          %10205 = vst.msk [vmem:[%s495 + $0x328] sm:$0xff] %vm10103, %v10072
          %10206 = vst.msk [vmem:[%s495 + $0x330] sm:$0xff] %vm10103, %v10073
          %10207 = vst.msk [vmem:[%s495 + $0x338] sm:$0xff] %vm10103, %v10074
          %10208 = vst.msk [vmem:[%s495 + $0x340] sm:$0xff] %vm10103, %v10075
          %10209 = vst.msk [vmem:[%s495 + $0x348] sm:$0xff] %vm10103, %v10076
          %10210 = vst.msk [vmem:[%s495 + $0x350] sm:$0xff] %vm10103, %v10077
          %10211 = vst.msk [vmem:[%s495 + $0x358] sm:$0xff] %vm10103, %v10078
          %10212 = vst.msk [vmem:[%s495 + $0x360] sm:$0xff] %vm10103, %v10079
          %10213 = vst.msk [vmem:[%s495 + $0x368] sm:$0xff] %vm10103, %v10080
          %10214 = vst.msk [vmem:[%s495 + $0x370] sm:$0xff] %vm10103, %v10081
          %10215 = vst.msk [vmem:[%s495 + $0x378] sm:$0xff] %vm10103, %v10082
          %10216 = vst.msk [vmem:[%s495 + $0x380] sm:$0xff] %vm10103, %v10083
          %10217 = vst.msk [vmem:[%s495 + $0x388] sm:$0xff] %vm10103, %v10084
          %10218 = vst.msk [vmem:[%s495 + $0x390] sm:$0xff] %vm10103, %v10085
          %10219 = vst.msk [vmem:[%s495 + $0x398] sm:$0xff] %vm10103, %v10086
          %10220 = vst.msk [vmem:[%s495 + $0x3a0] sm:$0xff] %vm10103, %v10087
          %10221 = vst.msk [vmem:[%s495 + $0x3a8] sm:$0xff] %vm10103, %v10088
          %10222 = vst.msk [vmem:[%s495 + $0x3b0] sm:$0xff] %vm10103, %v10089
          %10223 = vst.msk [vmem:[%s495 + $0x3b8] sm:$0xff] %vm10103, %v10090
          %10224 = vst.msk [vmem:[%s495 + $0x3c0] sm:$0xff] %vm10103, %v10091
          %10225 = vst.msk [vmem:[%s495 + $0x3c8] sm:$0xff] %vm10103, %v10092
          %10226 = vst.msk [vmem:[%s495 + $0x3d0] sm:$0xff] %vm10103, %v10093
          %10227 = vst.msk [vmem:[%s495 + $0x3d8] sm:$0xff] %vm10103, %v10094
          %10228 = vst.msk [vmem:[%s495 + $0x3e0] sm:$0xff] %vm10103, %v10095
          %10229 = vst.msk [vmem:[%s495 + $0x3e8] sm:$0xff] %vm10103, %v10096
          %10230 = vst.msk [vmem:[%s495 + $0x3f0] sm:$0xff] %vm10103, %v10097
          %10231 = vst.msk [vmem:[%s495 + $0x3f8] sm:$0xff] %vm10103, %v10098
        $region106: #{tpu_custom_call.1} parent=89 // pred_fallthru
          _
        %p10232 = scmp.gt.s32.totalorder %s34, 0
        // Predicated region
        $region107: #{tpu_custom_call.1} parent=89 // pred_check
          %p10233 = pneg %p10232
        $region108: #{tpu_custom_call.1} parent=89 // pred_check_branch
          %10235 = sbr.rel (%p10233) target = $region110
        $region109: #{tpu_custom_call.1} parent=89 // pred_region
          %v10236 = vld [vmem:[%s495] sm:$0xff]
          %v10237 = vld [vmem:[%s495 + $0x8] sm:$0xff]
          %v10238 = vld [vmem:[%s495 + $0x10] sm:$0xff]
          %v10239 = vld [vmem:[%s495 + $0x18] sm:$0xff]
          %v10240 = vld [vmem:[%s495 + $0x20] sm:$0xff]
          %v10241 = vld [vmem:[%s495 + $0x28] sm:$0xff]
          %v10242 = vld [vmem:[%s495 + $0x30] sm:$0xff]
          %v10243 = vld [vmem:[%s495 + $0x38] sm:$0xff]
          %v10244 = vld [vmem:[%s495 + $0x40] sm:$0xff]
          %v10245 = vld [vmem:[%s495 + $0x48] sm:$0xff]
          %v10246 = vld [vmem:[%s495 + $0x50] sm:$0xff]
          %v10247 = vld [vmem:[%s495 + $0x58] sm:$0xff]
          %v10248 = vld [vmem:[%s495 + $0x60] sm:$0xff]
          %v10249 = vld [vmem:[%s495 + $0x68] sm:$0xff]
          %v10250 = vld [vmem:[%s495 + $0x70] sm:$0xff]
          %v10251 = vld [vmem:[%s495 + $0x78] sm:$0xff]
          %v10252 = vld [vmem:[%s495 + $0x80] sm:$0xff]
          %v10253 = vld [vmem:[%s495 + $0x88] sm:$0xff]
          %v10254 = vld [vmem:[%s495 + $0x90] sm:$0xff]
          %v10255 = vld [vmem:[%s495 + $0x98] sm:$0xff]
          %v10256 = vld [vmem:[%s495 + $0xa0] sm:$0xff]
          %v10257 = vld [vmem:[%s495 + $0xa8] sm:$0xff]
          %v10258 = vld [vmem:[%s495 + $0xb0] sm:$0xff]
          %v10259 = vld [vmem:[%s495 + $0xb8] sm:$0xff]
          %v10260 = vld [vmem:[%s495 + $0xc0] sm:$0xff]
          %v10261 = vld [vmem:[%s495 + $0xc8] sm:$0xff]
          %v10262 = vld [vmem:[%s495 + $0xd0] sm:$0xff]
          %v10263 = vld [vmem:[%s495 + $0xd8] sm:$0xff]
          %v10264 = vld [vmem:[%s495 + $0xe0] sm:$0xff]
          %v10265 = vld [vmem:[%s495 + $0xe8] sm:$0xff]
          %v10266 = vld [vmem:[%s495 + $0xf0] sm:$0xff]
          %v10267 = vld [vmem:[%s495 + $0xf8] sm:$0xff]
          %v10268 = vld [vmem:[%s495 + $0x100] sm:$0xff]
          %v10269 = vld [vmem:[%s495 + $0x108] sm:$0xff]
          %v10270 = vld [vmem:[%s495 + $0x110] sm:$0xff]
          %v10271 = vld [vmem:[%s495 + $0x118] sm:$0xff]
          %v10272 = vld [vmem:[%s495 + $0x120] sm:$0xff]
          %v10273 = vld [vmem:[%s495 + $0x128] sm:$0xff]
          %v10274 = vld [vmem:[%s495 + $0x130] sm:$0xff]
          %v10275 = vld [vmem:[%s495 + $0x138] sm:$0xff]
          %v10276 = vld [vmem:[%s495 + $0x140] sm:$0xff]
          %v10277 = vld [vmem:[%s495 + $0x148] sm:$0xff]
          %v10278 = vld [vmem:[%s495 + $0x150] sm:$0xff]
          %v10279 = vld [vmem:[%s495 + $0x158] sm:$0xff]
          %v10280 = vld [vmem:[%s495 + $0x160] sm:$0xff]
          %v10281 = vld [vmem:[%s495 + $0x168] sm:$0xff]
          %v10282 = vld [vmem:[%s495 + $0x170] sm:$0xff]
          %v10283 = vld [vmem:[%s495 + $0x178] sm:$0xff]
          %v10284 = vld [vmem:[%s495 + $0x180] sm:$0xff]
          %v10285 = vld [vmem:[%s495 + $0x188] sm:$0xff]
          %v10286 = vld [vmem:[%s495 + $0x190] sm:$0xff]
          %v10287 = vld [vmem:[%s495 + $0x198] sm:$0xff]
          %v10288 = vld [vmem:[%s495 + $0x1a0] sm:$0xff]
          %v10289 = vld [vmem:[%s495 + $0x1a8] sm:$0xff]
          %v10290 = vld [vmem:[%s495 + $0x1b0] sm:$0xff]
          %v10291 = vld [vmem:[%s495 + $0x1b8] sm:$0xff]
          %v10292 = vld [vmem:[%s495 + $0x1c0] sm:$0xff]
          %v10293 = vld [vmem:[%s495 + $0x1c8] sm:$0xff]
          %v10294 = vld [vmem:[%s495 + $0x1d0] sm:$0xff]
          %v10295 = vld [vmem:[%s495 + $0x1d8] sm:$0xff]
          %v10296 = vld [vmem:[%s495 + $0x1e0] sm:$0xff]
          %v10297 = vld [vmem:[%s495 + $0x1e8] sm:$0xff]
          %v10298 = vld [vmem:[%s495 + $0x1f0] sm:$0xff]
          %v10299 = vld [vmem:[%s495 + $0x1f8] sm:$0xff]
          %v10300 = vld [vmem:[%s495 + $0x200] sm:$0xff]
          %v10301 = vld [vmem:[%s495 + $0x208] sm:$0xff]
          %v10302 = vld [vmem:[%s495 + $0x210] sm:$0xff]
          %v10303 = vld [vmem:[%s495 + $0x218] sm:$0xff]
          %v10304 = vld [vmem:[%s495 + $0x220] sm:$0xff]
          %v10305 = vld [vmem:[%s495 + $0x228] sm:$0xff]
          %v10306 = vld [vmem:[%s495 + $0x230] sm:$0xff]
          %v10307 = vld [vmem:[%s495 + $0x238] sm:$0xff]
          %v10308 = vld [vmem:[%s495 + $0x240] sm:$0xff]
          %v10309 = vld [vmem:[%s495 + $0x248] sm:$0xff]
          %v10310 = vld [vmem:[%s495 + $0x250] sm:$0xff]
          %v10311 = vld [vmem:[%s495 + $0x258] sm:$0xff]
          %v10312 = vld [vmem:[%s495 + $0x260] sm:$0xff]
          %v10313 = vld [vmem:[%s495 + $0x268] sm:$0xff]
          %v10314 = vld [vmem:[%s495 + $0x270] sm:$0xff]
          %v10315 = vld [vmem:[%s495 + $0x278] sm:$0xff]
          %v10316 = vld [vmem:[%s495 + $0x280] sm:$0xff]
          %v10317 = vld [vmem:[%s495 + $0x288] sm:$0xff]
          %v10318 = vld [vmem:[%s495 + $0x290] sm:$0xff]
          %v10319 = vld [vmem:[%s495 + $0x298] sm:$0xff]
          %v10320 = vld [vmem:[%s495 + $0x2a0] sm:$0xff]
          %v10321 = vld [vmem:[%s495 + $0x2a8] sm:$0xff]
          %v10322 = vld [vmem:[%s495 + $0x2b0] sm:$0xff]
          %v10323 = vld [vmem:[%s495 + $0x2b8] sm:$0xff]
          %v10324 = vld [vmem:[%s495 + $0x2c0] sm:$0xff]
          %v10325 = vld [vmem:[%s495 + $0x2c8] sm:$0xff]
          %v10326 = vld [vmem:[%s495 + $0x2d0] sm:$0xff]
          %v10327 = vld [vmem:[%s495 + $0x2d8] sm:$0xff]
          %v10328 = vld [vmem:[%s495 + $0x2e0] sm:$0xff]
          %v10329 = vld [vmem:[%s495 + $0x2e8] sm:$0xff]
          %v10330 = vld [vmem:[%s495 + $0x2f0] sm:$0xff]
          %v10331 = vld [vmem:[%s495 + $0x2f8] sm:$0xff]
          %v10332 = vld [vmem:[%s495 + $0x300] sm:$0xff]
          %v10333 = vld [vmem:[%s495 + $0x308] sm:$0xff]
          %v10334 = vld [vmem:[%s495 + $0x310] sm:$0xff]
          %v10335 = vld [vmem:[%s495 + $0x318] sm:$0xff]
          %v10336 = vld [vmem:[%s495 + $0x320] sm:$0xff]
          %v10337 = vld [vmem:[%s495 + $0x328] sm:$0xff]
          %v10338 = vld [vmem:[%s495 + $0x330] sm:$0xff]
          %v10339 = vld [vmem:[%s495 + $0x338] sm:$0xff]
          %v10340 = vld [vmem:[%s495 + $0x340] sm:$0xff]
          %v10341 = vld [vmem:[%s495 + $0x348] sm:$0xff]
          %v10342 = vld [vmem:[%s495 + $0x350] sm:$0xff]
          %v10343 = vld [vmem:[%s495 + $0x358] sm:$0xff]
          %v10344 = vld [vmem:[%s495 + $0x360] sm:$0xff]
          %v10345 = vld [vmem:[%s495 + $0x368] sm:$0xff]
          %v10346 = vld [vmem:[%s495 + $0x370] sm:$0xff]
          %v10347 = vld [vmem:[%s495 + $0x378] sm:$0xff]
          %v10348 = vld [vmem:[%s495 + $0x380] sm:$0xff]
          %v10349 = vld [vmem:[%s495 + $0x388] sm:$0xff]
          %v10350 = vld [vmem:[%s495 + $0x390] sm:$0xff]
          %v10351 = vld [vmem:[%s495 + $0x398] sm:$0xff]
          %v10352 = vld [vmem:[%s495 + $0x3a0] sm:$0xff]
          %v10353 = vld [vmem:[%s495 + $0x3a8] sm:$0xff]
          %v10354 = vld [vmem:[%s495 + $0x3b0] sm:$0xff]
          %v10355 = vld [vmem:[%s495 + $0x3b8] sm:$0xff]
          %v10356 = vld [vmem:[%s495 + $0x3c0] sm:$0xff]
          %v10357 = vld [vmem:[%s495 + $0x3c8] sm:$0xff]
          %v10358 = vld [vmem:[%s495 + $0x3d0] sm:$0xff]
          %v10359 = vld [vmem:[%s495 + $0x3d8] sm:$0xff]
          %v10360 = vld [vmem:[%s495 + $0x3e0] sm:$0xff]
          %v10361 = vld [vmem:[%s495 + $0x3e8] sm:$0xff]
          %v10362 = vld [vmem:[%s495 + $0x3f0] sm:$0xff]
          %v10363 = vld [vmem:[%s495 + $0x3f8] sm:$0xff]
          %v10364 = vmax.f32 %v10236, %v9971
          %v10365 = vmax.f32 %v10237, %v9972
          %v10366 = vmax.f32 %v10238, %v9973
          %v10367 = vmax.f32 %v10239, %v9974
          %v10368 = vmax.f32 %v10240, %v9975
          %v10369 = vmax.f32 %v10241, %v9976
          %v10370 = vmax.f32 %v10242, %v9977
          %v10371 = vmax.f32 %v10243, %v9978
          %v10372 = vmax.f32 %v10244, %v9979
          %v10373 = vmax.f32 %v10245, %v9980
          %v10374 = vmax.f32 %v10246, %v9981
          %v10375 = vmax.f32 %v10247, %v9982
          %v10376 = vmax.f32 %v10248, %v9983
          %v10377 = vmax.f32 %v10249, %v9984
          %v10378 = vmax.f32 %v10250, %v9985
          %v10379 = vmax.f32 %v10251, %v9986
          %v10380 = vmax.f32 %v10252, %v9987
          %v10381 = vmax.f32 %v10253, %v9988
          %v10382 = vmax.f32 %v10254, %v9989
          %v10383 = vmax.f32 %v10255, %v9990
          %v10384 = vmax.f32 %v10256, %v9991
          %v10385 = vmax.f32 %v10257, %v9992
          %v10386 = vmax.f32 %v10258, %v9993
          %v10387 = vmax.f32 %v10259, %v9994
          %v10388 = vmax.f32 %v10260, %v9995
          %v10389 = vmax.f32 %v10261, %v9996
          %v10390 = vmax.f32 %v10262, %v9997
          %v10391 = vmax.f32 %v10263, %v9998
          %v10392 = vmax.f32 %v10264, %v9999
          %v10393 = vmax.f32 %v10265, %v10000
          %v10394 = vmax.f32 %v10266, %v10001
          %v10395 = vmax.f32 %v10267, %v10002
          %v10396 = vmax.f32 %v10268, %v10003
          %v10397 = vmax.f32 %v10269, %v10004
          %v10398 = vmax.f32 %v10270, %v10005
          %v10399 = vmax.f32 %v10271, %v10006
          %v10400 = vmax.f32 %v10272, %v10007
          %v10401 = vmax.f32 %v10273, %v10008
          %v10402 = vmax.f32 %v10274, %v10009
          %v10403 = vmax.f32 %v10275, %v10010
          %v10404 = vmax.f32 %v10276, %v10011
          %v10405 = vmax.f32 %v10277, %v10012
          %v10406 = vmax.f32 %v10278, %v10013
          %v10407 = vmax.f32 %v10279, %v10014
          %v10408 = vmax.f32 %v10280, %v10015
          %v10409 = vmax.f32 %v10281, %v10016
          %v10410 = vmax.f32 %v10282, %v10017
          %v10411 = vmax.f32 %v10283, %v10018
          %v10412 = vmax.f32 %v10284, %v10019
          %v10413 = vmax.f32 %v10285, %v10020
          %v10414 = vmax.f32 %v10286, %v10021
          %v10415 = vmax.f32 %v10287, %v10022
          %v10416 = vmax.f32 %v10288, %v10023
          %v10417 = vmax.f32 %v10289, %v10024
          %v10418 = vmax.f32 %v10290, %v10025
          %v10419 = vmax.f32 %v10291, %v10026
          %v10420 = vmax.f32 %v10292, %v10027
          %v10421 = vmax.f32 %v10293, %v10028
          %v10422 = vmax.f32 %v10294, %v10029
          %v10423 = vmax.f32 %v10295, %v10030
          %v10424 = vmax.f32 %v10296, %v10031
          %v10425 = vmax.f32 %v10297, %v10032
          %v10426 = vmax.f32 %v10298, %v10033
          %v10427 = vmax.f32 %v10299, %v10034
          %v10428 = vmax.f32 %v10300, %v10035
          %v10429 = vmax.f32 %v10301, %v10036
          %v10430 = vmax.f32 %v10302, %v10037
          %v10431 = vmax.f32 %v10303, %v10038
          %v10432 = vmax.f32 %v10304, %v10039
          %v10433 = vmax.f32 %v10305, %v10040
          %v10434 = vmax.f32 %v10306, %v10041
          %v10435 = vmax.f32 %v10307, %v10042
          %v10436 = vmax.f32 %v10308, %v10043
          %v10437 = vmax.f32 %v10309, %v10044
          %v10438 = vmax.f32 %v10310, %v10045
          %v10439 = vmax.f32 %v10311, %v10046
          %v10440 = vmax.f32 %v10312, %v10047
          %v10441 = vmax.f32 %v10313, %v10048
          %v10442 = vmax.f32 %v10314, %v10049
          %v10443 = vmax.f32 %v10315, %v10050
          %v10444 = vmax.f32 %v10316, %v10051
          %v10445 = vmax.f32 %v10317, %v10052
          %v10446 = vmax.f32 %v10318, %v10053
          %v10447 = vmax.f32 %v10319, %v10054
          %v10448 = vmax.f32 %v10320, %v10055
          %v10449 = vmax.f32 %v10321, %v10056
          %v10450 = vmax.f32 %v10322, %v10057
          %v10451 = vmax.f32 %v10323, %v10058
          %v10452 = vmax.f32 %v10324, %v10059
          %v10453 = vmax.f32 %v10325, %v10060
          %v10454 = vmax.f32 %v10326, %v10061
          %v10455 = vmax.f32 %v10327, %v10062
          %v10456 = vmax.f32 %v10328, %v10063
          %v10457 = vmax.f32 %v10329, %v10064
          %v10458 = vmax.f32 %v10330, %v10065
          %v10459 = vmax.f32 %v10331, %v10066
          %v10460 = vmax.f32 %v10332, %v10067
          %v10461 = vmax.f32 %v10333, %v10068
          %v10462 = vmax.f32 %v10334, %v10069
          %v10463 = vmax.f32 %v10335, %v10070
          %v10464 = vmax.f32 %v10336, %v10071
          %v10465 = vmax.f32 %v10337, %v10072
          %v10466 = vmax.f32 %v10338, %v10073
          %v10467 = vmax.f32 %v10339, %v10074
          %v10468 = vmax.f32 %v10340, %v10075
          %v10469 = vmax.f32 %v10341, %v10076
          %v10470 = vmax.f32 %v10342, %v10077
          %v10471 = vmax.f32 %v10343, %v10078
          %v10472 = vmax.f32 %v10344, %v10079
          %v10473 = vmax.f32 %v10345, %v10080
          %v10474 = vmax.f32 %v10346, %v10081
          %v10475 = vmax.f32 %v10347, %v10082
          %v10476 = vmax.f32 %v10348, %v10083
          %v10477 = vmax.f32 %v10349, %v10084
          %v10478 = vmax.f32 %v10350, %v10085
          %v10479 = vmax.f32 %v10351, %v10086
          %v10480 = vmax.f32 %v10352, %v10087
          %v10481 = vmax.f32 %v10353, %v10088
          %v10482 = vmax.f32 %v10354, %v10089
          %v10483 = vmax.f32 %v10355, %v10090
          %v10484 = vmax.f32 %v10356, %v10091
          %v10485 = vmax.f32 %v10357, %v10092
          %v10486 = vmax.f32 %v10358, %v10093
          %v10487 = vmax.f32 %v10359, %v10094
          %v10488 = vmax.f32 %v10360, %v10095
          %v10489 = vmax.f32 %v10361, %v10096
          %v10490 = vmax.f32 %v10362, %v10097
          %v10491 = vmax.f32 %v10363, %v10098
          %vm10492 = vcmask 7168
          %10493 = vst.msk [vmem:[%s495] sm:$0xff] %vm10492, %v10364
          %10494 = vst.msk [vmem:[%s495 + $0x8] sm:$0xff] %vm10492, %v10365
          %10495 = vst.msk [vmem:[%s495 + $0x10] sm:$0xff] %vm10492, %v10366
          %10496 = vst.msk [vmem:[%s495 + $0x18] sm:$0xff] %vm10492, %v10367
          %10497 = vst.msk [vmem:[%s495 + $0x20] sm:$0xff] %vm10492, %v10368
          %10498 = vst.msk [vmem:[%s495 + $0x28] sm:$0xff] %vm10492, %v10369
          %10499 = vst.msk [vmem:[%s495 + $0x30] sm:$0xff] %vm10492, %v10370
          %10500 = vst.msk [vmem:[%s495 + $0x38] sm:$0xff] %vm10492, %v10371
          %10501 = vst.msk [vmem:[%s495 + $0x40] sm:$0xff] %vm10492, %v10372
          %10502 = vst.msk [vmem:[%s495 + $0x48] sm:$0xff] %vm10492, %v10373
          %10503 = vst.msk [vmem:[%s495 + $0x50] sm:$0xff] %vm10492, %v10374
          %10504 = vst.msk [vmem:[%s495 + $0x58] sm:$0xff] %vm10492, %v10375
          %10505 = vst.msk [vmem:[%s495 + $0x60] sm:$0xff] %vm10492, %v10376
          %10506 = vst.msk [vmem:[%s495 + $0x68] sm:$0xff] %vm10492, %v10377
          %10507 = vst.msk [vmem:[%s495 + $0x70] sm:$0xff] %vm10492, %v10378
          %10508 = vst.msk [vmem:[%s495 + $0x78] sm:$0xff] %vm10492, %v10379
          %10509 = vst.msk [vmem:[%s495 + $0x80] sm:$0xff] %vm10492, %v10380
          %10510 = vst.msk [vmem:[%s495 + $0x88] sm:$0xff] %vm10492, %v10381
          %10511 = vst.msk [vmem:[%s495 + $0x90] sm:$0xff] %vm10492, %v10382
          %10512 = vst.msk [vmem:[%s495 + $0x98] sm:$0xff] %vm10492, %v10383
          %10513 = vst.msk [vmem:[%s495 + $0xa0] sm:$0xff] %vm10492, %v10384
          %10514 = vst.msk [vmem:[%s495 + $0xa8] sm:$0xff] %vm10492, %v10385
          %10515 = vst.msk [vmem:[%s495 + $0xb0] sm:$0xff] %vm10492, %v10386
          %10516 = vst.msk [vmem:[%s495 + $0xb8] sm:$0xff] %vm10492, %v10387
          %10517 = vst.msk [vmem:[%s495 + $0xc0] sm:$0xff] %vm10492, %v10388
          %10518 = vst.msk [vmem:[%s495 + $0xc8] sm:$0xff] %vm10492, %v10389
          %10519 = vst.msk [vmem:[%s495 + $0xd0] sm:$0xff] %vm10492, %v10390
          %10520 = vst.msk [vmem:[%s495 + $0xd8] sm:$0xff] %vm10492, %v10391
          %10521 = vst.msk [vmem:[%s495 + $0xe0] sm:$0xff] %vm10492, %v10392
          %10522 = vst.msk [vmem:[%s495 + $0xe8] sm:$0xff] %vm10492, %v10393
          %10523 = vst.msk [vmem:[%s495 + $0xf0] sm:$0xff] %vm10492, %v10394
          %10524 = vst.msk [vmem:[%s495 + $0xf8] sm:$0xff] %vm10492, %v10395
          %10525 = vst.msk [vmem:[%s495 + $0x100] sm:$0xff] %vm10492, %v10396
          %10526 = vst.msk [vmem:[%s495 + $0x108] sm:$0xff] %vm10492, %v10397
          %10527 = vst.msk [vmem:[%s495 + $0x110] sm:$0xff] %vm10492, %v10398
          %10528 = vst.msk [vmem:[%s495 + $0x118] sm:$0xff] %vm10492, %v10399
          %10529 = vst.msk [vmem:[%s495 + $0x120] sm:$0xff] %vm10492, %v10400
          %10530 = vst.msk [vmem:[%s495 + $0x128] sm:$0xff] %vm10492, %v10401
          %10531 = vst.msk [vmem:[%s495 + $0x130] sm:$0xff] %vm10492, %v10402
          %10532 = vst.msk [vmem:[%s495 + $0x138] sm:$0xff] %vm10492, %v10403
          %10533 = vst.msk [vmem:[%s495 + $0x140] sm:$0xff] %vm10492, %v10404
          %10534 = vst.msk [vmem:[%s495 + $0x148] sm:$0xff] %vm10492, %v10405
          %10535 = vst.msk [vmem:[%s495 + $0x150] sm:$0xff] %vm10492, %v10406
          %10536 = vst.msk [vmem:[%s495 + $0x158] sm:$0xff] %vm10492, %v10407
          %10537 = vst.msk [vmem:[%s495 + $0x160] sm:$0xff] %vm10492, %v10408
          %10538 = vst.msk [vmem:[%s495 + $0x168] sm:$0xff] %vm10492, %v10409
          %10539 = vst.msk [vmem:[%s495 + $0x170] sm:$0xff] %vm10492, %v10410
          %10540 = vst.msk [vmem:[%s495 + $0x178] sm:$0xff] %vm10492, %v10411
          %10541 = vst.msk [vmem:[%s495 + $0x180] sm:$0xff] %vm10492, %v10412
          %10542 = vst.msk [vmem:[%s495 + $0x188] sm:$0xff] %vm10492, %v10413
          %10543 = vst.msk [vmem:[%s495 + $0x190] sm:$0xff] %vm10492, %v10414
          %10544 = vst.msk [vmem:[%s495 + $0x198] sm:$0xff] %vm10492, %v10415
          %10545 = vst.msk [vmem:[%s495 + $0x1a0] sm:$0xff] %vm10492, %v10416
          %10546 = vst.msk [vmem:[%s495 + $0x1a8] sm:$0xff] %vm10492, %v10417
          %10547 = vst.msk [vmem:[%s495 + $0x1b0] sm:$0xff] %vm10492, %v10418
          %10548 = vst.msk [vmem:[%s495 + $0x1b8] sm:$0xff] %vm10492, %v10419
          %10549 = vst.msk [vmem:[%s495 + $0x1c0] sm:$0xff] %vm10492, %v10420
          %10550 = vst.msk [vmem:[%s495 + $0x1c8] sm:$0xff] %vm10492, %v10421
          %10551 = vst.msk [vmem:[%s495 + $0x1d0] sm:$0xff] %vm10492, %v10422
          %10552 = vst.msk [vmem:[%s495 + $0x1d8] sm:$0xff] %vm10492, %v10423
          %10553 = vst.msk [vmem:[%s495 + $0x1e0] sm:$0xff] %vm10492, %v10424
          %10554 = vst.msk [vmem:[%s495 + $0x1e8] sm:$0xff] %vm10492, %v10425
          %10555 = vst.msk [vmem:[%s495 + $0x1f0] sm:$0xff] %vm10492, %v10426
          %10556 = vst.msk [vmem:[%s495 + $0x1f8] sm:$0xff] %vm10492, %v10427
          %10557 = vst.msk [vmem:[%s495 + $0x200] sm:$0xff] %vm10492, %v10428
          %10558 = vst.msk [vmem:[%s495 + $0x208] sm:$0xff] %vm10492, %v10429
          %10559 = vst.msk [vmem:[%s495 + $0x210] sm:$0xff] %vm10492, %v10430
          %10560 = vst.msk [vmem:[%s495 + $0x218] sm:$0xff] %vm10492, %v10431
          %10561 = vst.msk [vmem:[%s495 + $0x220] sm:$0xff] %vm10492, %v10432
          %10562 = vst.msk [vmem:[%s495 + $0x228] sm:$0xff] %vm10492, %v10433
          %10563 = vst.msk [vmem:[%s495 + $0x230] sm:$0xff] %vm10492, %v10434
          %10564 = vst.msk [vmem:[%s495 + $0x238] sm:$0xff] %vm10492, %v10435
          %10565 = vst.msk [vmem:[%s495 + $0x240] sm:$0xff] %vm10492, %v10436
          %10566 = vst.msk [vmem:[%s495 + $0x248] sm:$0xff] %vm10492, %v10437
          %10567 = vst.msk [vmem:[%s495 + $0x250] sm:$0xff] %vm10492, %v10438
          %10568 = vst.msk [vmem:[%s495 + $0x258] sm:$0xff] %vm10492, %v10439
          %10569 = vst.msk [vmem:[%s495 + $0x260] sm:$0xff] %vm10492, %v10440
          %10570 = vst.msk [vmem:[%s495 + $0x268] sm:$0xff] %vm10492, %v10441
          %10571 = vst.msk [vmem:[%s495 + $0x270] sm:$0xff] %vm10492, %v10442
          %10572 = vst.msk [vmem:[%s495 + $0x278] sm:$0xff] %vm10492, %v10443
          %10573 = vst.msk [vmem:[%s495 + $0x280] sm:$0xff] %vm10492, %v10444
          %10574 = vst.msk [vmem:[%s495 + $0x288] sm:$0xff] %vm10492, %v10445
          %10575 = vst.msk [vmem:[%s495 + $0x290] sm:$0xff] %vm10492, %v10446
          %10576 = vst.msk [vmem:[%s495 + $0x298] sm:$0xff] %vm10492, %v10447
          %10577 = vst.msk [vmem:[%s495 + $0x2a0] sm:$0xff] %vm10492, %v10448
          %10578 = vst.msk [vmem:[%s495 + $0x2a8] sm:$0xff] %vm10492, %v10449
          %10579 = vst.msk [vmem:[%s495 + $0x2b0] sm:$0xff] %vm10492, %v10450
          %10580 = vst.msk [vmem:[%s495 + $0x2b8] sm:$0xff] %vm10492, %v10451
          %10581 = vst.msk [vmem:[%s495 + $0x2c0] sm:$0xff] %vm10492, %v10452
          %10582 = vst.msk [vmem:[%s495 + $0x2c8] sm:$0xff] %vm10492, %v10453
          %10583 = vst.msk [vmem:[%s495 + $0x2d0] sm:$0xff] %vm10492, %v10454
          %10584 = vst.msk [vmem:[%s495 + $0x2d8] sm:$0xff] %vm10492, %v10455
          %10585 = vst.msk [vmem:[%s495 + $0x2e0] sm:$0xff] %vm10492, %v10456
          %10586 = vst.msk [vmem:[%s495 + $0x2e8] sm:$0xff] %vm10492, %v10457
          %10587 = vst.msk [vmem:[%s495 + $0x2f0] sm:$0xff] %vm10492, %v10458
          %10588 = vst.msk [vmem:[%s495 + $0x2f8] sm:$0xff] %vm10492, %v10459
          %10589 = vst.msk [vmem:[%s495 + $0x300] sm:$0xff] %vm10492, %v10460
          %10590 = vst.msk [vmem:[%s495 + $0x308] sm:$0xff] %vm10492, %v10461
          %10591 = vst.msk [vmem:[%s495 + $0x310] sm:$0xff] %vm10492, %v10462
          %10592 = vst.msk [vmem:[%s495 + $0x318] sm:$0xff] %vm10492, %v10463
          %10593 = vst.msk [vmem:[%s495 + $0x320] sm:$0xff] %vm10492, %v10464
          %10594 = vst.msk [vmem:[%s495 + $0x328] sm:$0xff] %vm10492, %v10465
          %10595 = vst.msk [vmem:[%s495 + $0x330] sm:$0xff] %vm10492, %v10466
          %10596 = vst.msk [vmem:[%s495 + $0x338] sm:$0xff] %vm10492, %v10467
          %10597 = vst.msk [vmem:[%s495 + $0x340] sm:$0xff] %vm10492, %v10468
          %10598 = vst.msk [vmem:[%s495 + $0x348] sm:$0xff] %vm10492, %v10469
          %10599 = vst.msk [vmem:[%s495 + $0x350] sm:$0xff] %vm10492, %v10470
          %10600 = vst.msk [vmem:[%s495 + $0x358] sm:$0xff] %vm10492, %v10471
          %10601 = vst.msk [vmem:[%s495 + $0x360] sm:$0xff] %vm10492, %v10472
          %10602 = vst.msk [vmem:[%s495 + $0x368] sm:$0xff] %vm10492, %v10473
          %10603 = vst.msk [vmem:[%s495 + $0x370] sm:$0xff] %vm10492, %v10474
          %10604 = vst.msk [vmem:[%s495 + $0x378] sm:$0xff] %vm10492, %v10475
          %10605 = vst.msk [vmem:[%s495 + $0x380] sm:$0xff] %vm10492, %v10476
          %10606 = vst.msk [vmem:[%s495 + $0x388] sm:$0xff] %vm10492, %v10477
          %10607 = vst.msk [vmem:[%s495 + $0x390] sm:$0xff] %vm10492, %v10478
          %10608 = vst.msk [vmem:[%s495 + $0x398] sm:$0xff] %vm10492, %v10479
          %10609 = vst.msk [vmem:[%s495 + $0x3a0] sm:$0xff] %vm10492, %v10480
          %10610 = vst.msk [vmem:[%s495 + $0x3a8] sm:$0xff] %vm10492, %v10481
          %10611 = vst.msk [vmem:[%s495 + $0x3b0] sm:$0xff] %vm10492, %v10482
          %10612 = vst.msk [vmem:[%s495 + $0x3b8] sm:$0xff] %vm10492, %v10483
          %10613 = vst.msk [vmem:[%s495 + $0x3c0] sm:$0xff] %vm10492, %v10484
          %10614 = vst.msk [vmem:[%s495 + $0x3c8] sm:$0xff] %vm10492, %v10485
          %10615 = vst.msk [vmem:[%s495 + $0x3d0] sm:$0xff] %vm10492, %v10486
          %10616 = vst.msk [vmem:[%s495 + $0x3d8] sm:$0xff] %vm10492, %v10487
          %10617 = vst.msk [vmem:[%s495 + $0x3e0] sm:$0xff] %vm10492, %v10488
          %10618 = vst.msk [vmem:[%s495 + $0x3e8] sm:$0xff] %vm10492, %v10489
          %10619 = vst.msk [vmem:[%s495 + $0x3f0] sm:$0xff] %vm10492, %v10490
          %10620 = vst.msk [vmem:[%s495 + $0x3f8] sm:$0xff] %vm10492, %v10491
        $region110: #{tpu_custom_call.1} parent=89 // pred_fallthru
          _
        %s10621 = sand.u32 %s260, 1
        %s10622 = scalar_lea.sflag [#allocation5], %s10621
        %s10623 = sand.u32 %s260, 1
        %s10624 = smul.addr %s10623, 1152
        %s10625 = scalar_lea.vmem [#allocation8], %s10624
        %p10626 = scmp.lt.s32.totalorder %s32, 1
        %s10627 = scalar_select %p10626, %s32, 1
        %p10628 = scmp.lt.s32.totalorder %s33, 0
        %s10629 = scalar_select %p10628, %s33, 0
        %s10630 = smul.addr %s10629, 128
        %s10631 = smul.addr %s10627, 128
        %s10632 = sadd.s32 %s10630, %s10631
        %s10633 = smul.addr %s10632, 8
        %s10634 = scalar_lea.vmem %s10, %s10633
        // Predicated region
        $region111: #{tpu_custom_call.1} parent=89 // pred_check
          %p10635 = pneg %p270
        $region112: #{tpu_custom_call.1} parent=89 // pred_check_branch
          %10637 = sbr.rel (%p10635) target = $region114
        $region113: #{tpu_custom_call.1} parent=89 // pred_region
          %s10638 = smul.u32 %s33, 2
          %s10639 = sadd.s32 %s10638, %s34
          %s10640 = smul.u32 2, %s10639
          %10642 = vsyncadd %s10622, 0
          %s10643 = smul.addr %s32, 288
          %s10644 = sadd.s32 %s10640, %s10643
          %s10645 = smul.addr %s10644, 8
          %s10646 = scalar_lea.hbm %s9, %s10645
          %s10647 = sshll.u32 %s10625, 4
          %s10648 = int_to_ptr.vmem [resolvable:$true] %s10647
          %s10649 = sshll.u32 %s10646, 4
          %s10650 = int_to_ptr.hbm [resolvable:$true] %s10649
          %10655 = dma.vmem_to_hbm [thread:$0]  %s10648, 18432, %s10650, %s10622, 256, 512, 16
        $region114: #{tpu_custom_call.1} parent=89 // pred_fallthru
          _
        // Predicated region
        $region115: #{tpu_custom_call.1} parent=89 // pred_check
          %p10656 = pneg %p298
        $region116: #{tpu_custom_call.1} parent=89 // pred_check_branch
          %10658 = sbr.rel (%p10656) target = $region118
        $region117: #{tpu_custom_call.1} parent=89 // pred_region
          _
        $region118: #{tpu_custom_call.1} parent=89 // pred_fallthru
          _
      $region90: #{tpu_custom_call.1} parent=5 // pred_fallthru
        _
      %p10659 = scmp.le.s32.totalorder 2, %s22
      // Predicated region
      $region119: #{tpu_custom_call.1} parent=5 // pred_check
        %p10660 = pneg %p10659
      $region120: #{tpu_custom_call.1} parent=5 // pred_check_branch
        %10662 = sbr.rel (%p10660) target = $region122
      $region121: #{tpu_custom_call.1} parent=5 // pred_region
        %s10663 = ssub.s32 %s22, 2
        // Predicated region
        $region123: #{tpu_custom_call.1} parent=121 // pred_check
          %p10664 = pneg %p276
        $region124: #{tpu_custom_call.1} parent=121 // pred_check_branch
          %10666 = sbr.rel (%p10664) target = $region126
        $region125: #{tpu_custom_call.1} parent=121 // pred_region
          %s10667 = sand.u32 %s261, 1
          %s10668 = scalar_lea.sflag [#allocation5], %s10667
          %s10669 = sand.u32 %s261, 1
          %s10670 = smul.addr %s10669, 1152
          %s10671 = scalar_lea.vmem [#allocation8], %s10670
          %10673 = dma.done %s10668, 18432
        $region126: #{tpu_custom_call.1} parent=121 // pred_fallthru
          _
        // Predicated region
        $region127: #{tpu_custom_call.1} parent=121 // pred_check
          %p10674 = pneg %p304
        $region128: #{tpu_custom_call.1} parent=121 // pred_check_branch
          %10676 = sbr.rel (%p10674) target = $region130
        $region129: #{tpu_custom_call.1} parent=121 // pred_region
          %p10677 = scmp.lt.s32.totalorder %s35, 1
          %s10678 = scalar_select %p10677, %s35, 1
          %p10679 = scmp.lt.s32.totalorder %s36, 0
          %s10680 = scalar_select %p10679, %s36, 0
          %s10681 = smul.addr %s10680, 128
          %s10682 = smul.addr %s10678, 128
          %s10683 = sadd.s32 %s10681, %s10682
          %s10684 = smul.addr %s10683, 8
          %s10685 = scalar_lea.vmem %s10, %s10684
        $region130: #{tpu_custom_call.1} parent=121 // pred_fallthru
          _
      $region122: #{tpu_custom_call.1} parent=5 // pred_fallthru
        _
    $region6: #{tpu_custom_call.1} parent=1 // loop_footer
      %s26 = sadd.s32 1, %s22
    $region7: #{tpu_custom_call.1} parent=1 // loop_footer_branch
      %21 = sbr.rel target = $region3
    $region8: #{tpu_custom_call.1} parent=1 // loop_exit
      _
    %10686 = vsyncpa [#allocation4], 1
    %s10687 = scalar_lea.sflag [#allocation4], 1
    %10688 = vsyncpa %s10687, 1
    %10689 = vsyncpa [#allocation7], 1
    %10690 = vsyncpa [#allocation5], 1
    %s10691 = scalar_lea.sflag [#allocation5], 1
    %10692 = vsyncpa %s10691, 1

</llo_original>
